<compile_context>
chip_gen: v6e
topology: v6e:2x2x1
jax: 0.10.0
libtpu: 0.0.40
codegen_flags: <defaults>
</compile_context>

<pallas_src>
import functools

import jax
import jax.numpy as jnp
from jax.experimental import pallas as pl
from jax.experimental.pallas import tpu as pltpu

LANE = 128


# ---------------------------------------------------------------------------
# helpers
# ---------------------------------------------------------------------------
def _round_up(x, m):
    return (x + m - 1) // m * m


def _pick_tile_h(ho, target=16):
    """Largest multiple-of-8 divisor of ho that is <= target (else full ho)."""
    if ho % 8 != 0:
        return ho
    t = min(target, ho)
    t -= t % 8
    t = max(t, 8)
    while ho % t != 0:
        t -= 8
    return t


def _vmem_limit_bytes(block_bytes):
    # Actual double-buffered need with headroom; clamp to fit v7x's 64 MiB.
    return int(min(max(2 * block_bytes, 16 * 2**20), 64 * 2**20))


def _prep_weights(w_hwio, bias, cin_x, mm_dtype):
    """Zero-pad input channels up to the (possibly padded) activation channel
    count and output channels up to a multiple of 128 (lane-dense stores)."""
    ci_w, co = w_hwio.shape[2], w_hwio.shape[3]
    co_p = _round_up(co, LANE)
    w = w_hwio
    if ci_w < cin_x:
        w = jnp.pad(w, ((0, 0), (0, 0), (0, cin_x - ci_w), (0, 0)))
    if co_p > co:
        w = jnp.pad(w, ((0, 0), (0, 0), (0, 0), (0, co_p - co)))
        bias = jnp.pad(bias, (0, co_p - co))
    return w.astype(mm_dtype), bias.reshape(1, co_p).astype(jnp.float32), co_p


# ---------------------------------------------------------------------------
# Kernel 1: KxK, stride 1, SAME conv (+ optional ReLU); input is already |y|.
# ---------------------------------------------------------------------------
def _conv_s1_kernel(x_ref, w_ref, b_ref, o_ref, acc_ref, *,
                    ksize, tile_h, wo, cin, cout_p, apply_relu):
    # x_ref : (1, Hp, Wp, Cin)     padded image of this batch (VMEM resident)
    # w_ref : (K, K, Cin, Cout_p)
    # b_ref : (1, Cout_p) f32
    # o_ref : (1, tile_h, Wo, Cout_p)
    # acc_ref: (tile_h*Wo, Cout_p) f32 VMEM accumulator
    row0 = pl.multiple_of(pl.program_id(1) * tile_h, tile_h)
    for kh in range(ksize):
        rows = x_ref[0, pl.ds(row0 + kh, tile_h), :, :]     # (tile_h, Wp, Cin)
        contrib = None
        for kw in range(ksize):
            lhs = rows[:, kw:kw + wo, :].reshape(tile_h * wo, cin)
            c = jnp.dot(lhs, w_ref[kh, kw],
                        preferred_element_type=jnp.float32)
            contrib = c if contrib is None else contrib + c
        if kh == 0:
            acc_ref[...] = contrib
        else:
            acc_ref[...] = acc_ref[...] + contrib
    out = acc_ref[...] + b_ref[...]
    if apply_relu:
        out = jnp.maximum(out, 0.0)
    o_ref[...] = out.reshape(1, tile_h, wo, cout_p).astype(o_ref.dtype)


def signal_conv2d_s1(x_nhwc, w_hwio, bias, *, apply_relu,
                     tile_h_target=16, mm_dtype=jnp.float32,
                     out_dtype=jnp.float32):
    b, h, w, cin = x_nhwc.shape
    k = w_hwio.shape[0]
    ho, wo = h, w                                   # SAME, stride 1
    pad = k - 1
    xp = jnp.pad(x_nhwc.astype(mm_dtype),
                 ((0, 0), (pad // 2, pad - pad // 2),
                  (pad // 2, pad - pad // 2), (0, 0)))
    hp, wp = xp.shape[1], xp.shape[2]
    w_p, bias_p, cout_p = _prep_weights(w_hwio, bias, cin, mm_dtype)
    tile_h = _pick_tile_h(ho, tile_h_target)

    kernel = functools.partial(
        _conv_s1_kernel, ksize=k, tile_h=tile_h, wo=wo, cin=cin,
        cout_p=cout_p, apply_relu=apply_relu)

    in_isz = jnp.dtype(mm_dtype).itemsize
    out_isz = jnp.dtype(out_dtype).itemsize
    block_bytes = (hp * wp * cin * in_isz + k * k * cin * cout_p * in_isz
                   + cout_p * 4 + tile_h * wo * cout_p * (out_isz + 4))
    flops = 2 * b * ho * wo * k * k * cin * cout_p
    bytes_accessed = (b * hp * wp * cin * in_isz
                      + k * k * cin * cout_p * in_isz
                      + b * ho * wo * cout_p * out_isz)

    return pl.pallas_call(
        kernel,
        out_shape=jax.ShapeDtypeStruct((b, ho, wo, cout_p), out_dtype),
        grid=(b, ho // tile_h),
        in_specs=[
            pl.BlockSpec((1, hp, wp, cin), lambda bi, hi: (bi, 0, 0, 0)),
            pl.BlockSpec((k, k, cin, cout_p), lambda bi, hi: (0, 0, 0, 0)),
            pl.BlockSpec((1, cout_p), lambda bi, hi: (0, 0)),
        ],
        out_specs=pl.BlockSpec((1, tile_h, wo, cout_p),
                               lambda bi, hi: (bi, hi, 0, 0)),
        scratch_shapes=[pltpu.VMEM((tile_h * wo, cout_p), jnp.float32)],
        compiler_params=pltpu.CompilerParams(
            dimension_semantics=("parallel", "parallel"),
            vmem_limit_bytes=_vmem_limit_bytes(block_bytes)),
        cost_estimate=pl.CostEstimate(flops=flops, transcendentals=0,
                                      bytes_accessed=bytes_accessed),
    )(xp, w_p, bias_p)


# ---------------------------------------------------------------------------
# Kernel 2: KxK, stride 2, SAME conv on space-to-depth phase planes
# ---------------------------------------------------------------------------
def _conv_s2_kernel(x00_ref, x01_ref, x10_ref, x11_ref, w_ref, b_ref, o_ref,
                    acc_ref, *, ksize, tile_h, wo, cin, cout_p):
    # x{rp}{cp}_ref : (1, Hh, Wh, Cin)  phase plane xp[:, rp::2, cp::2, :]
    # w_ref : (K, K, Cin, Cout_p); b_ref: (1, Cout_p) f32
    # o_ref : (1, tile_h, Wo, Cout_p); acc_ref: (tile_h*Wo, Cout_p) f32
    row0 = pl.multiple_of(pl.program_id(1) * tile_h, tile_h)
    planes = ((x00_ref, x01_ref), (x10_ref, x11_ref))   # indexed [row][col]
    for kh in range(ksize):
        rp, dh = kh % 2, kh // 2
        rows = (planes[rp][0][0, pl.ds(row0 + dh, tile_h), :, :],
                planes[rp][1][0, pl.ds(row0 + dh, tile_h), :, :])
        contrib = None
        for kw in range(ksize):
            cp, dw = kw % 2, kw // 2
            lhs = rows[cp][:, dw:dw + wo, :].reshape(tile_h * wo, cin)
            c = jnp.dot(lhs, w_ref[kh, kw],
                        preferred_element_type=jnp.float32)
            contrib = c if contrib is None else contrib + c
        if kh == 0:
            acc_ref[...] = contrib
        else:
            acc_ref[...] = acc_ref[...] + contrib
    out = acc_ref[...] + b_ref[...]
    o_ref[...] = out.reshape(1, tile_h, wo, cout_p).astype(o_ref.dtype)


def signal_conv2d_s2(x_nhwc, w_hwio, bias, *, tile_h_target=16,
                     mm_dtype=jnp.float32, out_dtype=jnp.float32):
    b, h, w, cin = x_nhwc.shape
    k = w_hwio.shape[0]
    stride = 2
    ho = -(-h // stride)
    wo = -(-w // stride)
    # TF-style SAME padding for stride 2 (extra pad on bottom/right).
    pad_h = max((ho - 1) * stride + k - h, 0)
    pad_w = max((wo - 1) * stride + k - w, 0)
    pt, pb = pad_h // 2, pad_h - pad_h // 2
    pleft, pr = pad_w // 2, pad_w - pad_w // 2
    # Round padded dims up to even so the phase split is exact (the extra
    # zero row/col is never read by any output tap).
    pb += (h + pad_h) % 2
    pr += (w + pad_w) % 2
    xp = jnp.pad(x_nhwc.astype(mm_dtype),
                 ((0, 0), (pt, pb), (pleft, pr), (0, 0)))
    # One up-front space-to-depth relayout instead of per-tap strided gathers.
    # TODO(synk): emit these phase planes directly from conv1's stores (or fuse
    #             the two convs) to drop this extra HBM relayout pass over h.
    planes = [xp[:, rp::2, cp::2, :] for rp in (0, 1) for cp in (0, 1)]
    hh, wh = planes[0].shape[1], planes[0].shape[2]
    w_p, bias_p, cout_p = _prep_weights(w_hwio, bias, cin, mm_dtype)
    tile_h = _pick_tile_h(ho, tile_h_target)

    kernel = functools.partial(
        _conv_s2_kernel, ksize=k, tile_h=tile_h, wo=wo, cin=cin, cout_p=cout_p)

    in_isz = jnp.dtype(mm_dtype).itemsize
    out_isz = jnp.dtype(out_dtype).itemsize
    block_bytes = (4 * hh * wh * cin * in_isz + k * k * cin * cout_p * in_isz
                   + cout_p * 4 + tile_h * wo * cout_p * (out_isz + 4))
    flops = 2 * b * ho * wo * k * k * cin * cout_p
    bytes_accessed = (4 * b * hh * wh * cin * in_isz
                      + k * k * cin * cout_p * in_isz
                      + b * ho * wo * cout_p * out_isz)

    plane_spec = pl.BlockSpec((1, hh, wh, cin), lambda bi, hi: (bi, 0, 0, 0))
    return pl.pallas_call(
        kernel,
        out_shape=jax.ShapeDtypeStruct((b, ho, wo, cout_p), out_dtype),
        grid=(b, ho // tile_h),
        in_specs=[plane_spec, plane_spec, plane_spec, plane_spec,
                  pl.BlockSpec((k, k, cin, cout_p),
                               lambda bi, hi: (0, 0, 0, 0)),
                  pl.BlockSpec((1, cout_p), lambda bi, hi: (0, 0))],
        out_specs=pl.BlockSpec((1, tile_h, wo, cout_p),
                               lambda bi, hi: (bi, hi, 0, 0)),
        scratch_shapes=[pltpu.VMEM((tile_h * wo, cout_p), jnp.float32)],
        compiler_params=pltpu.CompilerParams(
            dimension_semantics=("parallel", "parallel"),
            vmem_limit_bytes=_vmem_limit_bytes(block_bytes)),
        cost_estimate=pl.CostEstimate(flops=flops, transcendentals=0,
                                      bytes_accessed=bytes_accessed),
    )(*planes, w_p, bias_p)


# ---------------------------------------------------------------------------
# HyperAnalysisTransform
# ---------------------------------------------------------------------------
def init_hyper_analysis_params(key, n_ch, m_ch):
    k1, k2, k3, k4 = jax.random.split(key, 4)
    # weights stored HWIO (torch OIHW transposed to (2, 3, 1, 0))
    w1 = 0.1 * jax.random.normal(k1, (3, 3, n_ch, m_ch), jnp.float32)
    b1 = 0.1 * jax.random.normal(k2, (m_ch,), jnp.float32)
    w2 = 0.1 * jax.random.normal(k3, (5, 5, m_ch, m_ch), jnp.float32)
    b2 = 0.1 * jax.random.normal(k4, (m_ch,), jnp.float32)
    return {"w1": w1, "b1": b1, "w2": w2, "b2": b2}


def hyper_analysis_transform(params, y_nchw, *, matmul_dtype=jnp.float32):
    """y: (B, N, H, W) NCHW -> z: (B, M, ceil(H/2), ceil(W/2)) NCHW.

    matmul_dtype=jnp.bfloat16 halves image/weight/h DMA bytes and rides the
    bf16 MXU (f32 accumulation kept); the f32 default matches the PyTorch
    module's numerics.  Note: MXU matmuls run default (reduced) precision for
    f32 operands, hence the 5e-2 self-test tolerance below.
    """
    m_true = params["w2"].shape[3]
    # |y| fuses into the NCHW->NHWC relayout pass (free) — the kernels never
    # recompute abs per tap row.
    x = jnp.transpose(jnp.abs(y_nchw), (0, 2, 3, 1)).astype(matmul_dtype)
    # Conv1 emits lane-padded channels (exact zeros in the pad: zero weights,
    # zero bias, ReLU), which conv2 consumes directly with zero-padded
    # input-channel weights — no intermediate slicing.
    h = signal_conv2d_s1(x, params["w1"], params["b1"], apply_relu=True,
                         mm_dtype=matmul_dtype, out_dtype=matmul_dtype)
    z_pad = signal_conv2d_s2(h, params["w2"], params["b2"],
                             mm_dtype=matmul_dtype, out_dtype=jnp.float32)
    z = z_pad[..., :m_true]
    return jnp.transpose(z, (0, 3, 1, 2))                   # NHWC -> NCHW


# ---------------------------------------------------------------------------
# pure-JAX reference (standard SAME conv semantics)
# ---------------------------------------------------------------------------
def _reference(params, y_nchw):
    x = jnp.transpose(jnp.abs(y_nchw), (0, 2, 3, 1))
    h = jax.lax.conv_general_dilated(
        x, params["w1"], (1, 1), "SAME",
        dimension_numbers=("NHWC", "HWIO", "NHWC"),
        precision=jax.lax.Precision.HIGHEST) + params["b1"]
    h = jnp.maximum(h, 0.0)
    z = jax.lax.conv_general_dilated(
        h, params["w2"], (2, 2), "SAME",
        dimension_numbers=("NHWC", "HWIO", "NHWC"),
        precision=jax.lax.Precision.HIGHEST) + params["b2"]
    return jnp.transpose(z, (0, 3, 1, 2))


if __name__ == "__main__":
    # Small shapes consistent with the module (N=M=8 channels instead of 192).
    B, N, M, H, W = 2, 8, 8, 32, 32
    key = jax.random.PRNGKey(0)
    k_in, k_par = jax.random.split(key)

    y = jax.random.normal(k_in, (B, N, H, W), jnp.float32)   # NCHW like torch
    params = init_hyper_analysis_params(k_par, N, M)

    out = jax.block_until_ready(hyper_analysis_transform(params, y))
    assert out.shape == (B, M, H // 2, W // 2), out.shape

    ref = _reference(params, y)
    err = float(jnp.max(jnp.abs(out - ref)))
    assert err < 5e-2, f"max abs err vs reference: {err}"

    print("KERNEL_OK")
</pallas_src>

<mosaic_0001>
module attributes {stable_mosaic.version = 11 : i64} {
  func.func @_conv_s1_kernel(%arg0: i32, %arg1: i32, %arg2: memref<1x34x34x8xf32, #tpu.memory_space<vmem>>, %arg3: memref<3x3x8x128xf32, #tpu.memory_space<vmem>>, %arg4: memref<1x128xf32, #tpu.memory_space<vmem>>, %arg5: memref<1x16x32x128xf32, #tpu.memory_space<vmem>>, %arg6: memref<512x128xf32, #tpu.memory_space<vmem>>) attributes {dimension_semantics = [#tpu.dimension_semantics<parallel>, #tpu.dimension_semantics<parallel>], iteration_bounds = array<i64: 2, 2>, scalar_prefetch = 0 : i64, scratch_operands = 1 : i64, tpu.core_type = #tpu.core_type<tc>, window_params = [{transform_indices = @transform_0, window_bounds = array<i64: 1, 34, 34, 8>}, {pipeline_mode = #tpu.pipeline_mode<synchronous>, transform_indices = @transform_1, window_bounds = array<i64: 3, 3, 8, 128>}, {pipeline_mode = #tpu.pipeline_mode<synchronous>, transform_indices = @transform_2, window_bounds = array<i64: 1, 128>}, {transform_indices = @transform_3, window_bounds = array<i64: 1, 16, 32, 128>}]} {
    %c16_i32 = arith.constant 16 : i32
    %0 = arith.muli %arg1, %c16_i32 : i32
    %1 = tpu.assume_multiple %0, 16 : i32
    %c0_i32 = arith.constant 0 : i32
    %2 = arith.addi %1, %c0_i32 : i32
    %c0 = arith.constant 0 : index
    %3 = arith.index_cast %2 : i32 to index
    %c0_0 = arith.constant 0 : index
    %c0_1 = arith.constant 0 : index
    %4 = vector.load %arg2[%c0, %3, %c0_0, %c0_1] : memref<1x34x34x8xf32, #tpu.memory_space<vmem>>, vector<1x16x34x8xf32>
    %5 = vector.shape_cast %4 : vector<1x16x34x8xf32> to vector<16x34x8xf32>
    %6 = vector.extract_strided_slice %5 {offsets = [0, 0, 0], sizes = [16, 32, 8], strides = [1, 1, 1]} : vector<16x34x8xf32> to vector<16x32x8xf32>
    %7 = vector.shape_cast %6 : vector<16x32x8xf32> to vector<512x8xf32>
    %c0_2 = arith.constant 0 : index
    %c0_3 = arith.constant 0 : index
    %c0_4 = arith.constant 0 : index
    %c0_5 = arith.constant 0 : index
    %8 = vector.load %arg3[%c0_2, %c0_3, %c0_4, %c0_5] : memref<3x3x8x128xf32, #tpu.memory_space<vmem>>, vector<1x1x8x128xf32>
    %9 = vector.shape_cast %8 : vector<1x1x8x128xf32> to vector<8x128xf32>
    %cst = arith.constant dense<0.000000e+00> : vector<512x128xf32>
    %10 = tpu.matmul %7, %9, %cst {dimension_numbers = #tpu.dot_dimension_numbers<[1], [0], [0], [1], [0, 0, 1, 1], [], []>} : vector<512x8xf32>, vector<8x128xf32>, vector<512x128xf32> -> vector<512x128xf32>
    %11 = vector.extract_strided_slice %5 {offsets = [0, 1, 0], sizes = [16, 32, 8], strides = [1, 1, 1]} : vector<16x34x8xf32> to vector<16x32x8xf32>
    %12 = vector.shape_cast %11 : vector<16x32x8xf32> to vector<512x8xf32>
    %c0_6 = arith.constant 0 : index
    %c1 = arith.constant 1 : index
    %c0_7 = arith.constant 0 : index
    %c0_8 = arith.constant 0 : index
    %13 = vector.load %arg3[%c0_6, %c1, %c0_7, %c0_8] : memref<3x3x8x128xf32, #tpu.memory_space<vmem>>, vector<1x1x8x128xf32>
    %14 = vector.shape_cast %13 : vector<1x1x8x128xf32> to vector<8x128xf32>
    %cst_9 = arith.constant dense<0.000000e+00> : vector<512x128xf32>
    %15 = tpu.matmul %12, %14, %cst_9 {dimension_numbers = #tpu.dot_dimension_numbers<[1], [0], [0], [1], [0, 0, 1, 1], [], []>} : vector<512x8xf32>, vector<8x128xf32>, vector<512x128xf32> -> vector<512x128xf32>
    %16 = arith.addf %10, %15 : vector<512x128xf32>
    %17 = vector.extract_strided_slice %5 {offsets = [0, 2, 0], sizes = [16, 32, 8], strides = [1, 1, 1]} : vector<16x34x8xf32> to vector<16x32x8xf32>
    %18 = vector.shape_cast %17 : vector<16x32x8xf32> to vector<512x8xf32>
    %c0_10 = arith.constant 0 : index
    %c2 = arith.constant 2 : index
    %c0_11 = arith.constant 0 : index
    %c0_12 = arith.constant 0 : index
    %19 = vector.load %arg3[%c0_10, %c2, %c0_11, %c0_12] : memref<3x3x8x128xf32, #tpu.memory_space<vmem>>, vector<1x1x8x128xf32>
    %20 = vector.shape_cast %19 : vector<1x1x8x128xf32> to vector<8x128xf32>
    %cst_13 = arith.constant dense<0.000000e+00> : vector<512x128xf32>
    %21 = tpu.matmul %18, %20, %cst_13 {dimension_numbers = #tpu.dot_dimension_numbers<[1], [0], [0], [1], [0, 0, 1, 1], [], []>} : vector<512x8xf32>, vector<8x128xf32>, vector<512x128xf32> -> vector<512x128xf32>
    %22 = arith.addf %16, %21 : vector<512x128xf32>
    %c0_14 = arith.constant 0 : index
    %c0_15 = arith.constant 0 : index
    %23 = vector.load %arg6[%c0_14, %c0_15] : memref<512x128xf32, #tpu.memory_space<vmem>>, vector<512x128xf32>
    tpu.vector_store %arg6[%c0_14, %c0_15], %22 {strides = array<i32>} : memref<512x128xf32, #tpu.memory_space<vmem>>, vector<512x128xf32>,
    %c1_i32 = arith.constant 1 : i32
    %24 = arith.addi %1, %c1_i32 : i32
    %c0_16 = arith.constant 0 : index
    %25 = arith.index_cast %24 : i32 to index
    %c0_17 = arith.constant 0 : index
    %c0_18 = arith.constant 0 : index
    %26 = vector.load %arg2[%c0_16, %25, %c0_17, %c0_18] : memref<1x34x34x8xf32, #tpu.memory_space<vmem>>, vector<1x16x34x8xf32>
    %27 = vector.shape_cast %26 : vector<1x16x34x8xf32> to vector<16x34x8xf32>
    %28 = vector.extract_strided_slice %27 {offsets = [0, 0, 0], sizes = [16, 32, 8], strides = [1, 1, 1]} : vector<16x34x8xf32> to vector<16x32x8xf32>
    %29 = vector.shape_cast %28 : vector<16x32x8xf32> to vector<512x8xf32>
    %c1_19 = arith.constant 1 : index
    %c0_20 = arith.constant 0 : index
    %c0_21 = arith.constant 0 : index
    %c0_22 = arith.constant 0 : index
    %30 = vector.load %arg3[%c1_19, %c0_20, %c0_21, %c0_22] : memref<3x3x8x128xf32, #tpu.memory_space<vmem>>, vector<1x1x8x128xf32>
    %31 = vector.shape_cast %30 : vector<1x1x8x128xf32> to vector<8x128xf32>
    %cst_23 = arith.constant dense<0.000000e+00> : vector<512x128xf32>
    %32 = tpu.matmul %29, %31, %cst_23 {dimension_numbers = #tpu.dot_dimension_numbers<[1], [0], [0], [1], [0, 0, 1, 1], [], []>} : vector<512x8xf32>, vector<8x128xf32>, vector<512x128xf32> -> vector<512x128xf32>
    %33 = vector.extract_strided_slice %27 {offsets = [0, 1, 0], sizes = [16, 32, 8], strides = [1, 1, 1]} : vector<16x34x8xf32> to vector<16x32x8xf32>
    %34 = vector.shape_cast %33 : vector<16x32x8xf32> to vector<512x8xf32>
    %c1_24 = arith.constant 1 : index
    %c1_25 = arith.constant 1 : index
    %c0_26 = arith.constant 0 : index
    %c0_27 = arith.constant 0 : index
    %35 = vector.load %arg3[%c1_24, %c1_25, %c0_26, %c0_27] : memref<3x3x8x128xf32, #tpu.memory_space<vmem>>, vector<1x1x8x128xf32>
    %36 = vector.shape_cast %35 : vector<1x1x8x128xf32> to vector<8x128xf32>
    %cst_28 = arith.constant dense<0.000000e+00> : vector<512x128xf32>
    %37 = tpu.matmul %34, %36, %cst_28 {dimension_numbers = #tpu.dot_dimension_numbers<[1], [0], [0], [1], [0, 0, 1, 1], [], []>} : vector<512x8xf32>, vector<8x128xf32>, vector<512x128xf32> -> vector<512x128xf32>
    %38 = arith.addf %32, %37 : vector<512x128xf32>
    %39 = vector.extract_strided_slice %27 {offsets = [0, 2, 0], sizes = [16, 32, 8], strides = [1, 1, 1]} : vector<16x34x8xf32> to vector<16x32x8xf32>
    %40 = vector.shape_cast %39 : vector<16x32x8xf32> to vector<512x8xf32>
    %c1_29 = arith.constant 1 : index
    %c2_30 = arith.constant 2 : index
    %c0_31 = arith.constant 0 : index
    %c0_32 = arith.constant 0 : index
    %41 = vector.load %arg3[%c1_29, %c2_30, %c0_31, %c0_32] : memref<3x3x8x128xf32, #tpu.memory_space<vmem>>, vector<1x1x8x128xf32>
    %42 = vector.shape_cast %41 : vector<1x1x8x128xf32> to vector<8x128xf32>
    %cst_33 = arith.constant dense<0.000000e+00> : vector<512x128xf32>
    %43 = tpu.matmul %40, %42, %cst_33 {dimension_numbers = #tpu.dot_dimension_numbers<[1], [0], [0], [1], [0, 0, 1, 1], [], []>} : vector<512x8xf32>, vector<8x128xf32>, vector<512x128xf32> -> vector<512x128xf32>
    %44 = arith.addf %38, %43 : vector<512x128xf32>
    %c0_34 = arith.constant 0 : index
    %c0_35 = arith.constant 0 : index
    %45 = vector.load %arg6[%c0_34, %c0_35] : memref<512x128xf32, #tpu.memory_space<vmem>>, vector<512x128xf32>
    %46 = arith.addf %45, %44 : vector<512x128xf32>
    %c0_36 = arith.constant 0 : index
    %c0_37 = arith.constant 0 : index
    %47 = vector.load %arg6[%c0_36, %c0_37] : memref<512x128xf32, #tpu.memory_space<vmem>>, vector<512x128xf32>
    tpu.vector_store %arg6[%c0_36, %c0_37], %46 {strides = array<i32>} : memref<512x128xf32, #tpu.memory_space<vmem>>, vector<512x128xf32>,
    %c2_i32 = arith.constant 2 : i32
    %48 = arith.addi %1, %c2_i32 : i32
    %c0_38 = arith.constant 0 : index
    %49 = arith.index_cast %48 : i32 to index
    %c0_39 = arith.constant 0 : index
    %c0_40 = arith.constant 0 : index
    %50 = vector.load %arg2[%c0_38, %49, %c0_39, %c0_40] : memref<1x34x34x8xf32, #tpu.memory_space<vmem>>, vector<1x16x34x8xf32>
    %51 = vector.shape_cast %50 : vector<1x16x34x8xf32> to vector<16x34x8xf32>
    %52 = vector.extract_strided_slice %51 {offsets = [0, 0, 0], sizes = [16, 32, 8], strides = [1, 1, 1]} : vector<16x34x8xf32> to vector<16x32x8xf32>
    %53 = vector.shape_cast %52 : vector<16x32x8xf32> to vector<512x8xf32>
    %c2_41 = arith.constant 2 : index
    %c0_42 = arith.constant 0 : index
    %c0_43 = arith.constant 0 : index
    %c0_44 = arith.constant 0 : index
    %54 = vector.load %arg3[%c2_41, %c0_42, %c0_43, %c0_44] : memref<3x3x8x128xf32, #tpu.memory_space<vmem>>, vector<1x1x8x128xf32>
    %55 = vector.shape_cast %54 : vector<1x1x8x128xf32> to vector<8x128xf32>
    %cst_45 = arith.constant dense<0.000000e+00> : vector<512x128xf32>
    %56 = tpu.matmul %53, %55, %cst_45 {dimension_numbers = #tpu.dot_dimension_numbers<[1], [0], [0], [1], [0, 0, 1, 1], [], []>} : vector<512x8xf32>, vector<8x128xf32>, vector<512x128xf32> -> vector<512x128xf32>
    %57 = vector.extract_strided_slice %51 {offsets = [0, 1, 0], sizes = [16, 32, 8], strides = [1, 1, 1]} : vector<16x34x8xf32> to vector<16x32x8xf32>
    %58 = vector.shape_cast %57 : vector<16x32x8xf32> to vector<512x8xf32>
    %c2_46 = arith.constant 2 : index
    %c1_47 = arith.constant 1 : index
    %c0_48 = arith.constant 0 : index
    %c0_49 = arith.constant 0 : index
    %59 = vector.load %arg3[%c2_46, %c1_47, %c0_48, %c0_49] : memref<3x3x8x128xf32, #tpu.memory_space<vmem>>, vector<1x1x8x128xf32>
    %60 = vector.shape_cast %59 : vector<1x1x8x128xf32> to vector<8x128xf32>
    %cst_50 = arith.constant dense<0.000000e+00> : vector<512x128xf32>
    %61 = tpu.matmul %58, %60, %cst_50 {dimension_numbers = #tpu.dot_dimension_numbers<[1], [0], [0], [1], [0, 0, 1, 1], [], []>} : vector<512x8xf32>, vector<8x128xf32>, vector<512x128xf32> -> vector<512x128xf32>
    %62 = arith.addf %56, %61 : vector<512x128xf32>
    %63 = vector.extract_strided_slice %51 {offsets = [0, 2, 0], sizes = [16, 32, 8], strides = [1, 1, 1]} : vector<16x34x8xf32> to vector<16x32x8xf32>
    %64 = vector.shape_cast %63 : vector<16x32x8xf32> to vector<512x8xf32>
    %c2_51 = arith.constant 2 : index
    %c2_52 = arith.constant 2 : index
    %c0_53 = arith.constant 0 : index
    %c0_54 = arith.constant 0 : index
    %65 = vector.load %arg3[%c2_51, %c2_52, %c0_53, %c0_54] : memref<3x3x8x128xf32, #tpu.memory_space<vmem>>, vector<1x1x8x128xf32>
    %66 = vector.shape_cast %65 : vector<1x1x8x128xf32> to vector<8x128xf32>
    %cst_55 = arith.constant dense<0.000000e+00> : vector<512x128xf32>
    %67 = tpu.matmul %64, %66, %cst_55 {dimension_numbers = #tpu.dot_dimension_numbers<[1], [0], [0], [1], [0, 0, 1, 1], [], []>} : vector<512x8xf32>, vector<8x128xf32>, vector<512x128xf32> -> vector<512x128xf32>
    %68 = arith.addf %62, %67 : vector<512x128xf32>
    %c0_56 = arith.constant 0 : index
    %c0_57 = arith.constant 0 : index
    %69 = vector.load %arg6[%c0_56, %c0_57] : memref<512x128xf32, #tpu.memory_space<vmem>>, vector<512x128xf32>
    %70 = arith.addf %69, %68 : vector<512x128xf32>
    %c0_58 = arith.constant 0 : index
    %c0_59 = arith.constant 0 : index
    %71 = vector.load %arg6[%c0_58, %c0_59] : memref<512x128xf32, #tpu.memory_space<vmem>>, vector<512x128xf32>
    tpu.vector_store %arg6[%c0_58, %c0_59], %70 {strides = array<i32>} : memref<512x128xf32, #tpu.memory_space<vmem>>, vector<512x128xf32>,
    %c0_60 = arith.constant 0 : index
    %c0_61 = arith.constant 0 : index
    %72 = vector.load %arg6[%c0_60, %c0_61] : memref<512x128xf32, #tpu.memory_space<vmem>>, vector<512x128xf32>
    %c0_62 = arith.constant 0 : index
    %c0_63 = arith.constant 0 : index
    %73 = vector.load %arg4[%c0_62, %c0_63] : memref<1x128xf32, #tpu.memory_space<vmem>>, vector<1x128xf32>
    %74 = vector.broadcast %73 : vector<1x128xf32> to vector<512x128xf32>
    %75 = arith.addf %72, %74 : vector<512x128xf32>
    %cst_64 = arith.constant 0.000000e+00 : f32
    %76 = vector.broadcast %cst_64 : f32 to vector<512x128xf32>
    %77 = arith.maximumf %75, %76 : vector<512x128xf32>
    %78 = vector.shape_cast %77 : vector<512x128xf32> to vector<1x16x32x128xf32>
    %c0_65 = arith.constant 0 : index
    %c0_66 = arith.constant 0 : index
    %c0_67 = arith.constant 0 : index
    %c0_68 = arith.constant 0 : index
    %79 = vector.load %arg5[%c0_65, %c0_66, %c0_67, %c0_68] : memref<1x16x32x128xf32, #tpu.memory_space<vmem>>, vector<1x16x32x128xf32>
    tpu.vector_store %arg5[%c0_65, %c0_66, %c0_67, %c0_68], %78 {strides = array<i32>} : memref<1x16x32x128xf32, #tpu.memory_space<vmem>>, vector<1x16x32x128xf32>,
    return
  }
  func.func @transform_0(%arg0: i32, %arg1: i32) -> (i32, i32, i32, i32) {
    %c0_i32 = arith.constant 0 : i32
    %c0_i32_0 = arith.constant 0 : i32
    %c0_i32_1 = arith.constant 0 : i32
    %c0_i32_2 = arith.constant 0 : i32
    return %arg0, %c0_i32, %c0_i32_0, %c0_i32_1 : i32, i32, i32, i32
  }
  func.func @transform_1(%arg0: i32, %arg1: i32) -> (i32, i32, i32, i32) {
    %c0_i32 = arith.constant 0 : i32
    %c0_i32_0 = arith.constant 0 : i32
    %c0_i32_1 = arith.constant 0 : i32
    %c0_i32_2 = arith.constant 0 : i32
    %c0_i32_3 = arith.constant 0 : i32
    return %c0_i32, %c0_i32_0, %c0_i32_1, %c0_i32_2 : i32, i32, i32, i32
  }
  func.func @transform_2(%arg0: i32, %arg1: i32) -> (i32, i32) {
    %c0_i32 = arith.constant 0 : i32
    %c0_i32_0 = arith.constant 0 : i32
    %c0_i32_1 = arith.constant 0 : i32
    return %c0_i32, %c0_i32_0 : i32, i32
  }
  func.func @transform_3(%arg0: i32, %arg1: i32) -> (i32, i32, i32, i32) {
    %c0_i32 = arith.constant 0 : i32
    %c0_i32_0 = arith.constant 0 : i32
    %c0_i32_1 = arith.constant 0 : i32
    return %arg0, %arg1, %c0_i32, %c0_i32_0 : i32, i32, i32, i32
  }
}

</mosaic_0001>

<llo_original>
// kernel: tpu_custom_call.1
$region0: #{tpu_custom_call.1}
  #allocation0 [shape = 'u32[]', space=smem, size = 0x4, offset = 0x4, fixed_abs, tag = 'smem constant byte address 0x4 - core index']
  #allocation1 [shape = 'u32[144,128]{1,0:T(1,128)}', space=vmem, size = 0x12000, scoped, tag = 'internal scratch']
  #allocation2 [shape = 'f32[512,128]{1,0:T(8,128)}', space=vmem, size = 0x40000, scoped, tag = 'scratch operand']
  %s0 = inlined_call_operand.vmem [shape: f32[2,34,34,8], index: 0, kind: input, shape index: {}]
  %s1 = inlined_call_operand.vmem [shape: f32[3,3,8,128], index: 1, kind: input, shape index: {}]
  %s2 = inlined_call_operand.vmem [shape: f32[1,128], index: 2, kind: input, shape index: {}]
  %s3 = inlined_call_operand.hbm [shape: f32[2,32,32,128], index: 3, kind: output, shape index: {}]
  %s4 = sld [smem:[#allocation0]]
  $region45: #{tpu_custom_call.1} parent=0
    _
  %s6 = ssub.s32 1, %s4
  %s7 = scalar_select 0, %s6, %s4
  $region1: #{tpu_custom_call.1} parent=0
    #allocation3 [shape = 'u8[524288]{0}', space=vmem, size = 0x80000, scoped, tag = 'output window, operand 0']
    #allocation4 [shape = 's32[2]{0}', space=sflag, size = 0x8, scoped, tag = 'scoped memory for tpu_custom_call.1']
    %8 = vsyncpa [#allocation4], 0
    %s9 = scalar_lea.sflag [#allocation4], 1
    %10 = vsyncpa %s9, 0
    loop: start=0, step=1, limit=6
    $region2: #{tpu_custom_call.1} parent=1 // loop_pre_header
      _
    $region3: #{tpu_custom_call.1} parent=1 // loop_header
      %s12 = sphi 0, %s16
      %p13 = scmp.ge.s32.totalorder %s12, 6
      %s19 = sphi 0, %s31
      %s20 = sphi 0, %s27
      %s21 = sphi 0, %s19
      %s22 = sphi 0, %s20
      %s23 = sphi 0, %s21
      %s24 = sphi 0, %s22
      %s34 = sphi 0, %s36
      %s37 = sphi 0, %s34
      %s38 = sphi 0, %s37
      %s54 = sphi 0, %s38
      %s58 = sphi 0, %s58
      %s60 = sphi 0, %s58
      %s61 = sphi 0, %s60
      %s75 = sphi 0, %s61
      %s79 = sphi 0, %s79
      %s81 = sphi 0, %s79
      %s82 = sphi 0, %s81
      %s96 = sphi 0, %s82
      %s104 = sphi 0, %s106
      %s107 = sphi 0, %s104
      %s108 = sphi 0, %s107
      %s124 = sphi 0, %s108
    $region4: #{tpu_custom_call.1} parent=1 // loop_header_branch
      %15 = sbr.rel (%p13) target = $region8
    $region5: #{tpu_custom_call.1} parent=1 // loop_body
      %s17 = ssub.s32 %s12, 1
      %s18 = ssub.s32 %s12, 2
      %s25 = sadd.s32 1, %s20
      %p26 = scmp.ge.s32.totalorder %s25, 2
      %s27 = scalar_select %p26, 0, %s25
      %s28 = sadd.s32 1, %s19
      %s29 = scalar_select %p26, %s28, %s19
      %p30 = scmp.ge.s32.totalorder %s29, 2
      %s31 = scalar_select %p30, 0, %s29
      %s32 = ssub.s32 %s19, %s31
      %p33 = scmp.eq.s32.totalorder %s32, 0
      %s35 = sadd.s32 %s34, 1
      %s36 = scalar_select %p33, %s34, %s35
      %p39 = pneg %p33
      %p40 = scmp.eq.s32.totalorder %s12, 3
      %p41 = por %p39, %p40
      %p42 = scmp.ne.s32.totalorder %s34, %s37
      %p43 = scmp.eq.s32.totalorder %s12, 0
      %p44 = por %p42, %p43
      %p45 = scmp.ne.s32.totalorder %s34, %s37
      %p46 = scmp.eq.s32.totalorder %s17, 3
      %p47 = por %p45, %p46
      %p48 = scmp.ne.s32.totalorder %s37, %s38
      %p49 = scmp.eq.s32.totalorder %s17, 0
      %p50 = por %p48, %p49
      %p51 = scmp.ne.s32.totalorder %s37, %s38
      %p52 = scmp.eq.s32.totalorder %s18, 3
      %p53 = por %p51, %p52
      %p55 = scmp.ne.s32.totalorder %s38, %s54
      %p56 = scmp.eq.s32.totalorder %s18, 0
      %p57 = por %p55, %p56
      %s59 = sadd.s32 %s58, 1
      %p62 = scmp.eq.s32.totalorder %s12, 3
      %p63 = scmp.ne.s32.totalorder %s58, %s60
      %p64 = scmp.eq.s32.totalorder %s12, 0
      %p65 = por %p63, %p64
      %p66 = scmp.ne.s32.totalorder %s58, %s60
      %p67 = scmp.eq.s32.totalorder %s17, 3
      %p68 = por %p66, %p67
      %p69 = scmp.ne.s32.totalorder %s60, %s61
      %p70 = scmp.eq.s32.totalorder %s17, 0
      %p71 = por %p69, %p70
      %p72 = scmp.ne.s32.totalorder %s60, %s61
      %p73 = scmp.eq.s32.totalorder %s18, 3
      %p74 = por %p72, %p73
      %p76 = scmp.ne.s32.totalorder %s61, %s75
      %p77 = scmp.eq.s32.totalorder %s18, 0
      %p78 = por %p76, %p77
      %s80 = sadd.s32 %s79, 1
      %p83 = scmp.eq.s32.totalorder %s12, 3
      %p84 = scmp.ne.s32.totalorder %s79, %s81
      %p85 = scmp.eq.s32.totalorder %s12, 0
      %p86 = por %p84, %p85
      %p87 = scmp.ne.s32.totalorder %s79, %s81
      %p88 = scmp.eq.s32.totalorder %s17, 3
      %p89 = por %p87, %p88
      %p90 = scmp.ne.s32.totalorder %s81, %s82
      %p91 = scmp.eq.s32.totalorder %s17, 0
      %p92 = por %p90, %p91
      %p93 = scmp.ne.s32.totalorder %s81, %s82
      %p94 = scmp.eq.s32.totalorder %s18, 3
      %p95 = por %p93, %p94
      %p97 = scmp.ne.s32.totalorder %s82, %s96
      %p98 = scmp.eq.s32.totalorder %s18, 0
      %p99 = por %p97, %p98
      %s100 = ssub.s32 %s19, %s31
      %s101 = ssub.s32 %s20, %s27
      %s102 = sor.u32 %s100, %s101
      %p103 = scmp.eq.s32.totalorder %s102, 0
      %s105 = sadd.s32 %s104, 1
      %s106 = scalar_select %p103, %s104, %s105
      %p109 = pneg %p103
      %p110 = scmp.eq.s32.totalorder %s12, 3
      %p111 = por %p109, %p110
      %p112 = scmp.ne.s32.totalorder %s104, %s107
      %p113 = scmp.eq.s32.totalorder %s12, 0
      %p114 = por %p112, %p113
      %p115 = scmp.ne.s32.totalorder %s104, %s107
      %p116 = scmp.eq.s32.totalorder %s17, 3
      %p117 = por %p115, %p116
      %p118 = scmp.ne.s32.totalorder %s107, %s108
      %p119 = scmp.eq.s32.totalorder %s17, 0
      %p120 = por %p118, %p119
      %p121 = scmp.ne.s32.totalorder %s107, %s108
      %p122 = scmp.eq.s32.totalorder %s18, 3
      %p123 = por %p121, %p122
      %p125 = scmp.ne.s32.totalorder %s108, %s124
      %p126 = scmp.eq.s32.totalorder %s18, 0
      %p127 = por %p125, %p126
      %p128 = scmp.le.s32.totalorder 1, %s12
      %p129 = scmp.lt.s32.totalorder %s12, 5
      %p130 = pnand %p128, %p129
      %p131 = pneg %p130
      // Predicated region
      $region9: #{tpu_custom_call.1} parent=5 // pred_check
        _
      $region10: #{tpu_custom_call.1} parent=5 // pred_check_branch
        %133 = sbr.rel (%p130) target = $region12
      $region11: #{tpu_custom_call.1} parent=5 // pred_region
        %s134 = ssub.s32 %s12, 1
        // Predicated region
        $region13: #{tpu_custom_call.1} parent=11 // pred_check
          %p135 = pneg %p71
        $region14: #{tpu_custom_call.1} parent=11 // pred_check_branch
          %137 = sbr.rel (%p135) target = $region16
        $region15: #{tpu_custom_call.1} parent=11 // pred_region
          _
        $region16: #{tpu_custom_call.1} parent=11 // pred_fallthru
          _
        // Predicated region
        $region17: #{tpu_custom_call.1} parent=11 // pred_check
          %p138 = pneg %p92
        $region18: #{tpu_custom_call.1} parent=11 // pred_check_branch
          %140 = sbr.rel (%p138) target = $region20
        $region19: #{tpu_custom_call.1} parent=11 // pred_region
          _
        $region20: #{tpu_custom_call.1} parent=11 // pred_fallthru
          _
      $region12: #{tpu_custom_call.1} parent=5 // pred_fallthru
        _
      %p141 = scmp.lt.s32.totalorder %s12, 4
      // Predicated region
      $region21: #{tpu_custom_call.1} parent=5 // pred_check
        %p142 = pneg %p141
      $region22: #{tpu_custom_call.1} parent=5 // pred_check_branch
        %144 = sbr.rel (%p142) target = $region24
      $region23: #{tpu_custom_call.1} parent=5 // pred_region
        // Predicated region
        $region25: #{tpu_custom_call.1} parent=23 // pred_check
          %p145 = pneg %p44
        $region26: #{tpu_custom_call.1} parent=23 // pred_check_branch
          %147 = sbr.rel (%p145) target = $region28
        $region27: #{tpu_custom_call.1} parent=23 // pred_region
          %p148 = scmp.lt.s32.totalorder %s19, 1
          %s149 = scalar_select %p148, %s19, 1
          %s150 = smul.addr %s149, 170
          %s151 = smul.addr %s150, 8
          %s152 = scalar_lea.vmem %s0, %s151
        $region28: #{tpu_custom_call.1} parent=23 // pred_fallthru
          _
      $region24: #{tpu_custom_call.1} parent=5 // pred_fallthru
        _
      %p153 = scmp.le.s32.totalorder 1, %s12
      %p154 = scmp.lt.s32.totalorder %s12, 5
      %p155 = pnand %p153, %p154
      %p156 = pneg %p155
      // Predicated region
      $region29: #{tpu_custom_call.1} parent=5 // pred_check
        _
      $region30: #{tpu_custom_call.1} parent=5 // pred_check_branch
        %158 = sbr.rel (%p155) target = $region32
      $region31: #{tpu_custom_call.1} parent=5 // pred_region
        %s159 = ssub.s32 %s12, 1
        %p160 = scmp.lt.s32.totalorder %s21, 1
        %s161 = scalar_select %p160, %s21, 1
        %s162 = smul.addr %s161, 170
        %s163 = smul.addr %s162, 8
        %s164 = scalar_lea.vmem %s0, %s163
        %p165 = pneg %p50
        %p166 = pneg %p47
        %p167 = pneg %p71
        %p168 = pneg %p68
        %p169 = pneg %p92
        %p170 = pneg %p89
        %p171 = pneg %p120
        %p172 = pneg %p117
        %s173 = sand.u32 %s107, 1
        %s174 = scalar_lea.sflag [#allocation4], %s173
        %s175 = sand.u32 %s107, 1
        %s176 = smul.addr %s175, 512
        %s177 = scalar_lea.vmem [#allocation3], %s176
        %p178 = scmp.lt.s32.totalorder %s21, 1
        %s179 = scalar_select %p178, %s21, 1
        %s180 = smul.addr %s179, 170
        %s181 = smul.addr %s180, 8
        %s182 = scalar_lea.vmem %s0, %s181
        %s183 = smul.u32 16, %s22
        %s184 = smul.u32 %s22, 16
        %s185 = smul.u32 %s184, 40
        %s186 = scalar_lea.vmem %s182, %s185
        %v187 = vld [vmem:[%s186] sm:$0xff]
        %v188 = vld [vmem:[%s186 + $0x8] sm:$0xff]
        %v189 = vld [vmem:[%s186 + $0x10] sm:$0xff]
        %v190 = vld [vmem:[%s186 + $0x18] sm:$0xff]
        %v191 = vld [vmem:[%s186 + $0x20] sm:$0x3]
        %v192 = vld [vmem:[%s186 + $0x28] sm:$0xff]
        %v193 = vld [vmem:[%s186 + $0x30] sm:$0xff]
        %v194 = vld [vmem:[%s186 + $0x38] sm:$0xff]
        %v195 = vld [vmem:[%s186 + $0x40] sm:$0xff]
        %v196 = vld [vmem:[%s186 + $0x48] sm:$0x3]
        %v197 = vld [vmem:[%s186 + $0x50] sm:$0xff]
        %v198 = vld [vmem:[%s186 + $0x58] sm:$0xff]
        %v199 = vld [vmem:[%s186 + $0x60] sm:$0xff]
        %v200 = vld [vmem:[%s186 + $0x68] sm:$0xff]
        %v201 = vld [vmem:[%s186 + $0x70] sm:$0x3]
        %v202 = vld [vmem:[%s186 + $0x78] sm:$0xff]
        %v203 = vld [vmem:[%s186 + $0x80] sm:$0xff]
        %v204 = vld [vmem:[%s186 + $0x88] sm:$0xff]
        %v205 = vld [vmem:[%s186 + $0x90] sm:$0xff]
        %v206 = vld [vmem:[%s186 + $0x98] sm:$0x3]
        %v207 = vld [vmem:[%s186 + $0xa0] sm:$0xff]
        %v208 = vld [vmem:[%s186 + $0xa8] sm:$0xff]
        %v209 = vld [vmem:[%s186 + $0xb0] sm:$0xff]
        %v210 = vld [vmem:[%s186 + $0xb8] sm:$0xff]
        %v211 = vld [vmem:[%s186 + $0xc0] sm:$0x3]
        %v212 = vld [vmem:[%s186 + $0xc8] sm:$0xff]
        %v213 = vld [vmem:[%s186 + $0xd0] sm:$0xff]
        %v214 = vld [vmem:[%s186 + $0xd8] sm:$0xff]
        %v215 = vld [vmem:[%s186 + $0xe0] sm:$0xff]
        %v216 = vld [vmem:[%s186 + $0xe8] sm:$0x3]
        %v217 = vld [vmem:[%s186 + $0xf0] sm:$0xff]
        %v218 = vld [vmem:[%s186 + $0xf8] sm:$0xff]
        %v219 = vld [vmem:[%s186 + $0x100] sm:$0xff]
        %v220 = vld [vmem:[%s186 + $0x108] sm:$0xff]
        %v221 = vld [vmem:[%s186 + $0x110] sm:$0x3]
        %v222 = vld [vmem:[%s186 + $0x118] sm:$0xff]
        %v223 = vld [vmem:[%s186 + $0x120] sm:$0xff]
        %v224 = vld [vmem:[%s186 + $0x128] sm:$0xff]
        %v225 = vld [vmem:[%s186 + $0x130] sm:$0xff]
        %v226 = vld [vmem:[%s186 + $0x138] sm:$0x3]
        %v227 = vld [vmem:[%s186 + $0x140] sm:$0xff]
        %v228 = vld [vmem:[%s186 + $0x148] sm:$0xff]
        %v229 = vld [vmem:[%s186 + $0x150] sm:$0xff]
        %v230 = vld [vmem:[%s186 + $0x158] sm:$0xff]
        %v231 = vld [vmem:[%s186 + $0x160] sm:$0x3]
        %v232 = vld [vmem:[%s186 + $0x168] sm:$0xff]
        %v233 = vld [vmem:[%s186 + $0x170] sm:$0xff]
        %v234 = vld [vmem:[%s186 + $0x178] sm:$0xff]
        %v235 = vld [vmem:[%s186 + $0x180] sm:$0xff]
        %v236 = vld [vmem:[%s186 + $0x188] sm:$0x3]
        %v237 = vld [vmem:[%s186 + $0x190] sm:$0xff]
        %v238 = vld [vmem:[%s186 + $0x198] sm:$0xff]
        %v239 = vld [vmem:[%s186 + $0x1a0] sm:$0xff]
        %v240 = vld [vmem:[%s186 + $0x1a8] sm:$0xff]
        %v241 = vld [vmem:[%s186 + $0x1b0] sm:$0x3]
        %v242 = vld [vmem:[%s186 + $0x1b8] sm:$0xff]
        %v243 = vld [vmem:[%s186 + $0x1c0] sm:$0xff]
        %v244 = vld [vmem:[%s186 + $0x1c8] sm:$0xff]
        %v245 = vld [vmem:[%s186 + $0x1d0] sm:$0xff]
        %v246 = vld [vmem:[%s186 + $0x1d8] sm:$0x3]
        %v247 = vld [vmem:[%s186 + $0x1e0] sm:$0xff]
        %v248 = vld [vmem:[%s186 + $0x1e8] sm:$0xff]
        %v249 = vld [vmem:[%s186 + $0x1f0] sm:$0xff]
        %v250 = vld [vmem:[%s186 + $0x1f8] sm:$0xff]
        %v251 = vld [vmem:[%s186 + $0x200] sm:$0x3]
        %v252 = vld [vmem:[%s186 + $0x208] sm:$0xff]
        %v253 = vld [vmem:[%s186 + $0x210] sm:$0xff]
        %v254 = vld [vmem:[%s186 + $0x218] sm:$0xff]
        %v255 = vld [vmem:[%s186 + $0x220] sm:$0xff]
        %v256 = vld [vmem:[%s186 + $0x228] sm:$0x3]
        %v257 = vld [vmem:[%s186 + $0x230] sm:$0xff]
        %v258 = vld [vmem:[%s186 + $0x238] sm:$0xff]
        %v259 = vld [vmem:[%s186 + $0x240] sm:$0xff]
        %v260 = vld [vmem:[%s186 + $0x248] sm:$0xff]
        %v261 = vld [vmem:[%s186 + $0x250] sm:$0x3]
        %v262 = vld [vmem:[%s186 + $0x258] sm:$0xff]
        %v263 = vld [vmem:[%s186 + $0x260] sm:$0xff]
        %v264 = vld [vmem:[%s186 + $0x268] sm:$0xff]
        %v265 = vld [vmem:[%s186 + $0x270] sm:$0xff]
        %v266 = vld [vmem:[%s186 + $0x278] sm:$0x3]
        %v267 = vld [vmem:[%s1] sm:$0xff]
        %vm348 = vcmask 1046528
        %v349 = vrot.slane %v187, 1
        %v350 = vrot.slane %v188, 1
        %v351 = vsel %vm348, %v349, %v350
        %v352 = vrot.slane %v189, 1
        %v353 = vsel %vm348, %v350, %v352
        %v354 = vrot.slane %v190, 1
        %v355 = vsel %vm348, %v352, %v354
        %v356 = vrot.slane %v191, 1
        %v357 = vsel %vm348, %v354, %v356
        %v358 = vrot.slane %v192, 1
        %v359 = vrot.slane %v193, 1
        %v360 = vsel %vm348, %v358, %v359
        %v361 = vrot.slane %v194, 1
        %v362 = vsel %vm348, %v359, %v361
        %v363 = vrot.slane %v195, 1
        %v364 = vsel %vm348, %v361, %v363
        %v365 = vrot.slane %v196, 1
        %v366 = vsel %vm348, %v363, %v365
        %v367 = vrot.slane %v197, 1
        %v368 = vrot.slane %v198, 1
        %v369 = vsel %vm348, %v367, %v368
        %v370 = vrot.slane %v199, 1
        %v371 = vsel %vm348, %v368, %v370
        %v372 = vrot.slane %v200, 1
        %v373 = vsel %vm348, %v370, %v372
        %v374 = vrot.slane %v201, 1
        %v375 = vsel %vm348, %v372, %v374
        %v376 = vrot.slane %v202, 1
        %v377 = vrot.slane %v203, 1
        %v378 = vsel %vm348, %v376, %v377
        %v379 = vrot.slane %v204, 1
        %v380 = vsel %vm348, %v377, %v379
        %v381 = vrot.slane %v205, 1
        %v382 = vsel %vm348, %v379, %v381
        %v383 = vrot.slane %v206, 1
        %v384 = vsel %vm348, %v381, %v383
        %v385 = vrot.slane %v207, 1
        %v386 = vrot.slane %v208, 1
        %v387 = vsel %vm348, %v385, %v386
        %v388 = vrot.slane %v209, 1
        %v389 = vsel %vm348, %v386, %v388
        %v390 = vrot.slane %v210, 1
        %v391 = vsel %vm348, %v388, %v390
        %v392 = vrot.slane %v211, 1
        %v393 = vsel %vm348, %v390, %v392
        %v394 = vrot.slane %v212, 1
        %v395 = vrot.slane %v213, 1
        %v396 = vsel %vm348, %v394, %v395
        %v397 = vrot.slane %v214, 1
        %v398 = vsel %vm348, %v395, %v397
        %v399 = vrot.slane %v215, 1
        %v400 = vsel %vm348, %v397, %v399
        %v401 = vrot.slane %v216, 1
        %v402 = vsel %vm348, %v399, %v401
        %v403 = vrot.slane %v217, 1
        %v404 = vrot.slane %v218, 1
        %v405 = vsel %vm348, %v403, %v404
        %v406 = vrot.slane %v219, 1
        %v407 = vsel %vm348, %v404, %v406
        %v408 = vrot.slane %v220, 1
        %v409 = vsel %vm348, %v406, %v408
        %v410 = vrot.slane %v221, 1
        %v411 = vsel %vm348, %v408, %v410
        %v412 = vrot.slane %v222, 1
        %v413 = vrot.slane %v223, 1
        %v414 = vsel %vm348, %v412, %v413
        %v415 = vrot.slane %v224, 1
        %v416 = vsel %vm348, %v413, %v415
        %v417 = vrot.slane %v225, 1
        %v418 = vsel %vm348, %v415, %v417
        %v419 = vrot.slane %v226, 1
        %v420 = vsel %vm348, %v417, %v419
        %v421 = vrot.slane %v227, 1
        %v422 = vrot.slane %v228, 1
        %v423 = vsel %vm348, %v421, %v422
        %v424 = vrot.slane %v229, 1
        %v425 = vsel %vm348, %v422, %v424
        %v426 = vrot.slane %v230, 1
        %v427 = vsel %vm348, %v424, %v426
        %v428 = vrot.slane %v231, 1
        %v429 = vsel %vm348, %v426, %v428
        %v430 = vrot.slane %v232, 1
        %v431 = vrot.slane %v233, 1
        %v432 = vsel %vm348, %v430, %v431
        %v433 = vrot.slane %v234, 1
        %v434 = vsel %vm348, %v431, %v433
        %v435 = vrot.slane %v235, 1
        %v436 = vsel %vm348, %v433, %v435
        %v437 = vrot.slane %v236, 1
        %v438 = vsel %vm348, %v435, %v437
        %v439 = vrot.slane %v237, 1
        %v440 = vrot.slane %v238, 1
        %v441 = vsel %vm348, %v439, %v440
        %v442 = vrot.slane %v239, 1
        %v443 = vsel %vm348, %v440, %v442
        %v444 = vrot.slane %v240, 1
        %v445 = vsel %vm348, %v442, %v444
        %v446 = vrot.slane %v241, 1
        %v447 = vsel %vm348, %v444, %v446
        %v448 = vrot.slane %v242, 1
        %v449 = vrot.slane %v243, 1
        %v450 = vsel %vm348, %v448, %v449
        %v451 = vrot.slane %v244, 1
        %v452 = vsel %vm348, %v449, %v451
        %v453 = vrot.slane %v245, 1
        %v454 = vsel %vm348, %v451, %v453
        %v455 = vrot.slane %v246, 1
        %v456 = vsel %vm348, %v453, %v455
        %v457 = vrot.slane %v247, 1
        %v458 = vrot.slane %v248, 1
        %v459 = vsel %vm348, %v457, %v458
        %v460 = vrot.slane %v249, 1
        %v461 = vsel %vm348, %v458, %v460
        %v462 = vrot.slane %v250, 1
        %v463 = vsel %vm348, %v460, %v462
        %v464 = vrot.slane %v251, 1
        %v465 = vsel %vm348, %v462, %v464
        %v466 = vrot.slane %v252, 1
        %v467 = vrot.slane %v253, 1
        %v468 = vsel %vm348, %v466, %v467
        %v469 = vrot.slane %v254, 1
        %v470 = vsel %vm348, %v467, %v469
        %v471 = vrot.slane %v255, 1
        %v472 = vsel %vm348, %v469, %v471
        %v473 = vrot.slane %v256, 1
        %v474 = vsel %vm348, %v471, %v473
        %v475 = vrot.slane %v257, 1
        %v476 = vrot.slane %v258, 1
        %v477 = vsel %vm348, %v475, %v476
        %v478 = vrot.slane %v259, 1
        %v479 = vsel %vm348, %v476, %v478
        %v480 = vrot.slane %v260, 1
        %v481 = vsel %vm348, %v478, %v480
        %v482 = vrot.slane %v261, 1
        %v483 = vsel %vm348, %v480, %v482
        %v484 = vrot.slane %v262, 1
        %v485 = vrot.slane %v263, 1
        %v486 = vsel %vm348, %v484, %v485
        %v487 = vrot.slane %v264, 1
        %v488 = vsel %vm348, %v485, %v487
        %v489 = vrot.slane %v265, 1
        %v490 = vsel %vm348, %v487, %v489
        %v491 = vrot.slane %v266, 1
        %v492 = vsel %vm348, %v489, %v491
        %s493 = scalar_lea.vmem %s1, 8
        %v494 = vld [vmem:[%s493] sm:$0xff]
        %vm495 = vcmask 64512
        %v496 = vsel %vm495, %v351, 0
        %v498 = vsel %vm495, %v353, 0
        %v500 = vsel %vm495, %v355, 0
        %v502 = vsel %vm495, %v357, 0
        %v504 = vsel %vm495, %v360, 0
        %v506 = vsel %vm495, %v362, 0
        %v508 = vsel %vm495, %v364, 0
        %v510 = vsel %vm495, %v366, 0
        %v512 = vsel %vm495, %v369, 0
        %v514 = vsel %vm495, %v371, 0
        %v516 = vsel %vm495, %v373, 0
        %v518 = vsel %vm495, %v375, 0
        %v520 = vsel %vm495, %v378, 0
        %v522 = vsel %vm495, %v380, 0
        %v524 = vsel %vm495, %v382, 0
        %v526 = vsel %vm495, %v384, 0
        %v528 = vsel %vm495, %v387, 0
        %v530 = vsel %vm495, %v389, 0
        %v532 = vsel %vm495, %v391, 0
        %v534 = vsel %vm495, %v393, 0
        %v536 = vsel %vm495, %v396, 0
        %v538 = vsel %vm495, %v398, 0
        %v540 = vsel %vm495, %v400, 0
        %v542 = vsel %vm495, %v402, 0
        %v544 = vsel %vm495, %v405, 0
        %v546 = vsel %vm495, %v407, 0
        %v548 = vsel %vm495, %v409, 0
        %v550 = vsel %vm495, %v411, 0
        %v552 = vsel %vm495, %v414, 0
        %v554 = vsel %vm495, %v416, 0
        %v556 = vsel %vm495, %v418, 0
        %v558 = vsel %vm495, %v420, 0
        %v560 = vsel %vm495, %v423, 0
        %v562 = vsel %vm495, %v425, 0
        %v564 = vsel %vm495, %v427, 0
        %v566 = vsel %vm495, %v429, 0
        %v568 = vsel %vm495, %v432, 0
        %v570 = vsel %vm495, %v434, 0
        %v572 = vsel %vm495, %v436, 0
        %v574 = vsel %vm495, %v438, 0
        %v576 = vsel %vm495, %v441, 0
        %v578 = vsel %vm495, %v443, 0
        %v580 = vsel %vm495, %v445, 0
        %v582 = vsel %vm495, %v447, 0
        %v584 = vsel %vm495, %v450, 0
        %v586 = vsel %vm495, %v452, 0
        %v588 = vsel %vm495, %v454, 0
        %v590 = vsel %vm495, %v456, 0
        %v592 = vsel %vm495, %v459, 0
        %v594 = vsel %vm495, %v461, 0
        %v596 = vsel %vm495, %v463, 0
        %v598 = vsel %vm495, %v465, 0
        %v600 = vsel %vm495, %v468, 0
        %v602 = vsel %vm495, %v470, 0
        %v604 = vsel %vm495, %v472, 0
        %v606 = vsel %vm495, %v474, 0
        %v608 = vsel %vm495, %v477, 0
        %v610 = vsel %vm495, %v479, 0
        %v612 = vsel %vm495, %v481, 0
        %v614 = vsel %vm495, %v483, 0
        %v616 = vsel %vm495, %v486, 0
        %v618 = vsel %vm495, %v488, 0
        %v620 = vsel %vm495, %v490, 0
        %v622 = vsel %vm495, %v492, 0
        %624 = vmatprep.subr.mxu0 0.0
        %625 = vmatpush1.msra.mxu0 0.0
        %626 = vmatprep.subr.mxu0 0.0
        %627 = vmatpush1.msra.mxu0 0.0
        %628 = vmatprep.subr.mxu0 0.0
        %629 = vmatpush1.msra.mxu0 0.0
        %630 = vmatprep.subr.mxu0 0.0
        %631 = vmatpush1.msra.mxu0 0.0
        %632 = vmatprep.subr.mxu0 0.0
        %633 = vmatpush1.msra.mxu0 0.0
        %634 = vmatprep.subr.mxu0 0.0
        %635 = vmatpush1.msra.mxu0 0.0
        %636 = vmatprep.subr.mxu0 0.0
        %637 = vmatpush1.msra.mxu0 0.0
        %638 = vmatprep.subr.mxu0 0.0
        %639 = vmatpush1.msra.mxu0 0.0
        %640 = vmatprep.subr.mxu0 0.0
        %641 = vmatpush1.msra.mxu0 0.0
        %642 = vmatprep.subr.mxu0 0.0
        %643 = vmatpush1.msra.mxu0 0.0
        %644 = vmatprep.subr.mxu0 0.0
        %645 = vmatpush1.msra.mxu0 0.0
        %646 = vmatprep.subr.mxu0 0.0
        %647 = vmatpush1.msra.mxu0 0.0
        %648 = vmatprep.subr.mxu0 0.0
        %649 = vmatpush1.msra.mxu0 0.0
        %650 = vmatprep.subr.mxu0 0.0
        %651 = vmatpush1.msra.mxu0 0.0
        %652 = vmatprep.subr.mxu0 0.0
        %653 = vmatpush1.msra.mxu0 0.0
        %654 = vmatprep.subr.mxu0 0.0
        %655 = vmatpush1.msra.mxu0 %v494
        %656 = vmatprep.subr.mxu0 0.0
        %657 = vmatpush2.msra.mxu0 0.0
        %658 = vmatprep.subr.mxu0 0.0
        %659 = vmatpush2.msra.mxu0 0.0
        %660 = vmatprep.subr.mxu0 0.0
        %661 = vmatpush2.msra.mxu0 0.0
        %662 = vmatprep.subr.mxu0 0.0
        %663 = vmatpush2.msra.mxu0 0.0
        %664 = vmatprep.subr.mxu0 0.0
        %665 = vmatpush2.msra.mxu0 0.0
        %666 = vmatprep.subr.mxu0 0.0
        %667 = vmatpush2.msra.mxu0 0.0
        %668 = vmatprep.subr.mxu0 0.0
        %669 = vmatpush2.msra.mxu0 0.0
        %670 = vmatprep.subr.mxu0 0.0
        %671 = vmatpush2.msra.mxu0 0.0
        %672 = vmatprep.subr.mxu0 0.0
        %673 = vmatpush2.msra.mxu0 0.0
        %674 = vmatprep.subr.mxu0 0.0
        %675 = vmatpush2.msra.mxu0 0.0
        %676 = vmatprep.subr.mxu0 0.0
        %677 = vmatpush2.msra.mxu0 0.0
        %678 = vmatprep.subr.mxu0 0.0
        %679 = vmatpush2.msra.mxu0 0.0
        %680 = vmatprep.subr.mxu0 0.0
        %681 = vmatpush2.msra.mxu0 0.0
        %682 = vmatprep.subr.mxu0 0.0
        %683 = vmatpush2.msra.mxu0 0.0
        %684 = vmatprep.subr.mxu0 0.0
        %685 = vmatpush2.msra.mxu0 0.0
        %686 = vmatprep.subr.mxu0 0.0
        %687 = vmatpush2.msra.mxu0 0.0
        %688 = vmatprep.mubr.f32.mxu0 0.0
        %689 = vmatmul.mubr.f32.gmra.mxu0 %v496
        %v690 = vpop.f32.mrf.mxu0
        %v691 = vadd.f32 0.0, %v690
        %v692 = vpop.f32.mrf.mxu0
        %693 = vmatprep.mubr.f32.mxu0 0.0
        %694 = vmatmul.mubr.f32.gmra.mxu0 %v498
        %v695 = vpop.f32.mrf.mxu0
        %v696 = vadd.f32 0.0, %v695
        %v697 = vpop.f32.mrf.mxu0
        %698 = vmatprep.mubr.f32.mxu0 0.0
        %699 = vmatmul.mubr.f32.gmra.mxu0 %v500
        %v700 = vpop.f32.mrf.mxu0
        %v701 = vadd.f32 0.0, %v700
        %v702 = vpop.f32.mrf.mxu0
        %703 = vmatprep.mubr.f32.mxu0 0.0
        %704 = vmatmul.mubr.f32.gmra.mxu0 %v502
        %v705 = vpop.f32.mrf.mxu0
        %v706 = vadd.f32 0.0, %v705
        %v707 = vpop.f32.mrf.mxu0
        %708 = vmatprep.mubr.f32.mxu0 0.0
        %709 = vmatmul.mubr.f32.gmra.mxu0 %v504
        %v710 = vpop.f32.mrf.mxu0
        %v711 = vadd.f32 0.0, %v710
        %v712 = vpop.f32.mrf.mxu0
        %713 = vmatprep.mubr.f32.mxu0 0.0
        %714 = vmatmul.mubr.f32.gmra.mxu0 %v506
        %v715 = vpop.f32.mrf.mxu0
        %v716 = vadd.f32 0.0, %v715
        %v717 = vpop.f32.mrf.mxu0
        %718 = vmatprep.mubr.f32.mxu0 0.0
        %719 = vmatmul.mubr.f32.gmra.mxu0 %v508
        %v720 = vpop.f32.mrf.mxu0
        %v721 = vadd.f32 0.0, %v720
        %v722 = vpop.f32.mrf.mxu0
        %723 = vmatprep.mubr.f32.mxu0 0.0
        %724 = vmatmul.mubr.f32.gmra.mxu0 %v510
        %v725 = vpop.f32.mrf.mxu0
        %v726 = vadd.f32 0.0, %v725
        %v727 = vpop.f32.mrf.mxu0
        %728 = vmatprep.mubr.f32.mxu0 0.0
        %729 = vmatmul.mubr.f32.gmra.mxu0 %v512
        %v730 = vpop.f32.mrf.mxu0
        %v731 = vadd.f32 0.0, %v730
        %v732 = vpop.f32.mrf.mxu0
        %733 = vmatprep.mubr.f32.mxu0 0.0
        %734 = vmatmul.mubr.f32.gmra.mxu0 %v514
        %v735 = vpop.f32.mrf.mxu0
        %v736 = vadd.f32 0.0, %v735
        %v737 = vpop.f32.mrf.mxu0
        %738 = vmatprep.mubr.f32.mxu0 0.0
        %739 = vmatmul.mubr.f32.gmra.mxu0 %v516
        %v740 = vpop.f32.mrf.mxu0
        %v741 = vadd.f32 0.0, %v740
        %v742 = vpop.f32.mrf.mxu0
        %743 = vmatprep.mubr.f32.mxu0 0.0
        %744 = vmatmul.mubr.f32.gmra.mxu0 %v518
        %v745 = vpop.f32.mrf.mxu0
        %v746 = vadd.f32 0.0, %v745
        %v747 = vpop.f32.mrf.mxu0
        %748 = vmatprep.mubr.f32.mxu0 0.0
        %749 = vmatmul.mubr.f32.gmra.mxu0 %v520
        %v750 = vpop.f32.mrf.mxu0
        %v751 = vadd.f32 0.0, %v750
        %v752 = vpop.f32.mrf.mxu0
        %753 = vmatprep.mubr.f32.mxu0 0.0
        %754 = vmatmul.mubr.f32.gmra.mxu0 %v522
        %v755 = vpop.f32.mrf.mxu0
        %v756 = vadd.f32 0.0, %v755
        %v757 = vpop.f32.mrf.mxu0
        %758 = vmatprep.mubr.f32.mxu0 0.0
        %759 = vmatmul.mubr.f32.gmra.mxu0 %v524
        %v760 = vpop.f32.mrf.mxu0
        %v761 = vadd.f32 0.0, %v760
        %v762 = vpop.f32.mrf.mxu0
        %763 = vmatprep.mubr.f32.mxu0 0.0
        %764 = vmatmul.mubr.f32.gmra.mxu0 %v526
        %v765 = vpop.f32.mrf.mxu0
        %v766 = vadd.f32 0.0, %v765
        %v767 = vpop.f32.mrf.mxu0
        %768 = vmatprep.mubr.f32.mxu0 0.0
        %769 = vmatmul.mubr.f32.gmra.mxu0 %v528
        %v770 = vpop.f32.mrf.mxu0
        %v771 = vadd.f32 0.0, %v770
        %v772 = vpop.f32.mrf.mxu0
        %773 = vmatprep.mubr.f32.mxu0 0.0
        %774 = vmatmul.mubr.f32.gmra.mxu0 %v530
        %v775 = vpop.f32.mrf.mxu0
        %v776 = vadd.f32 0.0, %v775
        %v777 = vpop.f32.mrf.mxu0
        %778 = vmatprep.mubr.f32.mxu0 0.0
        %779 = vmatmul.mubr.f32.gmra.mxu0 %v532
        %v780 = vpop.f32.mrf.mxu0
        %v781 = vadd.f32 0.0, %v780
        %v782 = vpop.f32.mrf.mxu0
        %783 = vmatprep.mubr.f32.mxu0 0.0
        %784 = vmatmul.mubr.f32.gmra.mxu0 %v534
        %v785 = vpop.f32.mrf.mxu0
        %v786 = vadd.f32 0.0, %v785
        %v787 = vpop.f32.mrf.mxu0
        %788 = vmatprep.mubr.f32.mxu0 0.0
        %789 = vmatmul.mubr.f32.gmra.mxu0 %v536
        %v790 = vpop.f32.mrf.mxu0
        %v791 = vadd.f32 0.0, %v790
        %v792 = vpop.f32.mrf.mxu0
        %793 = vmatprep.mubr.f32.mxu0 0.0
        %794 = vmatmul.mubr.f32.gmra.mxu0 %v538
        %v795 = vpop.f32.mrf.mxu0
        %v796 = vadd.f32 0.0, %v795
        %v797 = vpop.f32.mrf.mxu0
        %798 = vmatprep.mubr.f32.mxu0 0.0
        %799 = vmatmul.mubr.f32.gmra.mxu0 %v540
        %v800 = vpop.f32.mrf.mxu0
        %v801 = vadd.f32 0.0, %v800
        %v802 = vpop.f32.mrf.mxu0
        %803 = vmatprep.mubr.f32.mxu0 0.0
        %804 = vmatmul.mubr.f32.gmra.mxu0 %v542
        %v805 = vpop.f32.mrf.mxu0
        %v806 = vadd.f32 0.0, %v805
        %v807 = vpop.f32.mrf.mxu0
        %808 = vmatprep.mubr.f32.mxu0 0.0
        %809 = vmatmul.mubr.f32.gmra.mxu0 %v544
        %v810 = vpop.f32.mrf.mxu0
        %v811 = vadd.f32 0.0, %v810
        %v812 = vpop.f32.mrf.mxu0
        %813 = vmatprep.mubr.f32.mxu0 0.0
        %814 = vmatmul.mubr.f32.gmra.mxu0 %v546
        %v815 = vpop.f32.mrf.mxu0
        %v816 = vadd.f32 0.0, %v815
        %v817 = vpop.f32.mrf.mxu0
        %818 = vmatprep.mubr.f32.mxu0 0.0
        %819 = vmatmul.mubr.f32.gmra.mxu0 %v548
        %v820 = vpop.f32.mrf.mxu0
        %v821 = vadd.f32 0.0, %v820
        %v822 = vpop.f32.mrf.mxu0
        %823 = vmatprep.mubr.f32.mxu0 0.0
        %824 = vmatmul.mubr.f32.gmra.mxu0 %v550
        %v825 = vpop.f32.mrf.mxu0
        %v826 = vadd.f32 0.0, %v825
        %v827 = vpop.f32.mrf.mxu0
        %828 = vmatprep.mubr.f32.mxu0 0.0
        %829 = vmatmul.mubr.f32.gmra.mxu0 %v552
        %v830 = vpop.f32.mrf.mxu0
        %v831 = vadd.f32 0.0, %v830
        %v832 = vpop.f32.mrf.mxu0
        %833 = vmatprep.mubr.f32.mxu0 0.0
        %834 = vmatmul.mubr.f32.gmra.mxu0 %v554
        %v835 = vpop.f32.mrf.mxu0
        %v836 = vadd.f32 0.0, %v835
        %v837 = vpop.f32.mrf.mxu0
        %838 = vmatprep.mubr.f32.mxu0 0.0
        %839 = vmatmul.mubr.f32.gmra.mxu0 %v556
        %v840 = vpop.f32.mrf.mxu0
        %v841 = vadd.f32 0.0, %v840
        %v842 = vpop.f32.mrf.mxu0
        %843 = vmatprep.mubr.f32.mxu0 0.0
        %844 = vmatmul.mubr.f32.gmra.mxu0 %v558
        %v845 = vpop.f32.mrf.mxu0
        %v846 = vadd.f32 0.0, %v845
        %v847 = vpop.f32.mrf.mxu0
        %848 = vmatprep.mubr.f32.mxu0 0.0
        %849 = vmatmul.mubr.f32.gmra.mxu0 %v560
        %v850 = vpop.f32.mrf.mxu0
        %v851 = vadd.f32 0.0, %v850
        %v852 = vpop.f32.mrf.mxu0
        %853 = vmatprep.mubr.f32.mxu0 0.0
        %854 = vmatmul.mubr.f32.gmra.mxu0 %v562
        %v855 = vpop.f32.mrf.mxu0
        %v856 = vadd.f32 0.0, %v855
        %v857 = vpop.f32.mrf.mxu0
        %858 = vmatprep.mubr.f32.mxu0 0.0
        %859 = vmatmul.mubr.f32.gmra.mxu0 %v564
        %v860 = vpop.f32.mrf.mxu0
        %v861 = vadd.f32 0.0, %v860
        %v862 = vpop.f32.mrf.mxu0
        %863 = vmatprep.mubr.f32.mxu0 0.0
        %864 = vmatmul.mubr.f32.gmra.mxu0 %v566
        %v865 = vpop.f32.mrf.mxu0
        %v866 = vadd.f32 0.0, %v865
        %v867 = vpop.f32.mrf.mxu0
        %868 = vmatprep.mubr.f32.mxu0 0.0
        %869 = vmatmul.mubr.f32.gmra.mxu0 %v568
        %v870 = vpop.f32.mrf.mxu0
        %v871 = vadd.f32 0.0, %v870
        %v872 = vpop.f32.mrf.mxu0
        %873 = vmatprep.mubr.f32.mxu0 0.0
        %874 = vmatmul.mubr.f32.gmra.mxu0 %v570
        %v875 = vpop.f32.mrf.mxu0
        %v876 = vadd.f32 0.0, %v875
        %v877 = vpop.f32.mrf.mxu0
        %878 = vmatprep.mubr.f32.mxu0 0.0
        %879 = vmatmul.mubr.f32.gmra.mxu0 %v572
        %v880 = vpop.f32.mrf.mxu0
        %v881 = vadd.f32 0.0, %v880
        %v882 = vpop.f32.mrf.mxu0
        %883 = vmatprep.mubr.f32.mxu0 0.0
        %884 = vmatmul.mubr.f32.gmra.mxu0 %v574
        %v885 = vpop.f32.mrf.mxu0
        %v886 = vadd.f32 0.0, %v885
        %v887 = vpop.f32.mrf.mxu0
        %888 = vmatprep.mubr.f32.mxu0 0.0
        %889 = vmatmul.mubr.f32.gmra.mxu0 %v576
        %v890 = vpop.f32.mrf.mxu0
        %v891 = vadd.f32 0.0, %v890
        %v892 = vpop.f32.mrf.mxu0
        %893 = vmatprep.mubr.f32.mxu0 0.0
        %894 = vmatmul.mubr.f32.gmra.mxu0 %v578
        %v895 = vpop.f32.mrf.mxu0
        %v896 = vadd.f32 0.0, %v895
        %v897 = vpop.f32.mrf.mxu0
        %898 = vmatprep.mubr.f32.mxu0 0.0
        %899 = vmatmul.mubr.f32.gmra.mxu0 %v580
        %v900 = vpop.f32.mrf.mxu0
        %v901 = vadd.f32 0.0, %v900
        %v902 = vpop.f32.mrf.mxu0
        %903 = vmatprep.mubr.f32.mxu0 0.0
        %904 = vmatmul.mubr.f32.gmra.mxu0 %v582
        %v905 = vpop.f32.mrf.mxu0
        %v906 = vadd.f32 0.0, %v905
        %v907 = vpop.f32.mrf.mxu0
        %908 = vmatprep.mubr.f32.mxu0 0.0
        %909 = vmatmul.mubr.f32.gmra.mxu0 %v584
        %v910 = vpop.f32.mrf.mxu0
        %v911 = vadd.f32 0.0, %v910
        %v912 = vpop.f32.mrf.mxu0
        %913 = vmatprep.mubr.f32.mxu0 0.0
        %914 = vmatmul.mubr.f32.gmra.mxu0 %v586
        %v915 = vpop.f32.mrf.mxu0
        %v916 = vadd.f32 0.0, %v915
        %v917 = vpop.f32.mrf.mxu0
        %918 = vmatprep.mubr.f32.mxu0 0.0
        %919 = vmatmul.mubr.f32.gmra.mxu0 %v588
        %v920 = vpop.f32.mrf.mxu0
        %v921 = vadd.f32 0.0, %v920
        %v922 = vpop.f32.mrf.mxu0
        %923 = vmatprep.mubr.f32.mxu0 0.0
        %924 = vmatmul.mubr.f32.gmra.mxu0 %v590
        %v925 = vpop.f32.mrf.mxu0
        %v926 = vadd.f32 0.0, %v925
        %v927 = vpop.f32.mrf.mxu0
        %928 = vmatprep.mubr.f32.mxu0 0.0
        %929 = vmatmul.mubr.f32.gmra.mxu0 %v592
        %v930 = vpop.f32.mrf.mxu0
        %v931 = vadd.f32 0.0, %v930
        %v932 = vpop.f32.mrf.mxu0
        %933 = vmatprep.mubr.f32.mxu0 0.0
        %934 = vmatmul.mubr.f32.gmra.mxu0 %v594
        %v935 = vpop.f32.mrf.mxu0
        %v936 = vadd.f32 0.0, %v935
        %v937 = vpop.f32.mrf.mxu0
        %938 = vmatprep.mubr.f32.mxu0 0.0
        %939 = vmatmul.mubr.f32.gmra.mxu0 %v596
        %v940 = vpop.f32.mrf.mxu0
        %v941 = vadd.f32 0.0, %v940
        %v942 = vpop.f32.mrf.mxu0
        %943 = vmatprep.mubr.f32.mxu0 0.0
        %944 = vmatmul.mubr.f32.gmra.mxu0 %v598
        %v945 = vpop.f32.mrf.mxu0
        %v946 = vadd.f32 0.0, %v945
        %v947 = vpop.f32.mrf.mxu0
        %948 = vmatprep.mubr.f32.mxu0 0.0
        %949 = vmatmul.mubr.f32.gmra.mxu0 %v600
        %v950 = vpop.f32.mrf.mxu0
        %v951 = vadd.f32 0.0, %v950
        %v952 = vpop.f32.mrf.mxu0
        %953 = vmatprep.mubr.f32.mxu0 0.0
        %954 = vmatmul.mubr.f32.gmra.mxu0 %v602
        %v955 = vpop.f32.mrf.mxu0
        %v956 = vadd.f32 0.0, %v955
        %v957 = vpop.f32.mrf.mxu0
        %958 = vmatprep.mubr.f32.mxu0 0.0
        %959 = vmatmul.mubr.f32.gmra.mxu0 %v604
        %v960 = vpop.f32.mrf.mxu0
        %v961 = vadd.f32 0.0, %v960
        %v962 = vpop.f32.mrf.mxu0
        %963 = vmatprep.mubr.f32.mxu0 0.0
        %964 = vmatmul.mubr.f32.gmra.mxu0 %v606
        %v965 = vpop.f32.mrf.mxu0
        %v966 = vadd.f32 0.0, %v965
        %v967 = vpop.f32.mrf.mxu0
        %968 = vmatprep.mubr.f32.mxu0 0.0
        %969 = vmatmul.mubr.f32.gmra.mxu0 %v608
        %v970 = vpop.f32.mrf.mxu0
        %v971 = vadd.f32 0.0, %v970
        %v972 = vpop.f32.mrf.mxu0
        %973 = vmatprep.mubr.f32.mxu0 0.0
        %974 = vmatmul.mubr.f32.gmra.mxu0 %v610
        %v975 = vpop.f32.mrf.mxu0
        %v976 = vadd.f32 0.0, %v975
        %v977 = vpop.f32.mrf.mxu0
        %978 = vmatprep.mubr.f32.mxu0 0.0
        %979 = vmatmul.mubr.f32.gmra.mxu0 %v612
        %v980 = vpop.f32.mrf.mxu0
        %v981 = vadd.f32 0.0, %v980
        %v982 = vpop.f32.mrf.mxu0
        %983 = vmatprep.mubr.f32.mxu0 0.0
        %984 = vmatmul.mubr.f32.gmra.mxu0 %v614
        %v985 = vpop.f32.mrf.mxu0
        %v986 = vadd.f32 0.0, %v985
        %v987 = vpop.f32.mrf.mxu0
        %988 = vmatprep.mubr.f32.mxu0 0.0
        %989 = vmatmul.mubr.f32.gmra.mxu0 %v616
        %v990 = vpop.f32.mrf.mxu0
        %v991 = vadd.f32 0.0, %v990
        %v992 = vpop.f32.mrf.mxu0
        %993 = vmatprep.mubr.f32.mxu0 0.0
        %994 = vmatmul.mubr.f32.gmra.mxu0 %v618
        %v995 = vpop.f32.mrf.mxu0
        %v996 = vadd.f32 0.0, %v995
        %v997 = vpop.f32.mrf.mxu0
        %998 = vmatprep.mubr.f32.mxu0 0.0
        %999 = vmatmul.mubr.f32.gmra.mxu0 %v620
        %v1000 = vpop.f32.mrf.mxu0
        %v1001 = vadd.f32 0.0, %v1000
        %v1002 = vpop.f32.mrf.mxu0
        %1003 = vmatprep.mubr.f32.mxu0 0.0
        %1004 = vmatmul.mubr.f32.gmra.mxu0 %v622
        %v1005 = vpop.f32.mrf.mxu0
        %v1006 = vadd.f32 0.0, %v1005
        %v1007 = vpop.f32.mrf.mxu0
        %1008 = vdwg.mxu0
        %v1009 = vsel %vm495, %v187, 0
        %v1011 = vsel %vm495, %v188, 0
        %v1013 = vsel %vm495, %v189, 0
        %v1015 = vsel %vm495, %v190, 0
        %v1017 = vsel %vm495, %v192, 0
        %v1019 = vsel %vm495, %v193, 0
        %v1021 = vsel %vm495, %v194, 0
        %v1023 = vsel %vm495, %v195, 0
        %v1025 = vsel %vm495, %v197, 0
        %v1027 = vsel %vm495, %v198, 0
        %v1029 = vsel %vm495, %v199, 0
        %v1031 = vsel %vm495, %v200, 0
        %v1033 = vsel %vm495, %v202, 0
        %v1035 = vsel %vm495, %v203, 0
        %v1037 = vsel %vm495, %v204, 0
        %v1039 = vsel %vm495, %v205, 0
        %v1041 = vsel %vm495, %v207, 0
        %v1043 = vsel %vm495, %v208, 0
        %v1045 = vsel %vm495, %v209, 0
        %v1047 = vsel %vm495, %v210, 0
        %v1049 = vsel %vm495, %v212, 0
        %v1051 = vsel %vm495, %v213, 0
        %v1053 = vsel %vm495, %v214, 0
        %v1055 = vsel %vm495, %v215, 0
        %v1057 = vsel %vm495, %v217, 0
        %v1059 = vsel %vm495, %v218, 0
        %v1061 = vsel %vm495, %v219, 0
        %v1063 = vsel %vm495, %v220, 0
        %v1065 = vsel %vm495, %v222, 0
        %v1067 = vsel %vm495, %v223, 0
        %v1069 = vsel %vm495, %v224, 0
        %v1071 = vsel %vm495, %v225, 0
        %v1073 = vsel %vm495, %v227, 0
        %v1075 = vsel %vm495, %v228, 0
        %v1077 = vsel %vm495, %v229, 0
        %v1079 = vsel %vm495, %v230, 0
        %v1081 = vsel %vm495, %v232, 0
        %v1083 = vsel %vm495, %v233, 0
        %v1085 = vsel %vm495, %v234, 0
        %v1087 = vsel %vm495, %v235, 0
        %v1089 = vsel %vm495, %v237, 0
        %v1091 = vsel %vm495, %v238, 0
        %v1093 = vsel %vm495, %v239, 0
        %v1095 = vsel %vm495, %v240, 0
        %v1097 = vsel %vm495, %v242, 0
        %v1099 = vsel %vm495, %v243, 0
        %v1101 = vsel %vm495, %v244, 0
        %v1103 = vsel %vm495, %v245, 0
        %v1105 = vsel %vm495, %v247, 0
        %v1107 = vsel %vm495, %v248, 0
        %v1109 = vsel %vm495, %v249, 0
        %v1111 = vsel %vm495, %v250, 0
        %v1113 = vsel %vm495, %v252, 0
        %v1115 = vsel %vm495, %v253, 0
        %v1117 = vsel %vm495, %v254, 0
        %v1119 = vsel %vm495, %v255, 0
        %v1121 = vsel %vm495, %v257, 0
        %v1123 = vsel %vm495, %v258, 0
        %v1125 = vsel %vm495, %v259, 0
        %v1127 = vsel %vm495, %v260, 0
        %v1129 = vsel %vm495, %v262, 0
        %v1131 = vsel %vm495, %v263, 0
        %v1133 = vsel %vm495, %v264, 0
        %v1135 = vsel %vm495, %v265, 0
        %1137 = vmatprep.subr.mxu0 0.0
        %1138 = vmatpush1.msra.mxu0 0.0
        %1139 = vmatprep.subr.mxu0 0.0
        %1140 = vmatpush1.msra.mxu0 0.0
        %1141 = vmatprep.subr.mxu0 0.0
        %1142 = vmatpush1.msra.mxu0 0.0
        %1143 = vmatprep.subr.mxu0 0.0
        %1144 = vmatpush1.msra.mxu0 0.0
        %1145 = vmatprep.subr.mxu0 0.0
        %1146 = vmatpush1.msra.mxu0 0.0
        %1147 = vmatprep.subr.mxu0 0.0
        %1148 = vmatpush1.msra.mxu0 0.0
        %1149 = vmatprep.subr.mxu0 0.0
        %1150 = vmatpush1.msra.mxu0 0.0
        %1151 = vmatprep.subr.mxu0 0.0
        %1152 = vmatpush1.msra.mxu0 0.0
        %1153 = vmatprep.subr.mxu0 0.0
        %1154 = vmatpush1.msra.mxu0 0.0
        %1155 = vmatprep.subr.mxu0 0.0
        %1156 = vmatpush1.msra.mxu0 0.0
        %1157 = vmatprep.subr.mxu0 0.0
        %1158 = vmatpush1.msra.mxu0 0.0
        %1159 = vmatprep.subr.mxu0 0.0
        %1160 = vmatpush1.msra.mxu0 0.0
        %1161 = vmatprep.subr.mxu0 0.0
        %1162 = vmatpush1.msra.mxu0 0.0
        %1163 = vmatprep.subr.mxu0 0.0
        %1164 = vmatpush1.msra.mxu0 0.0
        %1165 = vmatprep.subr.mxu0 0.0
        %1166 = vmatpush1.msra.mxu0 0.0
        %1167 = vmatprep.subr.mxu0 0.0
        %1168 = vmatpush1.msra.mxu0 %v267
        %1169 = vmatprep.subr.mxu0 0.0
        %1170 = vmatpush2.msra.mxu0 0.0
        %1171 = vmatprep.subr.mxu0 0.0
        %1172 = vmatpush2.msra.mxu0 0.0
        %1173 = vmatprep.subr.mxu0 0.0
        %1174 = vmatpush2.msra.mxu0 0.0
        %1175 = vmatprep.subr.mxu0 0.0
        %1176 = vmatpush2.msra.mxu0 0.0
        %1177 = vmatprep.subr.mxu0 0.0
        %1178 = vmatpush2.msra.mxu0 0.0
        %1179 = vmatprep.subr.mxu0 0.0
        %1180 = vmatpush2.msra.mxu0 0.0
        %1181 = vmatprep.subr.mxu0 0.0
        %1182 = vmatpush2.msra.mxu0 0.0
        %1183 = vmatprep.subr.mxu0 0.0
        %1184 = vmatpush2.msra.mxu0 0.0
        %1185 = vmatprep.subr.mxu0 0.0
        %1186 = vmatpush2.msra.mxu0 0.0
        %1187 = vmatprep.subr.mxu0 0.0
        %1188 = vmatpush2.msra.mxu0 0.0
        %1189 = vmatprep.subr.mxu0 0.0
        %1190 = vmatpush2.msra.mxu0 0.0
        %1191 = vmatprep.subr.mxu0 0.0
        %1192 = vmatpush2.msra.mxu0 0.0
        %1193 = vmatprep.subr.mxu0 0.0
        %1194 = vmatpush2.msra.mxu0 0.0
        %1195 = vmatprep.subr.mxu0 0.0
        %1196 = vmatpush2.msra.mxu0 0.0
        %1197 = vmatprep.subr.mxu0 0.0
        %1198 = vmatpush2.msra.mxu0 0.0
        %1199 = vmatprep.subr.mxu0 0.0
        %1200 = vmatpush2.msra.mxu0 0.0
        %1201 = vmatprep.mubr.f32.mxu0 0.0
        %1202 = vmatmul.mubr.f32.gmra.mxu0 %v1009
        %v1203 = vpop.f32.mrf.mxu0
        %v1204 = vadd.f32 %v691, %v1203
        %v1205 = vpop.f32.mrf.mxu0
        %1206 = vmatprep.mubr.f32.mxu0 0.0
        %1207 = vmatmul.mubr.f32.gmra.mxu0 %v1011
        %v1208 = vpop.f32.mrf.mxu0
        %v1209 = vadd.f32 %v696, %v1208
        %v1210 = vpop.f32.mrf.mxu0
        %1211 = vmatprep.mubr.f32.mxu0 0.0
        %1212 = vmatmul.mubr.f32.gmra.mxu0 %v1013
        %v1213 = vpop.f32.mrf.mxu0
        %v1214 = vadd.f32 %v701, %v1213
        %v1215 = vpop.f32.mrf.mxu0
        %1216 = vmatprep.mubr.f32.mxu0 0.0
        %1217 = vmatmul.mubr.f32.gmra.mxu0 %v1015
        %v1218 = vpop.f32.mrf.mxu0
        %v1219 = vadd.f32 %v706, %v1218
        %v1220 = vpop.f32.mrf.mxu0
        %1221 = vmatprep.mubr.f32.mxu0 0.0
        %1222 = vmatmul.mubr.f32.gmra.mxu0 %v1017
        %v1223 = vpop.f32.mrf.mxu0
        %v1224 = vadd.f32 %v711, %v1223
        %v1225 = vpop.f32.mrf.mxu0
        %1226 = vmatprep.mubr.f32.mxu0 0.0
        %1227 = vmatmul.mubr.f32.gmra.mxu0 %v1019
        %v1228 = vpop.f32.mrf.mxu0
        %v1229 = vadd.f32 %v716, %v1228
        %v1230 = vpop.f32.mrf.mxu0
        %1231 = vmatprep.mubr.f32.mxu0 0.0
        %1232 = vmatmul.mubr.f32.gmra.mxu0 %v1021
        %v1233 = vpop.f32.mrf.mxu0
        %v1234 = vadd.f32 %v721, %v1233
        %v1235 = vpop.f32.mrf.mxu0
        %1236 = vmatprep.mubr.f32.mxu0 0.0
        %1237 = vmatmul.mubr.f32.gmra.mxu0 %v1023
        %v1238 = vpop.f32.mrf.mxu0
        %v1239 = vadd.f32 %v726, %v1238
        %v1240 = vpop.f32.mrf.mxu0
        %1241 = vmatprep.mubr.f32.mxu0 0.0
        %1242 = vmatmul.mubr.f32.gmra.mxu0 %v1025
        %v1243 = vpop.f32.mrf.mxu0
        %v1244 = vadd.f32 %v731, %v1243
        %v1245 = vpop.f32.mrf.mxu0
        %1246 = vmatprep.mubr.f32.mxu0 0.0
        %1247 = vmatmul.mubr.f32.gmra.mxu0 %v1027
        %v1248 = vpop.f32.mrf.mxu0
        %v1249 = vadd.f32 %v736, %v1248
        %v1250 = vpop.f32.mrf.mxu0
        %1251 = vmatprep.mubr.f32.mxu0 0.0
        %1252 = vmatmul.mubr.f32.gmra.mxu0 %v1029
        %v1253 = vpop.f32.mrf.mxu0
        %v1254 = vadd.f32 %v741, %v1253
        %v1255 = vpop.f32.mrf.mxu0
        %1256 = vmatprep.mubr.f32.mxu0 0.0
        %1257 = vmatmul.mubr.f32.gmra.mxu0 %v1031
        %v1258 = vpop.f32.mrf.mxu0
        %v1259 = vadd.f32 %v746, %v1258
        %v1260 = vpop.f32.mrf.mxu0
        %1261 = vmatprep.mubr.f32.mxu0 0.0
        %1262 = vmatmul.mubr.f32.gmra.mxu0 %v1033
        %v1263 = vpop.f32.mrf.mxu0
        %v1264 = vadd.f32 %v751, %v1263
        %v1265 = vpop.f32.mrf.mxu0
        %1266 = vmatprep.mubr.f32.mxu0 0.0
        %1267 = vmatmul.mubr.f32.gmra.mxu0 %v1035
        %v1268 = vpop.f32.mrf.mxu0
        %v1269 = vadd.f32 %v756, %v1268
        %v1270 = vpop.f32.mrf.mxu0
        %1271 = vmatprep.mubr.f32.mxu0 0.0
        %1272 = vmatmul.mubr.f32.gmra.mxu0 %v1037
        %v1273 = vpop.f32.mrf.mxu0
        %v1274 = vadd.f32 %v761, %v1273
        %v1275 = vpop.f32.mrf.mxu0
        %1276 = vmatprep.mubr.f32.mxu0 0.0
        %1277 = vmatmul.mubr.f32.gmra.mxu0 %v1039
        %v1278 = vpop.f32.mrf.mxu0
        %v1279 = vadd.f32 %v766, %v1278
        %v1280 = vpop.f32.mrf.mxu0
        %1281 = vmatprep.mubr.f32.mxu0 0.0
        %1282 = vmatmul.mubr.f32.gmra.mxu0 %v1041
        %v1283 = vpop.f32.mrf.mxu0
        %v1284 = vadd.f32 %v771, %v1283
        %v1285 = vpop.f32.mrf.mxu0
        %1286 = vmatprep.mubr.f32.mxu0 0.0
        %1287 = vmatmul.mubr.f32.gmra.mxu0 %v1043
        %v1288 = vpop.f32.mrf.mxu0
        %v1289 = vadd.f32 %v776, %v1288
        %v1290 = vpop.f32.mrf.mxu0
        %1291 = vmatprep.mubr.f32.mxu0 0.0
        %1292 = vmatmul.mubr.f32.gmra.mxu0 %v1045
        %v1293 = vpop.f32.mrf.mxu0
        %v1294 = vadd.f32 %v781, %v1293
        %v1295 = vpop.f32.mrf.mxu0
        %1296 = vmatprep.mubr.f32.mxu0 0.0
        %1297 = vmatmul.mubr.f32.gmra.mxu0 %v1047
        %v1298 = vpop.f32.mrf.mxu0
        %v1299 = vadd.f32 %v786, %v1298
        %v1300 = vpop.f32.mrf.mxu0
        %1301 = vmatprep.mubr.f32.mxu0 0.0
        %1302 = vmatmul.mubr.f32.gmra.mxu0 %v1049
        %v1303 = vpop.f32.mrf.mxu0
        %v1304 = vadd.f32 %v791, %v1303
        %v1305 = vpop.f32.mrf.mxu0
        %1306 = vmatprep.mubr.f32.mxu0 0.0
        %1307 = vmatmul.mubr.f32.gmra.mxu0 %v1051
        %v1308 = vpop.f32.mrf.mxu0
        %v1309 = vadd.f32 %v796, %v1308
        %v1310 = vpop.f32.mrf.mxu0
        %1311 = vmatprep.mubr.f32.mxu0 0.0
        %1312 = vmatmul.mubr.f32.gmra.mxu0 %v1053
        %v1313 = vpop.f32.mrf.mxu0
        %v1314 = vadd.f32 %v801, %v1313
        %v1315 = vpop.f32.mrf.mxu0
        %1316 = vmatprep.mubr.f32.mxu0 0.0
        %1317 = vmatmul.mubr.f32.gmra.mxu0 %v1055
        %v1318 = vpop.f32.mrf.mxu0
        %v1319 = vadd.f32 %v806, %v1318
        %v1320 = vpop.f32.mrf.mxu0
        %1321 = vmatprep.mubr.f32.mxu0 0.0
        %1322 = vmatmul.mubr.f32.gmra.mxu0 %v1057
        %v1323 = vpop.f32.mrf.mxu0
        %v1324 = vadd.f32 %v811, %v1323
        %v1325 = vpop.f32.mrf.mxu0
        %1326 = vmatprep.mubr.f32.mxu0 0.0
        %1327 = vmatmul.mubr.f32.gmra.mxu0 %v1059
        %v1328 = vpop.f32.mrf.mxu0
        %v1329 = vadd.f32 %v816, %v1328
        %v1330 = vpop.f32.mrf.mxu0
        %1331 = vmatprep.mubr.f32.mxu0 0.0
        %1332 = vmatmul.mubr.f32.gmra.mxu0 %v1061
        %v1333 = vpop.f32.mrf.mxu0
        %v1334 = vadd.f32 %v821, %v1333
        %v1335 = vpop.f32.mrf.mxu0
        %1336 = vmatprep.mubr.f32.mxu0 0.0
        %1337 = vmatmul.mubr.f32.gmra.mxu0 %v1063
        %v1338 = vpop.f32.mrf.mxu0
        %v1339 = vadd.f32 %v826, %v1338
        %v1340 = vpop.f32.mrf.mxu0
        %1341 = vmatprep.mubr.f32.mxu0 0.0
        %1342 = vmatmul.mubr.f32.gmra.mxu0 %v1065
        %v1343 = vpop.f32.mrf.mxu0
        %v1344 = vadd.f32 %v831, %v1343
        %v1345 = vpop.f32.mrf.mxu0
        %1346 = vmatprep.mubr.f32.mxu0 0.0
        %1347 = vmatmul.mubr.f32.gmra.mxu0 %v1067
        %v1348 = vpop.f32.mrf.mxu0
        %v1349 = vadd.f32 %v836, %v1348
        %v1350 = vpop.f32.mrf.mxu0
        %1351 = vmatprep.mubr.f32.mxu0 0.0
        %1352 = vmatmul.mubr.f32.gmra.mxu0 %v1069
        %v1353 = vpop.f32.mrf.mxu0
        %v1354 = vadd.f32 %v841, %v1353
        %v1355 = vpop.f32.mrf.mxu0
        %1356 = vmatprep.mubr.f32.mxu0 0.0
        %1357 = vmatmul.mubr.f32.gmra.mxu0 %v1071
        %v1358 = vpop.f32.mrf.mxu0
        %v1359 = vadd.f32 %v846, %v1358
        %v1360 = vpop.f32.mrf.mxu0
        %1361 = vmatprep.mubr.f32.mxu0 0.0
        %1362 = vmatmul.mubr.f32.gmra.mxu0 %v1073
        %v1363 = vpop.f32.mrf.mxu0
        %v1364 = vadd.f32 %v851, %v1363
        %v1365 = vpop.f32.mrf.mxu0
        %1366 = vmatprep.mubr.f32.mxu0 0.0
        %1367 = vmatmul.mubr.f32.gmra.mxu0 %v1075
        %v1368 = vpop.f32.mrf.mxu0
        %v1369 = vadd.f32 %v856, %v1368
        %v1370 = vpop.f32.mrf.mxu0
        %1371 = vmatprep.mubr.f32.mxu0 0.0
        %1372 = vmatmul.mubr.f32.gmra.mxu0 %v1077
        %v1373 = vpop.f32.mrf.mxu0
        %v1374 = vadd.f32 %v861, %v1373
        %v1375 = vpop.f32.mrf.mxu0
        %1376 = vmatprep.mubr.f32.mxu0 0.0
        %1377 = vmatmul.mubr.f32.gmra.mxu0 %v1079
        %v1378 = vpop.f32.mrf.mxu0
        %v1379 = vadd.f32 %v866, %v1378
        %v1380 = vpop.f32.mrf.mxu0
        %1381 = vmatprep.mubr.f32.mxu0 0.0
        %1382 = vmatmul.mubr.f32.gmra.mxu0 %v1081
        %v1383 = vpop.f32.mrf.mxu0
        %v1384 = vadd.f32 %v871, %v1383
        %v1385 = vpop.f32.mrf.mxu0
        %1386 = vmatprep.mubr.f32.mxu0 0.0
        %1387 = vmatmul.mubr.f32.gmra.mxu0 %v1083
        %v1388 = vpop.f32.mrf.mxu0
        %v1389 = vadd.f32 %v876, %v1388
        %v1390 = vpop.f32.mrf.mxu0
        %1391 = vmatprep.mubr.f32.mxu0 0.0
        %1392 = vmatmul.mubr.f32.gmra.mxu0 %v1085
        %v1393 = vpop.f32.mrf.mxu0
        %v1394 = vadd.f32 %v881, %v1393
        %v1395 = vpop.f32.mrf.mxu0
        %1396 = vmatprep.mubr.f32.mxu0 0.0
        %1397 = vmatmul.mubr.f32.gmra.mxu0 %v1087
        %v1398 = vpop.f32.mrf.mxu0
        %v1399 = vadd.f32 %v886, %v1398
        %v1400 = vpop.f32.mrf.mxu0
        %1401 = vmatprep.mubr.f32.mxu0 0.0
        %1402 = vmatmul.mubr.f32.gmra.mxu0 %v1089
        %v1403 = vpop.f32.mrf.mxu0
        %v1404 = vadd.f32 %v891, %v1403
        %v1405 = vpop.f32.mrf.mxu0
        %1406 = vmatprep.mubr.f32.mxu0 0.0
        %1407 = vmatmul.mubr.f32.gmra.mxu0 %v1091
        %v1408 = vpop.f32.mrf.mxu0
        %v1409 = vadd.f32 %v896, %v1408
        %v1410 = vpop.f32.mrf.mxu0
        %1411 = vmatprep.mubr.f32.mxu0 0.0
        %1412 = vmatmul.mubr.f32.gmra.mxu0 %v1093
        %v1413 = vpop.f32.mrf.mxu0
        %v1414 = vadd.f32 %v901, %v1413
        %v1415 = vpop.f32.mrf.mxu0
        %1416 = vmatprep.mubr.f32.mxu0 0.0
        %1417 = vmatmul.mubr.f32.gmra.mxu0 %v1095
        %v1418 = vpop.f32.mrf.mxu0
        %v1419 = vadd.f32 %v906, %v1418
        %v1420 = vpop.f32.mrf.mxu0
        %1421 = vmatprep.mubr.f32.mxu0 0.0
        %1422 = vmatmul.mubr.f32.gmra.mxu0 %v1097
        %v1423 = vpop.f32.mrf.mxu0
        %v1424 = vadd.f32 %v911, %v1423
        %v1425 = vpop.f32.mrf.mxu0
        %1426 = vmatprep.mubr.f32.mxu0 0.0
        %1427 = vmatmul.mubr.f32.gmra.mxu0 %v1099
        %v1428 = vpop.f32.mrf.mxu0
        %v1429 = vadd.f32 %v916, %v1428
        %v1430 = vpop.f32.mrf.mxu0
        %1431 = vmatprep.mubr.f32.mxu0 0.0
        %1432 = vmatmul.mubr.f32.gmra.mxu0 %v1101
        %v1433 = vpop.f32.mrf.mxu0
        %v1434 = vadd.f32 %v921, %v1433
        %v1435 = vpop.f32.mrf.mxu0
        %1436 = vmatprep.mubr.f32.mxu0 0.0
        %1437 = vmatmul.mubr.f32.gmra.mxu0 %v1103
        %v1438 = vpop.f32.mrf.mxu0
        %v1439 = vadd.f32 %v926, %v1438
        %v1440 = vpop.f32.mrf.mxu0
        %1441 = vmatprep.mubr.f32.mxu0 0.0
        %1442 = vmatmul.mubr.f32.gmra.mxu0 %v1105
        %v1443 = vpop.f32.mrf.mxu0
        %v1444 = vadd.f32 %v931, %v1443
        %v1445 = vpop.f32.mrf.mxu0
        %1446 = vmatprep.mubr.f32.mxu0 0.0
        %1447 = vmatmul.mubr.f32.gmra.mxu0 %v1107
        %v1448 = vpop.f32.mrf.mxu0
        %v1449 = vadd.f32 %v936, %v1448
        %v1450 = vpop.f32.mrf.mxu0
        %1451 = vmatprep.mubr.f32.mxu0 0.0
        %1452 = vmatmul.mubr.f32.gmra.mxu0 %v1109
        %v1453 = vpop.f32.mrf.mxu0
        %v1454 = vadd.f32 %v941, %v1453
        %v1455 = vpop.f32.mrf.mxu0
        %1456 = vmatprep.mubr.f32.mxu0 0.0
        %1457 = vmatmul.mubr.f32.gmra.mxu0 %v1111
        %v1458 = vpop.f32.mrf.mxu0
        %v1459 = vadd.f32 %v946, %v1458
        %v1460 = vpop.f32.mrf.mxu0
        %1461 = vmatprep.mubr.f32.mxu0 0.0
        %1462 = vmatmul.mubr.f32.gmra.mxu0 %v1113
        %v1463 = vpop.f32.mrf.mxu0
        %v1464 = vadd.f32 %v951, %v1463
        %v1465 = vpop.f32.mrf.mxu0
        %1466 = vmatprep.mubr.f32.mxu0 0.0
        %1467 = vmatmul.mubr.f32.gmra.mxu0 %v1115
        %v1468 = vpop.f32.mrf.mxu0
        %v1469 = vadd.f32 %v956, %v1468
        %v1470 = vpop.f32.mrf.mxu0
        %1471 = vmatprep.mubr.f32.mxu0 0.0
        %1472 = vmatmul.mubr.f32.gmra.mxu0 %v1117
        %v1473 = vpop.f32.mrf.mxu0
        %v1474 = vadd.f32 %v961, %v1473
        %v1475 = vpop.f32.mrf.mxu0
        %1476 = vmatprep.mubr.f32.mxu0 0.0
        %1477 = vmatmul.mubr.f32.gmra.mxu0 %v1119
        %v1478 = vpop.f32.mrf.mxu0
        %v1479 = vadd.f32 %v966, %v1478
        %v1480 = vpop.f32.mrf.mxu0
        %1481 = vmatprep.mubr.f32.mxu0 0.0
        %1482 = vmatmul.mubr.f32.gmra.mxu0 %v1121
        %v1483 = vpop.f32.mrf.mxu0
        %v1484 = vadd.f32 %v971, %v1483
        %v1485 = vpop.f32.mrf.mxu0
        %1486 = vmatprep.mubr.f32.mxu0 0.0
        %1487 = vmatmul.mubr.f32.gmra.mxu0 %v1123
        %v1488 = vpop.f32.mrf.mxu0
        %v1489 = vadd.f32 %v976, %v1488
        %v1490 = vpop.f32.mrf.mxu0
        %1491 = vmatprep.mubr.f32.mxu0 0.0
        %1492 = vmatmul.mubr.f32.gmra.mxu0 %v1125
        %v1493 = vpop.f32.mrf.mxu0
        %v1494 = vadd.f32 %v981, %v1493
        %v1495 = vpop.f32.mrf.mxu0
        %1496 = vmatprep.mubr.f32.mxu0 0.0
        %1497 = vmatmul.mubr.f32.gmra.mxu0 %v1127
        %v1498 = vpop.f32.mrf.mxu0
        %v1499 = vadd.f32 %v986, %v1498
        %v1500 = vpop.f32.mrf.mxu0
        %1501 = vmatprep.mubr.f32.mxu0 0.0
        %1502 = vmatmul.mubr.f32.gmra.mxu0 %v1129
        %v1503 = vpop.f32.mrf.mxu0
        %v1504 = vadd.f32 %v991, %v1503
        %v1505 = vpop.f32.mrf.mxu0
        %1506 = vmatprep.mubr.f32.mxu0 0.0
        %1507 = vmatmul.mubr.f32.gmra.mxu0 %v1131
        %v1508 = vpop.f32.mrf.mxu0
        %v1509 = vadd.f32 %v996, %v1508
        %v1510 = vpop.f32.mrf.mxu0
        %1511 = vmatprep.mubr.f32.mxu0 0.0
        %1512 = vmatmul.mubr.f32.gmra.mxu0 %v1133
        %v1513 = vpop.f32.mrf.mxu0
        %v1514 = vadd.f32 %v1001, %v1513
        %v1515 = vpop.f32.mrf.mxu0
        %1516 = vmatprep.mubr.f32.mxu0 0.0
        %1517 = vmatmul.mubr.f32.gmra.mxu0 %v1135
        %v1518 = vpop.f32.mrf.mxu0
        %v1519 = vadd.f32 %v1006, %v1518
        %v1520 = vpop.f32.mrf.mxu0
        %1521 = vdwg.mxu0
        %vm1522 = vcmask 1045504
        %v1523 = vrot.slane %v187, 2
        %v1524 = vrot.slane %v188, 2
        %v1525 = vsel %vm1522, %v1523, %v1524
        %v1526 = vrot.slane %v189, 2
        %v1527 = vsel %vm1522, %v1524, %v1526
        %v1528 = vrot.slane %v190, 2
        %v1529 = vsel %vm1522, %v1526, %v1528
        %v1530 = vrot.slane %v191, 2
        %v1531 = vsel %vm1522, %v1528, %v1530
        %v1532 = vrot.slane %v192, 2
        %v1533 = vrot.slane %v193, 2
        %v1534 = vsel %vm1522, %v1532, %v1533
        %v1535 = vrot.slane %v194, 2
        %v1536 = vsel %vm1522, %v1533, %v1535
        %v1537 = vrot.slane %v195, 2
        %v1538 = vsel %vm1522, %v1535, %v1537
        %v1539 = vrot.slane %v196, 2
        %v1540 = vsel %vm1522, %v1537, %v1539
        %v1541 = vrot.slane %v197, 2
        %v1542 = vrot.slane %v198, 2
        %v1543 = vsel %vm1522, %v1541, %v1542
        %v1544 = vrot.slane %v199, 2
        %v1545 = vsel %vm1522, %v1542, %v1544
        %v1546 = vrot.slane %v200, 2
        %v1547 = vsel %vm1522, %v1544, %v1546
        %v1548 = vrot.slane %v201, 2
        %v1549 = vsel %vm1522, %v1546, %v1548
        %v1550 = vrot.slane %v202, 2
        %v1551 = vrot.slane %v203, 2
        %v1552 = vsel %vm1522, %v1550, %v1551
        %v1553 = vrot.slane %v204, 2
        %v1554 = vsel %vm1522, %v1551, %v1553
        %v1555 = vrot.slane %v205, 2
        %v1556 = vsel %vm1522, %v1553, %v1555
        %v1557 = vrot.slane %v206, 2
        %v1558 = vsel %vm1522, %v1555, %v1557
        %v1559 = vrot.slane %v207, 2
        %v1560 = vrot.slane %v208, 2
        %v1561 = vsel %vm1522, %v1559, %v1560
        %v1562 = vrot.slane %v209, 2
        %v1563 = vsel %vm1522, %v1560, %v1562
        %v1564 = vrot.slane %v210, 2
        %v1565 = vsel %vm1522, %v1562, %v1564
        %v1566 = vrot.slane %v211, 2
        %v1567 = vsel %vm1522, %v1564, %v1566
        %v1568 = vrot.slane %v212, 2
        %v1569 = vrot.slane %v213, 2
        %v1570 = vsel %vm1522, %v1568, %v1569
        %v1571 = vrot.slane %v214, 2
        %v1572 = vsel %vm1522, %v1569, %v1571
        %v1573 = vrot.slane %v215, 2
        %v1574 = vsel %vm1522, %v1571, %v1573
        %v1575 = vrot.slane %v216, 2
        %v1576 = vsel %vm1522, %v1573, %v1575
        %v1577 = vrot.slane %v217, 2
        %v1578 = vrot.slane %v218, 2
        %v1579 = vsel %vm1522, %v1577, %v1578
        %v1580 = vrot.slane %v219, 2
        %v1581 = vsel %vm1522, %v1578, %v1580
        %v1582 = vrot.slane %v220, 2
        %v1583 = vsel %vm1522, %v1580, %v1582
        %v1584 = vrot.slane %v221, 2
        %v1585 = vsel %vm1522, %v1582, %v1584
        %v1586 = vrot.slane %v222, 2
        %v1587 = vrot.slane %v223, 2
        %v1588 = vsel %vm1522, %v1586, %v1587
        %v1589 = vrot.slane %v224, 2
        %v1590 = vsel %vm1522, %v1587, %v1589
        %v1591 = vrot.slane %v225, 2
        %v1592 = vsel %vm1522, %v1589, %v1591
        %v1593 = vrot.slane %v226, 2
        %v1594 = vsel %vm1522, %v1591, %v1593
        %v1595 = vrot.slane %v227, 2
        %v1596 = vrot.slane %v228, 2
        %v1597 = vsel %vm1522, %v1595, %v1596
        %v1598 = vrot.slane %v229, 2
        %v1599 = vsel %vm1522, %v1596, %v1598
        %v1600 = vrot.slane %v230, 2
        %v1601 = vsel %vm1522, %v1598, %v1600
        %v1602 = vrot.slane %v231, 2
        %v1603 = vsel %vm1522, %v1600, %v1602
        %v1604 = vrot.slane %v232, 2
        %v1605 = vrot.slane %v233, 2
        %v1606 = vsel %vm1522, %v1604, %v1605
        %v1607 = vrot.slane %v234, 2
        %v1608 = vsel %vm1522, %v1605, %v1607
        %v1609 = vrot.slane %v235, 2
        %v1610 = vsel %vm1522, %v1607, %v1609
        %v1611 = vrot.slane %v236, 2
        %v1612 = vsel %vm1522, %v1609, %v1611
        %v1613 = vrot.slane %v237, 2
        %v1614 = vrot.slane %v238, 2
        %v1615 = vsel %vm1522, %v1613, %v1614
        %v1616 = vrot.slane %v239, 2
        %v1617 = vsel %vm1522, %v1614, %v1616
        %v1618 = vrot.slane %v240, 2
        %v1619 = vsel %vm1522, %v1616, %v1618
        %v1620 = vrot.slane %v241, 2
        %v1621 = vsel %vm1522, %v1618, %v1620
        %v1622 = vrot.slane %v242, 2
        %v1623 = vrot.slane %v243, 2
        %v1624 = vsel %vm1522, %v1622, %v1623
        %v1625 = vrot.slane %v244, 2
        %v1626 = vsel %vm1522, %v1623, %v1625
        %v1627 = vrot.slane %v245, 2
        %v1628 = vsel %vm1522, %v1625, %v1627
        %v1629 = vrot.slane %v246, 2
        %v1630 = vsel %vm1522, %v1627, %v1629
        %v1631 = vrot.slane %v247, 2
        %v1632 = vrot.slane %v248, 2
        %v1633 = vsel %vm1522, %v1631, %v1632
        %v1634 = vrot.slane %v249, 2
        %v1635 = vsel %vm1522, %v1632, %v1634
        %v1636 = vrot.slane %v250, 2
        %v1637 = vsel %vm1522, %v1634, %v1636
        %v1638 = vrot.slane %v251, 2
        %v1639 = vsel %vm1522, %v1636, %v1638
        %v1640 = vrot.slane %v252, 2
        %v1641 = vrot.slane %v253, 2
        %v1642 = vsel %vm1522, %v1640, %v1641
        %v1643 = vrot.slane %v254, 2
        %v1644 = vsel %vm1522, %v1641, %v1643
        %v1645 = vrot.slane %v255, 2
        %v1646 = vsel %vm1522, %v1643, %v1645
        %v1647 = vrot.slane %v256, 2
        %v1648 = vsel %vm1522, %v1645, %v1647
        %v1649 = vrot.slane %v257, 2
        %v1650 = vrot.slane %v258, 2
        %v1651 = vsel %vm1522, %v1649, %v1650
        %v1652 = vrot.slane %v259, 2
        %v1653 = vsel %vm1522, %v1650, %v1652
        %v1654 = vrot.slane %v260, 2
        %v1655 = vsel %vm1522, %v1652, %v1654
        %v1656 = vrot.slane %v261, 2
        %v1657 = vsel %vm1522, %v1654, %v1656
        %v1658 = vrot.slane %v262, 2
        %v1659 = vrot.slane %v263, 2
        %v1660 = vsel %vm1522, %v1658, %v1659
        %v1661 = vrot.slane %v264, 2
        %v1662 = vsel %vm1522, %v1659, %v1661
        %v1663 = vrot.slane %v265, 2
        %v1664 = vsel %vm1522, %v1661, %v1663
        %v1665 = vrot.slane %v266, 2
        %v1666 = vsel %vm1522, %v1663, %v1665
        %s1667 = scalar_lea.vmem %s1, 16
        %v1668 = vld [vmem:[%s1667] sm:$0xff]
        %v1669 = vsel %vm495, %v1525, 0
        %v1671 = vsel %vm495, %v1527, 0
        %v1673 = vsel %vm495, %v1529, 0
        %v1675 = vsel %vm495, %v1531, 0
        %v1677 = vsel %vm495, %v1534, 0
        %v1679 = vsel %vm495, %v1536, 0
        %v1681 = vsel %vm495, %v1538, 0
        %v1683 = vsel %vm495, %v1540, 0
        %v1685 = vsel %vm495, %v1543, 0
        %v1687 = vsel %vm495, %v1545, 0
        %v1689 = vsel %vm495, %v1547, 0
        %v1691 = vsel %vm495, %v1549, 0
        %v1693 = vsel %vm495, %v1552, 0
        %v1695 = vsel %vm495, %v1554, 0
        %v1697 = vsel %vm495, %v1556, 0
        %v1699 = vsel %vm495, %v1558, 0
        %v1701 = vsel %vm495, %v1561, 0
        %v1703 = vsel %vm495, %v1563, 0
        %v1705 = vsel %vm495, %v1565, 0
        %v1707 = vsel %vm495, %v1567, 0
        %v1709 = vsel %vm495, %v1570, 0
        %v1711 = vsel %vm495, %v1572, 0
        %v1713 = vsel %vm495, %v1574, 0
        %v1715 = vsel %vm495, %v1576, 0
        %v1717 = vsel %vm495, %v1579, 0
        %v1719 = vsel %vm495, %v1581, 0
        %v1721 = vsel %vm495, %v1583, 0
        %v1723 = vsel %vm495, %v1585, 0
        %v1725 = vsel %vm495, %v1588, 0
        %v1727 = vsel %vm495, %v1590, 0
        %v1729 = vsel %vm495, %v1592, 0
        %v1731 = vsel %vm495, %v1594, 0
        %v1733 = vsel %vm495, %v1597, 0
        %v1735 = vsel %vm495, %v1599, 0
        %v1737 = vsel %vm495, %v1601, 0
        %v1739 = vsel %vm495, %v1603, 0
        %v1741 = vsel %vm495, %v1606, 0
        %v1743 = vsel %vm495, %v1608, 0
        %v1745 = vsel %vm495, %v1610, 0
        %v1747 = vsel %vm495, %v1612, 0
        %v1749 = vsel %vm495, %v1615, 0
        %v1751 = vsel %vm495, %v1617, 0
        %v1753 = vsel %vm495, %v1619, 0
        %v1755 = vsel %vm495, %v1621, 0
        %v1757 = vsel %vm495, %v1624, 0
        %v1759 = vsel %vm495, %v1626, 0
        %v1761 = vsel %vm495, %v1628, 0
        %v1763 = vsel %vm495, %v1630, 0
        %v1765 = vsel %vm495, %v1633, 0
        %v1767 = vsel %vm495, %v1635, 0
        %v1769 = vsel %vm495, %v1637, 0
        %v1771 = vsel %vm495, %v1639, 0
        %v1773 = vsel %vm495, %v1642, 0
        %v1775 = vsel %vm495, %v1644, 0
        %v1777 = vsel %vm495, %v1646, 0
        %v1779 = vsel %vm495, %v1648, 0
        %v1781 = vsel %vm495, %v1651, 0
        %v1783 = vsel %vm495, %v1653, 0
        %v1785 = vsel %vm495, %v1655, 0
        %v1787 = vsel %vm495, %v1657, 0
        %v1789 = vsel %vm495, %v1660, 0
        %v1791 = vsel %vm495, %v1662, 0
        %v1793 = vsel %vm495, %v1664, 0
        %v1795 = vsel %vm495, %v1666, 0
        %1797 = vmatprep.subr.mxu0 0.0
        %1798 = vmatpush1.msra.mxu0 0.0
        %1799 = vmatprep.subr.mxu0 0.0
        %1800 = vmatpush1.msra.mxu0 0.0
        %1801 = vmatprep.subr.mxu0 0.0
        %1802 = vmatpush1.msra.mxu0 0.0
        %1803 = vmatprep.subr.mxu0 0.0
        %1804 = vmatpush1.msra.mxu0 0.0
        %1805 = vmatprep.subr.mxu0 0.0
        %1806 = vmatpush1.msra.mxu0 0.0
        %1807 = vmatprep.subr.mxu0 0.0
        %1808 = vmatpush1.msra.mxu0 0.0
        %1809 = vmatprep.subr.mxu0 0.0
        %1810 = vmatpush1.msra.mxu0 0.0
        %1811 = vmatprep.subr.mxu0 0.0
        %1812 = vmatpush1.msra.mxu0 0.0
        %1813 = vmatprep.subr.mxu0 0.0
        %1814 = vmatpush1.msra.mxu0 0.0
        %1815 = vmatprep.subr.mxu0 0.0
        %1816 = vmatpush1.msra.mxu0 0.0
        %1817 = vmatprep.subr.mxu0 0.0
        %1818 = vmatpush1.msra.mxu0 0.0
        %1819 = vmatprep.subr.mxu0 0.0
        %1820 = vmatpush1.msra.mxu0 0.0
        %1821 = vmatprep.subr.mxu0 0.0
        %1822 = vmatpush1.msra.mxu0 0.0
        %1823 = vmatprep.subr.mxu0 0.0
        %1824 = vmatpush1.msra.mxu0 0.0
        %1825 = vmatprep.subr.mxu0 0.0
        %1826 = vmatpush1.msra.mxu0 0.0
        %1827 = vmatprep.subr.mxu0 0.0
        %1828 = vmatpush1.msra.mxu0 %v1668
        %1829 = vmatprep.subr.mxu0 0.0
        %1830 = vmatpush2.msra.mxu0 0.0
        %1831 = vmatprep.subr.mxu0 0.0
        %1832 = vmatpush2.msra.mxu0 0.0
        %1833 = vmatprep.subr.mxu0 0.0
        %1834 = vmatpush2.msra.mxu0 0.0
        %1835 = vmatprep.subr.mxu0 0.0
        %1836 = vmatpush2.msra.mxu0 0.0
        %1837 = vmatprep.subr.mxu0 0.0
        %1838 = vmatpush2.msra.mxu0 0.0
        %1839 = vmatprep.subr.mxu0 0.0
        %1840 = vmatpush2.msra.mxu0 0.0
        %1841 = vmatprep.subr.mxu0 0.0
        %1842 = vmatpush2.msra.mxu0 0.0
        %1843 = vmatprep.subr.mxu0 0.0
        %1844 = vmatpush2.msra.mxu0 0.0
        %1845 = vmatprep.subr.mxu0 0.0
        %1846 = vmatpush2.msra.mxu0 0.0
        %1847 = vmatprep.subr.mxu0 0.0
        %1848 = vmatpush2.msra.mxu0 0.0
        %1849 = vmatprep.subr.mxu0 0.0
        %1850 = vmatpush2.msra.mxu0 0.0
        %1851 = vmatprep.subr.mxu0 0.0
        %1852 = vmatpush2.msra.mxu0 0.0
        %1853 = vmatprep.subr.mxu0 0.0
        %1854 = vmatpush2.msra.mxu0 0.0
        %1855 = vmatprep.subr.mxu0 0.0
        %1856 = vmatpush2.msra.mxu0 0.0
        %1857 = vmatprep.subr.mxu0 0.0
        %1858 = vmatpush2.msra.mxu0 0.0
        %1859 = vmatprep.subr.mxu0 0.0
        %1860 = vmatpush2.msra.mxu0 0.0
        %1861 = vmatprep.mubr.f32.mxu0 0.0
        %1862 = vmatmul.mubr.f32.gmra.mxu0 %v1669
        %v1863 = vpop.f32.mrf.mxu0
        %v1864 = vadd.f32 0.0, %v1863
        %v1865 = vpop.f32.mrf.mxu0
        %1866 = vmatprep.mubr.f32.mxu0 0.0
        %1867 = vmatmul.mubr.f32.gmra.mxu0 %v1671
        %v1868 = vpop.f32.mrf.mxu0
        %v1869 = vadd.f32 0.0, %v1868
        %v1870 = vpop.f32.mrf.mxu0
        %1871 = vmatprep.mubr.f32.mxu0 0.0
        %1872 = vmatmul.mubr.f32.gmra.mxu0 %v1673
        %v1873 = vpop.f32.mrf.mxu0
        %v1874 = vadd.f32 0.0, %v1873
        %v1875 = vpop.f32.mrf.mxu0
        %1876 = vmatprep.mubr.f32.mxu0 0.0
        %1877 = vmatmul.mubr.f32.gmra.mxu0 %v1675
        %v1878 = vpop.f32.mrf.mxu0
        %v1879 = vadd.f32 0.0, %v1878
        %v1880 = vpop.f32.mrf.mxu0
        %1881 = vmatprep.mubr.f32.mxu0 0.0
        %1882 = vmatmul.mubr.f32.gmra.mxu0 %v1677
        %v1883 = vpop.f32.mrf.mxu0
        %v1884 = vadd.f32 0.0, %v1883
        %v1885 = vpop.f32.mrf.mxu0
        %1886 = vmatprep.mubr.f32.mxu0 0.0
        %1887 = vmatmul.mubr.f32.gmra.mxu0 %v1679
        %v1888 = vpop.f32.mrf.mxu0
        %v1889 = vadd.f32 0.0, %v1888
        %v1890 = vpop.f32.mrf.mxu0
        %1891 = vmatprep.mubr.f32.mxu0 0.0
        %1892 = vmatmul.mubr.f32.gmra.mxu0 %v1681
        %v1893 = vpop.f32.mrf.mxu0
        %v1894 = vadd.f32 0.0, %v1893
        %v1895 = vpop.f32.mrf.mxu0
        %1896 = vmatprep.mubr.f32.mxu0 0.0
        %1897 = vmatmul.mubr.f32.gmra.mxu0 %v1683
        %v1898 = vpop.f32.mrf.mxu0
        %v1899 = vadd.f32 0.0, %v1898
        %v1900 = vpop.f32.mrf.mxu0
        %1901 = vmatprep.mubr.f32.mxu0 0.0
        %1902 = vmatmul.mubr.f32.gmra.mxu0 %v1685
        %v1903 = vpop.f32.mrf.mxu0
        %v1904 = vadd.f32 0.0, %v1903
        %v1905 = vpop.f32.mrf.mxu0
        %1906 = vmatprep.mubr.f32.mxu0 0.0
        %1907 = vmatmul.mubr.f32.gmra.mxu0 %v1687
        %v1908 = vpop.f32.mrf.mxu0
        %v1909 = vadd.f32 0.0, %v1908
        %v1910 = vpop.f32.mrf.mxu0
        %1911 = vmatprep.mubr.f32.mxu0 0.0
        %1912 = vmatmul.mubr.f32.gmra.mxu0 %v1689
        %v1913 = vpop.f32.mrf.mxu0
        %v1914 = vadd.f32 0.0, %v1913
        %v1915 = vpop.f32.mrf.mxu0
        %1916 = vmatprep.mubr.f32.mxu0 0.0
        %1917 = vmatmul.mubr.f32.gmra.mxu0 %v1691
        %v1918 = vpop.f32.mrf.mxu0
        %v1919 = vadd.f32 0.0, %v1918
        %v1920 = vpop.f32.mrf.mxu0
        %1921 = vmatprep.mubr.f32.mxu0 0.0
        %1922 = vmatmul.mubr.f32.gmra.mxu0 %v1693
        %v1923 = vpop.f32.mrf.mxu0
        %v1924 = vadd.f32 0.0, %v1923
        %v1925 = vpop.f32.mrf.mxu0
        %1926 = vmatprep.mubr.f32.mxu0 0.0
        %1927 = vmatmul.mubr.f32.gmra.mxu0 %v1695
        %v1928 = vpop.f32.mrf.mxu0
        %v1929 = vadd.f32 0.0, %v1928
        %v1930 = vpop.f32.mrf.mxu0
        %1931 = vmatprep.mubr.f32.mxu0 0.0
        %1932 = vmatmul.mubr.f32.gmra.mxu0 %v1697
        %v1933 = vpop.f32.mrf.mxu0
        %v1934 = vadd.f32 0.0, %v1933
        %v1935 = vpop.f32.mrf.mxu0
        %1936 = vmatprep.mubr.f32.mxu0 0.0
        %1937 = vmatmul.mubr.f32.gmra.mxu0 %v1699
        %v1938 = vpop.f32.mrf.mxu0
        %v1939 = vadd.f32 0.0, %v1938
        %v1940 = vpop.f32.mrf.mxu0
        %1941 = vmatprep.mubr.f32.mxu0 0.0
        %1942 = vmatmul.mubr.f32.gmra.mxu0 %v1701
        %v1943 = vpop.f32.mrf.mxu0
        %v1944 = vadd.f32 0.0, %v1943
        %v1945 = vpop.f32.mrf.mxu0
        %1946 = vmatprep.mubr.f32.mxu0 0.0
        %1947 = vmatmul.mubr.f32.gmra.mxu0 %v1703
        %v1948 = vpop.f32.mrf.mxu0
        %v1949 = vadd.f32 0.0, %v1948
        %v1950 = vpop.f32.mrf.mxu0
        %1951 = vmatprep.mubr.f32.mxu0 0.0
        %1952 = vmatmul.mubr.f32.gmra.mxu0 %v1705
        %v1953 = vpop.f32.mrf.mxu0
        %v1954 = vadd.f32 0.0, %v1953
        %v1955 = vpop.f32.mrf.mxu0
        %1956 = vmatprep.mubr.f32.mxu0 0.0
        %1957 = vmatmul.mubr.f32.gmra.mxu0 %v1707
        %v1958 = vpop.f32.mrf.mxu0
        %v1959 = vadd.f32 0.0, %v1958
        %v1960 = vpop.f32.mrf.mxu0
        %1961 = vmatprep.mubr.f32.mxu0 0.0
        %1962 = vmatmul.mubr.f32.gmra.mxu0 %v1709
        %v1963 = vpop.f32.mrf.mxu0
        %v1964 = vadd.f32 0.0, %v1963
        %v1965 = vpop.f32.mrf.mxu0
        %1966 = vmatprep.mubr.f32.mxu0 0.0
        %1967 = vmatmul.mubr.f32.gmra.mxu0 %v1711
        %v1968 = vpop.f32.mrf.mxu0
        %v1969 = vadd.f32 0.0, %v1968
        %v1970 = vpop.f32.mrf.mxu0
        %1971 = vmatprep.mubr.f32.mxu0 0.0
        %1972 = vmatmul.mubr.f32.gmra.mxu0 %v1713
        %v1973 = vpop.f32.mrf.mxu0
        %v1974 = vadd.f32 0.0, %v1973
        %v1975 = vpop.f32.mrf.mxu0
        %1976 = vmatprep.mubr.f32.mxu0 0.0
        %1977 = vmatmul.mubr.f32.gmra.mxu0 %v1715
        %v1978 = vpop.f32.mrf.mxu0
        %v1979 = vadd.f32 0.0, %v1978
        %v1980 = vpop.f32.mrf.mxu0
        %1981 = vmatprep.mubr.f32.mxu0 0.0
        %1982 = vmatmul.mubr.f32.gmra.mxu0 %v1717
        %v1983 = vpop.f32.mrf.mxu0
        %v1984 = vadd.f32 0.0, %v1983
        %v1985 = vpop.f32.mrf.mxu0
        %1986 = vmatprep.mubr.f32.mxu0 0.0
        %1987 = vmatmul.mubr.f32.gmra.mxu0 %v1719
        %v1988 = vpop.f32.mrf.mxu0
        %v1989 = vadd.f32 0.0, %v1988
        %v1990 = vpop.f32.mrf.mxu0
        %1991 = vmatprep.mubr.f32.mxu0 0.0
        %1992 = vmatmul.mubr.f32.gmra.mxu0 %v1721
        %v1993 = vpop.f32.mrf.mxu0
        %v1994 = vadd.f32 0.0, %v1993
        %v1995 = vpop.f32.mrf.mxu0
        %1996 = vmatprep.mubr.f32.mxu0 0.0
        %1997 = vmatmul.mubr.f32.gmra.mxu0 %v1723
        %v1998 = vpop.f32.mrf.mxu0
        %v1999 = vadd.f32 0.0, %v1998
        %v2000 = vpop.f32.mrf.mxu0
        %2001 = vmatprep.mubr.f32.mxu0 0.0
        %2002 = vmatmul.mubr.f32.gmra.mxu0 %v1725
        %v2003 = vpop.f32.mrf.mxu0
        %v2004 = vadd.f32 0.0, %v2003
        %v2005 = vpop.f32.mrf.mxu0
        %2006 = vmatprep.mubr.f32.mxu0 0.0
        %2007 = vmatmul.mubr.f32.gmra.mxu0 %v1727
        %v2008 = vpop.f32.mrf.mxu0
        %v2009 = vadd.f32 0.0, %v2008
        %v2010 = vpop.f32.mrf.mxu0
        %2011 = vmatprep.mubr.f32.mxu0 0.0
        %2012 = vmatmul.mubr.f32.gmra.mxu0 %v1729
        %v2013 = vpop.f32.mrf.mxu0
        %v2014 = vadd.f32 0.0, %v2013
        %v2015 = vpop.f32.mrf.mxu0
        %2016 = vmatprep.mubr.f32.mxu0 0.0
        %2017 = vmatmul.mubr.f32.gmra.mxu0 %v1731
        %v2018 = vpop.f32.mrf.mxu0
        %v2019 = vadd.f32 0.0, %v2018
        %v2020 = vpop.f32.mrf.mxu0
        %2021 = vmatprep.mubr.f32.mxu0 0.0
        %2022 = vmatmul.mubr.f32.gmra.mxu0 %v1733
        %v2023 = vpop.f32.mrf.mxu0
        %v2024 = vadd.f32 0.0, %v2023
        %v2025 = vpop.f32.mrf.mxu0
        %2026 = vmatprep.mubr.f32.mxu0 0.0
        %2027 = vmatmul.mubr.f32.gmra.mxu0 %v1735
        %v2028 = vpop.f32.mrf.mxu0
        %v2029 = vadd.f32 0.0, %v2028
        %v2030 = vpop.f32.mrf.mxu0
        %2031 = vmatprep.mubr.f32.mxu0 0.0
        %2032 = vmatmul.mubr.f32.gmra.mxu0 %v1737
        %v2033 = vpop.f32.mrf.mxu0
        %v2034 = vadd.f32 0.0, %v2033
        %v2035 = vpop.f32.mrf.mxu0
        %2036 = vmatprep.mubr.f32.mxu0 0.0
        %2037 = vmatmul.mubr.f32.gmra.mxu0 %v1739
        %v2038 = vpop.f32.mrf.mxu0
        %v2039 = vadd.f32 0.0, %v2038
        %v2040 = vpop.f32.mrf.mxu0
        %2041 = vmatprep.mubr.f32.mxu0 0.0
        %2042 = vmatmul.mubr.f32.gmra.mxu0 %v1741
        %v2043 = vpop.f32.mrf.mxu0
        %v2044 = vadd.f32 0.0, %v2043
        %v2045 = vpop.f32.mrf.mxu0
        %2046 = vmatprep.mubr.f32.mxu0 0.0
        %2047 = vmatmul.mubr.f32.gmra.mxu0 %v1743
        %v2048 = vpop.f32.mrf.mxu0
        %v2049 = vadd.f32 0.0, %v2048
        %v2050 = vpop.f32.mrf.mxu0
        %2051 = vmatprep.mubr.f32.mxu0 0.0
        %2052 = vmatmul.mubr.f32.gmra.mxu0 %v1745
        %v2053 = vpop.f32.mrf.mxu0
        %v2054 = vadd.f32 0.0, %v2053
        %v2055 = vpop.f32.mrf.mxu0
        %2056 = vmatprep.mubr.f32.mxu0 0.0
        %2057 = vmatmul.mubr.f32.gmra.mxu0 %v1747
        %v2058 = vpop.f32.mrf.mxu0
        %v2059 = vadd.f32 0.0, %v2058
        %v2060 = vpop.f32.mrf.mxu0
        %2061 = vmatprep.mubr.f32.mxu0 0.0
        %2062 = vmatmul.mubr.f32.gmra.mxu0 %v1749
        %v2063 = vpop.f32.mrf.mxu0
        %v2064 = vadd.f32 0.0, %v2063
        %v2065 = vpop.f32.mrf.mxu0
        %2066 = vmatprep.mubr.f32.mxu0 0.0
        %2067 = vmatmul.mubr.f32.gmra.mxu0 %v1751
        %v2068 = vpop.f32.mrf.mxu0
        %v2069 = vadd.f32 0.0, %v2068
        %v2070 = vpop.f32.mrf.mxu0
        %2071 = vmatprep.mubr.f32.mxu0 0.0
        %2072 = vmatmul.mubr.f32.gmra.mxu0 %v1753
        %v2073 = vpop.f32.mrf.mxu0
        %v2074 = vadd.f32 0.0, %v2073
        %v2075 = vpop.f32.mrf.mxu0
        %2076 = vmatprep.mubr.f32.mxu0 0.0
        %2077 = vmatmul.mubr.f32.gmra.mxu0 %v1755
        %v2078 = vpop.f32.mrf.mxu0
        %v2079 = vadd.f32 0.0, %v2078
        %v2080 = vpop.f32.mrf.mxu0
        %2081 = vmatprep.mubr.f32.mxu0 0.0
        %2082 = vmatmul.mubr.f32.gmra.mxu0 %v1757
        %v2083 = vpop.f32.mrf.mxu0
        %v2084 = vadd.f32 0.0, %v2083
        %v2085 = vpop.f32.mrf.mxu0
        %2086 = vmatprep.mubr.f32.mxu0 0.0
        %2087 = vmatmul.mubr.f32.gmra.mxu0 %v1759
        %v2088 = vpop.f32.mrf.mxu0
        %v2089 = vadd.f32 0.0, %v2088
        %v2090 = vpop.f32.mrf.mxu0
        %2091 = vmatprep.mubr.f32.mxu0 0.0
        %2092 = vmatmul.mubr.f32.gmra.mxu0 %v1761
        %v2093 = vpop.f32.mrf.mxu0
        %v2094 = vadd.f32 0.0, %v2093
        %v2095 = vpop.f32.mrf.mxu0
        %2096 = vmatprep.mubr.f32.mxu0 0.0
        %2097 = vmatmul.mubr.f32.gmra.mxu0 %v1763
        %v2098 = vpop.f32.mrf.mxu0
        %v2099 = vadd.f32 0.0, %v2098
        %v2100 = vpop.f32.mrf.mxu0
        %2101 = vmatprep.mubr.f32.mxu0 0.0
        %2102 = vmatmul.mubr.f32.gmra.mxu0 %v1765
        %v2103 = vpop.f32.mrf.mxu0
        %v2104 = vadd.f32 0.0, %v2103
        %v2105 = vpop.f32.mrf.mxu0
        %2106 = vmatprep.mubr.f32.mxu0 0.0
        %2107 = vmatmul.mubr.f32.gmra.mxu0 %v1767
        %v2108 = vpop.f32.mrf.mxu0
        %v2109 = vadd.f32 0.0, %v2108
        %v2110 = vpop.f32.mrf.mxu0
        %2111 = vmatprep.mubr.f32.mxu0 0.0
        %2112 = vmatmul.mubr.f32.gmra.mxu0 %v1769
        %v2113 = vpop.f32.mrf.mxu0
        %v2114 = vadd.f32 0.0, %v2113
        %v2115 = vpop.f32.mrf.mxu0
        %2116 = vmatprep.mubr.f32.mxu0 0.0
        %2117 = vmatmul.mubr.f32.gmra.mxu0 %v1771
        %v2118 = vpop.f32.mrf.mxu0
        %v2119 = vadd.f32 0.0, %v2118
        %v2120 = vpop.f32.mrf.mxu0
        %2121 = vmatprep.mubr.f32.mxu0 0.0
        %2122 = vmatmul.mubr.f32.gmra.mxu0 %v1773
        %v2123 = vpop.f32.mrf.mxu0
        %v2124 = vadd.f32 0.0, %v2123
        %v2125 = vpop.f32.mrf.mxu0
        %2126 = vmatprep.mubr.f32.mxu0 0.0
        %2127 = vmatmul.mubr.f32.gmra.mxu0 %v1775
        %v2128 = vpop.f32.mrf.mxu0
        %v2129 = vadd.f32 0.0, %v2128
        %v2130 = vpop.f32.mrf.mxu0
        %2131 = vmatprep.mubr.f32.mxu0 0.0
        %2132 = vmatmul.mubr.f32.gmra.mxu0 %v1777
        %v2133 = vpop.f32.mrf.mxu0
        %v2134 = vadd.f32 0.0, %v2133
        %v2135 = vpop.f32.mrf.mxu0
        %2136 = vmatprep.mubr.f32.mxu0 0.0
        %2137 = vmatmul.mubr.f32.gmra.mxu0 %v1779
        %v2138 = vpop.f32.mrf.mxu0
        %v2139 = vadd.f32 0.0, %v2138
        %v2140 = vpop.f32.mrf.mxu0
        %2141 = vmatprep.mubr.f32.mxu0 0.0
        %2142 = vmatmul.mubr.f32.gmra.mxu0 %v1781
        %v2143 = vpop.f32.mrf.mxu0
        %v2144 = vadd.f32 0.0, %v2143
        %v2145 = vpop.f32.mrf.mxu0
        %2146 = vmatprep.mubr.f32.mxu0 0.0
        %2147 = vmatmul.mubr.f32.gmra.mxu0 %v1783
        %v2148 = vpop.f32.mrf.mxu0
        %v2149 = vadd.f32 0.0, %v2148
        %v2150 = vpop.f32.mrf.mxu0
        %2151 = vmatprep.mubr.f32.mxu0 0.0
        %2152 = vmatmul.mubr.f32.gmra.mxu0 %v1785
        %v2153 = vpop.f32.mrf.mxu0
        %v2154 = vadd.f32 0.0, %v2153
        %v2155 = vpop.f32.mrf.mxu0
        %2156 = vmatprep.mubr.f32.mxu0 0.0
        %2157 = vmatmul.mubr.f32.gmra.mxu0 %v1787
        %v2158 = vpop.f32.mrf.mxu0
        %v2159 = vadd.f32 0.0, %v2158
        %v2160 = vpop.f32.mrf.mxu0
        %2161 = vmatprep.mubr.f32.mxu0 0.0
        %2162 = vmatmul.mubr.f32.gmra.mxu0 %v1789
        %v2163 = vpop.f32.mrf.mxu0
        %v2164 = vadd.f32 0.0, %v2163
        %v2165 = vpop.f32.mrf.mxu0
        %2166 = vmatprep.mubr.f32.mxu0 0.0
        %2167 = vmatmul.mubr.f32.gmra.mxu0 %v1791
        %v2168 = vpop.f32.mrf.mxu0
        %v2169 = vadd.f32 0.0, %v2168
        %v2170 = vpop.f32.mrf.mxu0
        %2171 = vmatprep.mubr.f32.mxu0 0.0
        %2172 = vmatmul.mubr.f32.gmra.mxu0 %v1793
        %v2173 = vpop.f32.mrf.mxu0
        %v2174 = vadd.f32 0.0, %v2173
        %v2175 = vpop.f32.mrf.mxu0
        %2176 = vmatprep.mubr.f32.mxu0 0.0
        %2177 = vmatmul.mubr.f32.gmra.mxu0 %v1795
        %v2178 = vpop.f32.mrf.mxu0
        %v2179 = vadd.f32 0.0, %v2178
        %v2180 = vpop.f32.mrf.mxu0
        %2181 = vdwg.mxu0
        %v2182 = vadd.f32 %v1204, %v1864
        %v2183 = vadd.f32 %v1209, %v1869
        %v2184 = vadd.f32 %v1214, %v1874
        %v2185 = vadd.f32 %v1219, %v1879
        %v2186 = vadd.f32 %v1224, %v1884
        %v2187 = vadd.f32 %v1229, %v1889
        %v2188 = vadd.f32 %v1234, %v1894
        %v2189 = vadd.f32 %v1239, %v1899
        %v2190 = vadd.f32 %v1244, %v1904
        %v2191 = vadd.f32 %v1249, %v1909
        %v2192 = vadd.f32 %v1254, %v1914
        %v2193 = vadd.f32 %v1259, %v1919
        %v2194 = vadd.f32 %v1264, %v1924
        %v2195 = vadd.f32 %v1269, %v1929
        %v2196 = vadd.f32 %v1274, %v1934
        %v2197 = vadd.f32 %v1279, %v1939
        %v2198 = vadd.f32 %v1284, %v1944
        %v2199 = vadd.f32 %v1289, %v1949
        %v2200 = vadd.f32 %v1294, %v1954
        %v2201 = vadd.f32 %v1299, %v1959
        %v2202 = vadd.f32 %v1304, %v1964
        %v2203 = vadd.f32 %v1309, %v1969
        %v2204 = vadd.f32 %v1314, %v1974
        %v2205 = vadd.f32 %v1319, %v1979
        %v2206 = vadd.f32 %v1324, %v1984
        %v2207 = vadd.f32 %v1329, %v1989
        %v2208 = vadd.f32 %v1334, %v1994
        %v2209 = vadd.f32 %v1339, %v1999
        %v2210 = vadd.f32 %v1344, %v2004
        %v2211 = vadd.f32 %v1349, %v2009
        %v2212 = vadd.f32 %v1354, %v2014
        %v2213 = vadd.f32 %v1359, %v2019
        %v2214 = vadd.f32 %v1364, %v2024
        %v2215 = vadd.f32 %v1369, %v2029
        %v2216 = vadd.f32 %v1374, %v2034
        %v2217 = vadd.f32 %v1379, %v2039
        %v2218 = vadd.f32 %v1384, %v2044
        %v2219 = vadd.f32 %v1389, %v2049
        %v2220 = vadd.f32 %v1394, %v2054
        %v2221 = vadd.f32 %v1399, %v2059
        %v2222 = vadd.f32 %v1404, %v2064
        %v2223 = vadd.f32 %v1409, %v2069
        %v2224 = vadd.f32 %v1414, %v2074
        %v2225 = vadd.f32 %v1419, %v2079
        %v2226 = vadd.f32 %v1424, %v2084
        %v2227 = vadd.f32 %v1429, %v2089
        %v2228 = vadd.f32 %v1434, %v2094
        %v2229 = vadd.f32 %v1439, %v2099
        %v2230 = vadd.f32 %v1444, %v2104
        %v2231 = vadd.f32 %v1449, %v2109
        %v2232 = vadd.f32 %v1454, %v2114
        %v2233 = vadd.f32 %v1459, %v2119
        %v2234 = vadd.f32 %v1464, %v2124
        %v2235 = vadd.f32 %v1469, %v2129
        %v2236 = vadd.f32 %v1474, %v2134
        %v2237 = vadd.f32 %v1479, %v2139
        %v2238 = vadd.f32 %v1484, %v2144
        %v2239 = vadd.f32 %v1489, %v2149
        %v2240 = vadd.f32 %v1494, %v2154
        %v2241 = vadd.f32 %v1499, %v2159
        %v2242 = vadd.f32 %v1504, %v2164
        %v2243 = vadd.f32 %v1509, %v2169
        %v2244 = vadd.f32 %v1514, %v2174
        %v2245 = vadd.f32 %v1519, %v2179
        %2246 = vst [vmem:[#allocation2] sm:$0xff] %v2182
        %2247 = vst [vmem:[#allocation2 + $0x8] sm:$0xff] %v2183
        %2248 = vst [vmem:[#allocation2 + $0x10] sm:$0xff] %v2184
        %2249 = vst [vmem:[#allocation2 + $0x18] sm:$0xff] %v2185
        %2250 = vst [vmem:[#allocation2 + $0x20] sm:$0xff] %v2186
        %2251 = vst [vmem:[#allocation2 + $0x28] sm:$0xff] %v2187
        %2252 = vst [vmem:[#allocation2 + $0x30] sm:$0xff] %v2188
        %2253 = vst [vmem:[#allocation2 + $0x38] sm:$0xff] %v2189
        %2254 = vst [vmem:[#allocation2 + $0x40] sm:$0xff] %v2190
        %2255 = vst [vmem:[#allocation2 + $0x48] sm:$0xff] %v2191
        %2256 = vst [vmem:[#allocation2 + $0x50] sm:$0xff] %v2192
        %2257 = vst [vmem:[#allocation2 + $0x58] sm:$0xff] %v2193
        %2258 = vst [vmem:[#allocation2 + $0x60] sm:$0xff] %v2194
        %2259 = vst [vmem:[#allocation2 + $0x68] sm:$0xff] %v2195
        %2260 = vst [vmem:[#allocation2 + $0x70] sm:$0xff] %v2196
        %2261 = vst [vmem:[#allocation2 + $0x78] sm:$0xff] %v2197
        %2262 = vst [vmem:[#allocation2 + $0x80] sm:$0xff] %v2198
        %2263 = vst [vmem:[#allocation2 + $0x88] sm:$0xff] %v2199
        %2264 = vst [vmem:[#allocation2 + $0x90] sm:$0xff] %v2200
        %2265 = vst [vmem:[#allocation2 + $0x98] sm:$0xff] %v2201
        %2266 = vst [vmem:[#allocation2 + $0xa0] sm:$0xff] %v2202
        %2267 = vst [vmem:[#allocation2 + $0xa8] sm:$0xff] %v2203
        %2268 = vst [vmem:[#allocation2 + $0xb0] sm:$0xff] %v2204
        %2269 = vst [vmem:[#allocation2 + $0xb8] sm:$0xff] %v2205
        %2270 = vst [vmem:[#allocation2 + $0xc0] sm:$0xff] %v2206
        %2271 = vst [vmem:[#allocation2 + $0xc8] sm:$0xff] %v2207
        %2272 = vst [vmem:[#allocation2 + $0xd0] sm:$0xff] %v2208
        %2273 = vst [vmem:[#allocation2 + $0xd8] sm:$0xff] %v2209
        %2274 = vst [vmem:[#allocation2 + $0xe0] sm:$0xff] %v2210
        %2275 = vst [vmem:[#allocation2 + $0xe8] sm:$0xff] %v2211
        %2276 = vst [vmem:[#allocation2 + $0xf0] sm:$0xff] %v2212
        %2277 = vst [vmem:[#allocation2 + $0xf8] sm:$0xff] %v2213
        %2278 = vst [vmem:[#allocation2 + $0x100] sm:$0xff] %v2214
        %2279 = vst [vmem:[#allocation2 + $0x108] sm:$0xff] %v2215
        %2280 = vst [vmem:[#allocation2 + $0x110] sm:$0xff] %v2216
        %2281 = vst [vmem:[#allocation2 + $0x118] sm:$0xff] %v2217
        %2282 = vst [vmem:[#allocation2 + $0x120] sm:$0xff] %v2218
        %2283 = vst [vmem:[#allocation2 + $0x128] sm:$0xff] %v2219
        %2284 = vst [vmem:[#allocation2 + $0x130] sm:$0xff] %v2220
        %2285 = vst [vmem:[#allocation2 + $0x138] sm:$0xff] %v2221
        %2286 = vst [vmem:[#allocation2 + $0x140] sm:$0xff] %v2222
        %2287 = vst [vmem:[#allocation2 + $0x148] sm:$0xff] %v2223
        %2288 = vst [vmem:[#allocation2 + $0x150] sm:$0xff] %v2224
        %2289 = vst [vmem:[#allocation2 + $0x158] sm:$0xff] %v2225
        %2290 = vst [vmem:[#allocation2 + $0x160] sm:$0xff] %v2226
        %2291 = vst [vmem:[#allocation2 + $0x168] sm:$0xff] %v2227
        %2292 = vst [vmem:[#allocation2 + $0x170] sm:$0xff] %v2228
        %2293 = vst [vmem:[#allocation2 + $0x178] sm:$0xff] %v2229
        %2294 = vst [vmem:[#allocation2 + $0x180] sm:$0xff] %v2230
        %2295 = vst [vmem:[#allocation2 + $0x188] sm:$0xff] %v2231
        %2296 = vst [vmem:[#allocation2 + $0x190] sm:$0xff] %v2232
        %2297 = vst [vmem:[#allocation2 + $0x198] sm:$0xff] %v2233
        %2298 = vst [vmem:[#allocation2 + $0x1a0] sm:$0xff] %v2234
        %2299 = vst [vmem:[#allocation2 + $0x1a8] sm:$0xff] %v2235
        %2300 = vst [vmem:[#allocation2 + $0x1b0] sm:$0xff] %v2236
        %2301 = vst [vmem:[#allocation2 + $0x1b8] sm:$0xff] %v2237
        %2302 = vst [vmem:[#allocation2 + $0x1c0] sm:$0xff] %v2238
        %2303 = vst [vmem:[#allocation2 + $0x1c8] sm:$0xff] %v2239
        %2304 = vst [vmem:[#allocation2 + $0x1d0] sm:$0xff] %v2240
        %2305 = vst [vmem:[#allocation2 + $0x1d8] sm:$0xff] %v2241
        %2306 = vst [vmem:[#allocation2 + $0x1e0] sm:$0xff] %v2242
        %2307 = vst [vmem:[#allocation2 + $0x1e8] sm:$0xff] %v2243
        %2308 = vst [vmem:[#allocation2 + $0x1f0] sm:$0xff] %v2244
        %2309 = vst [vmem:[#allocation2 + $0x1f8] sm:$0xff] %v2245
        %s2310 = sadd.s32 %s184, 1
        %s2311 = smul.u32 %s2310, 40
        %s2312 = scalar_lea.vmem %s182, %s2311
        %v2313 = vld [vmem:[%s2312] sm:$0xff]
        %v2314 = vld [vmem:[%s2312 + $0x8] sm:$0xff]
        %v2315 = vld [vmem:[%s2312 + $0x10] sm:$0xff]
        %v2316 = vld [vmem:[%s2312 + $0x18] sm:$0xff]
        %v2317 = vld [vmem:[%s2312 + $0x20] sm:$0x3]
        %v2318 = vld [vmem:[%s2312 + $0x28] sm:$0xff]
        %v2319 = vld [vmem:[%s2312 + $0x30] sm:$0xff]
        %v2320 = vld [vmem:[%s2312 + $0x38] sm:$0xff]
        %v2321 = vld [vmem:[%s2312 + $0x40] sm:$0xff]
        %v2322 = vld [vmem:[%s2312 + $0x48] sm:$0x3]
        %v2323 = vld [vmem:[%s2312 + $0x50] sm:$0xff]
        %v2324 = vld [vmem:[%s2312 + $0x58] sm:$0xff]
        %v2325 = vld [vmem:[%s2312 + $0x60] sm:$0xff]
        %v2326 = vld [vmem:[%s2312 + $0x68] sm:$0xff]
        %v2327 = vld [vmem:[%s2312 + $0x70] sm:$0x3]
        %v2328 = vld [vmem:[%s2312 + $0x78] sm:$0xff]
        %v2329 = vld [vmem:[%s2312 + $0x80] sm:$0xff]
        %v2330 = vld [vmem:[%s2312 + $0x88] sm:$0xff]
        %v2331 = vld [vmem:[%s2312 + $0x90] sm:$0xff]
        %v2332 = vld [vmem:[%s2312 + $0x98] sm:$0x3]
        %v2333 = vld [vmem:[%s2312 + $0xa0] sm:$0xff]
        %v2334 = vld [vmem:[%s2312 + $0xa8] sm:$0xff]
        %v2335 = vld [vmem:[%s2312 + $0xb0] sm:$0xff]
        %v2336 = vld [vmem:[%s2312 + $0xb8] sm:$0xff]
        %v2337 = vld [vmem:[%s2312 + $0xc0] sm:$0x3]
        %v2338 = vld [vmem:[%s2312 + $0xc8] sm:$0xff]
        %v2339 = vld [vmem:[%s2312 + $0xd0] sm:$0xff]
        %v2340 = vld [vmem:[%s2312 + $0xd8] sm:$0xff]
        %v2341 = vld [vmem:[%s2312 + $0xe0] sm:$0xff]
        %v2342 = vld [vmem:[%s2312 + $0xe8] sm:$0x3]
        %v2343 = vld [vmem:[%s2312 + $0xf0] sm:$0xff]
        %v2344 = vld [vmem:[%s2312 + $0xf8] sm:$0xff]
        %v2345 = vld [vmem:[%s2312 + $0x100] sm:$0xff]
        %v2346 = vld [vmem:[%s2312 + $0x108] sm:$0xff]
        %v2347 = vld [vmem:[%s2312 + $0x110] sm:$0x3]
        %v2348 = vld [vmem:[%s2312 + $0x118] sm:$0xff]
        %v2349 = vld [vmem:[%s2312 + $0x120] sm:$0xff]
        %v2350 = vld [vmem:[%s2312 + $0x128] sm:$0xff]
        %v2351 = vld [vmem:[%s2312 + $0x130] sm:$0xff]
        %v2352 = vld [vmem:[%s2312 + $0x138] sm:$0x3]
        %v2353 = vld [vmem:[%s2312 + $0x140] sm:$0xff]
        %v2354 = vld [vmem:[%s2312 + $0x148] sm:$0xff]
        %v2355 = vld [vmem:[%s2312 + $0x150] sm:$0xff]
        %v2356 = vld [vmem:[%s2312 + $0x158] sm:$0xff]
        %v2357 = vld [vmem:[%s2312 + $0x160] sm:$0x3]
        %v2358 = vld [vmem:[%s2312 + $0x168] sm:$0xff]
        %v2359 = vld [vmem:[%s2312 + $0x170] sm:$0xff]
        %v2360 = vld [vmem:[%s2312 + $0x178] sm:$0xff]
        %v2361 = vld [vmem:[%s2312 + $0x180] sm:$0xff]
        %v2362 = vld [vmem:[%s2312 + $0x188] sm:$0x3]
        %v2363 = vld [vmem:[%s2312 + $0x190] sm:$0xff]
        %v2364 = vld [vmem:[%s2312 + $0x198] sm:$0xff]
        %v2365 = vld [vmem:[%s2312 + $0x1a0] sm:$0xff]
        %v2366 = vld [vmem:[%s2312 + $0x1a8] sm:$0xff]
        %v2367 = vld [vmem:[%s2312 + $0x1b0] sm:$0x3]
        %v2368 = vld [vmem:[%s2312 + $0x1b8] sm:$0xff]
        %v2369 = vld [vmem:[%s2312 + $0x1c0] sm:$0xff]
        %v2370 = vld [vmem:[%s2312 + $0x1c8] sm:$0xff]
        %v2371 = vld [vmem:[%s2312 + $0x1d0] sm:$0xff]
        %v2372 = vld [vmem:[%s2312 + $0x1d8] sm:$0x3]
        %v2373 = vld [vmem:[%s2312 + $0x1e0] sm:$0xff]
        %v2374 = vld [vmem:[%s2312 + $0x1e8] sm:$0xff]
        %v2375 = vld [vmem:[%s2312 + $0x1f0] sm:$0xff]
        %v2376 = vld [vmem:[%s2312 + $0x1f8] sm:$0xff]
        %v2377 = vld [vmem:[%s2312 + $0x200] sm:$0x3]
        %v2378 = vld [vmem:[%s2312 + $0x208] sm:$0xff]
        %v2379 = vld [vmem:[%s2312 + $0x210] sm:$0xff]
        %v2380 = vld [vmem:[%s2312 + $0x218] sm:$0xff]
        %v2381 = vld [vmem:[%s2312 + $0x220] sm:$0xff]
        %v2382 = vld [vmem:[%s2312 + $0x228] sm:$0x3]
        %v2383 = vld [vmem:[%s2312 + $0x230] sm:$0xff]
        %v2384 = vld [vmem:[%s2312 + $0x238] sm:$0xff]
        %v2385 = vld [vmem:[%s2312 + $0x240] sm:$0xff]
        %v2386 = vld [vmem:[%s2312 + $0x248] sm:$0xff]
        %v2387 = vld [vmem:[%s2312 + $0x250] sm:$0x3]
        %v2388 = vld [vmem:[%s2312 + $0x258] sm:$0xff]
        %v2389 = vld [vmem:[%s2312 + $0x260] sm:$0xff]
        %v2390 = vld [vmem:[%s2312 + $0x268] sm:$0xff]
        %v2391 = vld [vmem:[%s2312 + $0x270] sm:$0xff]
        %v2392 = vld [vmem:[%s2312 + $0x278] sm:$0x3]
        %s2393 = scalar_lea.vmem %s1, 24
        %v2394 = vld [vmem:[%s2393] sm:$0xff]
        %v2475 = vrot.slane %v2313, 1
        %v2476 = vrot.slane %v2314, 1
        %v2477 = vsel %vm348, %v2475, %v2476
        %v2478 = vrot.slane %v2315, 1
        %v2479 = vsel %vm348, %v2476, %v2478
        %v2480 = vrot.slane %v2316, 1
        %v2481 = vsel %vm348, %v2478, %v2480
        %v2482 = vrot.slane %v2317, 1
        %v2483 = vsel %vm348, %v2480, %v2482
        %v2484 = vrot.slane %v2318, 1
        %v2485 = vrot.slane %v2319, 1
        %v2486 = vsel %vm348, %v2484, %v2485
        %v2487 = vrot.slane %v2320, 1
        %v2488 = vsel %vm348, %v2485, %v2487
        %v2489 = vrot.slane %v2321, 1
        %v2490 = vsel %vm348, %v2487, %v2489
        %v2491 = vrot.slane %v2322, 1
        %v2492 = vsel %vm348, %v2489, %v2491
        %v2493 = vrot.slane %v2323, 1
        %v2494 = vrot.slane %v2324, 1
        %v2495 = vsel %vm348, %v2493, %v2494
        %v2496 = vrot.slane %v2325, 1
        %v2497 = vsel %vm348, %v2494, %v2496
        %v2498 = vrot.slane %v2326, 1
        %v2499 = vsel %vm348, %v2496, %v2498
        %v2500 = vrot.slane %v2327, 1
        %v2501 = vsel %vm348, %v2498, %v2500
        %v2502 = vrot.slane %v2328, 1
        %v2503 = vrot.slane %v2329, 1
        %v2504 = vsel %vm348, %v2502, %v2503
        %v2505 = vrot.slane %v2330, 1
        %v2506 = vsel %vm348, %v2503, %v2505
        %v2507 = vrot.slane %v2331, 1
        %v2508 = vsel %vm348, %v2505, %v2507
        %v2509 = vrot.slane %v2332, 1
        %v2510 = vsel %vm348, %v2507, %v2509
        %v2511 = vrot.slane %v2333, 1
        %v2512 = vrot.slane %v2334, 1
        %v2513 = vsel %vm348, %v2511, %v2512
        %v2514 = vrot.slane %v2335, 1
        %v2515 = vsel %vm348, %v2512, %v2514
        %v2516 = vrot.slane %v2336, 1
        %v2517 = vsel %vm348, %v2514, %v2516
        %v2518 = vrot.slane %v2337, 1
        %v2519 = vsel %vm348, %v2516, %v2518
        %v2520 = vrot.slane %v2338, 1
        %v2521 = vrot.slane %v2339, 1
        %v2522 = vsel %vm348, %v2520, %v2521
        %v2523 = vrot.slane %v2340, 1
        %v2524 = vsel %vm348, %v2521, %v2523
        %v2525 = vrot.slane %v2341, 1
        %v2526 = vsel %vm348, %v2523, %v2525
        %v2527 = vrot.slane %v2342, 1
        %v2528 = vsel %vm348, %v2525, %v2527
        %v2529 = vrot.slane %v2343, 1
        %v2530 = vrot.slane %v2344, 1
        %v2531 = vsel %vm348, %v2529, %v2530
        %v2532 = vrot.slane %v2345, 1
        %v2533 = vsel %vm348, %v2530, %v2532
        %v2534 = vrot.slane %v2346, 1
        %v2535 = vsel %vm348, %v2532, %v2534
        %v2536 = vrot.slane %v2347, 1
        %v2537 = vsel %vm348, %v2534, %v2536
        %v2538 = vrot.slane %v2348, 1
        %v2539 = vrot.slane %v2349, 1
        %v2540 = vsel %vm348, %v2538, %v2539
        %v2541 = vrot.slane %v2350, 1
        %v2542 = vsel %vm348, %v2539, %v2541
        %v2543 = vrot.slane %v2351, 1
        %v2544 = vsel %vm348, %v2541, %v2543
        %v2545 = vrot.slane %v2352, 1
        %v2546 = vsel %vm348, %v2543, %v2545
        %v2547 = vrot.slane %v2353, 1
        %v2548 = vrot.slane %v2354, 1
        %v2549 = vsel %vm348, %v2547, %v2548
        %v2550 = vrot.slane %v2355, 1
        %v2551 = vsel %vm348, %v2548, %v2550
        %v2552 = vrot.slane %v2356, 1
        %v2553 = vsel %vm348, %v2550, %v2552
        %v2554 = vrot.slane %v2357, 1
        %v2555 = vsel %vm348, %v2552, %v2554
        %v2556 = vrot.slane %v2358, 1
        %v2557 = vrot.slane %v2359, 1
        %v2558 = vsel %vm348, %v2556, %v2557
        %v2559 = vrot.slane %v2360, 1
        %v2560 = vsel %vm348, %v2557, %v2559
        %v2561 = vrot.slane %v2361, 1
        %v2562 = vsel %vm348, %v2559, %v2561
        %v2563 = vrot.slane %v2362, 1
        %v2564 = vsel %vm348, %v2561, %v2563
        %v2565 = vrot.slane %v2363, 1
        %v2566 = vrot.slane %v2364, 1
        %v2567 = vsel %vm348, %v2565, %v2566
        %v2568 = vrot.slane %v2365, 1
        %v2569 = vsel %vm348, %v2566, %v2568
        %v2570 = vrot.slane %v2366, 1
        %v2571 = vsel %vm348, %v2568, %v2570
        %v2572 = vrot.slane %v2367, 1
        %v2573 = vsel %vm348, %v2570, %v2572
        %v2574 = vrot.slane %v2368, 1
        %v2575 = vrot.slane %v2369, 1
        %v2576 = vsel %vm348, %v2574, %v2575
        %v2577 = vrot.slane %v2370, 1
        %v2578 = vsel %vm348, %v2575, %v2577
        %v2579 = vrot.slane %v2371, 1
        %v2580 = vsel %vm348, %v2577, %v2579
        %v2581 = vrot.slane %v2372, 1
        %v2582 = vsel %vm348, %v2579, %v2581
        %v2583 = vrot.slane %v2373, 1
        %v2584 = vrot.slane %v2374, 1
        %v2585 = vsel %vm348, %v2583, %v2584
        %v2586 = vrot.slane %v2375, 1
        %v2587 = vsel %vm348, %v2584, %v2586
        %v2588 = vrot.slane %v2376, 1
        %v2589 = vsel %vm348, %v2586, %v2588
        %v2590 = vrot.slane %v2377, 1
        %v2591 = vsel %vm348, %v2588, %v2590
        %v2592 = vrot.slane %v2378, 1
        %v2593 = vrot.slane %v2379, 1
        %v2594 = vsel %vm348, %v2592, %v2593
        %v2595 = vrot.slane %v2380, 1
        %v2596 = vsel %vm348, %v2593, %v2595
        %v2597 = vrot.slane %v2381, 1
        %v2598 = vsel %vm348, %v2595, %v2597
        %v2599 = vrot.slane %v2382, 1
        %v2600 = vsel %vm348, %v2597, %v2599
        %v2601 = vrot.slane %v2383, 1
        %v2602 = vrot.slane %v2384, 1
        %v2603 = vsel %vm348, %v2601, %v2602
        %v2604 = vrot.slane %v2385, 1
        %v2605 = vsel %vm348, %v2602, %v2604
        %v2606 = vrot.slane %v2386, 1
        %v2607 = vsel %vm348, %v2604, %v2606
        %v2608 = vrot.slane %v2387, 1
        %v2609 = vsel %vm348, %v2606, %v2608
        %v2610 = vrot.slane %v2388, 1
        %v2611 = vrot.slane %v2389, 1
        %v2612 = vsel %vm348, %v2610, %v2611
        %v2613 = vrot.slane %v2390, 1
        %v2614 = vsel %vm348, %v2611, %v2613
        %v2615 = vrot.slane %v2391, 1
        %v2616 = vsel %vm348, %v2613, %v2615
        %v2617 = vrot.slane %v2392, 1
        %v2618 = vsel %vm348, %v2615, %v2617
        %s2619 = scalar_lea.vmem %s1, 32
        %v2620 = vld [vmem:[%s2619] sm:$0xff]
        %v2621 = vsel %vm495, %v2477, 0
        %v2623 = vsel %vm495, %v2479, 0
        %v2625 = vsel %vm495, %v2481, 0
        %v2627 = vsel %vm495, %v2483, 0
        %v2629 = vsel %vm495, %v2486, 0
        %v2631 = vsel %vm495, %v2488, 0
        %v2633 = vsel %vm495, %v2490, 0
        %v2635 = vsel %vm495, %v2492, 0
        %v2637 = vsel %vm495, %v2495, 0
        %v2639 = vsel %vm495, %v2497, 0
        %v2641 = vsel %vm495, %v2499, 0
        %v2643 = vsel %vm495, %v2501, 0
        %v2645 = vsel %vm495, %v2504, 0
        %v2647 = vsel %vm495, %v2506, 0
        %v2649 = vsel %vm495, %v2508, 0
        %v2651 = vsel %vm495, %v2510, 0
        %v2653 = vsel %vm495, %v2513, 0
        %v2655 = vsel %vm495, %v2515, 0
        %v2657 = vsel %vm495, %v2517, 0
        %v2659 = vsel %vm495, %v2519, 0
        %v2661 = vsel %vm495, %v2522, 0
        %v2663 = vsel %vm495, %v2524, 0
        %v2665 = vsel %vm495, %v2526, 0
        %v2667 = vsel %vm495, %v2528, 0
        %v2669 = vsel %vm495, %v2531, 0
        %v2671 = vsel %vm495, %v2533, 0
        %v2673 = vsel %vm495, %v2535, 0
        %v2675 = vsel %vm495, %v2537, 0
        %v2677 = vsel %vm495, %v2540, 0
        %v2679 = vsel %vm495, %v2542, 0
        %v2681 = vsel %vm495, %v2544, 0
        %v2683 = vsel %vm495, %v2546, 0
        %v2685 = vsel %vm495, %v2549, 0
        %v2687 = vsel %vm495, %v2551, 0
        %v2689 = vsel %vm495, %v2553, 0
        %v2691 = vsel %vm495, %v2555, 0
        %v2693 = vsel %vm495, %v2558, 0
        %v2695 = vsel %vm495, %v2560, 0
        %v2697 = vsel %vm495, %v2562, 0
        %v2699 = vsel %vm495, %v2564, 0
        %v2701 = vsel %vm495, %v2567, 0
        %v2703 = vsel %vm495, %v2569, 0
        %v2705 = vsel %vm495, %v2571, 0
        %v2707 = vsel %vm495, %v2573, 0
        %v2709 = vsel %vm495, %v2576, 0
        %v2711 = vsel %vm495, %v2578, 0
        %v2713 = vsel %vm495, %v2580, 0
        %v2715 = vsel %vm495, %v2582, 0
        %v2717 = vsel %vm495, %v2585, 0
        %v2719 = vsel %vm495, %v2587, 0
        %v2721 = vsel %vm495, %v2589, 0
        %v2723 = vsel %vm495, %v2591, 0
        %v2725 = vsel %vm495, %v2594, 0
        %v2727 = vsel %vm495, %v2596, 0
        %v2729 = vsel %vm495, %v2598, 0
        %v2731 = vsel %vm495, %v2600, 0
        %v2733 = vsel %vm495, %v2603, 0
        %v2735 = vsel %vm495, %v2605, 0
        %v2737 = vsel %vm495, %v2607, 0
        %v2739 = vsel %vm495, %v2609, 0
        %v2741 = vsel %vm495, %v2612, 0
        %v2743 = vsel %vm495, %v2614, 0
        %v2745 = vsel %vm495, %v2616, 0
        %v2747 = vsel %vm495, %v2618, 0
        %2749 = vmatprep.subr.mxu0 0.0
        %2750 = vmatpush1.msra.mxu0 0.0
        %2751 = vmatprep.subr.mxu0 0.0
        %2752 = vmatpush1.msra.mxu0 0.0
        %2753 = vmatprep.subr.mxu0 0.0
        %2754 = vmatpush1.msra.mxu0 0.0
        %2755 = vmatprep.subr.mxu0 0.0
        %2756 = vmatpush1.msra.mxu0 0.0
        %2757 = vmatprep.subr.mxu0 0.0
        %2758 = vmatpush1.msra.mxu0 0.0
        %2759 = vmatprep.subr.mxu0 0.0
        %2760 = vmatpush1.msra.mxu0 0.0
        %2761 = vmatprep.subr.mxu0 0.0
        %2762 = vmatpush1.msra.mxu0 0.0
        %2763 = vmatprep.subr.mxu0 0.0
        %2764 = vmatpush1.msra.mxu0 0.0
        %2765 = vmatprep.subr.mxu0 0.0
        %2766 = vmatpush1.msra.mxu0 0.0
        %2767 = vmatprep.subr.mxu0 0.0
        %2768 = vmatpush1.msra.mxu0 0.0
        %2769 = vmatprep.subr.mxu0 0.0
        %2770 = vmatpush1.msra.mxu0 0.0
        %2771 = vmatprep.subr.mxu0 0.0
        %2772 = vmatpush1.msra.mxu0 0.0
        %2773 = vmatprep.subr.mxu0 0.0
        %2774 = vmatpush1.msra.mxu0 0.0
        %2775 = vmatprep.subr.mxu0 0.0
        %2776 = vmatpush1.msra.mxu0 0.0
        %2777 = vmatprep.subr.mxu0 0.0
        %2778 = vmatpush1.msra.mxu0 0.0
        %2779 = vmatprep.subr.mxu0 0.0
        %2780 = vmatpush1.msra.mxu0 %v2620
        %2781 = vmatprep.subr.mxu0 0.0
        %2782 = vmatpush2.msra.mxu0 0.0
        %2783 = vmatprep.subr.mxu0 0.0
        %2784 = vmatpush2.msra.mxu0 0.0
        %2785 = vmatprep.subr.mxu0 0.0
        %2786 = vmatpush2.msra.mxu0 0.0
        %2787 = vmatprep.subr.mxu0 0.0
        %2788 = vmatpush2.msra.mxu0 0.0
        %2789 = vmatprep.subr.mxu0 0.0
        %2790 = vmatpush2.msra.mxu0 0.0
        %2791 = vmatprep.subr.mxu0 0.0
        %2792 = vmatpush2.msra.mxu0 0.0
        %2793 = vmatprep.subr.mxu0 0.0
        %2794 = vmatpush2.msra.mxu0 0.0
        %2795 = vmatprep.subr.mxu0 0.0
        %2796 = vmatpush2.msra.mxu0 0.0
        %2797 = vmatprep.subr.mxu0 0.0
        %2798 = vmatpush2.msra.mxu0 0.0
        %2799 = vmatprep.subr.mxu0 0.0
        %2800 = vmatpush2.msra.mxu0 0.0
        %2801 = vmatprep.subr.mxu0 0.0
        %2802 = vmatpush2.msra.mxu0 0.0
        %2803 = vmatprep.subr.mxu0 0.0
        %2804 = vmatpush2.msra.mxu0 0.0
        %2805 = vmatprep.subr.mxu0 0.0
        %2806 = vmatpush2.msra.mxu0 0.0
        %2807 = vmatprep.subr.mxu0 0.0
        %2808 = vmatpush2.msra.mxu0 0.0
        %2809 = vmatprep.subr.mxu0 0.0
        %2810 = vmatpush2.msra.mxu0 0.0
        %2811 = vmatprep.subr.mxu0 0.0
        %2812 = vmatpush2.msra.mxu0 0.0
        %2813 = vmatprep.mubr.f32.mxu0 0.0
        %2814 = vmatmul.mubr.f32.gmra.mxu0 %v2621
        %v2815 = vpop.f32.mrf.mxu0
        %v2816 = vadd.f32 0.0, %v2815
        %v2817 = vpop.f32.mrf.mxu0
        %2818 = vmatprep.mubr.f32.mxu0 0.0
        %2819 = vmatmul.mubr.f32.gmra.mxu0 %v2623
        %v2820 = vpop.f32.mrf.mxu0
        %v2821 = vadd.f32 0.0, %v2820
        %v2822 = vpop.f32.mrf.mxu0
        %2823 = vmatprep.mubr.f32.mxu0 0.0
        %2824 = vmatmul.mubr.f32.gmra.mxu0 %v2625
        %v2825 = vpop.f32.mrf.mxu0
        %v2826 = vadd.f32 0.0, %v2825
        %v2827 = vpop.f32.mrf.mxu0
        %2828 = vmatprep.mubr.f32.mxu0 0.0
        %2829 = vmatmul.mubr.f32.gmra.mxu0 %v2627
        %v2830 = vpop.f32.mrf.mxu0
        %v2831 = vadd.f32 0.0, %v2830
        %v2832 = vpop.f32.mrf.mxu0
        %2833 = vmatprep.mubr.f32.mxu0 0.0
        %2834 = vmatmul.mubr.f32.gmra.mxu0 %v2629
        %v2835 = vpop.f32.mrf.mxu0
        %v2836 = vadd.f32 0.0, %v2835
        %v2837 = vpop.f32.mrf.mxu0
        %2838 = vmatprep.mubr.f32.mxu0 0.0
        %2839 = vmatmul.mubr.f32.gmra.mxu0 %v2631
        %v2840 = vpop.f32.mrf.mxu0
        %v2841 = vadd.f32 0.0, %v2840
        %v2842 = vpop.f32.mrf.mxu0
        %2843 = vmatprep.mubr.f32.mxu0 0.0
        %2844 = vmatmul.mubr.f32.gmra.mxu0 %v2633
        %v2845 = vpop.f32.mrf.mxu0
        %v2846 = vadd.f32 0.0, %v2845
        %v2847 = vpop.f32.mrf.mxu0
        %2848 = vmatprep.mubr.f32.mxu0 0.0
        %2849 = vmatmul.mubr.f32.gmra.mxu0 %v2635
        %v2850 = vpop.f32.mrf.mxu0
        %v2851 = vadd.f32 0.0, %v2850
        %v2852 = vpop.f32.mrf.mxu0
        %2853 = vmatprep.mubr.f32.mxu0 0.0
        %2854 = vmatmul.mubr.f32.gmra.mxu0 %v2637
        %v2855 = vpop.f32.mrf.mxu0
        %v2856 = vadd.f32 0.0, %v2855
        %v2857 = vpop.f32.mrf.mxu0
        %2858 = vmatprep.mubr.f32.mxu0 0.0
        %2859 = vmatmul.mubr.f32.gmra.mxu0 %v2639
        %v2860 = vpop.f32.mrf.mxu0
        %v2861 = vadd.f32 0.0, %v2860
        %v2862 = vpop.f32.mrf.mxu0
        %2863 = vmatprep.mubr.f32.mxu0 0.0
        %2864 = vmatmul.mubr.f32.gmra.mxu0 %v2641
        %v2865 = vpop.f32.mrf.mxu0
        %v2866 = vadd.f32 0.0, %v2865
        %v2867 = vpop.f32.mrf.mxu0
        %2868 = vmatprep.mubr.f32.mxu0 0.0
        %2869 = vmatmul.mubr.f32.gmra.mxu0 %v2643
        %v2870 = vpop.f32.mrf.mxu0
        %v2871 = vadd.f32 0.0, %v2870
        %v2872 = vpop.f32.mrf.mxu0
        %2873 = vmatprep.mubr.f32.mxu0 0.0
        %2874 = vmatmul.mubr.f32.gmra.mxu0 %v2645
        %v2875 = vpop.f32.mrf.mxu0
        %v2876 = vadd.f32 0.0, %v2875
        %v2877 = vpop.f32.mrf.mxu0
        %2878 = vmatprep.mubr.f32.mxu0 0.0
        %2879 = vmatmul.mubr.f32.gmra.mxu0 %v2647
        %v2880 = vpop.f32.mrf.mxu0
        %v2881 = vadd.f32 0.0, %v2880
        %v2882 = vpop.f32.mrf.mxu0
        %2883 = vmatprep.mubr.f32.mxu0 0.0
        %2884 = vmatmul.mubr.f32.gmra.mxu0 %v2649
        %v2885 = vpop.f32.mrf.mxu0
        %v2886 = vadd.f32 0.0, %v2885
        %v2887 = vpop.f32.mrf.mxu0
        %2888 = vmatprep.mubr.f32.mxu0 0.0
        %2889 = vmatmul.mubr.f32.gmra.mxu0 %v2651
        %v2890 = vpop.f32.mrf.mxu0
        %v2891 = vadd.f32 0.0, %v2890
        %v2892 = vpop.f32.mrf.mxu0
        %2893 = vmatprep.mubr.f32.mxu0 0.0
        %2894 = vmatmul.mubr.f32.gmra.mxu0 %v2653
        %v2895 = vpop.f32.mrf.mxu0
        %v2896 = vadd.f32 0.0, %v2895
        %v2897 = vpop.f32.mrf.mxu0
        %2898 = vmatprep.mubr.f32.mxu0 0.0
        %2899 = vmatmul.mubr.f32.gmra.mxu0 %v2655
        %v2900 = vpop.f32.mrf.mxu0
        %v2901 = vadd.f32 0.0, %v2900
        %v2902 = vpop.f32.mrf.mxu0
        %2903 = vmatprep.mubr.f32.mxu0 0.0
        %2904 = vmatmul.mubr.f32.gmra.mxu0 %v2657
        %v2905 = vpop.f32.mrf.mxu0
        %v2906 = vadd.f32 0.0, %v2905
        %v2907 = vpop.f32.mrf.mxu0
        %2908 = vmatprep.mubr.f32.mxu0 0.0
        %2909 = vmatmul.mubr.f32.gmra.mxu0 %v2659
        %v2910 = vpop.f32.mrf.mxu0
        %v2911 = vadd.f32 0.0, %v2910
        %v2912 = vpop.f32.mrf.mxu0
        %2913 = vmatprep.mubr.f32.mxu0 0.0
        %2914 = vmatmul.mubr.f32.gmra.mxu0 %v2661
        %v2915 = vpop.f32.mrf.mxu0
        %v2916 = vadd.f32 0.0, %v2915
        %v2917 = vpop.f32.mrf.mxu0
        %2918 = vmatprep.mubr.f32.mxu0 0.0
        %2919 = vmatmul.mubr.f32.gmra.mxu0 %v2663
        %v2920 = vpop.f32.mrf.mxu0
        %v2921 = vadd.f32 0.0, %v2920
        %v2922 = vpop.f32.mrf.mxu0
        %2923 = vmatprep.mubr.f32.mxu0 0.0
        %2924 = vmatmul.mubr.f32.gmra.mxu0 %v2665
        %v2925 = vpop.f32.mrf.mxu0
        %v2926 = vadd.f32 0.0, %v2925
        %v2927 = vpop.f32.mrf.mxu0
        %2928 = vmatprep.mubr.f32.mxu0 0.0
        %2929 = vmatmul.mubr.f32.gmra.mxu0 %v2667
        %v2930 = vpop.f32.mrf.mxu0
        %v2931 = vadd.f32 0.0, %v2930
        %v2932 = vpop.f32.mrf.mxu0
        %2933 = vmatprep.mubr.f32.mxu0 0.0
        %2934 = vmatmul.mubr.f32.gmra.mxu0 %v2669
        %v2935 = vpop.f32.mrf.mxu0
        %v2936 = vadd.f32 0.0, %v2935
        %v2937 = vpop.f32.mrf.mxu0
        %2938 = vmatprep.mubr.f32.mxu0 0.0
        %2939 = vmatmul.mubr.f32.gmra.mxu0 %v2671
        %v2940 = vpop.f32.mrf.mxu0
        %v2941 = vadd.f32 0.0, %v2940
        %v2942 = vpop.f32.mrf.mxu0
        %2943 = vmatprep.mubr.f32.mxu0 0.0
        %2944 = vmatmul.mubr.f32.gmra.mxu0 %v2673
        %v2945 = vpop.f32.mrf.mxu0
        %v2946 = vadd.f32 0.0, %v2945
        %v2947 = vpop.f32.mrf.mxu0
        %2948 = vmatprep.mubr.f32.mxu0 0.0
        %2949 = vmatmul.mubr.f32.gmra.mxu0 %v2675
        %v2950 = vpop.f32.mrf.mxu0
        %v2951 = vadd.f32 0.0, %v2950
        %v2952 = vpop.f32.mrf.mxu0
        %2953 = vmatprep.mubr.f32.mxu0 0.0
        %2954 = vmatmul.mubr.f32.gmra.mxu0 %v2677
        %v2955 = vpop.f32.mrf.mxu0
        %v2956 = vadd.f32 0.0, %v2955
        %v2957 = vpop.f32.mrf.mxu0
        %2958 = vmatprep.mubr.f32.mxu0 0.0
        %2959 = vmatmul.mubr.f32.gmra.mxu0 %v2679
        %v2960 = vpop.f32.mrf.mxu0
        %v2961 = vadd.f32 0.0, %v2960
        %v2962 = vpop.f32.mrf.mxu0
        %2963 = vmatprep.mubr.f32.mxu0 0.0
        %2964 = vmatmul.mubr.f32.gmra.mxu0 %v2681
        %v2965 = vpop.f32.mrf.mxu0
        %v2966 = vadd.f32 0.0, %v2965
        %v2967 = vpop.f32.mrf.mxu0
        %2968 = vmatprep.mubr.f32.mxu0 0.0
        %2969 = vmatmul.mubr.f32.gmra.mxu0 %v2683
        %v2970 = vpop.f32.mrf.mxu0
        %v2971 = vadd.f32 0.0, %v2970
        %v2972 = vpop.f32.mrf.mxu0
        %2973 = vmatprep.mubr.f32.mxu0 0.0
        %2974 = vmatmul.mubr.f32.gmra.mxu0 %v2685
        %v2975 = vpop.f32.mrf.mxu0
        %v2976 = vadd.f32 0.0, %v2975
        %v2977 = vpop.f32.mrf.mxu0
        %2978 = vmatprep.mubr.f32.mxu0 0.0
        %2979 = vmatmul.mubr.f32.gmra.mxu0 %v2687
        %v2980 = vpop.f32.mrf.mxu0
        %v2981 = vadd.f32 0.0, %v2980
        %v2982 = vpop.f32.mrf.mxu0
        %2983 = vmatprep.mubr.f32.mxu0 0.0
        %2984 = vmatmul.mubr.f32.gmra.mxu0 %v2689
        %v2985 = vpop.f32.mrf.mxu0
        %v2986 = vadd.f32 0.0, %v2985
        %v2987 = vpop.f32.mrf.mxu0
        %2988 = vmatprep.mubr.f32.mxu0 0.0
        %2989 = vmatmul.mubr.f32.gmra.mxu0 %v2691
        %v2990 = vpop.f32.mrf.mxu0
        %v2991 = vadd.f32 0.0, %v2990
        %v2992 = vpop.f32.mrf.mxu0
        %2993 = vmatprep.mubr.f32.mxu0 0.0
        %2994 = vmatmul.mubr.f32.gmra.mxu0 %v2693
        %v2995 = vpop.f32.mrf.mxu0
        %v2996 = vadd.f32 0.0, %v2995
        %v2997 = vpop.f32.mrf.mxu0
        %2998 = vmatprep.mubr.f32.mxu0 0.0
        %2999 = vmatmul.mubr.f32.gmra.mxu0 %v2695
        %v3000 = vpop.f32.mrf.mxu0
        %v3001 = vadd.f32 0.0, %v3000
        %v3002 = vpop.f32.mrf.mxu0
        %3003 = vmatprep.mubr.f32.mxu0 0.0
        %3004 = vmatmul.mubr.f32.gmra.mxu0 %v2697
        %v3005 = vpop.f32.mrf.mxu0
        %v3006 = vadd.f32 0.0, %v3005
        %v3007 = vpop.f32.mrf.mxu0
        %3008 = vmatprep.mubr.f32.mxu0 0.0
        %3009 = vmatmul.mubr.f32.gmra.mxu0 %v2699
        %v3010 = vpop.f32.mrf.mxu0
        %v3011 = vadd.f32 0.0, %v3010
        %v3012 = vpop.f32.mrf.mxu0
        %3013 = vmatprep.mubr.f32.mxu0 0.0
        %3014 = vmatmul.mubr.f32.gmra.mxu0 %v2701
        %v3015 = vpop.f32.mrf.mxu0
        %v3016 = vadd.f32 0.0, %v3015
        %v3017 = vpop.f32.mrf.mxu0
        %3018 = vmatprep.mubr.f32.mxu0 0.0
        %3019 = vmatmul.mubr.f32.gmra.mxu0 %v2703
        %v3020 = vpop.f32.mrf.mxu0
        %v3021 = vadd.f32 0.0, %v3020
        %v3022 = vpop.f32.mrf.mxu0
        %3023 = vmatprep.mubr.f32.mxu0 0.0
        %3024 = vmatmul.mubr.f32.gmra.mxu0 %v2705
        %v3025 = vpop.f32.mrf.mxu0
        %v3026 = vadd.f32 0.0, %v3025
        %v3027 = vpop.f32.mrf.mxu0
        %3028 = vmatprep.mubr.f32.mxu0 0.0
        %3029 = vmatmul.mubr.f32.gmra.mxu0 %v2707
        %v3030 = vpop.f32.mrf.mxu0
        %v3031 = vadd.f32 0.0, %v3030
        %v3032 = vpop.f32.mrf.mxu0
        %3033 = vmatprep.mubr.f32.mxu0 0.0
        %3034 = vmatmul.mubr.f32.gmra.mxu0 %v2709
        %v3035 = vpop.f32.mrf.mxu0
        %v3036 = vadd.f32 0.0, %v3035
        %v3037 = vpop.f32.mrf.mxu0
        %3038 = vmatprep.mubr.f32.mxu0 0.0
        %3039 = vmatmul.mubr.f32.gmra.mxu0 %v2711
        %v3040 = vpop.f32.mrf.mxu0
        %v3041 = vadd.f32 0.0, %v3040
        %v3042 = vpop.f32.mrf.mxu0
        %3043 = vmatprep.mubr.f32.mxu0 0.0
        %3044 = vmatmul.mubr.f32.gmra.mxu0 %v2713
        %v3045 = vpop.f32.mrf.mxu0
        %v3046 = vadd.f32 0.0, %v3045
        %v3047 = vpop.f32.mrf.mxu0
        %3048 = vmatprep.mubr.f32.mxu0 0.0
        %3049 = vmatmul.mubr.f32.gmra.mxu0 %v2715
        %v3050 = vpop.f32.mrf.mxu0
        %v3051 = vadd.f32 0.0, %v3050
        %v3052 = vpop.f32.mrf.mxu0
        %3053 = vmatprep.mubr.f32.mxu0 0.0
        %3054 = vmatmul.mubr.f32.gmra.mxu0 %v2717
        %v3055 = vpop.f32.mrf.mxu0
        %v3056 = vadd.f32 0.0, %v3055
        %v3057 = vpop.f32.mrf.mxu0
        %3058 = vmatprep.mubr.f32.mxu0 0.0
        %3059 = vmatmul.mubr.f32.gmra.mxu0 %v2719
        %v3060 = vpop.f32.mrf.mxu0
        %v3061 = vadd.f32 0.0, %v3060
        %v3062 = vpop.f32.mrf.mxu0
        %3063 = vmatprep.mubr.f32.mxu0 0.0
        %3064 = vmatmul.mubr.f32.gmra.mxu0 %v2721
        %v3065 = vpop.f32.mrf.mxu0
        %v3066 = vadd.f32 0.0, %v3065
        %v3067 = vpop.f32.mrf.mxu0
        %3068 = vmatprep.mubr.f32.mxu0 0.0
        %3069 = vmatmul.mubr.f32.gmra.mxu0 %v2723
        %v3070 = vpop.f32.mrf.mxu0
        %v3071 = vadd.f32 0.0, %v3070
        %v3072 = vpop.f32.mrf.mxu0
        %3073 = vmatprep.mubr.f32.mxu0 0.0
        %3074 = vmatmul.mubr.f32.gmra.mxu0 %v2725
        %v3075 = vpop.f32.mrf.mxu0
        %v3076 = vadd.f32 0.0, %v3075
        %v3077 = vpop.f32.mrf.mxu0
        %3078 = vmatprep.mubr.f32.mxu0 0.0
        %3079 = vmatmul.mubr.f32.gmra.mxu0 %v2727
        %v3080 = vpop.f32.mrf.mxu0
        %v3081 = vadd.f32 0.0, %v3080
        %v3082 = vpop.f32.mrf.mxu0
        %3083 = vmatprep.mubr.f32.mxu0 0.0
        %3084 = vmatmul.mubr.f32.gmra.mxu0 %v2729
        %v3085 = vpop.f32.mrf.mxu0
        %v3086 = vadd.f32 0.0, %v3085
        %v3087 = vpop.f32.mrf.mxu0
        %3088 = vmatprep.mubr.f32.mxu0 0.0
        %3089 = vmatmul.mubr.f32.gmra.mxu0 %v2731
        %v3090 = vpop.f32.mrf.mxu0
        %v3091 = vadd.f32 0.0, %v3090
        %v3092 = vpop.f32.mrf.mxu0
        %3093 = vmatprep.mubr.f32.mxu0 0.0
        %3094 = vmatmul.mubr.f32.gmra.mxu0 %v2733
        %v3095 = vpop.f32.mrf.mxu0
        %v3096 = vadd.f32 0.0, %v3095
        %v3097 = vpop.f32.mrf.mxu0
        %3098 = vmatprep.mubr.f32.mxu0 0.0
        %3099 = vmatmul.mubr.f32.gmra.mxu0 %v2735
        %v3100 = vpop.f32.mrf.mxu0
        %v3101 = vadd.f32 0.0, %v3100
        %v3102 = vpop.f32.mrf.mxu0
        %3103 = vmatprep.mubr.f32.mxu0 0.0
        %3104 = vmatmul.mubr.f32.gmra.mxu0 %v2737
        %v3105 = vpop.f32.mrf.mxu0
        %v3106 = vadd.f32 0.0, %v3105
        %v3107 = vpop.f32.mrf.mxu0
        %3108 = vmatprep.mubr.f32.mxu0 0.0
        %3109 = vmatmul.mubr.f32.gmra.mxu0 %v2739
        %v3110 = vpop.f32.mrf.mxu0
        %v3111 = vadd.f32 0.0, %v3110
        %v3112 = vpop.f32.mrf.mxu0
        %3113 = vmatprep.mubr.f32.mxu0 0.0
        %3114 = vmatmul.mubr.f32.gmra.mxu0 %v2741
        %v3115 = vpop.f32.mrf.mxu0
        %v3116 = vadd.f32 0.0, %v3115
        %v3117 = vpop.f32.mrf.mxu0
        %3118 = vmatprep.mubr.f32.mxu0 0.0
        %3119 = vmatmul.mubr.f32.gmra.mxu0 %v2743
        %v3120 = vpop.f32.mrf.mxu0
        %v3121 = vadd.f32 0.0, %v3120
        %v3122 = vpop.f32.mrf.mxu0
        %3123 = vmatprep.mubr.f32.mxu0 0.0
        %3124 = vmatmul.mubr.f32.gmra.mxu0 %v2745
        %v3125 = vpop.f32.mrf.mxu0
        %v3126 = vadd.f32 0.0, %v3125
        %v3127 = vpop.f32.mrf.mxu0
        %3128 = vmatprep.mubr.f32.mxu0 0.0
        %3129 = vmatmul.mubr.f32.gmra.mxu0 %v2747
        %v3130 = vpop.f32.mrf.mxu0
        %v3131 = vadd.f32 0.0, %v3130
        %v3132 = vpop.f32.mrf.mxu0
        %3133 = vdwg.mxu0
        %v3134 = vsel %vm495, %v2313, 0
        %v3136 = vsel %vm495, %v2314, 0
        %v3138 = vsel %vm495, %v2315, 0
        %v3140 = vsel %vm495, %v2316, 0
        %v3142 = vsel %vm495, %v2318, 0
        %v3144 = vsel %vm495, %v2319, 0
        %v3146 = vsel %vm495, %v2320, 0
        %v3148 = vsel %vm495, %v2321, 0
        %v3150 = vsel %vm495, %v2323, 0
        %v3152 = vsel %vm495, %v2324, 0
        %v3154 = vsel %vm495, %v2325, 0
        %v3156 = vsel %vm495, %v2326, 0
        %v3158 = vsel %vm495, %v2328, 0
        %v3160 = vsel %vm495, %v2329, 0
        %v3162 = vsel %vm495, %v2330, 0
        %v3164 = vsel %vm495, %v2331, 0
        %v3166 = vsel %vm495, %v2333, 0
        %v3168 = vsel %vm495, %v2334, 0
        %v3170 = vsel %vm495, %v2335, 0
        %v3172 = vsel %vm495, %v2336, 0
        %v3174 = vsel %vm495, %v2338, 0
        %v3176 = vsel %vm495, %v2339, 0
        %v3178 = vsel %vm495, %v2340, 0
        %v3180 = vsel %vm495, %v2341, 0
        %v3182 = vsel %vm495, %v2343, 0
        %v3184 = vsel %vm495, %v2344, 0
        %v3186 = vsel %vm495, %v2345, 0
        %v3188 = vsel %vm495, %v2346, 0
        %v3190 = vsel %vm495, %v2348, 0
        %v3192 = vsel %vm495, %v2349, 0
        %v3194 = vsel %vm495, %v2350, 0
        %v3196 = vsel %vm495, %v2351, 0
        %v3198 = vsel %vm495, %v2353, 0
        %v3200 = vsel %vm495, %v2354, 0
        %v3202 = vsel %vm495, %v2355, 0
        %v3204 = vsel %vm495, %v2356, 0
        %v3206 = vsel %vm495, %v2358, 0
        %v3208 = vsel %vm495, %v2359, 0
        %v3210 = vsel %vm495, %v2360, 0
        %v3212 = vsel %vm495, %v2361, 0
        %v3214 = vsel %vm495, %v2363, 0
        %v3216 = vsel %vm495, %v2364, 0
        %v3218 = vsel %vm495, %v2365, 0
        %v3220 = vsel %vm495, %v2366, 0
        %v3222 = vsel %vm495, %v2368, 0
        %v3224 = vsel %vm495, %v2369, 0
        %v3226 = vsel %vm495, %v2370, 0
        %v3228 = vsel %vm495, %v2371, 0
        %v3230 = vsel %vm495, %v2373, 0
        %v3232 = vsel %vm495, %v2374, 0
        %v3234 = vsel %vm495, %v2375, 0
        %v3236 = vsel %vm495, %v2376, 0
        %v3238 = vsel %vm495, %v2378, 0
        %v3240 = vsel %vm495, %v2379, 0
        %v3242 = vsel %vm495, %v2380, 0
        %v3244 = vsel %vm495, %v2381, 0
        %v3246 = vsel %vm495, %v2383, 0
        %v3248 = vsel %vm495, %v2384, 0
        %v3250 = vsel %vm495, %v2385, 0
        %v3252 = vsel %vm495, %v2386, 0
        %v3254 = vsel %vm495, %v2388, 0
        %v3256 = vsel %vm495, %v2389, 0
        %v3258 = vsel %vm495, %v2390, 0
        %v3260 = vsel %vm495, %v2391, 0
        %3262 = vmatprep.subr.mxu0 0.0
        %3263 = vmatpush1.msra.mxu0 0.0
        %3264 = vmatprep.subr.mxu0 0.0
        %3265 = vmatpush1.msra.mxu0 0.0
        %3266 = vmatprep.subr.mxu0 0.0
        %3267 = vmatpush1.msra.mxu0 0.0
        %3268 = vmatprep.subr.mxu0 0.0
        %3269 = vmatpush1.msra.mxu0 0.0
        %3270 = vmatprep.subr.mxu0 0.0
        %3271 = vmatpush1.msra.mxu0 0.0
        %3272 = vmatprep.subr.mxu0 0.0
        %3273 = vmatpush1.msra.mxu0 0.0
        %3274 = vmatprep.subr.mxu0 0.0
        %3275 = vmatpush1.msra.mxu0 0.0
        %3276 = vmatprep.subr.mxu0 0.0
        %3277 = vmatpush1.msra.mxu0 0.0
        %3278 = vmatprep.subr.mxu0 0.0
        %3279 = vmatpush1.msra.mxu0 0.0
        %3280 = vmatprep.subr.mxu0 0.0
        %3281 = vmatpush1.msra.mxu0 0.0
        %3282 = vmatprep.subr.mxu0 0.0
        %3283 = vmatpush1.msra.mxu0 0.0
        %3284 = vmatprep.subr.mxu0 0.0
        %3285 = vmatpush1.msra.mxu0 0.0
        %3286 = vmatprep.subr.mxu0 0.0
        %3287 = vmatpush1.msra.mxu0 0.0
        %3288 = vmatprep.subr.mxu0 0.0
        %3289 = vmatpush1.msra.mxu0 0.0
        %3290 = vmatprep.subr.mxu0 0.0
        %3291 = vmatpush1.msra.mxu0 0.0
        %3292 = vmatprep.subr.mxu0 0.0
        %3293 = vmatpush1.msra.mxu0 %v2394
        %3294 = vmatprep.subr.mxu0 0.0
        %3295 = vmatpush2.msra.mxu0 0.0
        %3296 = vmatprep.subr.mxu0 0.0
        %3297 = vmatpush2.msra.mxu0 0.0
        %3298 = vmatprep.subr.mxu0 0.0
        %3299 = vmatpush2.msra.mxu0 0.0
        %3300 = vmatprep.subr.mxu0 0.0
        %3301 = vmatpush2.msra.mxu0 0.0
        %3302 = vmatprep.subr.mxu0 0.0
        %3303 = vmatpush2.msra.mxu0 0.0
        %3304 = vmatprep.subr.mxu0 0.0
        %3305 = vmatpush2.msra.mxu0 0.0
        %3306 = vmatprep.subr.mxu0 0.0
        %3307 = vmatpush2.msra.mxu0 0.0
        %3308 = vmatprep.subr.mxu0 0.0
        %3309 = vmatpush2.msra.mxu0 0.0
        %3310 = vmatprep.subr.mxu0 0.0
        %3311 = vmatpush2.msra.mxu0 0.0
        %3312 = vmatprep.subr.mxu0 0.0
        %3313 = vmatpush2.msra.mxu0 0.0
        %3314 = vmatprep.subr.mxu0 0.0
        %3315 = vmatpush2.msra.mxu0 0.0
        %3316 = vmatprep.subr.mxu0 0.0
        %3317 = vmatpush2.msra.mxu0 0.0
        %3318 = vmatprep.subr.mxu0 0.0
        %3319 = vmatpush2.msra.mxu0 0.0
        %3320 = vmatprep.subr.mxu0 0.0
        %3321 = vmatpush2.msra.mxu0 0.0
        %3322 = vmatprep.subr.mxu0 0.0
        %3323 = vmatpush2.msra.mxu0 0.0
        %3324 = vmatprep.subr.mxu0 0.0
        %3325 = vmatpush2.msra.mxu0 0.0
        %3326 = vmatprep.mubr.f32.mxu0 0.0
        %3327 = vmatmul.mubr.f32.gmra.mxu0 %v3134
        %v3328 = vpop.f32.mrf.mxu0
        %v3329 = vadd.f32 %v2816, %v3328
        %v3330 = vpop.f32.mrf.mxu0
        %3331 = vmatprep.mubr.f32.mxu0 0.0
        %3332 = vmatmul.mubr.f32.gmra.mxu0 %v3136
        %v3333 = vpop.f32.mrf.mxu0
        %v3334 = vadd.f32 %v2821, %v3333
        %v3335 = vpop.f32.mrf.mxu0
        %3336 = vmatprep.mubr.f32.mxu0 0.0
        %3337 = vmatmul.mubr.f32.gmra.mxu0 %v3138
        %v3338 = vpop.f32.mrf.mxu0
        %v3339 = vadd.f32 %v2826, %v3338
        %v3340 = vpop.f32.mrf.mxu0
        %3341 = vmatprep.mubr.f32.mxu0 0.0
        %3342 = vmatmul.mubr.f32.gmra.mxu0 %v3140
        %v3343 = vpop.f32.mrf.mxu0
        %v3344 = vadd.f32 %v2831, %v3343
        %v3345 = vpop.f32.mrf.mxu0
        %3346 = vmatprep.mubr.f32.mxu0 0.0
        %3347 = vmatmul.mubr.f32.gmra.mxu0 %v3142
        %v3348 = vpop.f32.mrf.mxu0
        %v3349 = vadd.f32 %v2836, %v3348
        %v3350 = vpop.f32.mrf.mxu0
        %3351 = vmatprep.mubr.f32.mxu0 0.0
        %3352 = vmatmul.mubr.f32.gmra.mxu0 %v3144
        %v3353 = vpop.f32.mrf.mxu0
        %v3354 = vadd.f32 %v2841, %v3353
        %v3355 = vpop.f32.mrf.mxu0
        %3356 = vmatprep.mubr.f32.mxu0 0.0
        %3357 = vmatmul.mubr.f32.gmra.mxu0 %v3146
        %v3358 = vpop.f32.mrf.mxu0
        %v3359 = vadd.f32 %v2846, %v3358
        %v3360 = vpop.f32.mrf.mxu0
        %3361 = vmatprep.mubr.f32.mxu0 0.0
        %3362 = vmatmul.mubr.f32.gmra.mxu0 %v3148
        %v3363 = vpop.f32.mrf.mxu0
        %v3364 = vadd.f32 %v2851, %v3363
        %v3365 = vpop.f32.mrf.mxu0
        %3366 = vmatprep.mubr.f32.mxu0 0.0
        %3367 = vmatmul.mubr.f32.gmra.mxu0 %v3150
        %v3368 = vpop.f32.mrf.mxu0
        %v3369 = vadd.f32 %v2856, %v3368
        %v3370 = vpop.f32.mrf.mxu0
        %3371 = vmatprep.mubr.f32.mxu0 0.0
        %3372 = vmatmul.mubr.f32.gmra.mxu0 %v3152
        %v3373 = vpop.f32.mrf.mxu0
        %v3374 = vadd.f32 %v2861, %v3373
        %v3375 = vpop.f32.mrf.mxu0
        %3376 = vmatprep.mubr.f32.mxu0 0.0
        %3377 = vmatmul.mubr.f32.gmra.mxu0 %v3154
        %v3378 = vpop.f32.mrf.mxu0
        %v3379 = vadd.f32 %v2866, %v3378
        %v3380 = vpop.f32.mrf.mxu0
        %3381 = vmatprep.mubr.f32.mxu0 0.0
        %3382 = vmatmul.mubr.f32.gmra.mxu0 %v3156
        %v3383 = vpop.f32.mrf.mxu0
        %v3384 = vadd.f32 %v2871, %v3383
        %v3385 = vpop.f32.mrf.mxu0
        %3386 = vmatprep.mubr.f32.mxu0 0.0
        %3387 = vmatmul.mubr.f32.gmra.mxu0 %v3158
        %v3388 = vpop.f32.mrf.mxu0
        %v3389 = vadd.f32 %v2876, %v3388
        %v3390 = vpop.f32.mrf.mxu0
        %3391 = vmatprep.mubr.f32.mxu0 0.0
        %3392 = vmatmul.mubr.f32.gmra.mxu0 %v3160
        %v3393 = vpop.f32.mrf.mxu0
        %v3394 = vadd.f32 %v2881, %v3393
        %v3395 = vpop.f32.mrf.mxu0
        %3396 = vmatprep.mubr.f32.mxu0 0.0
        %3397 = vmatmul.mubr.f32.gmra.mxu0 %v3162
        %v3398 = vpop.f32.mrf.mxu0
        %v3399 = vadd.f32 %v2886, %v3398
        %v3400 = vpop.f32.mrf.mxu0
        %3401 = vmatprep.mubr.f32.mxu0 0.0
        %3402 = vmatmul.mubr.f32.gmra.mxu0 %v3164
        %v3403 = vpop.f32.mrf.mxu0
        %v3404 = vadd.f32 %v2891, %v3403
        %v3405 = vpop.f32.mrf.mxu0
        %3406 = vmatprep.mubr.f32.mxu0 0.0
        %3407 = vmatmul.mubr.f32.gmra.mxu0 %v3166
        %v3408 = vpop.f32.mrf.mxu0
        %v3409 = vadd.f32 %v2896, %v3408
        %v3410 = vpop.f32.mrf.mxu0
        %3411 = vmatprep.mubr.f32.mxu0 0.0
        %3412 = vmatmul.mubr.f32.gmra.mxu0 %v3168
        %v3413 = vpop.f32.mrf.mxu0
        %v3414 = vadd.f32 %v2901, %v3413
        %v3415 = vpop.f32.mrf.mxu0
        %3416 = vmatprep.mubr.f32.mxu0 0.0
        %3417 = vmatmul.mubr.f32.gmra.mxu0 %v3170
        %v3418 = vpop.f32.mrf.mxu0
        %v3419 = vadd.f32 %v2906, %v3418
        %v3420 = vpop.f32.mrf.mxu0
        %3421 = vmatprep.mubr.f32.mxu0 0.0
        %3422 = vmatmul.mubr.f32.gmra.mxu0 %v3172
        %v3423 = vpop.f32.mrf.mxu0
        %v3424 = vadd.f32 %v2911, %v3423
        %v3425 = vpop.f32.mrf.mxu0
        %3426 = vmatprep.mubr.f32.mxu0 0.0
        %3427 = vmatmul.mubr.f32.gmra.mxu0 %v3174
        %v3428 = vpop.f32.mrf.mxu0
        %v3429 = vadd.f32 %v2916, %v3428
        %v3430 = vpop.f32.mrf.mxu0
        %3431 = vmatprep.mubr.f32.mxu0 0.0
        %3432 = vmatmul.mubr.f32.gmra.mxu0 %v3176
        %v3433 = vpop.f32.mrf.mxu0
        %v3434 = vadd.f32 %v2921, %v3433
        %v3435 = vpop.f32.mrf.mxu0
        %3436 = vmatprep.mubr.f32.mxu0 0.0
        %3437 = vmatmul.mubr.f32.gmra.mxu0 %v3178
        %v3438 = vpop.f32.mrf.mxu0
        %v3439 = vadd.f32 %v2926, %v3438
        %v3440 = vpop.f32.mrf.mxu0
        %3441 = vmatprep.mubr.f32.mxu0 0.0
        %3442 = vmatmul.mubr.f32.gmra.mxu0 %v3180
        %v3443 = vpop.f32.mrf.mxu0
        %v3444 = vadd.f32 %v2931, %v3443
        %v3445 = vpop.f32.mrf.mxu0
        %3446 = vmatprep.mubr.f32.mxu0 0.0
        %3447 = vmatmul.mubr.f32.gmra.mxu0 %v3182
        %v3448 = vpop.f32.mrf.mxu0
        %v3449 = vadd.f32 %v2936, %v3448
        %v3450 = vpop.f32.mrf.mxu0
        %3451 = vmatprep.mubr.f32.mxu0 0.0
        %3452 = vmatmul.mubr.f32.gmra.mxu0 %v3184
        %v3453 = vpop.f32.mrf.mxu0
        %v3454 = vadd.f32 %v2941, %v3453
        %v3455 = vpop.f32.mrf.mxu0
        %3456 = vmatprep.mubr.f32.mxu0 0.0
        %3457 = vmatmul.mubr.f32.gmra.mxu0 %v3186
        %v3458 = vpop.f32.mrf.mxu0
        %v3459 = vadd.f32 %v2946, %v3458
        %v3460 = vpop.f32.mrf.mxu0
        %3461 = vmatprep.mubr.f32.mxu0 0.0
        %3462 = vmatmul.mubr.f32.gmra.mxu0 %v3188
        %v3463 = vpop.f32.mrf.mxu0
        %v3464 = vadd.f32 %v2951, %v3463
        %v3465 = vpop.f32.mrf.mxu0
        %3466 = vmatprep.mubr.f32.mxu0 0.0
        %3467 = vmatmul.mubr.f32.gmra.mxu0 %v3190
        %v3468 = vpop.f32.mrf.mxu0
        %v3469 = vadd.f32 %v2956, %v3468
        %v3470 = vpop.f32.mrf.mxu0
        %3471 = vmatprep.mubr.f32.mxu0 0.0
        %3472 = vmatmul.mubr.f32.gmra.mxu0 %v3192
        %v3473 = vpop.f32.mrf.mxu0
        %v3474 = vadd.f32 %v2961, %v3473
        %v3475 = vpop.f32.mrf.mxu0
        %3476 = vmatprep.mubr.f32.mxu0 0.0
        %3477 = vmatmul.mubr.f32.gmra.mxu0 %v3194
        %v3478 = vpop.f32.mrf.mxu0
        %v3479 = vadd.f32 %v2966, %v3478
        %v3480 = vpop.f32.mrf.mxu0
        %3481 = vmatprep.mubr.f32.mxu0 0.0
        %3482 = vmatmul.mubr.f32.gmra.mxu0 %v3196
        %v3483 = vpop.f32.mrf.mxu0
        %v3484 = vadd.f32 %v2971, %v3483
        %v3485 = vpop.f32.mrf.mxu0
        %3486 = vmatprep.mubr.f32.mxu0 0.0
        %3487 = vmatmul.mubr.f32.gmra.mxu0 %v3198
        %v3488 = vpop.f32.mrf.mxu0
        %v3489 = vadd.f32 %v2976, %v3488
        %v3490 = vpop.f32.mrf.mxu0
        %3491 = vmatprep.mubr.f32.mxu0 0.0
        %3492 = vmatmul.mubr.f32.gmra.mxu0 %v3200
        %v3493 = vpop.f32.mrf.mxu0
        %v3494 = vadd.f32 %v2981, %v3493
        %v3495 = vpop.f32.mrf.mxu0
        %3496 = vmatprep.mubr.f32.mxu0 0.0
        %3497 = vmatmul.mubr.f32.gmra.mxu0 %v3202
        %v3498 = vpop.f32.mrf.mxu0
        %v3499 = vadd.f32 %v2986, %v3498
        %v3500 = vpop.f32.mrf.mxu0
        %3501 = vmatprep.mubr.f32.mxu0 0.0
        %3502 = vmatmul.mubr.f32.gmra.mxu0 %v3204
        %v3503 = vpop.f32.mrf.mxu0
        %v3504 = vadd.f32 %v2991, %v3503
        %v3505 = vpop.f32.mrf.mxu0
        %3506 = vmatprep.mubr.f32.mxu0 0.0
        %3507 = vmatmul.mubr.f32.gmra.mxu0 %v3206
        %v3508 = vpop.f32.mrf.mxu0
        %v3509 = vadd.f32 %v2996, %v3508
        %v3510 = vpop.f32.mrf.mxu0
        %3511 = vmatprep.mubr.f32.mxu0 0.0
        %3512 = vmatmul.mubr.f32.gmra.mxu0 %v3208
        %v3513 = vpop.f32.mrf.mxu0
        %v3514 = vadd.f32 %v3001, %v3513
        %v3515 = vpop.f32.mrf.mxu0
        %3516 = vmatprep.mubr.f32.mxu0 0.0
        %3517 = vmatmul.mubr.f32.gmra.mxu0 %v3210
        %v3518 = vpop.f32.mrf.mxu0
        %v3519 = vadd.f32 %v3006, %v3518
        %v3520 = vpop.f32.mrf.mxu0
        %3521 = vmatprep.mubr.f32.mxu0 0.0
        %3522 = vmatmul.mubr.f32.gmra.mxu0 %v3212
        %v3523 = vpop.f32.mrf.mxu0
        %v3524 = vadd.f32 %v3011, %v3523
        %v3525 = vpop.f32.mrf.mxu0
        %3526 = vmatprep.mubr.f32.mxu0 0.0
        %3527 = vmatmul.mubr.f32.gmra.mxu0 %v3214
        %v3528 = vpop.f32.mrf.mxu0
        %v3529 = vadd.f32 %v3016, %v3528
        %v3530 = vpop.f32.mrf.mxu0
        %3531 = vmatprep.mubr.f32.mxu0 0.0
        %3532 = vmatmul.mubr.f32.gmra.mxu0 %v3216
        %v3533 = vpop.f32.mrf.mxu0
        %v3534 = vadd.f32 %v3021, %v3533
        %v3535 = vpop.f32.mrf.mxu0
        %3536 = vmatprep.mubr.f32.mxu0 0.0
        %3537 = vmatmul.mubr.f32.gmra.mxu0 %v3218
        %v3538 = vpop.f32.mrf.mxu0
        %v3539 = vadd.f32 %v3026, %v3538
        %v3540 = vpop.f32.mrf.mxu0
        %3541 = vmatprep.mubr.f32.mxu0 0.0
        %3542 = vmatmul.mubr.f32.gmra.mxu0 %v3220
        %v3543 = vpop.f32.mrf.mxu0
        %v3544 = vadd.f32 %v3031, %v3543
        %v3545 = vpop.f32.mrf.mxu0
        %3546 = vmatprep.mubr.f32.mxu0 0.0
        %3547 = vmatmul.mubr.f32.gmra.mxu0 %v3222
        %v3548 = vpop.f32.mrf.mxu0
        %v3549 = vadd.f32 %v3036, %v3548
        %v3550 = vpop.f32.mrf.mxu0
        %3551 = vmatprep.mubr.f32.mxu0 0.0
        %3552 = vmatmul.mubr.f32.gmra.mxu0 %v3224
        %v3553 = vpop.f32.mrf.mxu0
        %v3554 = vadd.f32 %v3041, %v3553
        %v3555 = vpop.f32.mrf.mxu0
        %3556 = vmatprep.mubr.f32.mxu0 0.0
        %3557 = vmatmul.mubr.f32.gmra.mxu0 %v3226
        %v3558 = vpop.f32.mrf.mxu0
        %v3559 = vadd.f32 %v3046, %v3558
        %v3560 = vpop.f32.mrf.mxu0
        %3561 = vmatprep.mubr.f32.mxu0 0.0
        %3562 = vmatmul.mubr.f32.gmra.mxu0 %v3228
        %v3563 = vpop.f32.mrf.mxu0
        %v3564 = vadd.f32 %v3051, %v3563
        %v3565 = vpop.f32.mrf.mxu0
        %3566 = vmatprep.mubr.f32.mxu0 0.0
        %3567 = vmatmul.mubr.f32.gmra.mxu0 %v3230
        %v3568 = vpop.f32.mrf.mxu0
        %v3569 = vadd.f32 %v3056, %v3568
        %v3570 = vpop.f32.mrf.mxu0
        %3571 = vmatprep.mubr.f32.mxu0 0.0
        %3572 = vmatmul.mubr.f32.gmra.mxu0 %v3232
        %v3573 = vpop.f32.mrf.mxu0
        %v3574 = vadd.f32 %v3061, %v3573
        %v3575 = vpop.f32.mrf.mxu0
        %3576 = vmatprep.mubr.f32.mxu0 0.0
        %3577 = vmatmul.mubr.f32.gmra.mxu0 %v3234
        %v3578 = vpop.f32.mrf.mxu0
        %v3579 = vadd.f32 %v3066, %v3578
        %v3580 = vpop.f32.mrf.mxu0
        %3581 = vmatprep.mubr.f32.mxu0 0.0
        %3582 = vmatmul.mubr.f32.gmra.mxu0 %v3236
        %v3583 = vpop.f32.mrf.mxu0
        %v3584 = vadd.f32 %v3071, %v3583
        %v3585 = vpop.f32.mrf.mxu0
        %3586 = vmatprep.mubr.f32.mxu0 0.0
        %3587 = vmatmul.mubr.f32.gmra.mxu0 %v3238
        %v3588 = vpop.f32.mrf.mxu0
        %v3589 = vadd.f32 %v3076, %v3588
        %v3590 = vpop.f32.mrf.mxu0
        %3591 = vmatprep.mubr.f32.mxu0 0.0
        %3592 = vmatmul.mubr.f32.gmra.mxu0 %v3240
        %v3593 = vpop.f32.mrf.mxu0
        %v3594 = vadd.f32 %v3081, %v3593
        %v3595 = vpop.f32.mrf.mxu0
        %3596 = vmatprep.mubr.f32.mxu0 0.0
        %3597 = vmatmul.mubr.f32.gmra.mxu0 %v3242
        %v3598 = vpop.f32.mrf.mxu0
        %v3599 = vadd.f32 %v3086, %v3598
        %v3600 = vpop.f32.mrf.mxu0
        %3601 = vmatprep.mubr.f32.mxu0 0.0
        %3602 = vmatmul.mubr.f32.gmra.mxu0 %v3244
        %v3603 = vpop.f32.mrf.mxu0
        %v3604 = vadd.f32 %v3091, %v3603
        %v3605 = vpop.f32.mrf.mxu0
        %3606 = vmatprep.mubr.f32.mxu0 0.0
        %3607 = vmatmul.mubr.f32.gmra.mxu0 %v3246
        %v3608 = vpop.f32.mrf.mxu0
        %v3609 = vadd.f32 %v3096, %v3608
        %v3610 = vpop.f32.mrf.mxu0
        %3611 = vmatprep.mubr.f32.mxu0 0.0
        %3612 = vmatmul.mubr.f32.gmra.mxu0 %v3248
        %v3613 = vpop.f32.mrf.mxu0
        %v3614 = vadd.f32 %v3101, %v3613
        %v3615 = vpop.f32.mrf.mxu0
        %3616 = vmatprep.mubr.f32.mxu0 0.0
        %3617 = vmatmul.mubr.f32.gmra.mxu0 %v3250
        %v3618 = vpop.f32.mrf.mxu0
        %v3619 = vadd.f32 %v3106, %v3618
        %v3620 = vpop.f32.mrf.mxu0
        %3621 = vmatprep.mubr.f32.mxu0 0.0
        %3622 = vmatmul.mubr.f32.gmra.mxu0 %v3252
        %v3623 = vpop.f32.mrf.mxu0
        %v3624 = vadd.f32 %v3111, %v3623
        %v3625 = vpop.f32.mrf.mxu0
        %3626 = vmatprep.mubr.f32.mxu0 0.0
        %3627 = vmatmul.mubr.f32.gmra.mxu0 %v3254
        %v3628 = vpop.f32.mrf.mxu0
        %v3629 = vadd.f32 %v3116, %v3628
        %v3630 = vpop.f32.mrf.mxu0
        %3631 = vmatprep.mubr.f32.mxu0 0.0
        %3632 = vmatmul.mubr.f32.gmra.mxu0 %v3256
        %v3633 = vpop.f32.mrf.mxu0
        %v3634 = vadd.f32 %v3121, %v3633
        %v3635 = vpop.f32.mrf.mxu0
        %3636 = vmatprep.mubr.f32.mxu0 0.0
        %3637 = vmatmul.mubr.f32.gmra.mxu0 %v3258
        %v3638 = vpop.f32.mrf.mxu0
        %v3639 = vadd.f32 %v3126, %v3638
        %v3640 = vpop.f32.mrf.mxu0
        %3641 = vmatprep.mubr.f32.mxu0 0.0
        %3642 = vmatmul.mubr.f32.gmra.mxu0 %v3260
        %v3643 = vpop.f32.mrf.mxu0
        %v3644 = vadd.f32 %v3131, %v3643
        %v3645 = vpop.f32.mrf.mxu0
        %3646 = vdwg.mxu0
        %v3647 = vrot.slane %v2313, 2
        %v3648 = vrot.slane %v2314, 2
        %v3649 = vsel %vm1522, %v3647, %v3648
        %v3650 = vrot.slane %v2315, 2
        %v3651 = vsel %vm1522, %v3648, %v3650
        %v3652 = vrot.slane %v2316, 2
        %v3653 = vsel %vm1522, %v3650, %v3652
        %v3654 = vrot.slane %v2317, 2
        %v3655 = vsel %vm1522, %v3652, %v3654
        %v3656 = vrot.slane %v2318, 2
        %v3657 = vrot.slane %v2319, 2
        %v3658 = vsel %vm1522, %v3656, %v3657
        %v3659 = vrot.slane %v2320, 2
        %v3660 = vsel %vm1522, %v3657, %v3659
        %v3661 = vrot.slane %v2321, 2
        %v3662 = vsel %vm1522, %v3659, %v3661
        %v3663 = vrot.slane %v2322, 2
        %v3664 = vsel %vm1522, %v3661, %v3663
        %v3665 = vrot.slane %v2323, 2
        %v3666 = vrot.slane %v2324, 2
        %v3667 = vsel %vm1522, %v3665, %v3666
        %v3668 = vrot.slane %v2325, 2
        %v3669 = vsel %vm1522, %v3666, %v3668
        %v3670 = vrot.slane %v2326, 2
        %v3671 = vsel %vm1522, %v3668, %v3670
        %v3672 = vrot.slane %v2327, 2
        %v3673 = vsel %vm1522, %v3670, %v3672
        %v3674 = vrot.slane %v2328, 2
        %v3675 = vrot.slane %v2329, 2
        %v3676 = vsel %vm1522, %v3674, %v3675
        %v3677 = vrot.slane %v2330, 2
        %v3678 = vsel %vm1522, %v3675, %v3677
        %v3679 = vrot.slane %v2331, 2
        %v3680 = vsel %vm1522, %v3677, %v3679
        %v3681 = vrot.slane %v2332, 2
        %v3682 = vsel %vm1522, %v3679, %v3681
        %v3683 = vrot.slane %v2333, 2
        %v3684 = vrot.slane %v2334, 2
        %v3685 = vsel %vm1522, %v3683, %v3684
        %v3686 = vrot.slane %v2335, 2
        %v3687 = vsel %vm1522, %v3684, %v3686
        %v3688 = vrot.slane %v2336, 2
        %v3689 = vsel %vm1522, %v3686, %v3688
        %v3690 = vrot.slane %v2337, 2
        %v3691 = vsel %vm1522, %v3688, %v3690
        %v3692 = vrot.slane %v2338, 2
        %v3693 = vrot.slane %v2339, 2
        %v3694 = vsel %vm1522, %v3692, %v3693
        %v3695 = vrot.slane %v2340, 2
        %v3696 = vsel %vm1522, %v3693, %v3695
        %v3697 = vrot.slane %v2341, 2
        %v3698 = vsel %vm1522, %v3695, %v3697
        %v3699 = vrot.slane %v2342, 2
        %v3700 = vsel %vm1522, %v3697, %v3699
        %v3701 = vrot.slane %v2343, 2
        %v3702 = vrot.slane %v2344, 2
        %v3703 = vsel %vm1522, %v3701, %v3702
        %v3704 = vrot.slane %v2345, 2
        %v3705 = vsel %vm1522, %v3702, %v3704
        %v3706 = vrot.slane %v2346, 2
        %v3707 = vsel %vm1522, %v3704, %v3706
        %v3708 = vrot.slane %v2347, 2
        %v3709 = vsel %vm1522, %v3706, %v3708
        %v3710 = vrot.slane %v2348, 2
        %v3711 = vrot.slane %v2349, 2
        %v3712 = vsel %vm1522, %v3710, %v3711
        %v3713 = vrot.slane %v2350, 2
        %v3714 = vsel %vm1522, %v3711, %v3713
        %v3715 = vrot.slane %v2351, 2
        %v3716 = vsel %vm1522, %v3713, %v3715
        %v3717 = vrot.slane %v2352, 2
        %v3718 = vsel %vm1522, %v3715, %v3717
        %v3719 = vrot.slane %v2353, 2
        %v3720 = vrot.slane %v2354, 2
        %v3721 = vsel %vm1522, %v3719, %v3720
        %v3722 = vrot.slane %v2355, 2
        %v3723 = vsel %vm1522, %v3720, %v3722
        %v3724 = vrot.slane %v2356, 2
        %v3725 = vsel %vm1522, %v3722, %v3724
        %v3726 = vrot.slane %v2357, 2
        %v3727 = vsel %vm1522, %v3724, %v3726
        %v3728 = vrot.slane %v2358, 2
        %v3729 = vrot.slane %v2359, 2
        %v3730 = vsel %vm1522, %v3728, %v3729
        %v3731 = vrot.slane %v2360, 2
        %v3732 = vsel %vm1522, %v3729, %v3731
        %v3733 = vrot.slane %v2361, 2
        %v3734 = vsel %vm1522, %v3731, %v3733
        %v3735 = vrot.slane %v2362, 2
        %v3736 = vsel %vm1522, %v3733, %v3735
        %v3737 = vrot.slane %v2363, 2
        %v3738 = vrot.slane %v2364, 2
        %v3739 = vsel %vm1522, %v3737, %v3738
        %v3740 = vrot.slane %v2365, 2
        %v3741 = vsel %vm1522, %v3738, %v3740
        %v3742 = vrot.slane %v2366, 2
        %v3743 = vsel %vm1522, %v3740, %v3742
        %v3744 = vrot.slane %v2367, 2
        %v3745 = vsel %vm1522, %v3742, %v3744
        %v3746 = vrot.slane %v2368, 2
        %v3747 = vrot.slane %v2369, 2
        %v3748 = vsel %vm1522, %v3746, %v3747
        %v3749 = vrot.slane %v2370, 2
        %v3750 = vsel %vm1522, %v3747, %v3749
        %v3751 = vrot.slane %v2371, 2
        %v3752 = vsel %vm1522, %v3749, %v3751
        %v3753 = vrot.slane %v2372, 2
        %v3754 = vsel %vm1522, %v3751, %v3753
        %v3755 = vrot.slane %v2373, 2
        %v3756 = vrot.slane %v2374, 2
        %v3757 = vsel %vm1522, %v3755, %v3756
        %v3758 = vrot.slane %v2375, 2
        %v3759 = vsel %vm1522, %v3756, %v3758
        %v3760 = vrot.slane %v2376, 2
        %v3761 = vsel %vm1522, %v3758, %v3760
        %v3762 = vrot.slane %v2377, 2
        %v3763 = vsel %vm1522, %v3760, %v3762
        %v3764 = vrot.slane %v2378, 2
        %v3765 = vrot.slane %v2379, 2
        %v3766 = vsel %vm1522, %v3764, %v3765
        %v3767 = vrot.slane %v2380, 2
        %v3768 = vsel %vm1522, %v3765, %v3767
        %v3769 = vrot.slane %v2381, 2
        %v3770 = vsel %vm1522, %v3767, %v3769
        %v3771 = vrot.slane %v2382, 2
        %v3772 = vsel %vm1522, %v3769, %v3771
        %v3773 = vrot.slane %v2383, 2
        %v3774 = vrot.slane %v2384, 2
        %v3775 = vsel %vm1522, %v3773, %v3774
        %v3776 = vrot.slane %v2385, 2
        %v3777 = vsel %vm1522, %v3774, %v3776
        %v3778 = vrot.slane %v2386, 2
        %v3779 = vsel %vm1522, %v3776, %v3778
        %v3780 = vrot.slane %v2387, 2
        %v3781 = vsel %vm1522, %v3778, %v3780
        %v3782 = vrot.slane %v2388, 2
        %v3783 = vrot.slane %v2389, 2
        %v3784 = vsel %vm1522, %v3782, %v3783
        %v3785 = vrot.slane %v2390, 2
        %v3786 = vsel %vm1522, %v3783, %v3785
        %v3787 = vrot.slane %v2391, 2
        %v3788 = vsel %vm1522, %v3785, %v3787
        %v3789 = vrot.slane %v2392, 2
        %v3790 = vsel %vm1522, %v3787, %v3789
        %s3791 = scalar_lea.vmem %s1, 40
        %v3792 = vld [vmem:[%s3791] sm:$0xff]
        %v3793 = vsel %vm495, %v3649, 0
        %v3795 = vsel %vm495, %v3651, 0
        %v3797 = vsel %vm495, %v3653, 0
        %v3799 = vsel %vm495, %v3655, 0
        %v3801 = vsel %vm495, %v3658, 0
        %v3803 = vsel %vm495, %v3660, 0
        %v3805 = vsel %vm495, %v3662, 0
        %v3807 = vsel %vm495, %v3664, 0
        %v3809 = vsel %vm495, %v3667, 0
        %v3811 = vsel %vm495, %v3669, 0
        %v3813 = vsel %vm495, %v3671, 0
        %v3815 = vsel %vm495, %v3673, 0
        %v3817 = vsel %vm495, %v3676, 0
        %v3819 = vsel %vm495, %v3678, 0
        %v3821 = vsel %vm495, %v3680, 0
        %v3823 = vsel %vm495, %v3682, 0
        %v3825 = vsel %vm495, %v3685, 0
        %v3827 = vsel %vm495, %v3687, 0
        %v3829 = vsel %vm495, %v3689, 0
        %v3831 = vsel %vm495, %v3691, 0
        %v3833 = vsel %vm495, %v3694, 0
        %v3835 = vsel %vm495, %v3696, 0
        %v3837 = vsel %vm495, %v3698, 0
        %v3839 = vsel %vm495, %v3700, 0
        %v3841 = vsel %vm495, %v3703, 0
        %v3843 = vsel %vm495, %v3705, 0
        %v3845 = vsel %vm495, %v3707, 0
        %v3847 = vsel %vm495, %v3709, 0
        %v3849 = vsel %vm495, %v3712, 0
        %v3851 = vsel %vm495, %v3714, 0
        %v3853 = vsel %vm495, %v3716, 0
        %v3855 = vsel %vm495, %v3718, 0
        %v3857 = vsel %vm495, %v3721, 0
        %v3859 = vsel %vm495, %v3723, 0
        %v3861 = vsel %vm495, %v3725, 0
        %v3863 = vsel %vm495, %v3727, 0
        %v3865 = vsel %vm495, %v3730, 0
        %v3867 = vsel %vm495, %v3732, 0
        %v3869 = vsel %vm495, %v3734, 0
        %v3871 = vsel %vm495, %v3736, 0
        %v3873 = vsel %vm495, %v3739, 0
        %v3875 = vsel %vm495, %v3741, 0
        %v3877 = vsel %vm495, %v3743, 0
        %v3879 = vsel %vm495, %v3745, 0
        %v3881 = vsel %vm495, %v3748, 0
        %v3883 = vsel %vm495, %v3750, 0
        %v3885 = vsel %vm495, %v3752, 0
        %v3887 = vsel %vm495, %v3754, 0
        %v3889 = vsel %vm495, %v3757, 0
        %v3891 = vsel %vm495, %v3759, 0
        %v3893 = vsel %vm495, %v3761, 0
        %v3895 = vsel %vm495, %v3763, 0
        %v3897 = vsel %vm495, %v3766, 0
        %v3899 = vsel %vm495, %v3768, 0
        %v3901 = vsel %vm495, %v3770, 0
        %v3903 = vsel %vm495, %v3772, 0
        %v3905 = vsel %vm495, %v3775, 0
        %v3907 = vsel %vm495, %v3777, 0
        %v3909 = vsel %vm495, %v3779, 0
        %v3911 = vsel %vm495, %v3781, 0
        %v3913 = vsel %vm495, %v3784, 0
        %v3915 = vsel %vm495, %v3786, 0
        %v3917 = vsel %vm495, %v3788, 0
        %v3919 = vsel %vm495, %v3790, 0
        %3921 = vmatprep.subr.mxu0 0.0
        %3922 = vmatpush1.msra.mxu0 0.0
        %3923 = vmatprep.subr.mxu0 0.0
        %3924 = vmatpush1.msra.mxu0 0.0
        %3925 = vmatprep.subr.mxu0 0.0
        %3926 = vmatpush1.msra.mxu0 0.0
        %3927 = vmatprep.subr.mxu0 0.0
        %3928 = vmatpush1.msra.mxu0 0.0
        %3929 = vmatprep.subr.mxu0 0.0
        %3930 = vmatpush1.msra.mxu0 0.0
        %3931 = vmatprep.subr.mxu0 0.0
        %3932 = vmatpush1.msra.mxu0 0.0
        %3933 = vmatprep.subr.mxu0 0.0
        %3934 = vmatpush1.msra.mxu0 0.0
        %3935 = vmatprep.subr.mxu0 0.0
        %3936 = vmatpush1.msra.mxu0 0.0
        %3937 = vmatprep.subr.mxu0 0.0
        %3938 = vmatpush1.msra.mxu0 0.0
        %3939 = vmatprep.subr.mxu0 0.0
        %3940 = vmatpush1.msra.mxu0 0.0
        %3941 = vmatprep.subr.mxu0 0.0
        %3942 = vmatpush1.msra.mxu0 0.0
        %3943 = vmatprep.subr.mxu0 0.0
        %3944 = vmatpush1.msra.mxu0 0.0
        %3945 = vmatprep.subr.mxu0 0.0
        %3946 = vmatpush1.msra.mxu0 0.0
        %3947 = vmatprep.subr.mxu0 0.0
        %3948 = vmatpush1.msra.mxu0 0.0
        %3949 = vmatprep.subr.mxu0 0.0
        %3950 = vmatpush1.msra.mxu0 0.0
        %3951 = vmatprep.subr.mxu0 0.0
        %3952 = vmatpush1.msra.mxu0 %v3792
        %3953 = vmatprep.subr.mxu0 0.0
        %3954 = vmatpush2.msra.mxu0 0.0
        %3955 = vmatprep.subr.mxu0 0.0
        %3956 = vmatpush2.msra.mxu0 0.0
        %3957 = vmatprep.subr.mxu0 0.0
        %3958 = vmatpush2.msra.mxu0 0.0
        %3959 = vmatprep.subr.mxu0 0.0
        %3960 = vmatpush2.msra.mxu0 0.0
        %3961 = vmatprep.subr.mxu0 0.0
        %3962 = vmatpush2.msra.mxu0 0.0
        %3963 = vmatprep.subr.mxu0 0.0
        %3964 = vmatpush2.msra.mxu0 0.0
        %3965 = vmatprep.subr.mxu0 0.0
        %3966 = vmatpush2.msra.mxu0 0.0
        %3967 = vmatprep.subr.mxu0 0.0
        %3968 = vmatpush2.msra.mxu0 0.0
        %3969 = vmatprep.subr.mxu0 0.0
        %3970 = vmatpush2.msra.mxu0 0.0
        %3971 = vmatprep.subr.mxu0 0.0
        %3972 = vmatpush2.msra.mxu0 0.0
        %3973 = vmatprep.subr.mxu0 0.0
        %3974 = vmatpush2.msra.mxu0 0.0
        %3975 = vmatprep.subr.mxu0 0.0
        %3976 = vmatpush2.msra.mxu0 0.0
        %3977 = vmatprep.subr.mxu0 0.0
        %3978 = vmatpush2.msra.mxu0 0.0
        %3979 = vmatprep.subr.mxu0 0.0
        %3980 = vmatpush2.msra.mxu0 0.0
        %3981 = vmatprep.subr.mxu0 0.0
        %3982 = vmatpush2.msra.mxu0 0.0
        %3983 = vmatprep.subr.mxu0 0.0
        %3984 = vmatpush2.msra.mxu0 0.0
        %3985 = vmatprep.mubr.f32.mxu0 0.0
        %3986 = vmatmul.mubr.f32.gmra.mxu0 %v3793
        %v3987 = vpop.f32.mrf.mxu0
        %v3988 = vadd.f32 0.0, %v3987
        %v3989 = vpop.f32.mrf.mxu0
        %3990 = vmatprep.mubr.f32.mxu0 0.0
        %3991 = vmatmul.mubr.f32.gmra.mxu0 %v3795
        %v3992 = vpop.f32.mrf.mxu0
        %v3993 = vadd.f32 0.0, %v3992
        %v3994 = vpop.f32.mrf.mxu0
        %3995 = vmatprep.mubr.f32.mxu0 0.0
        %3996 = vmatmul.mubr.f32.gmra.mxu0 %v3797
        %v3997 = vpop.f32.mrf.mxu0
        %v3998 = vadd.f32 0.0, %v3997
        %v3999 = vpop.f32.mrf.mxu0
        %4000 = vmatprep.mubr.f32.mxu0 0.0
        %4001 = vmatmul.mubr.f32.gmra.mxu0 %v3799
        %v4002 = vpop.f32.mrf.mxu0
        %v4003 = vadd.f32 0.0, %v4002
        %v4004 = vpop.f32.mrf.mxu0
        %4005 = vmatprep.mubr.f32.mxu0 0.0
        %4006 = vmatmul.mubr.f32.gmra.mxu0 %v3801
        %v4007 = vpop.f32.mrf.mxu0
        %v4008 = vadd.f32 0.0, %v4007
        %v4009 = vpop.f32.mrf.mxu0
        %4010 = vmatprep.mubr.f32.mxu0 0.0
        %4011 = vmatmul.mubr.f32.gmra.mxu0 %v3803
        %v4012 = vpop.f32.mrf.mxu0
        %v4013 = vadd.f32 0.0, %v4012
        %v4014 = vpop.f32.mrf.mxu0
        %4015 = vmatprep.mubr.f32.mxu0 0.0
        %4016 = vmatmul.mubr.f32.gmra.mxu0 %v3805
        %v4017 = vpop.f32.mrf.mxu0
        %v4018 = vadd.f32 0.0, %v4017
        %v4019 = vpop.f32.mrf.mxu0
        %4020 = vmatprep.mubr.f32.mxu0 0.0
        %4021 = vmatmul.mubr.f32.gmra.mxu0 %v3807
        %v4022 = vpop.f32.mrf.mxu0
        %v4023 = vadd.f32 0.0, %v4022
        %v4024 = vpop.f32.mrf.mxu0
        %4025 = vmatprep.mubr.f32.mxu0 0.0
        %4026 = vmatmul.mubr.f32.gmra.mxu0 %v3809
        %v4027 = vpop.f32.mrf.mxu0
        %v4028 = vadd.f32 0.0, %v4027
        %v4029 = vpop.f32.mrf.mxu0
        %4030 = vmatprep.mubr.f32.mxu0 0.0
        %4031 = vmatmul.mubr.f32.gmra.mxu0 %v3811
        %v4032 = vpop.f32.mrf.mxu0
        %v4033 = vadd.f32 0.0, %v4032
        %v4034 = vpop.f32.mrf.mxu0
        %4035 = vmatprep.mubr.f32.mxu0 0.0
        %4036 = vmatmul.mubr.f32.gmra.mxu0 %v3813
        %v4037 = vpop.f32.mrf.mxu0
        %v4038 = vadd.f32 0.0, %v4037
        %v4039 = vpop.f32.mrf.mxu0
        %4040 = vmatprep.mubr.f32.mxu0 0.0
        %4041 = vmatmul.mubr.f32.gmra.mxu0 %v3815
        %v4042 = vpop.f32.mrf.mxu0
        %v4043 = vadd.f32 0.0, %v4042
        %v4044 = vpop.f32.mrf.mxu0
        %4045 = vmatprep.mubr.f32.mxu0 0.0
        %4046 = vmatmul.mubr.f32.gmra.mxu0 %v3817
        %v4047 = vpop.f32.mrf.mxu0
        %v4048 = vadd.f32 0.0, %v4047
        %v4049 = vpop.f32.mrf.mxu0
        %4050 = vmatprep.mubr.f32.mxu0 0.0
        %4051 = vmatmul.mubr.f32.gmra.mxu0 %v3819
        %v4052 = vpop.f32.mrf.mxu0
        %v4053 = vadd.f32 0.0, %v4052
        %v4054 = vpop.f32.mrf.mxu0
        %4055 = vmatprep.mubr.f32.mxu0 0.0
        %4056 = vmatmul.mubr.f32.gmra.mxu0 %v3821
        %v4057 = vpop.f32.mrf.mxu0
        %v4058 = vadd.f32 0.0, %v4057
        %v4059 = vpop.f32.mrf.mxu0
        %4060 = vmatprep.mubr.f32.mxu0 0.0
        %4061 = vmatmul.mubr.f32.gmra.mxu0 %v3823
        %v4062 = vpop.f32.mrf.mxu0
        %v4063 = vadd.f32 0.0, %v4062
        %v4064 = vpop.f32.mrf.mxu0
        %4065 = vmatprep.mubr.f32.mxu0 0.0
        %4066 = vmatmul.mubr.f32.gmra.mxu0 %v3825
        %v4067 = vpop.f32.mrf.mxu0
        %v4068 = vadd.f32 0.0, %v4067
        %v4069 = vpop.f32.mrf.mxu0
        %4070 = vmatprep.mubr.f32.mxu0 0.0
        %4071 = vmatmul.mubr.f32.gmra.mxu0 %v3827
        %v4072 = vpop.f32.mrf.mxu0
        %v4073 = vadd.f32 0.0, %v4072
        %v4074 = vpop.f32.mrf.mxu0
        %4075 = vmatprep.mubr.f32.mxu0 0.0
        %4076 = vmatmul.mubr.f32.gmra.mxu0 %v3829
        %v4077 = vpop.f32.mrf.mxu0
        %v4078 = vadd.f32 0.0, %v4077
        %v4079 = vpop.f32.mrf.mxu0
        %4080 = vmatprep.mubr.f32.mxu0 0.0
        %4081 = vmatmul.mubr.f32.gmra.mxu0 %v3831
        %v4082 = vpop.f32.mrf.mxu0
        %v4083 = vadd.f32 0.0, %v4082
        %v4084 = vpop.f32.mrf.mxu0
        %4085 = vmatprep.mubr.f32.mxu0 0.0
        %4086 = vmatmul.mubr.f32.gmra.mxu0 %v3833
        %v4087 = vpop.f32.mrf.mxu0
        %v4088 = vadd.f32 0.0, %v4087
        %v4089 = vpop.f32.mrf.mxu0
        %4090 = vmatprep.mubr.f32.mxu0 0.0
        %4091 = vmatmul.mubr.f32.gmra.mxu0 %v3835
        %v4092 = vpop.f32.mrf.mxu0
        %v4093 = vadd.f32 0.0, %v4092
        %v4094 = vpop.f32.mrf.mxu0
        %4095 = vmatprep.mubr.f32.mxu0 0.0
        %4096 = vmatmul.mubr.f32.gmra.mxu0 %v3837
        %v4097 = vpop.f32.mrf.mxu0
        %v4098 = vadd.f32 0.0, %v4097
        %v4099 = vpop.f32.mrf.mxu0
        %4100 = vmatprep.mubr.f32.mxu0 0.0
        %4101 = vmatmul.mubr.f32.gmra.mxu0 %v3839
        %v4102 = vpop.f32.mrf.mxu0
        %v4103 = vadd.f32 0.0, %v4102
        %v4104 = vpop.f32.mrf.mxu0
        %4105 = vmatprep.mubr.f32.mxu0 0.0
        %4106 = vmatmul.mubr.f32.gmra.mxu0 %v3841
        %v4107 = vpop.f32.mrf.mxu0
        %v4108 = vadd.f32 0.0, %v4107
        %v4109 = vpop.f32.mrf.mxu0
        %4110 = vmatprep.mubr.f32.mxu0 0.0
        %4111 = vmatmul.mubr.f32.gmra.mxu0 %v3843
        %v4112 = vpop.f32.mrf.mxu0
        %v4113 = vadd.f32 0.0, %v4112
        %v4114 = vpop.f32.mrf.mxu0
        %4115 = vmatprep.mubr.f32.mxu0 0.0
        %4116 = vmatmul.mubr.f32.gmra.mxu0 %v3845
        %v4117 = vpop.f32.mrf.mxu0
        %v4118 = vadd.f32 0.0, %v4117
        %v4119 = vpop.f32.mrf.mxu0
        %4120 = vmatprep.mubr.f32.mxu0 0.0
        %4121 = vmatmul.mubr.f32.gmra.mxu0 %v3847
        %v4122 = vpop.f32.mrf.mxu0
        %v4123 = vadd.f32 0.0, %v4122
        %v4124 = vpop.f32.mrf.mxu0
        %4125 = vmatprep.mubr.f32.mxu0 0.0
        %4126 = vmatmul.mubr.f32.gmra.mxu0 %v3849
        %v4127 = vpop.f32.mrf.mxu0
        %v4128 = vadd.f32 0.0, %v4127
        %v4129 = vpop.f32.mrf.mxu0
        %4130 = vmatprep.mubr.f32.mxu0 0.0
        %4131 = vmatmul.mubr.f32.gmra.mxu0 %v3851
        %v4132 = vpop.f32.mrf.mxu0
        %v4133 = vadd.f32 0.0, %v4132
        %v4134 = vpop.f32.mrf.mxu0
        %4135 = vmatprep.mubr.f32.mxu0 0.0
        %4136 = vmatmul.mubr.f32.gmra.mxu0 %v3853
        %v4137 = vpop.f32.mrf.mxu0
        %v4138 = vadd.f32 0.0, %v4137
        %v4139 = vpop.f32.mrf.mxu0
        %4140 = vmatprep.mubr.f32.mxu0 0.0
        %4141 = vmatmul.mubr.f32.gmra.mxu0 %v3855
        %v4142 = vpop.f32.mrf.mxu0
        %v4143 = vadd.f32 0.0, %v4142
        %v4144 = vpop.f32.mrf.mxu0
        %4145 = vmatprep.mubr.f32.mxu0 0.0
        %4146 = vmatmul.mubr.f32.gmra.mxu0 %v3857
        %v4147 = vpop.f32.mrf.mxu0
        %v4148 = vadd.f32 0.0, %v4147
        %v4149 = vpop.f32.mrf.mxu0
        %4150 = vmatprep.mubr.f32.mxu0 0.0
        %4151 = vmatmul.mubr.f32.gmra.mxu0 %v3859
        %v4152 = vpop.f32.mrf.mxu0
        %v4153 = vadd.f32 0.0, %v4152
        %v4154 = vpop.f32.mrf.mxu0
        %4155 = vmatprep.mubr.f32.mxu0 0.0
        %4156 = vmatmul.mubr.f32.gmra.mxu0 %v3861
        %v4157 = vpop.f32.mrf.mxu0
        %v4158 = vadd.f32 0.0, %v4157
        %v4159 = vpop.f32.mrf.mxu0
        %4160 = vmatprep.mubr.f32.mxu0 0.0
        %4161 = vmatmul.mubr.f32.gmra.mxu0 %v3863
        %v4162 = vpop.f32.mrf.mxu0
        %v4163 = vadd.f32 0.0, %v4162
        %v4164 = vpop.f32.mrf.mxu0
        %4165 = vmatprep.mubr.f32.mxu0 0.0
        %4166 = vmatmul.mubr.f32.gmra.mxu0 %v3865
        %v4167 = vpop.f32.mrf.mxu0
        %v4168 = vadd.f32 0.0, %v4167
        %v4169 = vpop.f32.mrf.mxu0
        %4170 = vmatprep.mubr.f32.mxu0 0.0
        %4171 = vmatmul.mubr.f32.gmra.mxu0 %v3867
        %v4172 = vpop.f32.mrf.mxu0
        %v4173 = vadd.f32 0.0, %v4172
        %v4174 = vpop.f32.mrf.mxu0
        %4175 = vmatprep.mubr.f32.mxu0 0.0
        %4176 = vmatmul.mubr.f32.gmra.mxu0 %v3869
        %v4177 = vpop.f32.mrf.mxu0
        %v4178 = vadd.f32 0.0, %v4177
        %v4179 = vpop.f32.mrf.mxu0
        %4180 = vmatprep.mubr.f32.mxu0 0.0
        %4181 = vmatmul.mubr.f32.gmra.mxu0 %v3871
        %v4182 = vpop.f32.mrf.mxu0
        %v4183 = vadd.f32 0.0, %v4182
        %v4184 = vpop.f32.mrf.mxu0
        %4185 = vmatprep.mubr.f32.mxu0 0.0
        %4186 = vmatmul.mubr.f32.gmra.mxu0 %v3873
        %v4187 = vpop.f32.mrf.mxu0
        %v4188 = vadd.f32 0.0, %v4187
        %v4189 = vpop.f32.mrf.mxu0
        %4190 = vmatprep.mubr.f32.mxu0 0.0
        %4191 = vmatmul.mubr.f32.gmra.mxu0 %v3875
        %v4192 = vpop.f32.mrf.mxu0
        %v4193 = vadd.f32 0.0, %v4192
        %v4194 = vpop.f32.mrf.mxu0
        %4195 = vmatprep.mubr.f32.mxu0 0.0
        %4196 = vmatmul.mubr.f32.gmra.mxu0 %v3877
        %v4197 = vpop.f32.mrf.mxu0
        %v4198 = vadd.f32 0.0, %v4197
        %v4199 = vpop.f32.mrf.mxu0
        %4200 = vmatprep.mubr.f32.mxu0 0.0
        %4201 = vmatmul.mubr.f32.gmra.mxu0 %v3879
        %v4202 = vpop.f32.mrf.mxu0
        %v4203 = vadd.f32 0.0, %v4202
        %v4204 = vpop.f32.mrf.mxu0
        %4205 = vmatprep.mubr.f32.mxu0 0.0
        %4206 = vmatmul.mubr.f32.gmra.mxu0 %v3881
        %v4207 = vpop.f32.mrf.mxu0
        %v4208 = vadd.f32 0.0, %v4207
        %v4209 = vpop.f32.mrf.mxu0
        %4210 = vmatprep.mubr.f32.mxu0 0.0
        %4211 = vmatmul.mubr.f32.gmra.mxu0 %v3883
        %v4212 = vpop.f32.mrf.mxu0
        %v4213 = vadd.f32 0.0, %v4212
        %v4214 = vpop.f32.mrf.mxu0
        %4215 = vmatprep.mubr.f32.mxu0 0.0
        %4216 = vmatmul.mubr.f32.gmra.mxu0 %v3885
        %v4217 = vpop.f32.mrf.mxu0
        %v4218 = vadd.f32 0.0, %v4217
        %v4219 = vpop.f32.mrf.mxu0
        %4220 = vmatprep.mubr.f32.mxu0 0.0
        %4221 = vmatmul.mubr.f32.gmra.mxu0 %v3887
        %v4222 = vpop.f32.mrf.mxu0
        %v4223 = vadd.f32 0.0, %v4222
        %v4224 = vpop.f32.mrf.mxu0
        %4225 = vmatprep.mubr.f32.mxu0 0.0
        %4226 = vmatmul.mubr.f32.gmra.mxu0 %v3889
        %v4227 = vpop.f32.mrf.mxu0
        %v4228 = vadd.f32 0.0, %v4227
        %v4229 = vpop.f32.mrf.mxu0
        %4230 = vmatprep.mubr.f32.mxu0 0.0
        %4231 = vmatmul.mubr.f32.gmra.mxu0 %v3891
        %v4232 = vpop.f32.mrf.mxu0
        %v4233 = vadd.f32 0.0, %v4232
        %v4234 = vpop.f32.mrf.mxu0
        %4235 = vmatprep.mubr.f32.mxu0 0.0
        %4236 = vmatmul.mubr.f32.gmra.mxu0 %v3893
        %v4237 = vpop.f32.mrf.mxu0
        %v4238 = vadd.f32 0.0, %v4237
        %v4239 = vpop.f32.mrf.mxu0
        %4240 = vmatprep.mubr.f32.mxu0 0.0
        %4241 = vmatmul.mubr.f32.gmra.mxu0 %v3895
        %v4242 = vpop.f32.mrf.mxu0
        %v4243 = vadd.f32 0.0, %v4242
        %v4244 = vpop.f32.mrf.mxu0
        %4245 = vmatprep.mubr.f32.mxu0 0.0
        %4246 = vmatmul.mubr.f32.gmra.mxu0 %v3897
        %v4247 = vpop.f32.mrf.mxu0
        %v4248 = vadd.f32 0.0, %v4247
        %v4249 = vpop.f32.mrf.mxu0
        %4250 = vmatprep.mubr.f32.mxu0 0.0
        %4251 = vmatmul.mubr.f32.gmra.mxu0 %v3899
        %v4252 = vpop.f32.mrf.mxu0
        %v4253 = vadd.f32 0.0, %v4252
        %v4254 = vpop.f32.mrf.mxu0
        %4255 = vmatprep.mubr.f32.mxu0 0.0
        %4256 = vmatmul.mubr.f32.gmra.mxu0 %v3901
        %v4257 = vpop.f32.mrf.mxu0
        %v4258 = vadd.f32 0.0, %v4257
        %v4259 = vpop.f32.mrf.mxu0
        %4260 = vmatprep.mubr.f32.mxu0 0.0
        %4261 = vmatmul.mubr.f32.gmra.mxu0 %v3903
        %v4262 = vpop.f32.mrf.mxu0
        %v4263 = vadd.f32 0.0, %v4262
        %v4264 = vpop.f32.mrf.mxu0
        %4265 = vmatprep.mubr.f32.mxu0 0.0
        %4266 = vmatmul.mubr.f32.gmra.mxu0 %v3905
        %v4267 = vpop.f32.mrf.mxu0
        %v4268 = vadd.f32 0.0, %v4267
        %v4269 = vpop.f32.mrf.mxu0
        %4270 = vmatprep.mubr.f32.mxu0 0.0
        %4271 = vmatmul.mubr.f32.gmra.mxu0 %v3907
        %v4272 = vpop.f32.mrf.mxu0
        %v4273 = vadd.f32 0.0, %v4272
        %v4274 = vpop.f32.mrf.mxu0
        %4275 = vmatprep.mubr.f32.mxu0 0.0
        %4276 = vmatmul.mubr.f32.gmra.mxu0 %v3909
        %v4277 = vpop.f32.mrf.mxu0
        %v4278 = vadd.f32 0.0, %v4277
        %v4279 = vpop.f32.mrf.mxu0
        %4280 = vmatprep.mubr.f32.mxu0 0.0
        %4281 = vmatmul.mubr.f32.gmra.mxu0 %v3911
        %v4282 = vpop.f32.mrf.mxu0
        %v4283 = vadd.f32 0.0, %v4282
        %v4284 = vpop.f32.mrf.mxu0
        %4285 = vmatprep.mubr.f32.mxu0 0.0
        %4286 = vmatmul.mubr.f32.gmra.mxu0 %v3913
        %v4287 = vpop.f32.mrf.mxu0
        %v4288 = vadd.f32 0.0, %v4287
        %v4289 = vpop.f32.mrf.mxu0
        %4290 = vmatprep.mubr.f32.mxu0 0.0
        %4291 = vmatmul.mubr.f32.gmra.mxu0 %v3915
        %v4292 = vpop.f32.mrf.mxu0
        %v4293 = vadd.f32 0.0, %v4292
        %v4294 = vpop.f32.mrf.mxu0
        %4295 = vmatprep.mubr.f32.mxu0 0.0
        %4296 = vmatmul.mubr.f32.gmra.mxu0 %v3917
        %v4297 = vpop.f32.mrf.mxu0
        %v4298 = vadd.f32 0.0, %v4297
        %v4299 = vpop.f32.mrf.mxu0
        %4300 = vmatprep.mubr.f32.mxu0 0.0
        %4301 = vmatmul.mubr.f32.gmra.mxu0 %v3919
        %v4302 = vpop.f32.mrf.mxu0
        %v4303 = vadd.f32 0.0, %v4302
        %v4304 = vpop.f32.mrf.mxu0
        %4305 = vdwg.mxu0
        %v4306 = vadd.f32 %v3329, %v3988
        %v4307 = vadd.f32 %v3334, %v3993
        %v4308 = vadd.f32 %v3339, %v3998
        %v4309 = vadd.f32 %v3344, %v4003
        %v4310 = vadd.f32 %v3349, %v4008
        %v4311 = vadd.f32 %v3354, %v4013
        %v4312 = vadd.f32 %v3359, %v4018
        %v4313 = vadd.f32 %v3364, %v4023
        %v4314 = vadd.f32 %v3369, %v4028
        %v4315 = vadd.f32 %v3374, %v4033
        %v4316 = vadd.f32 %v3379, %v4038
        %v4317 = vadd.f32 %v3384, %v4043
        %v4318 = vadd.f32 %v3389, %v4048
        %v4319 = vadd.f32 %v3394, %v4053
        %v4320 = vadd.f32 %v3399, %v4058
        %v4321 = vadd.f32 %v3404, %v4063
        %v4322 = vadd.f32 %v3409, %v4068
        %v4323 = vadd.f32 %v3414, %v4073
        %v4324 = vadd.f32 %v3419, %v4078
        %v4325 = vadd.f32 %v3424, %v4083
        %v4326 = vadd.f32 %v3429, %v4088
        %v4327 = vadd.f32 %v3434, %v4093
        %v4328 = vadd.f32 %v3439, %v4098
        %v4329 = vadd.f32 %v3444, %v4103
        %v4330 = vadd.f32 %v3449, %v4108
        %v4331 = vadd.f32 %v3454, %v4113
        %v4332 = vadd.f32 %v3459, %v4118
        %v4333 = vadd.f32 %v3464, %v4123
        %v4334 = vadd.f32 %v3469, %v4128
        %v4335 = vadd.f32 %v3474, %v4133
        %v4336 = vadd.f32 %v3479, %v4138
        %v4337 = vadd.f32 %v3484, %v4143
        %v4338 = vadd.f32 %v3489, %v4148
        %v4339 = vadd.f32 %v3494, %v4153
        %v4340 = vadd.f32 %v3499, %v4158
        %v4341 = vadd.f32 %v3504, %v4163
        %v4342 = vadd.f32 %v3509, %v4168
        %v4343 = vadd.f32 %v3514, %v4173
        %v4344 = vadd.f32 %v3519, %v4178
        %v4345 = vadd.f32 %v3524, %v4183
        %v4346 = vadd.f32 %v3529, %v4188
        %v4347 = vadd.f32 %v3534, %v4193
        %v4348 = vadd.f32 %v3539, %v4198
        %v4349 = vadd.f32 %v3544, %v4203
        %v4350 = vadd.f32 %v3549, %v4208
        %v4351 = vadd.f32 %v3554, %v4213
        %v4352 = vadd.f32 %v3559, %v4218
        %v4353 = vadd.f32 %v3564, %v4223
        %v4354 = vadd.f32 %v3569, %v4228
        %v4355 = vadd.f32 %v3574, %v4233
        %v4356 = vadd.f32 %v3579, %v4238
        %v4357 = vadd.f32 %v3584, %v4243
        %v4358 = vadd.f32 %v3589, %v4248
        %v4359 = vadd.f32 %v3594, %v4253
        %v4360 = vadd.f32 %v3599, %v4258
        %v4361 = vadd.f32 %v3604, %v4263
        %v4362 = vadd.f32 %v3609, %v4268
        %v4363 = vadd.f32 %v3614, %v4273
        %v4364 = vadd.f32 %v3619, %v4278
        %v4365 = vadd.f32 %v3624, %v4283
        %v4366 = vadd.f32 %v3629, %v4288
        %v4367 = vadd.f32 %v3634, %v4293
        %v4368 = vadd.f32 %v3639, %v4298
        %v4369 = vadd.f32 %v3644, %v4303
        %v4370 = vld [vmem:[#allocation2] sm:$0xff]
        %v4371 = vld [vmem:[#allocation2 + $0x8] sm:$0xff]
        %v4372 = vld [vmem:[#allocation2 + $0x10] sm:$0xff]
        %v4373 = vld [vmem:[#allocation2 + $0x18] sm:$0xff]
        %v4374 = vld [vmem:[#allocation2 + $0x20] sm:$0xff]
        %v4375 = vld [vmem:[#allocation2 + $0x28] sm:$0xff]
        %v4376 = vld [vmem:[#allocation2 + $0x30] sm:$0xff]
        %v4377 = vld [vmem:[#allocation2 + $0x38] sm:$0xff]
        %v4378 = vld [vmem:[#allocation2 + $0x40] sm:$0xff]
        %v4379 = vld [vmem:[#allocation2 + $0x48] sm:$0xff]
        %v4380 = vld [vmem:[#allocation2 + $0x50] sm:$0xff]
        %v4381 = vld [vmem:[#allocation2 + $0x58] sm:$0xff]
        %v4382 = vld [vmem:[#allocation2 + $0x60] sm:$0xff]
        %v4383 = vld [vmem:[#allocation2 + $0x68] sm:$0xff]
        %v4384 = vld [vmem:[#allocation2 + $0x70] sm:$0xff]
        %v4385 = vld [vmem:[#allocation2 + $0x78] sm:$0xff]
        %v4386 = vld [vmem:[#allocation2 + $0x80] sm:$0xff]
        %v4387 = vld [vmem:[#allocation2 + $0x88] sm:$0xff]
        %v4388 = vld [vmem:[#allocation2 + $0x90] sm:$0xff]
        %v4389 = vld [vmem:[#allocation2 + $0x98] sm:$0xff]
        %v4390 = vld [vmem:[#allocation2 + $0xa0] sm:$0xff]
        %v4391 = vld [vmem:[#allocation2 + $0xa8] sm:$0xff]
        %v4392 = vld [vmem:[#allocation2 + $0xb0] sm:$0xff]
        %v4393 = vld [vmem:[#allocation2 + $0xb8] sm:$0xff]
        %v4394 = vld [vmem:[#allocation2 + $0xc0] sm:$0xff]
        %v4395 = vld [vmem:[#allocation2 + $0xc8] sm:$0xff]
        %v4396 = vld [vmem:[#allocation2 + $0xd0] sm:$0xff]
        %v4397 = vld [vmem:[#allocation2 + $0xd8] sm:$0xff]
        %v4398 = vld [vmem:[#allocation2 + $0xe0] sm:$0xff]
        %v4399 = vld [vmem:[#allocation2 + $0xe8] sm:$0xff]
        %v4400 = vld [vmem:[#allocation2 + $0xf0] sm:$0xff]
        %v4401 = vld [vmem:[#allocation2 + $0xf8] sm:$0xff]
        %v4402 = vld [vmem:[#allocation2 + $0x100] sm:$0xff]
        %v4403 = vld [vmem:[#allocation2 + $0x108] sm:$0xff]
        %v4404 = vld [vmem:[#allocation2 + $0x110] sm:$0xff]
        %v4405 = vld [vmem:[#allocation2 + $0x118] sm:$0xff]
        %v4406 = vld [vmem:[#allocation2 + $0x120] sm:$0xff]
        %v4407 = vld [vmem:[#allocation2 + $0x128] sm:$0xff]
        %v4408 = vld [vmem:[#allocation2 + $0x130] sm:$0xff]
        %v4409 = vld [vmem:[#allocation2 + $0x138] sm:$0xff]
        %v4410 = vld [vmem:[#allocation2 + $0x140] sm:$0xff]
        %v4411 = vld [vmem:[#allocation2 + $0x148] sm:$0xff]
        %v4412 = vld [vmem:[#allocation2 + $0x150] sm:$0xff]
        %v4413 = vld [vmem:[#allocation2 + $0x158] sm:$0xff]
        %v4414 = vld [vmem:[#allocation2 + $0x160] sm:$0xff]
        %v4415 = vld [vmem:[#allocation2 + $0x168] sm:$0xff]
        %v4416 = vld [vmem:[#allocation2 + $0x170] sm:$0xff]
        %v4417 = vld [vmem:[#allocation2 + $0x178] sm:$0xff]
        %v4418 = vld [vmem:[#allocation2 + $0x180] sm:$0xff]
        %v4419 = vld [vmem:[#allocation2 + $0x188] sm:$0xff]
        %v4420 = vld [vmem:[#allocation2 + $0x190] sm:$0xff]
        %v4421 = vld [vmem:[#allocation2 + $0x198] sm:$0xff]
        %v4422 = vld [vmem:[#allocation2 + $0x1a0] sm:$0xff]
        %v4423 = vld [vmem:[#allocation2 + $0x1a8] sm:$0xff]
        %v4424 = vld [vmem:[#allocation2 + $0x1b0] sm:$0xff]
        %v4425 = vld [vmem:[#allocation2 + $0x1b8] sm:$0xff]
        %v4426 = vld [vmem:[#allocation2 + $0x1c0] sm:$0xff]
        %v4427 = vld [vmem:[#allocation2 + $0x1c8] sm:$0xff]
        %v4428 = vld [vmem:[#allocation2 + $0x1d0] sm:$0xff]
        %v4429 = vld [vmem:[#allocation2 + $0x1d8] sm:$0xff]
        %v4430 = vld [vmem:[#allocation2 + $0x1e0] sm:$0xff]
        %v4431 = vld [vmem:[#allocation2 + $0x1e8] sm:$0xff]
        %v4432 = vld [vmem:[#allocation2 + $0x1f0] sm:$0xff]
        %v4433 = vld [vmem:[#allocation2 + $0x1f8] sm:$0xff]
        %v4434 = vadd.f32 %v4370, %v4306
        %v4435 = vadd.f32 %v4371, %v4307
        %v4436 = vadd.f32 %v4372, %v4308
        %v4437 = vadd.f32 %v4373, %v4309
        %v4438 = vadd.f32 %v4374, %v4310
        %v4439 = vadd.f32 %v4375, %v4311
        %v4440 = vadd.f32 %v4376, %v4312
        %v4441 = vadd.f32 %v4377, %v4313
        %v4442 = vadd.f32 %v4378, %v4314
        %v4443 = vadd.f32 %v4379, %v4315
        %v4444 = vadd.f32 %v4380, %v4316
        %v4445 = vadd.f32 %v4381, %v4317
        %v4446 = vadd.f32 %v4382, %v4318
        %v4447 = vadd.f32 %v4383, %v4319
        %v4448 = vadd.f32 %v4384, %v4320
        %v4449 = vadd.f32 %v4385, %v4321
        %v4450 = vadd.f32 %v4386, %v4322
        %v4451 = vadd.f32 %v4387, %v4323
        %v4452 = vadd.f32 %v4388, %v4324
        %v4453 = vadd.f32 %v4389, %v4325
        %v4454 = vadd.f32 %v4390, %v4326
        %v4455 = vadd.f32 %v4391, %v4327
        %v4456 = vadd.f32 %v4392, %v4328
        %v4457 = vadd.f32 %v4393, %v4329
        %v4458 = vadd.f32 %v4394, %v4330
        %v4459 = vadd.f32 %v4395, %v4331
        %v4460 = vadd.f32 %v4396, %v4332
        %v4461 = vadd.f32 %v4397, %v4333
        %v4462 = vadd.f32 %v4398, %v4334
        %v4463 = vadd.f32 %v4399, %v4335
        %v4464 = vadd.f32 %v4400, %v4336
        %v4465 = vadd.f32 %v4401, %v4337
        %v4466 = vadd.f32 %v4402, %v4338
        %v4467 = vadd.f32 %v4403, %v4339
        %v4468 = vadd.f32 %v4404, %v4340
        %v4469 = vadd.f32 %v4405, %v4341
        %v4470 = vadd.f32 %v4406, %v4342
        %v4471 = vadd.f32 %v4407, %v4343
        %v4472 = vadd.f32 %v4408, %v4344
        %v4473 = vadd.f32 %v4409, %v4345
        %v4474 = vadd.f32 %v4410, %v4346
        %v4475 = vadd.f32 %v4411, %v4347
        %v4476 = vadd.f32 %v4412, %v4348
        %v4477 = vadd.f32 %v4413, %v4349
        %v4478 = vadd.f32 %v4414, %v4350
        %v4479 = vadd.f32 %v4415, %v4351
        %v4480 = vadd.f32 %v4416, %v4352
        %v4481 = vadd.f32 %v4417, %v4353
        %v4482 = vadd.f32 %v4418, %v4354
        %v4483 = vadd.f32 %v4419, %v4355
        %v4484 = vadd.f32 %v4420, %v4356
        %v4485 = vadd.f32 %v4421, %v4357
        %v4486 = vadd.f32 %v4422, %v4358
        %v4487 = vadd.f32 %v4423, %v4359
        %v4488 = vadd.f32 %v4424, %v4360
        %v4489 = vadd.f32 %v4425, %v4361
        %v4490 = vadd.f32 %v4426, %v4362
        %v4491 = vadd.f32 %v4427, %v4363
        %v4492 = vadd.f32 %v4428, %v4364
        %v4493 = vadd.f32 %v4429, %v4365
        %v4494 = vadd.f32 %v4430, %v4366
        %v4495 = vadd.f32 %v4431, %v4367
        %v4496 = vadd.f32 %v4432, %v4368
        %v4497 = vadd.f32 %v4433, %v4369
        %4498 = vst [vmem:[#allocation2] sm:$0xff] %v4434
        %4499 = vst [vmem:[#allocation2 + $0x8] sm:$0xff] %v4435
        %4500 = vst [vmem:[#allocation2 + $0x10] sm:$0xff] %v4436
        %4501 = vst [vmem:[#allocation2 + $0x18] sm:$0xff] %v4437
        %4502 = vst [vmem:[#allocation2 + $0x20] sm:$0xff] %v4438
        %4503 = vst [vmem:[#allocation2 + $0x28] sm:$0xff] %v4439
        %4504 = vst [vmem:[#allocation2 + $0x30] sm:$0xff] %v4440
        %4505 = vst [vmem:[#allocation2 + $0x38] sm:$0xff] %v4441
        %4506 = vst [vmem:[#allocation2 + $0x40] sm:$0xff] %v4442
        %4507 = vst [vmem:[#allocation2 + $0x48] sm:$0xff] %v4443
        %4508 = vst [vmem:[#allocation2 + $0x50] sm:$0xff] %v4444
        %4509 = vst [vmem:[#allocation2 + $0x58] sm:$0xff] %v4445
        %4510 = vst [vmem:[#allocation2 + $0x60] sm:$0xff] %v4446
        %4511 = vst [vmem:[#allocation2 + $0x68] sm:$0xff] %v4447
        %4512 = vst [vmem:[#allocation2 + $0x70] sm:$0xff] %v4448
        %4513 = vst [vmem:[#allocation2 + $0x78] sm:$0xff] %v4449
        %4514 = vst [vmem:[#allocation2 + $0x80] sm:$0xff] %v4450
        %4515 = vst [vmem:[#allocation2 + $0x88] sm:$0xff] %v4451
        %4516 = vst [vmem:[#allocation2 + $0x90] sm:$0xff] %v4452
        %4517 = vst [vmem:[#allocation2 + $0x98] sm:$0xff] %v4453
        %4518 = vst [vmem:[#allocation2 + $0xa0] sm:$0xff] %v4454
        %4519 = vst [vmem:[#allocation2 + $0xa8] sm:$0xff] %v4455
        %4520 = vst [vmem:[#allocation2 + $0xb0] sm:$0xff] %v4456
        %4521 = vst [vmem:[#allocation2 + $0xb8] sm:$0xff] %v4457
        %4522 = vst [vmem:[#allocation2 + $0xc0] sm:$0xff] %v4458
        %4523 = vst [vmem:[#allocation2 + $0xc8] sm:$0xff] %v4459
        %4524 = vst [vmem:[#allocation2 + $0xd0] sm:$0xff] %v4460
        %4525 = vst [vmem:[#allocation2 + $0xd8] sm:$0xff] %v4461
        %4526 = vst [vmem:[#allocation2 + $0xe0] sm:$0xff] %v4462
        %4527 = vst [vmem:[#allocation2 + $0xe8] sm:$0xff] %v4463
        %4528 = vst [vmem:[#allocation2 + $0xf0] sm:$0xff] %v4464
        %4529 = vst [vmem:[#allocation2 + $0xf8] sm:$0xff] %v4465
        %4530 = vst [vmem:[#allocation2 + $0x100] sm:$0xff] %v4466
        %4531 = vst [vmem:[#allocation2 + $0x108] sm:$0xff] %v4467
        %4532 = vst [vmem:[#allocation2 + $0x110] sm:$0xff] %v4468
        %4533 = vst [vmem:[#allocation2 + $0x118] sm:$0xff] %v4469
        %4534 = vst [vmem:[#allocation2 + $0x120] sm:$0xff] %v4470
        %4535 = vst [vmem:[#allocation2 + $0x128] sm:$0xff] %v4471
        %4536 = vst [vmem:[#allocation2 + $0x130] sm:$0xff] %v4472
        %4537 = vst [vmem:[#allocation2 + $0x138] sm:$0xff] %v4473
        %4538 = vst [vmem:[#allocation2 + $0x140] sm:$0xff] %v4474
        %4539 = vst [vmem:[#allocation2 + $0x148] sm:$0xff] %v4475
        %4540 = vst [vmem:[#allocation2 + $0x150] sm:$0xff] %v4476
        %4541 = vst [vmem:[#allocation2 + $0x158] sm:$0xff] %v4477
        %4542 = vst [vmem:[#allocation2 + $0x160] sm:$0xff] %v4478
        %4543 = vst [vmem:[#allocation2 + $0x168] sm:$0xff] %v4479
        %4544 = vst [vmem:[#allocation2 + $0x170] sm:$0xff] %v4480
        %4545 = vst [vmem:[#allocation2 + $0x178] sm:$0xff] %v4481
        %4546 = vst [vmem:[#allocation2 + $0x180] sm:$0xff] %v4482
        %4547 = vst [vmem:[#allocation2 + $0x188] sm:$0xff] %v4483
        %4548 = vst [vmem:[#allocation2 + $0x190] sm:$0xff] %v4484
        %4549 = vst [vmem:[#allocation2 + $0x198] sm:$0xff] %v4485
        %4550 = vst [vmem:[#allocation2 + $0x1a0] sm:$0xff] %v4486
        %4551 = vst [vmem:[#allocation2 + $0x1a8] sm:$0xff] %v4487
        %4552 = vst [vmem:[#allocation2 + $0x1b0] sm:$0xff] %v4488
        %4553 = vst [vmem:[#allocation2 + $0x1b8] sm:$0xff] %v4489
        %4554 = vst [vmem:[#allocation2 + $0x1c0] sm:$0xff] %v4490
        %4555 = vst [vmem:[#allocation2 + $0x1c8] sm:$0xff] %v4491
        %4556 = vst [vmem:[#allocation2 + $0x1d0] sm:$0xff] %v4492
        %4557 = vst [vmem:[#allocation2 + $0x1d8] sm:$0xff] %v4493
        %4558 = vst [vmem:[#allocation2 + $0x1e0] sm:$0xff] %v4494
        %4559 = vst [vmem:[#allocation2 + $0x1e8] sm:$0xff] %v4495
        %4560 = vst [vmem:[#allocation2 + $0x1f0] sm:$0xff] %v4496
        %4561 = vst [vmem:[#allocation2 + $0x1f8] sm:$0xff] %v4497
        %s4562 = sadd.s32 %s184, 2
        %s4563 = smul.u32 %s4562, 40
        %s4564 = scalar_lea.vmem %s182, %s4563
        %v4565 = vld [vmem:[%s4564] sm:$0xff]
        %v4566 = vld [vmem:[%s4564 + $0x8] sm:$0xff]
        %v4567 = vld [vmem:[%s4564 + $0x10] sm:$0xff]
        %v4568 = vld [vmem:[%s4564 + $0x18] sm:$0xff]
        %v4569 = vld [vmem:[%s4564 + $0x20] sm:$0x3]
        %v4570 = vld [vmem:[%s4564 + $0x28] sm:$0xff]
        %v4571 = vld [vmem:[%s4564 + $0x30] sm:$0xff]
        %v4572 = vld [vmem:[%s4564 + $0x38] sm:$0xff]
        %v4573 = vld [vmem:[%s4564 + $0x40] sm:$0xff]
        %v4574 = vld [vmem:[%s4564 + $0x48] sm:$0x3]
        %v4575 = vld [vmem:[%s4564 + $0x50] sm:$0xff]
        %v4576 = vld [vmem:[%s4564 + $0x58] sm:$0xff]
        %v4577 = vld [vmem:[%s4564 + $0x60] sm:$0xff]
        %v4578 = vld [vmem:[%s4564 + $0x68] sm:$0xff]
        %v4579 = vld [vmem:[%s4564 + $0x70] sm:$0x3]
        %v4580 = vld [vmem:[%s4564 + $0x78] sm:$0xff]
        %v4581 = vld [vmem:[%s4564 + $0x80] sm:$0xff]
        %v4582 = vld [vmem:[%s4564 + $0x88] sm:$0xff]
        %v4583 = vld [vmem:[%s4564 + $0x90] sm:$0xff]
        %v4584 = vld [vmem:[%s4564 + $0x98] sm:$0x3]
        %v4585 = vld [vmem:[%s4564 + $0xa0] sm:$0xff]
        %v4586 = vld [vmem:[%s4564 + $0xa8] sm:$0xff]
        %v4587 = vld [vmem:[%s4564 + $0xb0] sm:$0xff]
        %v4588 = vld [vmem:[%s4564 + $0xb8] sm:$0xff]
        %v4589 = vld [vmem:[%s4564 + $0xc0] sm:$0x3]
        %v4590 = vld [vmem:[%s4564 + $0xc8] sm:$0xff]
        %v4591 = vld [vmem:[%s4564 + $0xd0] sm:$0xff]
        %v4592 = vld [vmem:[%s4564 + $0xd8] sm:$0xff]
        %v4593 = vld [vmem:[%s4564 + $0xe0] sm:$0xff]
        %v4594 = vld [vmem:[%s4564 + $0xe8] sm:$0x3]
        %v4595 = vld [vmem:[%s4564 + $0xf0] sm:$0xff]
        %v4596 = vld [vmem:[%s4564 + $0xf8] sm:$0xff]
        %v4597 = vld [vmem:[%s4564 + $0x100] sm:$0xff]
        %v4598 = vld [vmem:[%s4564 + $0x108] sm:$0xff]
        %v4599 = vld [vmem:[%s4564 + $0x110] sm:$0x3]
        %v4600 = vld [vmem:[%s4564 + $0x118] sm:$0xff]
        %v4601 = vld [vmem:[%s4564 + $0x120] sm:$0xff]
        %v4602 = vld [vmem:[%s4564 + $0x128] sm:$0xff]
        %v4603 = vld [vmem:[%s4564 + $0x130] sm:$0xff]
        %v4604 = vld [vmem:[%s4564 + $0x138] sm:$0x3]
        %v4605 = vld [vmem:[%s4564 + $0x140] sm:$0xff]
        %v4606 = vld [vmem:[%s4564 + $0x148] sm:$0xff]
        %v4607 = vld [vmem:[%s4564 + $0x150] sm:$0xff]
        %v4608 = vld [vmem:[%s4564 + $0x158] sm:$0xff]
        %v4609 = vld [vmem:[%s4564 + $0x160] sm:$0x3]
        %v4610 = vld [vmem:[%s4564 + $0x168] sm:$0xff]
        %v4611 = vld [vmem:[%s4564 + $0x170] sm:$0xff]
        %v4612 = vld [vmem:[%s4564 + $0x178] sm:$0xff]
        %v4613 = vld [vmem:[%s4564 + $0x180] sm:$0xff]
        %v4614 = vld [vmem:[%s4564 + $0x188] sm:$0x3]
        %v4615 = vld [vmem:[%s4564 + $0x190] sm:$0xff]
        %v4616 = vld [vmem:[%s4564 + $0x198] sm:$0xff]
        %v4617 = vld [vmem:[%s4564 + $0x1a0] sm:$0xff]
        %v4618 = vld [vmem:[%s4564 + $0x1a8] sm:$0xff]
        %v4619 = vld [vmem:[%s4564 + $0x1b0] sm:$0x3]
        %v4620 = vld [vmem:[%s4564 + $0x1b8] sm:$0xff]
        %v4621 = vld [vmem:[%s4564 + $0x1c0] sm:$0xff]
        %v4622 = vld [vmem:[%s4564 + $0x1c8] sm:$0xff]
        %v4623 = vld [vmem:[%s4564 + $0x1d0] sm:$0xff]
        %v4624 = vld [vmem:[%s4564 + $0x1d8] sm:$0x3]
        %v4625 = vld [vmem:[%s4564 + $0x1e0] sm:$0xff]
        %v4626 = vld [vmem:[%s4564 + $0x1e8] sm:$0xff]
        %v4627 = vld [vmem:[%s4564 + $0x1f0] sm:$0xff]
        %v4628 = vld [vmem:[%s4564 + $0x1f8] sm:$0xff]
        %v4629 = vld [vmem:[%s4564 + $0x200] sm:$0x3]
        %v4630 = vld [vmem:[%s4564 + $0x208] sm:$0xff]
        %v4631 = vld [vmem:[%s4564 + $0x210] sm:$0xff]
        %v4632 = vld [vmem:[%s4564 + $0x218] sm:$0xff]
        %v4633 = vld [vmem:[%s4564 + $0x220] sm:$0xff]
        %v4634 = vld [vmem:[%s4564 + $0x228] sm:$0x3]
        %v4635 = vld [vmem:[%s4564 + $0x230] sm:$0xff]
        %v4636 = vld [vmem:[%s4564 + $0x238] sm:$0xff]
        %v4637 = vld [vmem:[%s4564 + $0x240] sm:$0xff]
        %v4638 = vld [vmem:[%s4564 + $0x248] sm:$0xff]
        %v4639 = vld [vmem:[%s4564 + $0x250] sm:$0x3]
        %v4640 = vld [vmem:[%s4564 + $0x258] sm:$0xff]
        %v4641 = vld [vmem:[%s4564 + $0x260] sm:$0xff]
        %v4642 = vld [vmem:[%s4564 + $0x268] sm:$0xff]
        %v4643 = vld [vmem:[%s4564 + $0x270] sm:$0xff]
        %v4644 = vld [vmem:[%s4564 + $0x278] sm:$0x3]
        %s4645 = scalar_lea.vmem %s1, 48
        %v4646 = vld [vmem:[%s4645] sm:$0xff]
        %v4727 = vrot.slane %v4565, 1
        %v4728 = vrot.slane %v4566, 1
        %v4729 = vsel %vm348, %v4727, %v4728
        %v4730 = vrot.slane %v4567, 1
        %v4731 = vsel %vm348, %v4728, %v4730
        %v4732 = vrot.slane %v4568, 1
        %v4733 = vsel %vm348, %v4730, %v4732
        %v4734 = vrot.slane %v4569, 1
        %v4735 = vsel %vm348, %v4732, %v4734
        %v4736 = vrot.slane %v4570, 1
        %v4737 = vrot.slane %v4571, 1
        %v4738 = vsel %vm348, %v4736, %v4737
        %v4739 = vrot.slane %v4572, 1
        %v4740 = vsel %vm348, %v4737, %v4739
        %v4741 = vrot.slane %v4573, 1
        %v4742 = vsel %vm348, %v4739, %v4741
        %v4743 = vrot.slane %v4574, 1
        %v4744 = vsel %vm348, %v4741, %v4743
        %v4745 = vrot.slane %v4575, 1
        %v4746 = vrot.slane %v4576, 1
        %v4747 = vsel %vm348, %v4745, %v4746
        %v4748 = vrot.slane %v4577, 1
        %v4749 = vsel %vm348, %v4746, %v4748
        %v4750 = vrot.slane %v4578, 1
        %v4751 = vsel %vm348, %v4748, %v4750
        %v4752 = vrot.slane %v4579, 1
        %v4753 = vsel %vm348, %v4750, %v4752
        %v4754 = vrot.slane %v4580, 1
        %v4755 = vrot.slane %v4581, 1
        %v4756 = vsel %vm348, %v4754, %v4755
        %v4757 = vrot.slane %v4582, 1
        %v4758 = vsel %vm348, %v4755, %v4757
        %v4759 = vrot.slane %v4583, 1
        %v4760 = vsel %vm348, %v4757, %v4759
        %v4761 = vrot.slane %v4584, 1
        %v4762 = vsel %vm348, %v4759, %v4761
        %v4763 = vrot.slane %v4585, 1
        %v4764 = vrot.slane %v4586, 1
        %v4765 = vsel %vm348, %v4763, %v4764
        %v4766 = vrot.slane %v4587, 1
        %v4767 = vsel %vm348, %v4764, %v4766
        %v4768 = vrot.slane %v4588, 1
        %v4769 = vsel %vm348, %v4766, %v4768
        %v4770 = vrot.slane %v4589, 1
        %v4771 = vsel %vm348, %v4768, %v4770
        %v4772 = vrot.slane %v4590, 1
        %v4773 = vrot.slane %v4591, 1
        %v4774 = vsel %vm348, %v4772, %v4773
        %v4775 = vrot.slane %v4592, 1
        %v4776 = vsel %vm348, %v4773, %v4775
        %v4777 = vrot.slane %v4593, 1
        %v4778 = vsel %vm348, %v4775, %v4777
        %v4779 = vrot.slane %v4594, 1
        %v4780 = vsel %vm348, %v4777, %v4779
        %v4781 = vrot.slane %v4595, 1
        %v4782 = vrot.slane %v4596, 1
        %v4783 = vsel %vm348, %v4781, %v4782
        %v4784 = vrot.slane %v4597, 1
        %v4785 = vsel %vm348, %v4782, %v4784
        %v4786 = vrot.slane %v4598, 1
        %v4787 = vsel %vm348, %v4784, %v4786
        %v4788 = vrot.slane %v4599, 1
        %v4789 = vsel %vm348, %v4786, %v4788
        %v4790 = vrot.slane %v4600, 1
        %v4791 = vrot.slane %v4601, 1
        %v4792 = vsel %vm348, %v4790, %v4791
        %v4793 = vrot.slane %v4602, 1
        %v4794 = vsel %vm348, %v4791, %v4793
        %v4795 = vrot.slane %v4603, 1
        %v4796 = vsel %vm348, %v4793, %v4795
        %v4797 = vrot.slane %v4604, 1
        %v4798 = vsel %vm348, %v4795, %v4797
        %v4799 = vrot.slane %v4605, 1
        %v4800 = vrot.slane %v4606, 1
        %v4801 = vsel %vm348, %v4799, %v4800
        %v4802 = vrot.slane %v4607, 1
        %v4803 = vsel %vm348, %v4800, %v4802
        %v4804 = vrot.slane %v4608, 1
        %v4805 = vsel %vm348, %v4802, %v4804
        %v4806 = vrot.slane %v4609, 1
        %v4807 = vsel %vm348, %v4804, %v4806
        %v4808 = vrot.slane %v4610, 1
        %v4809 = vrot.slane %v4611, 1
        %v4810 = vsel %vm348, %v4808, %v4809
        %v4811 = vrot.slane %v4612, 1
        %v4812 = vsel %vm348, %v4809, %v4811
        %v4813 = vrot.slane %v4613, 1
        %v4814 = vsel %vm348, %v4811, %v4813
        %v4815 = vrot.slane %v4614, 1
        %v4816 = vsel %vm348, %v4813, %v4815
        %v4817 = vrot.slane %v4615, 1
        %v4818 = vrot.slane %v4616, 1
        %v4819 = vsel %vm348, %v4817, %v4818
        %v4820 = vrot.slane %v4617, 1
        %v4821 = vsel %vm348, %v4818, %v4820
        %v4822 = vrot.slane %v4618, 1
        %v4823 = vsel %vm348, %v4820, %v4822
        %v4824 = vrot.slane %v4619, 1
        %v4825 = vsel %vm348, %v4822, %v4824
        %v4826 = vrot.slane %v4620, 1
        %v4827 = vrot.slane %v4621, 1
        %v4828 = vsel %vm348, %v4826, %v4827
        %v4829 = vrot.slane %v4622, 1
        %v4830 = vsel %vm348, %v4827, %v4829
        %v4831 = vrot.slane %v4623, 1
        %v4832 = vsel %vm348, %v4829, %v4831
        %v4833 = vrot.slane %v4624, 1
        %v4834 = vsel %vm348, %v4831, %v4833
        %v4835 = vrot.slane %v4625, 1
        %v4836 = vrot.slane %v4626, 1
        %v4837 = vsel %vm348, %v4835, %v4836
        %v4838 = vrot.slane %v4627, 1
        %v4839 = vsel %vm348, %v4836, %v4838
        %v4840 = vrot.slane %v4628, 1
        %v4841 = vsel %vm348, %v4838, %v4840
        %v4842 = vrot.slane %v4629, 1
        %v4843 = vsel %vm348, %v4840, %v4842
        %v4844 = vrot.slane %v4630, 1
        %v4845 = vrot.slane %v4631, 1
        %v4846 = vsel %vm348, %v4844, %v4845
        %v4847 = vrot.slane %v4632, 1
        %v4848 = vsel %vm348, %v4845, %v4847
        %v4849 = vrot.slane %v4633, 1
        %v4850 = vsel %vm348, %v4847, %v4849
        %v4851 = vrot.slane %v4634, 1
        %v4852 = vsel %vm348, %v4849, %v4851
        %v4853 = vrot.slane %v4635, 1
        %v4854 = vrot.slane %v4636, 1
        %v4855 = vsel %vm348, %v4853, %v4854
        %v4856 = vrot.slane %v4637, 1
        %v4857 = vsel %vm348, %v4854, %v4856
        %v4858 = vrot.slane %v4638, 1
        %v4859 = vsel %vm348, %v4856, %v4858
        %v4860 = vrot.slane %v4639, 1
        %v4861 = vsel %vm348, %v4858, %v4860
        %v4862 = vrot.slane %v4640, 1
        %v4863 = vrot.slane %v4641, 1
        %v4864 = vsel %vm348, %v4862, %v4863
        %v4865 = vrot.slane %v4642, 1
        %v4866 = vsel %vm348, %v4863, %v4865
        %v4867 = vrot.slane %v4643, 1
        %v4868 = vsel %vm348, %v4865, %v4867
        %v4869 = vrot.slane %v4644, 1
        %v4870 = vsel %vm348, %v4867, %v4869
        %s4871 = scalar_lea.vmem %s1, 56
        %v4872 = vld [vmem:[%s4871] sm:$0xff]
        %v4873 = vsel %vm495, %v4729, 0
        %v4875 = vsel %vm495, %v4731, 0
        %v4877 = vsel %vm495, %v4733, 0
        %v4879 = vsel %vm495, %v4735, 0
        %v4881 = vsel %vm495, %v4738, 0
        %v4883 = vsel %vm495, %v4740, 0
        %v4885 = vsel %vm495, %v4742, 0
        %v4887 = vsel %vm495, %v4744, 0
        %v4889 = vsel %vm495, %v4747, 0
        %v4891 = vsel %vm495, %v4749, 0
        %v4893 = vsel %vm495, %v4751, 0
        %v4895 = vsel %vm495, %v4753, 0
        %v4897 = vsel %vm495, %v4756, 0
        %v4899 = vsel %vm495, %v4758, 0
        %v4901 = vsel %vm495, %v4760, 0
        %v4903 = vsel %vm495, %v4762, 0
        %v4905 = vsel %vm495, %v4765, 0
        %v4907 = vsel %vm495, %v4767, 0
        %v4909 = vsel %vm495, %v4769, 0
        %v4911 = vsel %vm495, %v4771, 0
        %v4913 = vsel %vm495, %v4774, 0
        %v4915 = vsel %vm495, %v4776, 0
        %v4917 = vsel %vm495, %v4778, 0
        %v4919 = vsel %vm495, %v4780, 0
        %v4921 = vsel %vm495, %v4783, 0
        %v4923 = vsel %vm495, %v4785, 0
        %v4925 = vsel %vm495, %v4787, 0
        %v4927 = vsel %vm495, %v4789, 0
        %v4929 = vsel %vm495, %v4792, 0
        %v4931 = vsel %vm495, %v4794, 0
        %v4933 = vsel %vm495, %v4796, 0
        %v4935 = vsel %vm495, %v4798, 0
        %v4937 = vsel %vm495, %v4801, 0
        %v4939 = vsel %vm495, %v4803, 0
        %v4941 = vsel %vm495, %v4805, 0
        %v4943 = vsel %vm495, %v4807, 0
        %v4945 = vsel %vm495, %v4810, 0
        %v4947 = vsel %vm495, %v4812, 0
        %v4949 = vsel %vm495, %v4814, 0
        %v4951 = vsel %vm495, %v4816, 0
        %v4953 = vsel %vm495, %v4819, 0
        %v4955 = vsel %vm495, %v4821, 0
        %v4957 = vsel %vm495, %v4823, 0
        %v4959 = vsel %vm495, %v4825, 0
        %v4961 = vsel %vm495, %v4828, 0
        %v4963 = vsel %vm495, %v4830, 0
        %v4965 = vsel %vm495, %v4832, 0
        %v4967 = vsel %vm495, %v4834, 0
        %v4969 = vsel %vm495, %v4837, 0
        %v4971 = vsel %vm495, %v4839, 0
        %v4973 = vsel %vm495, %v4841, 0
        %v4975 = vsel %vm495, %v4843, 0
        %v4977 = vsel %vm495, %v4846, 0
        %v4979 = vsel %vm495, %v4848, 0
        %v4981 = vsel %vm495, %v4850, 0
        %v4983 = vsel %vm495, %v4852, 0
        %v4985 = vsel %vm495, %v4855, 0
        %v4987 = vsel %vm495, %v4857, 0
        %v4989 = vsel %vm495, %v4859, 0
        %v4991 = vsel %vm495, %v4861, 0
        %v4993 = vsel %vm495, %v4864, 0
        %v4995 = vsel %vm495, %v4866, 0
        %v4997 = vsel %vm495, %v4868, 0
        %v4999 = vsel %vm495, %v4870, 0
        %5001 = vmatprep.subr.mxu0 0.0
        %5002 = vmatpush1.msra.mxu0 0.0
        %5003 = vmatprep.subr.mxu0 0.0
        %5004 = vmatpush1.msra.mxu0 0.0
        %5005 = vmatprep.subr.mxu0 0.0
        %5006 = vmatpush1.msra.mxu0 0.0
        %5007 = vmatprep.subr.mxu0 0.0
        %5008 = vmatpush1.msra.mxu0 0.0
        %5009 = vmatprep.subr.mxu0 0.0
        %5010 = vmatpush1.msra.mxu0 0.0
        %5011 = vmatprep.subr.mxu0 0.0
        %5012 = vmatpush1.msra.mxu0 0.0
        %5013 = vmatprep.subr.mxu0 0.0
        %5014 = vmatpush1.msra.mxu0 0.0
        %5015 = vmatprep.subr.mxu0 0.0
        %5016 = vmatpush1.msra.mxu0 0.0
        %5017 = vmatprep.subr.mxu0 0.0
        %5018 = vmatpush1.msra.mxu0 0.0
        %5019 = vmatprep.subr.mxu0 0.0
        %5020 = vmatpush1.msra.mxu0 0.0
        %5021 = vmatprep.subr.mxu0 0.0
        %5022 = vmatpush1.msra.mxu0 0.0
        %5023 = vmatprep.subr.mxu0 0.0
        %5024 = vmatpush1.msra.mxu0 0.0
        %5025 = vmatprep.subr.mxu0 0.0
        %5026 = vmatpush1.msra.mxu0 0.0
        %5027 = vmatprep.subr.mxu0 0.0
        %5028 = vmatpush1.msra.mxu0 0.0
        %5029 = vmatprep.subr.mxu0 0.0
        %5030 = vmatpush1.msra.mxu0 0.0
        %5031 = vmatprep.subr.mxu0 0.0
        %5032 = vmatpush1.msra.mxu0 %v4872
        %5033 = vmatprep.subr.mxu0 0.0
        %5034 = vmatpush2.msra.mxu0 0.0
        %5035 = vmatprep.subr.mxu0 0.0
        %5036 = vmatpush2.msra.mxu0 0.0
        %5037 = vmatprep.subr.mxu0 0.0
        %5038 = vmatpush2.msra.mxu0 0.0
        %5039 = vmatprep.subr.mxu0 0.0
        %5040 = vmatpush2.msra.mxu0 0.0
        %5041 = vmatprep.subr.mxu0 0.0
        %5042 = vmatpush2.msra.mxu0 0.0
        %5043 = vmatprep.subr.mxu0 0.0
        %5044 = vmatpush2.msra.mxu0 0.0
        %5045 = vmatprep.subr.mxu0 0.0
        %5046 = vmatpush2.msra.mxu0 0.0
        %5047 = vmatprep.subr.mxu0 0.0
        %5048 = vmatpush2.msra.mxu0 0.0
        %5049 = vmatprep.subr.mxu0 0.0
        %5050 = vmatpush2.msra.mxu0 0.0
        %5051 = vmatprep.subr.mxu0 0.0
        %5052 = vmatpush2.msra.mxu0 0.0
        %5053 = vmatprep.subr.mxu0 0.0
        %5054 = vmatpush2.msra.mxu0 0.0
        %5055 = vmatprep.subr.mxu0 0.0
        %5056 = vmatpush2.msra.mxu0 0.0
        %5057 = vmatprep.subr.mxu0 0.0
        %5058 = vmatpush2.msra.mxu0 0.0
        %5059 = vmatprep.subr.mxu0 0.0
        %5060 = vmatpush2.msra.mxu0 0.0
        %5061 = vmatprep.subr.mxu0 0.0
        %5062 = vmatpush2.msra.mxu0 0.0
        %5063 = vmatprep.subr.mxu0 0.0
        %5064 = vmatpush2.msra.mxu0 0.0
        %5065 = vmatprep.mubr.f32.mxu0 0.0
        %5066 = vmatmul.mubr.f32.gmra.mxu0 %v4873
        %v5067 = vpop.f32.mrf.mxu0
        %v5068 = vadd.f32 0.0, %v5067
        %v5069 = vpop.f32.mrf.mxu0
        %5070 = vmatprep.mubr.f32.mxu0 0.0
        %5071 = vmatmul.mubr.f32.gmra.mxu0 %v4875
        %v5072 = vpop.f32.mrf.mxu0
        %v5073 = vadd.f32 0.0, %v5072
        %v5074 = vpop.f32.mrf.mxu0
        %5075 = vmatprep.mubr.f32.mxu0 0.0
        %5076 = vmatmul.mubr.f32.gmra.mxu0 %v4877
        %v5077 = vpop.f32.mrf.mxu0
        %v5078 = vadd.f32 0.0, %v5077
        %v5079 = vpop.f32.mrf.mxu0
        %5080 = vmatprep.mubr.f32.mxu0 0.0
        %5081 = vmatmul.mubr.f32.gmra.mxu0 %v4879
        %v5082 = vpop.f32.mrf.mxu0
        %v5083 = vadd.f32 0.0, %v5082
        %v5084 = vpop.f32.mrf.mxu0
        %5085 = vmatprep.mubr.f32.mxu0 0.0
        %5086 = vmatmul.mubr.f32.gmra.mxu0 %v4881
        %v5087 = vpop.f32.mrf.mxu0
        %v5088 = vadd.f32 0.0, %v5087
        %v5089 = vpop.f32.mrf.mxu0
        %5090 = vmatprep.mubr.f32.mxu0 0.0
        %5091 = vmatmul.mubr.f32.gmra.mxu0 %v4883
        %v5092 = vpop.f32.mrf.mxu0
        %v5093 = vadd.f32 0.0, %v5092
        %v5094 = vpop.f32.mrf.mxu0
        %5095 = vmatprep.mubr.f32.mxu0 0.0
        %5096 = vmatmul.mubr.f32.gmra.mxu0 %v4885
        %v5097 = vpop.f32.mrf.mxu0
        %v5098 = vadd.f32 0.0, %v5097
        %v5099 = vpop.f32.mrf.mxu0
        %5100 = vmatprep.mubr.f32.mxu0 0.0
        %5101 = vmatmul.mubr.f32.gmra.mxu0 %v4887
        %v5102 = vpop.f32.mrf.mxu0
        %v5103 = vadd.f32 0.0, %v5102
        %v5104 = vpop.f32.mrf.mxu0
        %5105 = vmatprep.mubr.f32.mxu0 0.0
        %5106 = vmatmul.mubr.f32.gmra.mxu0 %v4889
        %v5107 = vpop.f32.mrf.mxu0
        %v5108 = vadd.f32 0.0, %v5107
        %v5109 = vpop.f32.mrf.mxu0
        %5110 = vmatprep.mubr.f32.mxu0 0.0
        %5111 = vmatmul.mubr.f32.gmra.mxu0 %v4891
        %v5112 = vpop.f32.mrf.mxu0
        %v5113 = vadd.f32 0.0, %v5112
        %v5114 = vpop.f32.mrf.mxu0
        %5115 = vmatprep.mubr.f32.mxu0 0.0
        %5116 = vmatmul.mubr.f32.gmra.mxu0 %v4893
        %v5117 = vpop.f32.mrf.mxu0
        %v5118 = vadd.f32 0.0, %v5117
        %v5119 = vpop.f32.mrf.mxu0
        %5120 = vmatprep.mubr.f32.mxu0 0.0
        %5121 = vmatmul.mubr.f32.gmra.mxu0 %v4895
        %v5122 = vpop.f32.mrf.mxu0
        %v5123 = vadd.f32 0.0, %v5122
        %v5124 = vpop.f32.mrf.mxu0
        %5125 = vmatprep.mubr.f32.mxu0 0.0
        %5126 = vmatmul.mubr.f32.gmra.mxu0 %v4897
        %v5127 = vpop.f32.mrf.mxu0
        %v5128 = vadd.f32 0.0, %v5127
        %v5129 = vpop.f32.mrf.mxu0
        %5130 = vmatprep.mubr.f32.mxu0 0.0
        %5131 = vmatmul.mubr.f32.gmra.mxu0 %v4899
        %v5132 = vpop.f32.mrf.mxu0
        %v5133 = vadd.f32 0.0, %v5132
        %v5134 = vpop.f32.mrf.mxu0
        %5135 = vmatprep.mubr.f32.mxu0 0.0
        %5136 = vmatmul.mubr.f32.gmra.mxu0 %v4901
        %v5137 = vpop.f32.mrf.mxu0
        %v5138 = vadd.f32 0.0, %v5137
        %v5139 = vpop.f32.mrf.mxu0
        %5140 = vmatprep.mubr.f32.mxu0 0.0
        %5141 = vmatmul.mubr.f32.gmra.mxu0 %v4903
        %v5142 = vpop.f32.mrf.mxu0
        %v5143 = vadd.f32 0.0, %v5142
        %v5144 = vpop.f32.mrf.mxu0
        %5145 = vmatprep.mubr.f32.mxu0 0.0
        %5146 = vmatmul.mubr.f32.gmra.mxu0 %v4905
        %v5147 = vpop.f32.mrf.mxu0
        %v5148 = vadd.f32 0.0, %v5147
        %v5149 = vpop.f32.mrf.mxu0
        %5150 = vmatprep.mubr.f32.mxu0 0.0
        %5151 = vmatmul.mubr.f32.gmra.mxu0 %v4907
        %v5152 = vpop.f32.mrf.mxu0
        %v5153 = vadd.f32 0.0, %v5152
        %v5154 = vpop.f32.mrf.mxu0
        %5155 = vmatprep.mubr.f32.mxu0 0.0
        %5156 = vmatmul.mubr.f32.gmra.mxu0 %v4909
        %v5157 = vpop.f32.mrf.mxu0
        %v5158 = vadd.f32 0.0, %v5157
        %v5159 = vpop.f32.mrf.mxu0
        %5160 = vmatprep.mubr.f32.mxu0 0.0
        %5161 = vmatmul.mubr.f32.gmra.mxu0 %v4911
        %v5162 = vpop.f32.mrf.mxu0
        %v5163 = vadd.f32 0.0, %v5162
        %v5164 = vpop.f32.mrf.mxu0
        %5165 = vmatprep.mubr.f32.mxu0 0.0
        %5166 = vmatmul.mubr.f32.gmra.mxu0 %v4913
        %v5167 = vpop.f32.mrf.mxu0
        %v5168 = vadd.f32 0.0, %v5167
        %v5169 = vpop.f32.mrf.mxu0
        %5170 = vmatprep.mubr.f32.mxu0 0.0
        %5171 = vmatmul.mubr.f32.gmra.mxu0 %v4915
        %v5172 = vpop.f32.mrf.mxu0
        %v5173 = vadd.f32 0.0, %v5172
        %v5174 = vpop.f32.mrf.mxu0
        %5175 = vmatprep.mubr.f32.mxu0 0.0
        %5176 = vmatmul.mubr.f32.gmra.mxu0 %v4917
        %v5177 = vpop.f32.mrf.mxu0
        %v5178 = vadd.f32 0.0, %v5177
        %v5179 = vpop.f32.mrf.mxu0
        %5180 = vmatprep.mubr.f32.mxu0 0.0
        %5181 = vmatmul.mubr.f32.gmra.mxu0 %v4919
        %v5182 = vpop.f32.mrf.mxu0
        %v5183 = vadd.f32 0.0, %v5182
        %v5184 = vpop.f32.mrf.mxu0
        %5185 = vmatprep.mubr.f32.mxu0 0.0
        %5186 = vmatmul.mubr.f32.gmra.mxu0 %v4921
        %v5187 = vpop.f32.mrf.mxu0
        %v5188 = vadd.f32 0.0, %v5187
        %v5189 = vpop.f32.mrf.mxu0
        %5190 = vmatprep.mubr.f32.mxu0 0.0
        %5191 = vmatmul.mubr.f32.gmra.mxu0 %v4923
        %v5192 = vpop.f32.mrf.mxu0
        %v5193 = vadd.f32 0.0, %v5192
        %v5194 = vpop.f32.mrf.mxu0
        %5195 = vmatprep.mubr.f32.mxu0 0.0
        %5196 = vmatmul.mubr.f32.gmra.mxu0 %v4925
        %v5197 = vpop.f32.mrf.mxu0
        %v5198 = vadd.f32 0.0, %v5197
        %v5199 = vpop.f32.mrf.mxu0
        %5200 = vmatprep.mubr.f32.mxu0 0.0
        %5201 = vmatmul.mubr.f32.gmra.mxu0 %v4927
        %v5202 = vpop.f32.mrf.mxu0
        %v5203 = vadd.f32 0.0, %v5202
        %v5204 = vpop.f32.mrf.mxu0
        %5205 = vmatprep.mubr.f32.mxu0 0.0
        %5206 = vmatmul.mubr.f32.gmra.mxu0 %v4929
        %v5207 = vpop.f32.mrf.mxu0
        %v5208 = vadd.f32 0.0, %v5207
        %v5209 = vpop.f32.mrf.mxu0
        %5210 = vmatprep.mubr.f32.mxu0 0.0
        %5211 = vmatmul.mubr.f32.gmra.mxu0 %v4931
        %v5212 = vpop.f32.mrf.mxu0
        %v5213 = vadd.f32 0.0, %v5212
        %v5214 = vpop.f32.mrf.mxu0
        %5215 = vmatprep.mubr.f32.mxu0 0.0
        %5216 = vmatmul.mubr.f32.gmra.mxu0 %v4933
        %v5217 = vpop.f32.mrf.mxu0
        %v5218 = vadd.f32 0.0, %v5217
        %v5219 = vpop.f32.mrf.mxu0
        %5220 = vmatprep.mubr.f32.mxu0 0.0
        %5221 = vmatmul.mubr.f32.gmra.mxu0 %v4935
        %v5222 = vpop.f32.mrf.mxu0
        %v5223 = vadd.f32 0.0, %v5222
        %v5224 = vpop.f32.mrf.mxu0
        %5225 = vmatprep.mubr.f32.mxu0 0.0
        %5226 = vmatmul.mubr.f32.gmra.mxu0 %v4937
        %v5227 = vpop.f32.mrf.mxu0
        %v5228 = vadd.f32 0.0, %v5227
        %v5229 = vpop.f32.mrf.mxu0
        %5230 = vmatprep.mubr.f32.mxu0 0.0
        %5231 = vmatmul.mubr.f32.gmra.mxu0 %v4939
        %v5232 = vpop.f32.mrf.mxu0
        %v5233 = vadd.f32 0.0, %v5232
        %v5234 = vpop.f32.mrf.mxu0
        %5235 = vmatprep.mubr.f32.mxu0 0.0
        %5236 = vmatmul.mubr.f32.gmra.mxu0 %v4941
        %v5237 = vpop.f32.mrf.mxu0
        %v5238 = vadd.f32 0.0, %v5237
        %v5239 = vpop.f32.mrf.mxu0
        %5240 = vmatprep.mubr.f32.mxu0 0.0
        %5241 = vmatmul.mubr.f32.gmra.mxu0 %v4943
        %v5242 = vpop.f32.mrf.mxu0
        %v5243 = vadd.f32 0.0, %v5242
        %v5244 = vpop.f32.mrf.mxu0
        %5245 = vmatprep.mubr.f32.mxu0 0.0
        %5246 = vmatmul.mubr.f32.gmra.mxu0 %v4945
        %v5247 = vpop.f32.mrf.mxu0
        %v5248 = vadd.f32 0.0, %v5247
        %v5249 = vpop.f32.mrf.mxu0
        %5250 = vmatprep.mubr.f32.mxu0 0.0
        %5251 = vmatmul.mubr.f32.gmra.mxu0 %v4947
        %v5252 = vpop.f32.mrf.mxu0
        %v5253 = vadd.f32 0.0, %v5252
        %v5254 = vpop.f32.mrf.mxu0
        %5255 = vmatprep.mubr.f32.mxu0 0.0
        %5256 = vmatmul.mubr.f32.gmra.mxu0 %v4949
        %v5257 = vpop.f32.mrf.mxu0
        %v5258 = vadd.f32 0.0, %v5257
        %v5259 = vpop.f32.mrf.mxu0
        %5260 = vmatprep.mubr.f32.mxu0 0.0
        %5261 = vmatmul.mubr.f32.gmra.mxu0 %v4951
        %v5262 = vpop.f32.mrf.mxu0
        %v5263 = vadd.f32 0.0, %v5262
        %v5264 = vpop.f32.mrf.mxu0
        %5265 = vmatprep.mubr.f32.mxu0 0.0
        %5266 = vmatmul.mubr.f32.gmra.mxu0 %v4953
        %v5267 = vpop.f32.mrf.mxu0
        %v5268 = vadd.f32 0.0, %v5267
        %v5269 = vpop.f32.mrf.mxu0
        %5270 = vmatprep.mubr.f32.mxu0 0.0
        %5271 = vmatmul.mubr.f32.gmra.mxu0 %v4955
        %v5272 = vpop.f32.mrf.mxu0
        %v5273 = vadd.f32 0.0, %v5272
        %v5274 = vpop.f32.mrf.mxu0
        %5275 = vmatprep.mubr.f32.mxu0 0.0
        %5276 = vmatmul.mubr.f32.gmra.mxu0 %v4957
        %v5277 = vpop.f32.mrf.mxu0
        %v5278 = vadd.f32 0.0, %v5277
        %v5279 = vpop.f32.mrf.mxu0
        %5280 = vmatprep.mubr.f32.mxu0 0.0
        %5281 = vmatmul.mubr.f32.gmra.mxu0 %v4959
        %v5282 = vpop.f32.mrf.mxu0
        %v5283 = vadd.f32 0.0, %v5282
        %v5284 = vpop.f32.mrf.mxu0
        %5285 = vmatprep.mubr.f32.mxu0 0.0
        %5286 = vmatmul.mubr.f32.gmra.mxu0 %v4961
        %v5287 = vpop.f32.mrf.mxu0
        %v5288 = vadd.f32 0.0, %v5287
        %v5289 = vpop.f32.mrf.mxu0
        %5290 = vmatprep.mubr.f32.mxu0 0.0
        %5291 = vmatmul.mubr.f32.gmra.mxu0 %v4963
        %v5292 = vpop.f32.mrf.mxu0
        %v5293 = vadd.f32 0.0, %v5292
        %v5294 = vpop.f32.mrf.mxu0
        %5295 = vmatprep.mubr.f32.mxu0 0.0
        %5296 = vmatmul.mubr.f32.gmra.mxu0 %v4965
        %v5297 = vpop.f32.mrf.mxu0
        %v5298 = vadd.f32 0.0, %v5297
        %v5299 = vpop.f32.mrf.mxu0
        %5300 = vmatprep.mubr.f32.mxu0 0.0
        %5301 = vmatmul.mubr.f32.gmra.mxu0 %v4967
        %v5302 = vpop.f32.mrf.mxu0
        %v5303 = vadd.f32 0.0, %v5302
        %v5304 = vpop.f32.mrf.mxu0
        %5305 = vmatprep.mubr.f32.mxu0 0.0
        %5306 = vmatmul.mubr.f32.gmra.mxu0 %v4969
        %v5307 = vpop.f32.mrf.mxu0
        %v5308 = vadd.f32 0.0, %v5307
        %v5309 = vpop.f32.mrf.mxu0
        %5310 = vmatprep.mubr.f32.mxu0 0.0
        %5311 = vmatmul.mubr.f32.gmra.mxu0 %v4971
        %v5312 = vpop.f32.mrf.mxu0
        %v5313 = vadd.f32 0.0, %v5312
        %v5314 = vpop.f32.mrf.mxu0
        %5315 = vmatprep.mubr.f32.mxu0 0.0
        %5316 = vmatmul.mubr.f32.gmra.mxu0 %v4973
        %v5317 = vpop.f32.mrf.mxu0
        %v5318 = vadd.f32 0.0, %v5317
        %v5319 = vpop.f32.mrf.mxu0
        %5320 = vmatprep.mubr.f32.mxu0 0.0
        %5321 = vmatmul.mubr.f32.gmra.mxu0 %v4975
        %v5322 = vpop.f32.mrf.mxu0
        %v5323 = vadd.f32 0.0, %v5322
        %v5324 = vpop.f32.mrf.mxu0
        %5325 = vmatprep.mubr.f32.mxu0 0.0
        %5326 = vmatmul.mubr.f32.gmra.mxu0 %v4977
        %v5327 = vpop.f32.mrf.mxu0
        %v5328 = vadd.f32 0.0, %v5327
        %v5329 = vpop.f32.mrf.mxu0
        %5330 = vmatprep.mubr.f32.mxu0 0.0
        %5331 = vmatmul.mubr.f32.gmra.mxu0 %v4979
        %v5332 = vpop.f32.mrf.mxu0
        %v5333 = vadd.f32 0.0, %v5332
        %v5334 = vpop.f32.mrf.mxu0
        %5335 = vmatprep.mubr.f32.mxu0 0.0
        %5336 = vmatmul.mubr.f32.gmra.mxu0 %v4981
        %v5337 = vpop.f32.mrf.mxu0
        %v5338 = vadd.f32 0.0, %v5337
        %v5339 = vpop.f32.mrf.mxu0
        %5340 = vmatprep.mubr.f32.mxu0 0.0
        %5341 = vmatmul.mubr.f32.gmra.mxu0 %v4983
        %v5342 = vpop.f32.mrf.mxu0
        %v5343 = vadd.f32 0.0, %v5342
        %v5344 = vpop.f32.mrf.mxu0
        %5345 = vmatprep.mubr.f32.mxu0 0.0
        %5346 = vmatmul.mubr.f32.gmra.mxu0 %v4985
        %v5347 = vpop.f32.mrf.mxu0
        %v5348 = vadd.f32 0.0, %v5347
        %v5349 = vpop.f32.mrf.mxu0
        %5350 = vmatprep.mubr.f32.mxu0 0.0
        %5351 = vmatmul.mubr.f32.gmra.mxu0 %v4987
        %v5352 = vpop.f32.mrf.mxu0
        %v5353 = vadd.f32 0.0, %v5352
        %v5354 = vpop.f32.mrf.mxu0
        %5355 = vmatprep.mubr.f32.mxu0 0.0
        %5356 = vmatmul.mubr.f32.gmra.mxu0 %v4989
        %v5357 = vpop.f32.mrf.mxu0
        %v5358 = vadd.f32 0.0, %v5357
        %v5359 = vpop.f32.mrf.mxu0
        %5360 = vmatprep.mubr.f32.mxu0 0.0
        %5361 = vmatmul.mubr.f32.gmra.mxu0 %v4991
        %v5362 = vpop.f32.mrf.mxu0
        %v5363 = vadd.f32 0.0, %v5362
        %v5364 = vpop.f32.mrf.mxu0
        %5365 = vmatprep.mubr.f32.mxu0 0.0
        %5366 = vmatmul.mubr.f32.gmra.mxu0 %v4993
        %v5367 = vpop.f32.mrf.mxu0
        %v5368 = vadd.f32 0.0, %v5367
        %v5369 = vpop.f32.mrf.mxu0
        %5370 = vmatprep.mubr.f32.mxu0 0.0
        %5371 = vmatmul.mubr.f32.gmra.mxu0 %v4995
        %v5372 = vpop.f32.mrf.mxu0
        %v5373 = vadd.f32 0.0, %v5372
        %v5374 = vpop.f32.mrf.mxu0
        %5375 = vmatprep.mubr.f32.mxu0 0.0
        %5376 = vmatmul.mubr.f32.gmra.mxu0 %v4997
        %v5377 = vpop.f32.mrf.mxu0
        %v5378 = vadd.f32 0.0, %v5377
        %v5379 = vpop.f32.mrf.mxu0
        %5380 = vmatprep.mubr.f32.mxu0 0.0
        %5381 = vmatmul.mubr.f32.gmra.mxu0 %v4999
        %v5382 = vpop.f32.mrf.mxu0
        %v5383 = vadd.f32 0.0, %v5382
        %v5384 = vpop.f32.mrf.mxu0
        %5385 = vdwg.mxu0
        %v5386 = vsel %vm495, %v4565, 0
        %v5388 = vsel %vm495, %v4566, 0
        %v5390 = vsel %vm495, %v4567, 0
        %v5392 = vsel %vm495, %v4568, 0
        %v5394 = vsel %vm495, %v4570, 0
        %v5396 = vsel %vm495, %v4571, 0
        %v5398 = vsel %vm495, %v4572, 0
        %v5400 = vsel %vm495, %v4573, 0
        %v5402 = vsel %vm495, %v4575, 0
        %v5404 = vsel %vm495, %v4576, 0
        %v5406 = vsel %vm495, %v4577, 0
        %v5408 = vsel %vm495, %v4578, 0
        %v5410 = vsel %vm495, %v4580, 0
        %v5412 = vsel %vm495, %v4581, 0
        %v5414 = vsel %vm495, %v4582, 0
        %v5416 = vsel %vm495, %v4583, 0
        %v5418 = vsel %vm495, %v4585, 0
        %v5420 = vsel %vm495, %v4586, 0
        %v5422 = vsel %vm495, %v4587, 0
        %v5424 = vsel %vm495, %v4588, 0
        %v5426 = vsel %vm495, %v4590, 0
        %v5428 = vsel %vm495, %v4591, 0
        %v5430 = vsel %vm495, %v4592, 0
        %v5432 = vsel %vm495, %v4593, 0
        %v5434 = vsel %vm495, %v4595, 0
        %v5436 = vsel %vm495, %v4596, 0
        %v5438 = vsel %vm495, %v4597, 0
        %v5440 = vsel %vm495, %v4598, 0
        %v5442 = vsel %vm495, %v4600, 0
        %v5444 = vsel %vm495, %v4601, 0
        %v5446 = vsel %vm495, %v4602, 0
        %v5448 = vsel %vm495, %v4603, 0
        %v5450 = vsel %vm495, %v4605, 0
        %v5452 = vsel %vm495, %v4606, 0
        %v5454 = vsel %vm495, %v4607, 0
        %v5456 = vsel %vm495, %v4608, 0
        %v5458 = vsel %vm495, %v4610, 0
        %v5460 = vsel %vm495, %v4611, 0
        %v5462 = vsel %vm495, %v4612, 0
        %v5464 = vsel %vm495, %v4613, 0
        %v5466 = vsel %vm495, %v4615, 0
        %v5468 = vsel %vm495, %v4616, 0
        %v5470 = vsel %vm495, %v4617, 0
        %v5472 = vsel %vm495, %v4618, 0
        %v5474 = vsel %vm495, %v4620, 0
        %v5476 = vsel %vm495, %v4621, 0
        %v5478 = vsel %vm495, %v4622, 0
        %v5480 = vsel %vm495, %v4623, 0
        %v5482 = vsel %vm495, %v4625, 0
        %v5484 = vsel %vm495, %v4626, 0
        %v5486 = vsel %vm495, %v4627, 0
        %v5488 = vsel %vm495, %v4628, 0
        %v5490 = vsel %vm495, %v4630, 0
        %v5492 = vsel %vm495, %v4631, 0
        %v5494 = vsel %vm495, %v4632, 0
        %v5496 = vsel %vm495, %v4633, 0
        %v5498 = vsel %vm495, %v4635, 0
        %v5500 = vsel %vm495, %v4636, 0
        %v5502 = vsel %vm495, %v4637, 0
        %v5504 = vsel %vm495, %v4638, 0
        %v5506 = vsel %vm495, %v4640, 0
        %v5508 = vsel %vm495, %v4641, 0
        %v5510 = vsel %vm495, %v4642, 0
        %v5512 = vsel %vm495, %v4643, 0
        %5514 = vmatprep.subr.mxu0 0.0
        %5515 = vmatpush1.msra.mxu0 0.0
        %5516 = vmatprep.subr.mxu0 0.0
        %5517 = vmatpush1.msra.mxu0 0.0
        %5518 = vmatprep.subr.mxu0 0.0
        %5519 = vmatpush1.msra.mxu0 0.0
        %5520 = vmatprep.subr.mxu0 0.0
        %5521 = vmatpush1.msra.mxu0 0.0
        %5522 = vmatprep.subr.mxu0 0.0
        %5523 = vmatpush1.msra.mxu0 0.0
        %5524 = vmatprep.subr.mxu0 0.0
        %5525 = vmatpush1.msra.mxu0 0.0
        %5526 = vmatprep.subr.mxu0 0.0
        %5527 = vmatpush1.msra.mxu0 0.0
        %5528 = vmatprep.subr.mxu0 0.0
        %5529 = vmatpush1.msra.mxu0 0.0
        %5530 = vmatprep.subr.mxu0 0.0
        %5531 = vmatpush1.msra.mxu0 0.0
        %5532 = vmatprep.subr.mxu0 0.0
        %5533 = vmatpush1.msra.mxu0 0.0
        %5534 = vmatprep.subr.mxu0 0.0
        %5535 = vmatpush1.msra.mxu0 0.0
        %5536 = vmatprep.subr.mxu0 0.0
        %5537 = vmatpush1.msra.mxu0 0.0
        %5538 = vmatprep.subr.mxu0 0.0
        %5539 = vmatpush1.msra.mxu0 0.0
        %5540 = vmatprep.subr.mxu0 0.0
        %5541 = vmatpush1.msra.mxu0 0.0
        %5542 = vmatprep.subr.mxu0 0.0
        %5543 = vmatpush1.msra.mxu0 0.0
        %5544 = vmatprep.subr.mxu0 0.0
        %5545 = vmatpush1.msra.mxu0 %v4646
        %5546 = vmatprep.subr.mxu0 0.0
        %5547 = vmatpush2.msra.mxu0 0.0
        %5548 = vmatprep.subr.mxu0 0.0
        %5549 = vmatpush2.msra.mxu0 0.0
        %5550 = vmatprep.subr.mxu0 0.0
        %5551 = vmatpush2.msra.mxu0 0.0
        %5552 = vmatprep.subr.mxu0 0.0
        %5553 = vmatpush2.msra.mxu0 0.0
        %5554 = vmatprep.subr.mxu0 0.0
        %5555 = vmatpush2.msra.mxu0 0.0
        %5556 = vmatprep.subr.mxu0 0.0
        %5557 = vmatpush2.msra.mxu0 0.0
        %5558 = vmatprep.subr.mxu0 0.0
        %5559 = vmatpush2.msra.mxu0 0.0
        %5560 = vmatprep.subr.mxu0 0.0
        %5561 = vmatpush2.msra.mxu0 0.0
        %5562 = vmatprep.subr.mxu0 0.0
        %5563 = vmatpush2.msra.mxu0 0.0
        %5564 = vmatprep.subr.mxu0 0.0
        %5565 = vmatpush2.msra.mxu0 0.0
        %5566 = vmatprep.subr.mxu0 0.0
        %5567 = vmatpush2.msra.mxu0 0.0
        %5568 = vmatprep.subr.mxu0 0.0
        %5569 = vmatpush2.msra.mxu0 0.0
        %5570 = vmatprep.subr.mxu0 0.0
        %5571 = vmatpush2.msra.mxu0 0.0
        %5572 = vmatprep.subr.mxu0 0.0
        %5573 = vmatpush2.msra.mxu0 0.0
        %5574 = vmatprep.subr.mxu0 0.0
        %5575 = vmatpush2.msra.mxu0 0.0
        %5576 = vmatprep.subr.mxu0 0.0
        %5577 = vmatpush2.msra.mxu0 0.0
        %5578 = vmatprep.mubr.f32.mxu0 0.0
        %5579 = vmatmul.mubr.f32.gmra.mxu0 %v5386
        %v5580 = vpop.f32.mrf.mxu0
        %v5581 = vadd.f32 %v5068, %v5580
        %v5582 = vpop.f32.mrf.mxu0
        %5583 = vmatprep.mubr.f32.mxu0 0.0
        %5584 = vmatmul.mubr.f32.gmra.mxu0 %v5388
        %v5585 = vpop.f32.mrf.mxu0
        %v5586 = vadd.f32 %v5073, %v5585
        %v5587 = vpop.f32.mrf.mxu0
        %5588 = vmatprep.mubr.f32.mxu0 0.0
        %5589 = vmatmul.mubr.f32.gmra.mxu0 %v5390
        %v5590 = vpop.f32.mrf.mxu0
        %v5591 = vadd.f32 %v5078, %v5590
        %v5592 = vpop.f32.mrf.mxu0
        %5593 = vmatprep.mubr.f32.mxu0 0.0
        %5594 = vmatmul.mubr.f32.gmra.mxu0 %v5392
        %v5595 = vpop.f32.mrf.mxu0
        %v5596 = vadd.f32 %v5083, %v5595
        %v5597 = vpop.f32.mrf.mxu0
        %5598 = vmatprep.mubr.f32.mxu0 0.0
        %5599 = vmatmul.mubr.f32.gmra.mxu0 %v5394
        %v5600 = vpop.f32.mrf.mxu0
        %v5601 = vadd.f32 %v5088, %v5600
        %v5602 = vpop.f32.mrf.mxu0
        %5603 = vmatprep.mubr.f32.mxu0 0.0
        %5604 = vmatmul.mubr.f32.gmra.mxu0 %v5396
        %v5605 = vpop.f32.mrf.mxu0
        %v5606 = vadd.f32 %v5093, %v5605
        %v5607 = vpop.f32.mrf.mxu0
        %5608 = vmatprep.mubr.f32.mxu0 0.0
        %5609 = vmatmul.mubr.f32.gmra.mxu0 %v5398
        %v5610 = vpop.f32.mrf.mxu0
        %v5611 = vadd.f32 %v5098, %v5610
        %v5612 = vpop.f32.mrf.mxu0
        %5613 = vmatprep.mubr.f32.mxu0 0.0
        %5614 = vmatmul.mubr.f32.gmra.mxu0 %v5400
        %v5615 = vpop.f32.mrf.mxu0
        %v5616 = vadd.f32 %v5103, %v5615
        %v5617 = vpop.f32.mrf.mxu0
        %5618 = vmatprep.mubr.f32.mxu0 0.0
        %5619 = vmatmul.mubr.f32.gmra.mxu0 %v5402
        %v5620 = vpop.f32.mrf.mxu0
        %v5621 = vadd.f32 %v5108, %v5620
        %v5622 = vpop.f32.mrf.mxu0
        %5623 = vmatprep.mubr.f32.mxu0 0.0
        %5624 = vmatmul.mubr.f32.gmra.mxu0 %v5404
        %v5625 = vpop.f32.mrf.mxu0
        %v5626 = vadd.f32 %v5113, %v5625
        %v5627 = vpop.f32.mrf.mxu0
        %5628 = vmatprep.mubr.f32.mxu0 0.0
        %5629 = vmatmul.mubr.f32.gmra.mxu0 %v5406
        %v5630 = vpop.f32.mrf.mxu0
        %v5631 = vadd.f32 %v5118, %v5630
        %v5632 = vpop.f32.mrf.mxu0
        %5633 = vmatprep.mubr.f32.mxu0 0.0
        %5634 = vmatmul.mubr.f32.gmra.mxu0 %v5408
        %v5635 = vpop.f32.mrf.mxu0
        %v5636 = vadd.f32 %v5123, %v5635
        %v5637 = vpop.f32.mrf.mxu0
        %5638 = vmatprep.mubr.f32.mxu0 0.0
        %5639 = vmatmul.mubr.f32.gmra.mxu0 %v5410
        %v5640 = vpop.f32.mrf.mxu0
        %v5641 = vadd.f32 %v5128, %v5640
        %v5642 = vpop.f32.mrf.mxu0
        %5643 = vmatprep.mubr.f32.mxu0 0.0
        %5644 = vmatmul.mubr.f32.gmra.mxu0 %v5412
        %v5645 = vpop.f32.mrf.mxu0
        %v5646 = vadd.f32 %v5133, %v5645
        %v5647 = vpop.f32.mrf.mxu0
        %5648 = vmatprep.mubr.f32.mxu0 0.0
        %5649 = vmatmul.mubr.f32.gmra.mxu0 %v5414
        %v5650 = vpop.f32.mrf.mxu0
        %v5651 = vadd.f32 %v5138, %v5650
        %v5652 = vpop.f32.mrf.mxu0
        %5653 = vmatprep.mubr.f32.mxu0 0.0
        %5654 = vmatmul.mubr.f32.gmra.mxu0 %v5416
        %v5655 = vpop.f32.mrf.mxu0
        %v5656 = vadd.f32 %v5143, %v5655
        %v5657 = vpop.f32.mrf.mxu0
        %5658 = vmatprep.mubr.f32.mxu0 0.0
        %5659 = vmatmul.mubr.f32.gmra.mxu0 %v5418
        %v5660 = vpop.f32.mrf.mxu0
        %v5661 = vadd.f32 %v5148, %v5660
        %v5662 = vpop.f32.mrf.mxu0
        %5663 = vmatprep.mubr.f32.mxu0 0.0
        %5664 = vmatmul.mubr.f32.gmra.mxu0 %v5420
        %v5665 = vpop.f32.mrf.mxu0
        %v5666 = vadd.f32 %v5153, %v5665
        %v5667 = vpop.f32.mrf.mxu0
        %5668 = vmatprep.mubr.f32.mxu0 0.0
        %5669 = vmatmul.mubr.f32.gmra.mxu0 %v5422
        %v5670 = vpop.f32.mrf.mxu0
        %v5671 = vadd.f32 %v5158, %v5670
        %v5672 = vpop.f32.mrf.mxu0
        %5673 = vmatprep.mubr.f32.mxu0 0.0
        %5674 = vmatmul.mubr.f32.gmra.mxu0 %v5424
        %v5675 = vpop.f32.mrf.mxu0
        %v5676 = vadd.f32 %v5163, %v5675
        %v5677 = vpop.f32.mrf.mxu0
        %5678 = vmatprep.mubr.f32.mxu0 0.0
        %5679 = vmatmul.mubr.f32.gmra.mxu0 %v5426
        %v5680 = vpop.f32.mrf.mxu0
        %v5681 = vadd.f32 %v5168, %v5680
        %v5682 = vpop.f32.mrf.mxu0
        %5683 = vmatprep.mubr.f32.mxu0 0.0
        %5684 = vmatmul.mubr.f32.gmra.mxu0 %v5428
        %v5685 = vpop.f32.mrf.mxu0
        %v5686 = vadd.f32 %v5173, %v5685
        %v5687 = vpop.f32.mrf.mxu0
        %5688 = vmatprep.mubr.f32.mxu0 0.0
        %5689 = vmatmul.mubr.f32.gmra.mxu0 %v5430
        %v5690 = vpop.f32.mrf.mxu0
        %v5691 = vadd.f32 %v5178, %v5690
        %v5692 = vpop.f32.mrf.mxu0
        %5693 = vmatprep.mubr.f32.mxu0 0.0
        %5694 = vmatmul.mubr.f32.gmra.mxu0 %v5432
        %v5695 = vpop.f32.mrf.mxu0
        %v5696 = vadd.f32 %v5183, %v5695
        %v5697 = vpop.f32.mrf.mxu0
        %5698 = vmatprep.mubr.f32.mxu0 0.0
        %5699 = vmatmul.mubr.f32.gmra.mxu0 %v5434
        %v5700 = vpop.f32.mrf.mxu0
        %v5701 = vadd.f32 %v5188, %v5700
        %v5702 = vpop.f32.mrf.mxu0
        %5703 = vmatprep.mubr.f32.mxu0 0.0
        %5704 = vmatmul.mubr.f32.gmra.mxu0 %v5436
        %v5705 = vpop.f32.mrf.mxu0
        %v5706 = vadd.f32 %v5193, %v5705
        %v5707 = vpop.f32.mrf.mxu0
        %5708 = vmatprep.mubr.f32.mxu0 0.0
        %5709 = vmatmul.mubr.f32.gmra.mxu0 %v5438
        %v5710 = vpop.f32.mrf.mxu0
        %v5711 = vadd.f32 %v5198, %v5710
        %v5712 = vpop.f32.mrf.mxu0
        %5713 = vmatprep.mubr.f32.mxu0 0.0
        %5714 = vmatmul.mubr.f32.gmra.mxu0 %v5440
        %v5715 = vpop.f32.mrf.mxu0
        %v5716 = vadd.f32 %v5203, %v5715
        %v5717 = vpop.f32.mrf.mxu0
        %5718 = vmatprep.mubr.f32.mxu0 0.0
        %5719 = vmatmul.mubr.f32.gmra.mxu0 %v5442
        %v5720 = vpop.f32.mrf.mxu0
        %v5721 = vadd.f32 %v5208, %v5720
        %v5722 = vpop.f32.mrf.mxu0
        %5723 = vmatprep.mubr.f32.mxu0 0.0
        %5724 = vmatmul.mubr.f32.gmra.mxu0 %v5444
        %v5725 = vpop.f32.mrf.mxu0
        %v5726 = vadd.f32 %v5213, %v5725
        %v5727 = vpop.f32.mrf.mxu0
        %5728 = vmatprep.mubr.f32.mxu0 0.0
        %5729 = vmatmul.mubr.f32.gmra.mxu0 %v5446
        %v5730 = vpop.f32.mrf.mxu0
        %v5731 = vadd.f32 %v5218, %v5730
        %v5732 = vpop.f32.mrf.mxu0
        %5733 = vmatprep.mubr.f32.mxu0 0.0
        %5734 = vmatmul.mubr.f32.gmra.mxu0 %v5448
        %v5735 = vpop.f32.mrf.mxu0
        %v5736 = vadd.f32 %v5223, %v5735
        %v5737 = vpop.f32.mrf.mxu0
        %5738 = vmatprep.mubr.f32.mxu0 0.0
        %5739 = vmatmul.mubr.f32.gmra.mxu0 %v5450
        %v5740 = vpop.f32.mrf.mxu0
        %v5741 = vadd.f32 %v5228, %v5740
        %v5742 = vpop.f32.mrf.mxu0
        %5743 = vmatprep.mubr.f32.mxu0 0.0
        %5744 = vmatmul.mubr.f32.gmra.mxu0 %v5452
        %v5745 = vpop.f32.mrf.mxu0
        %v5746 = vadd.f32 %v5233, %v5745
        %v5747 = vpop.f32.mrf.mxu0
        %5748 = vmatprep.mubr.f32.mxu0 0.0
        %5749 = vmatmul.mubr.f32.gmra.mxu0 %v5454
        %v5750 = vpop.f32.mrf.mxu0
        %v5751 = vadd.f32 %v5238, %v5750
        %v5752 = vpop.f32.mrf.mxu0
        %5753 = vmatprep.mubr.f32.mxu0 0.0
        %5754 = vmatmul.mubr.f32.gmra.mxu0 %v5456
        %v5755 = vpop.f32.mrf.mxu0
        %v5756 = vadd.f32 %v5243, %v5755
        %v5757 = vpop.f32.mrf.mxu0
        %5758 = vmatprep.mubr.f32.mxu0 0.0
        %5759 = vmatmul.mubr.f32.gmra.mxu0 %v5458
        %v5760 = vpop.f32.mrf.mxu0
        %v5761 = vadd.f32 %v5248, %v5760
        %v5762 = vpop.f32.mrf.mxu0
        %5763 = vmatprep.mubr.f32.mxu0 0.0
        %5764 = vmatmul.mubr.f32.gmra.mxu0 %v5460
        %v5765 = vpop.f32.mrf.mxu0
        %v5766 = vadd.f32 %v5253, %v5765
        %v5767 = vpop.f32.mrf.mxu0
        %5768 = vmatprep.mubr.f32.mxu0 0.0
        %5769 = vmatmul.mubr.f32.gmra.mxu0 %v5462
        %v5770 = vpop.f32.mrf.mxu0
        %v5771 = vadd.f32 %v5258, %v5770
        %v5772 = vpop.f32.mrf.mxu0
        %5773 = vmatprep.mubr.f32.mxu0 0.0
        %5774 = vmatmul.mubr.f32.gmra.mxu0 %v5464
        %v5775 = vpop.f32.mrf.mxu0
        %v5776 = vadd.f32 %v5263, %v5775
        %v5777 = vpop.f32.mrf.mxu0
        %5778 = vmatprep.mubr.f32.mxu0 0.0
        %5779 = vmatmul.mubr.f32.gmra.mxu0 %v5466
        %v5780 = vpop.f32.mrf.mxu0
        %v5781 = vadd.f32 %v5268, %v5780
        %v5782 = vpop.f32.mrf.mxu0
        %5783 = vmatprep.mubr.f32.mxu0 0.0
        %5784 = vmatmul.mubr.f32.gmra.mxu0 %v5468
        %v5785 = vpop.f32.mrf.mxu0
        %v5786 = vadd.f32 %v5273, %v5785
        %v5787 = vpop.f32.mrf.mxu0
        %5788 = vmatprep.mubr.f32.mxu0 0.0
        %5789 = vmatmul.mubr.f32.gmra.mxu0 %v5470
        %v5790 = vpop.f32.mrf.mxu0
        %v5791 = vadd.f32 %v5278, %v5790
        %v5792 = vpop.f32.mrf.mxu0
        %5793 = vmatprep.mubr.f32.mxu0 0.0
        %5794 = vmatmul.mubr.f32.gmra.mxu0 %v5472
        %v5795 = vpop.f32.mrf.mxu0
        %v5796 = vadd.f32 %v5283, %v5795
        %v5797 = vpop.f32.mrf.mxu0
        %5798 = vmatprep.mubr.f32.mxu0 0.0
        %5799 = vmatmul.mubr.f32.gmra.mxu0 %v5474
        %v5800 = vpop.f32.mrf.mxu0
        %v5801 = vadd.f32 %v5288, %v5800
        %v5802 = vpop.f32.mrf.mxu0
        %5803 = vmatprep.mubr.f32.mxu0 0.0
        %5804 = vmatmul.mubr.f32.gmra.mxu0 %v5476
        %v5805 = vpop.f32.mrf.mxu0
        %v5806 = vadd.f32 %v5293, %v5805
        %v5807 = vpop.f32.mrf.mxu0
        %5808 = vmatprep.mubr.f32.mxu0 0.0
        %5809 = vmatmul.mubr.f32.gmra.mxu0 %v5478
        %v5810 = vpop.f32.mrf.mxu0
        %v5811 = vadd.f32 %v5298, %v5810
        %v5812 = vpop.f32.mrf.mxu0
        %5813 = vmatprep.mubr.f32.mxu0 0.0
        %5814 = vmatmul.mubr.f32.gmra.mxu0 %v5480
        %v5815 = vpop.f32.mrf.mxu0
        %v5816 = vadd.f32 %v5303, %v5815
        %v5817 = vpop.f32.mrf.mxu0
        %5818 = vmatprep.mubr.f32.mxu0 0.0
        %5819 = vmatmul.mubr.f32.gmra.mxu0 %v5482
        %v5820 = vpop.f32.mrf.mxu0
        %v5821 = vadd.f32 %v5308, %v5820
        %v5822 = vpop.f32.mrf.mxu0
        %5823 = vmatprep.mubr.f32.mxu0 0.0
        %5824 = vmatmul.mubr.f32.gmra.mxu0 %v5484
        %v5825 = vpop.f32.mrf.mxu0
        %v5826 = vadd.f32 %v5313, %v5825
        %v5827 = vpop.f32.mrf.mxu0
        %5828 = vmatprep.mubr.f32.mxu0 0.0
        %5829 = vmatmul.mubr.f32.gmra.mxu0 %v5486
        %v5830 = vpop.f32.mrf.mxu0
        %v5831 = vadd.f32 %v5318, %v5830
        %v5832 = vpop.f32.mrf.mxu0
        %5833 = vmatprep.mubr.f32.mxu0 0.0
        %5834 = vmatmul.mubr.f32.gmra.mxu0 %v5488
        %v5835 = vpop.f32.mrf.mxu0
        %v5836 = vadd.f32 %v5323, %v5835
        %v5837 = vpop.f32.mrf.mxu0
        %5838 = vmatprep.mubr.f32.mxu0 0.0
        %5839 = vmatmul.mubr.f32.gmra.mxu0 %v5490
        %v5840 = vpop.f32.mrf.mxu0
        %v5841 = vadd.f32 %v5328, %v5840
        %v5842 = vpop.f32.mrf.mxu0
        %5843 = vmatprep.mubr.f32.mxu0 0.0
        %5844 = vmatmul.mubr.f32.gmra.mxu0 %v5492
        %v5845 = vpop.f32.mrf.mxu0
        %v5846 = vadd.f32 %v5333, %v5845
        %v5847 = vpop.f32.mrf.mxu0
        %5848 = vmatprep.mubr.f32.mxu0 0.0
        %5849 = vmatmul.mubr.f32.gmra.mxu0 %v5494
        %v5850 = vpop.f32.mrf.mxu0
        %v5851 = vadd.f32 %v5338, %v5850
        %v5852 = vpop.f32.mrf.mxu0
        %5853 = vmatprep.mubr.f32.mxu0 0.0
        %5854 = vmatmul.mubr.f32.gmra.mxu0 %v5496
        %v5855 = vpop.f32.mrf.mxu0
        %v5856 = vadd.f32 %v5343, %v5855
        %v5857 = vpop.f32.mrf.mxu0
        %5858 = vmatprep.mubr.f32.mxu0 0.0
        %5859 = vmatmul.mubr.f32.gmra.mxu0 %v5498
        %v5860 = vpop.f32.mrf.mxu0
        %v5861 = vadd.f32 %v5348, %v5860
        %v5862 = vpop.f32.mrf.mxu0
        %5863 = vmatprep.mubr.f32.mxu0 0.0
        %5864 = vmatmul.mubr.f32.gmra.mxu0 %v5500
        %v5865 = vpop.f32.mrf.mxu0
        %v5866 = vadd.f32 %v5353, %v5865
        %v5867 = vpop.f32.mrf.mxu0
        %5868 = vmatprep.mubr.f32.mxu0 0.0
        %5869 = vmatmul.mubr.f32.gmra.mxu0 %v5502
        %v5870 = vpop.f32.mrf.mxu0
        %v5871 = vadd.f32 %v5358, %v5870
        %v5872 = vpop.f32.mrf.mxu0
        %5873 = vmatprep.mubr.f32.mxu0 0.0
        %5874 = vmatmul.mubr.f32.gmra.mxu0 %v5504
        %v5875 = vpop.f32.mrf.mxu0
        %v5876 = vadd.f32 %v5363, %v5875
        %v5877 = vpop.f32.mrf.mxu0
        %5878 = vmatprep.mubr.f32.mxu0 0.0
        %5879 = vmatmul.mubr.f32.gmra.mxu0 %v5506
        %v5880 = vpop.f32.mrf.mxu0
        %v5881 = vadd.f32 %v5368, %v5880
        %v5882 = vpop.f32.mrf.mxu0
        %5883 = vmatprep.mubr.f32.mxu0 0.0
        %5884 = vmatmul.mubr.f32.gmra.mxu0 %v5508
        %v5885 = vpop.f32.mrf.mxu0
        %v5886 = vadd.f32 %v5373, %v5885
        %v5887 = vpop.f32.mrf.mxu0
        %5888 = vmatprep.mubr.f32.mxu0 0.0
        %5889 = vmatmul.mubr.f32.gmra.mxu0 %v5510
        %v5890 = vpop.f32.mrf.mxu0
        %v5891 = vadd.f32 %v5378, %v5890
        %v5892 = vpop.f32.mrf.mxu0
        %5893 = vmatprep.mubr.f32.mxu0 0.0
        %5894 = vmatmul.mubr.f32.gmra.mxu0 %v5512
        %v5895 = vpop.f32.mrf.mxu0
        %v5896 = vadd.f32 %v5383, %v5895
        %v5897 = vpop.f32.mrf.mxu0
        %5898 = vdwg.mxu0
        %v5899 = vrot.slane %v4565, 2
        %v5900 = vrot.slane %v4566, 2
        %v5901 = vsel %vm1522, %v5899, %v5900
        %v5902 = vrot.slane %v4567, 2
        %v5903 = vsel %vm1522, %v5900, %v5902
        %v5904 = vrot.slane %v4568, 2
        %v5905 = vsel %vm1522, %v5902, %v5904
        %v5906 = vrot.slane %v4569, 2
        %v5907 = vsel %vm1522, %v5904, %v5906
        %v5908 = vrot.slane %v4570, 2
        %v5909 = vrot.slane %v4571, 2
        %v5910 = vsel %vm1522, %v5908, %v5909
        %v5911 = vrot.slane %v4572, 2
        %v5912 = vsel %vm1522, %v5909, %v5911
        %v5913 = vrot.slane %v4573, 2
        %v5914 = vsel %vm1522, %v5911, %v5913
        %v5915 = vrot.slane %v4574, 2
        %v5916 = vsel %vm1522, %v5913, %v5915
        %v5917 = vrot.slane %v4575, 2
        %v5918 = vrot.slane %v4576, 2
        %v5919 = vsel %vm1522, %v5917, %v5918
        %v5920 = vrot.slane %v4577, 2
        %v5921 = vsel %vm1522, %v5918, %v5920
        %v5922 = vrot.slane %v4578, 2
        %v5923 = vsel %vm1522, %v5920, %v5922
        %v5924 = vrot.slane %v4579, 2
        %v5925 = vsel %vm1522, %v5922, %v5924
        %v5926 = vrot.slane %v4580, 2
        %v5927 = vrot.slane %v4581, 2
        %v5928 = vsel %vm1522, %v5926, %v5927
        %v5929 = vrot.slane %v4582, 2
        %v5930 = vsel %vm1522, %v5927, %v5929
        %v5931 = vrot.slane %v4583, 2
        %v5932 = vsel %vm1522, %v5929, %v5931
        %v5933 = vrot.slane %v4584, 2
        %v5934 = vsel %vm1522, %v5931, %v5933
        %v5935 = vrot.slane %v4585, 2
        %v5936 = vrot.slane %v4586, 2
        %v5937 = vsel %vm1522, %v5935, %v5936
        %v5938 = vrot.slane %v4587, 2
        %v5939 = vsel %vm1522, %v5936, %v5938
        %v5940 = vrot.slane %v4588, 2
        %v5941 = vsel %vm1522, %v5938, %v5940
        %v5942 = vrot.slane %v4589, 2
        %v5943 = vsel %vm1522, %v5940, %v5942
        %v5944 = vrot.slane %v4590, 2
        %v5945 = vrot.slane %v4591, 2
        %v5946 = vsel %vm1522, %v5944, %v5945
        %v5947 = vrot.slane %v4592, 2
        %v5948 = vsel %vm1522, %v5945, %v5947
        %v5949 = vrot.slane %v4593, 2
        %v5950 = vsel %vm1522, %v5947, %v5949
        %v5951 = vrot.slane %v4594, 2
        %v5952 = vsel %vm1522, %v5949, %v5951
        %v5953 = vrot.slane %v4595, 2
        %v5954 = vrot.slane %v4596, 2
        %v5955 = vsel %vm1522, %v5953, %v5954
        %v5956 = vrot.slane %v4597, 2
        %v5957 = vsel %vm1522, %v5954, %v5956
        %v5958 = vrot.slane %v4598, 2
        %v5959 = vsel %vm1522, %v5956, %v5958
        %v5960 = vrot.slane %v4599, 2
        %v5961 = vsel %vm1522, %v5958, %v5960
        %v5962 = vrot.slane %v4600, 2
        %v5963 = vrot.slane %v4601, 2
        %v5964 = vsel %vm1522, %v5962, %v5963
        %v5965 = vrot.slane %v4602, 2
        %v5966 = vsel %vm1522, %v5963, %v5965
        %v5967 = vrot.slane %v4603, 2
        %v5968 = vsel %vm1522, %v5965, %v5967
        %v5969 = vrot.slane %v4604, 2
        %v5970 = vsel %vm1522, %v5967, %v5969
        %v5971 = vrot.slane %v4605, 2
        %v5972 = vrot.slane %v4606, 2
        %v5973 = vsel %vm1522, %v5971, %v5972
        %v5974 = vrot.slane %v4607, 2
        %v5975 = vsel %vm1522, %v5972, %v5974
        %v5976 = vrot.slane %v4608, 2
        %v5977 = vsel %vm1522, %v5974, %v5976
        %v5978 = vrot.slane %v4609, 2
        %v5979 = vsel %vm1522, %v5976, %v5978
        %v5980 = vrot.slane %v4610, 2
        %v5981 = vrot.slane %v4611, 2
        %v5982 = vsel %vm1522, %v5980, %v5981
        %v5983 = vrot.slane %v4612, 2
        %v5984 = vsel %vm1522, %v5981, %v5983
        %v5985 = vrot.slane %v4613, 2
        %v5986 = vsel %vm1522, %v5983, %v5985
        %v5987 = vrot.slane %v4614, 2
        %v5988 = vsel %vm1522, %v5985, %v5987
        %v5989 = vrot.slane %v4615, 2
        %v5990 = vrot.slane %v4616, 2
        %v5991 = vsel %vm1522, %v5989, %v5990
        %v5992 = vrot.slane %v4617, 2
        %v5993 = vsel %vm1522, %v5990, %v5992
        %v5994 = vrot.slane %v4618, 2
        %v5995 = vsel %vm1522, %v5992, %v5994
        %v5996 = vrot.slane %v4619, 2
        %v5997 = vsel %vm1522, %v5994, %v5996
        %v5998 = vrot.slane %v4620, 2
        %v5999 = vrot.slane %v4621, 2
        %v6000 = vsel %vm1522, %v5998, %v5999
        %v6001 = vrot.slane %v4622, 2
        %v6002 = vsel %vm1522, %v5999, %v6001
        %v6003 = vrot.slane %v4623, 2
        %v6004 = vsel %vm1522, %v6001, %v6003
        %v6005 = vrot.slane %v4624, 2
        %v6006 = vsel %vm1522, %v6003, %v6005
        %v6007 = vrot.slane %v4625, 2
        %v6008 = vrot.slane %v4626, 2
        %v6009 = vsel %vm1522, %v6007, %v6008
        %v6010 = vrot.slane %v4627, 2
        %v6011 = vsel %vm1522, %v6008, %v6010
        %v6012 = vrot.slane %v4628, 2
        %v6013 = vsel %vm1522, %v6010, %v6012
        %v6014 = vrot.slane %v4629, 2
        %v6015 = vsel %vm1522, %v6012, %v6014
        %v6016 = vrot.slane %v4630, 2
        %v6017 = vrot.slane %v4631, 2
        %v6018 = vsel %vm1522, %v6016, %v6017
        %v6019 = vrot.slane %v4632, 2
        %v6020 = vsel %vm1522, %v6017, %v6019
        %v6021 = vrot.slane %v4633, 2
        %v6022 = vsel %vm1522, %v6019, %v6021
        %v6023 = vrot.slane %v4634, 2
        %v6024 = vsel %vm1522, %v6021, %v6023
        %v6025 = vrot.slane %v4635, 2
        %v6026 = vrot.slane %v4636, 2
        %v6027 = vsel %vm1522, %v6025, %v6026
        %v6028 = vrot.slane %v4637, 2
        %v6029 = vsel %vm1522, %v6026, %v6028
        %v6030 = vrot.slane %v4638, 2
        %v6031 = vsel %vm1522, %v6028, %v6030
        %v6032 = vrot.slane %v4639, 2
        %v6033 = vsel %vm1522, %v6030, %v6032
        %v6034 = vrot.slane %v4640, 2
        %v6035 = vrot.slane %v4641, 2
        %v6036 = vsel %vm1522, %v6034, %v6035
        %v6037 = vrot.slane %v4642, 2
        %v6038 = vsel %vm1522, %v6035, %v6037
        %v6039 = vrot.slane %v4643, 2
        %v6040 = vsel %vm1522, %v6037, %v6039
        %v6041 = vrot.slane %v4644, 2
        %v6042 = vsel %vm1522, %v6039, %v6041
        %s6043 = scalar_lea.vmem %s1, 64
        %v6044 = vld [vmem:[%s6043] sm:$0xff]
        %v6045 = vsel %vm495, %v5901, 0
        %v6047 = vsel %vm495, %v5903, 0
        %v6049 = vsel %vm495, %v5905, 0
        %v6051 = vsel %vm495, %v5907, 0
        %v6053 = vsel %vm495, %v5910, 0
        %v6055 = vsel %vm495, %v5912, 0
        %v6057 = vsel %vm495, %v5914, 0
        %v6059 = vsel %vm495, %v5916, 0
        %v6061 = vsel %vm495, %v5919, 0
        %v6063 = vsel %vm495, %v5921, 0
        %v6065 = vsel %vm495, %v5923, 0
        %v6067 = vsel %vm495, %v5925, 0
        %v6069 = vsel %vm495, %v5928, 0
        %v6071 = vsel %vm495, %v5930, 0
        %v6073 = vsel %vm495, %v5932, 0
        %v6075 = vsel %vm495, %v5934, 0
        %v6077 = vsel %vm495, %v5937, 0
        %v6079 = vsel %vm495, %v5939, 0
        %v6081 = vsel %vm495, %v5941, 0
        %v6083 = vsel %vm495, %v5943, 0
        %v6085 = vsel %vm495, %v5946, 0
        %v6087 = vsel %vm495, %v5948, 0
        %v6089 = vsel %vm495, %v5950, 0
        %v6091 = vsel %vm495, %v5952, 0
        %v6093 = vsel %vm495, %v5955, 0
        %v6095 = vsel %vm495, %v5957, 0
        %v6097 = vsel %vm495, %v5959, 0
        %v6099 = vsel %vm495, %v5961, 0
        %v6101 = vsel %vm495, %v5964, 0
        %v6103 = vsel %vm495, %v5966, 0
        %v6105 = vsel %vm495, %v5968, 0
        %v6107 = vsel %vm495, %v5970, 0
        %v6109 = vsel %vm495, %v5973, 0
        %v6111 = vsel %vm495, %v5975, 0
        %v6113 = vsel %vm495, %v5977, 0
        %v6115 = vsel %vm495, %v5979, 0
        %v6117 = vsel %vm495, %v5982, 0
        %v6119 = vsel %vm495, %v5984, 0
        %v6121 = vsel %vm495, %v5986, 0
        %v6123 = vsel %vm495, %v5988, 0
        %v6125 = vsel %vm495, %v5991, 0
        %v6127 = vsel %vm495, %v5993, 0
        %v6129 = vsel %vm495, %v5995, 0
        %v6131 = vsel %vm495, %v5997, 0
        %v6133 = vsel %vm495, %v6000, 0
        %v6135 = vsel %vm495, %v6002, 0
        %v6137 = vsel %vm495, %v6004, 0
        %v6139 = vsel %vm495, %v6006, 0
        %v6141 = vsel %vm495, %v6009, 0
        %v6143 = vsel %vm495, %v6011, 0
        %v6145 = vsel %vm495, %v6013, 0
        %v6147 = vsel %vm495, %v6015, 0
        %v6149 = vsel %vm495, %v6018, 0
        %v6151 = vsel %vm495, %v6020, 0
        %v6153 = vsel %vm495, %v6022, 0
        %v6155 = vsel %vm495, %v6024, 0
        %v6157 = vsel %vm495, %v6027, 0
        %v6159 = vsel %vm495, %v6029, 0
        %v6161 = vsel %vm495, %v6031, 0
        %v6163 = vsel %vm495, %v6033, 0
        %v6165 = vsel %vm495, %v6036, 0
        %v6167 = vsel %vm495, %v6038, 0
        %v6169 = vsel %vm495, %v6040, 0
        %v6171 = vsel %vm495, %v6042, 0
        %6173 = vmatprep.subr.mxu0 0.0
        %6174 = vmatpush1.msra.mxu0 0.0
        %6175 = vmatprep.subr.mxu0 0.0
        %6176 = vmatpush1.msra.mxu0 0.0
        %6177 = vmatprep.subr.mxu0 0.0
        %6178 = vmatpush1.msra.mxu0 0.0
        %6179 = vmatprep.subr.mxu0 0.0
        %6180 = vmatpush1.msra.mxu0 0.0
        %6181 = vmatprep.subr.mxu0 0.0
        %6182 = vmatpush1.msra.mxu0 0.0
        %6183 = vmatprep.subr.mxu0 0.0
        %6184 = vmatpush1.msra.mxu0 0.0
        %6185 = vmatprep.subr.mxu0 0.0
        %6186 = vmatpush1.msra.mxu0 0.0
        %6187 = vmatprep.subr.mxu0 0.0
        %6188 = vmatpush1.msra.mxu0 0.0
        %6189 = vmatprep.subr.mxu0 0.0
        %6190 = vmatpush1.msra.mxu0 0.0
        %6191 = vmatprep.subr.mxu0 0.0
        %6192 = vmatpush1.msra.mxu0 0.0
        %6193 = vmatprep.subr.mxu0 0.0
        %6194 = vmatpush1.msra.mxu0 0.0
        %6195 = vmatprep.subr.mxu0 0.0
        %6196 = vmatpush1.msra.mxu0 0.0
        %6197 = vmatprep.subr.mxu0 0.0
        %6198 = vmatpush1.msra.mxu0 0.0
        %6199 = vmatprep.subr.mxu0 0.0
        %6200 = vmatpush1.msra.mxu0 0.0
        %6201 = vmatprep.subr.mxu0 0.0
        %6202 = vmatpush1.msra.mxu0 0.0
        %6203 = vmatprep.subr.mxu0 0.0
        %6204 = vmatpush1.msra.mxu0 %v6044
        %6205 = vmatprep.subr.mxu0 0.0
        %6206 = vmatpush2.msra.mxu0 0.0
        %6207 = vmatprep.subr.mxu0 0.0
        %6208 = vmatpush2.msra.mxu0 0.0
        %6209 = vmatprep.subr.mxu0 0.0
        %6210 = vmatpush2.msra.mxu0 0.0
        %6211 = vmatprep.subr.mxu0 0.0
        %6212 = vmatpush2.msra.mxu0 0.0
        %6213 = vmatprep.subr.mxu0 0.0
        %6214 = vmatpush2.msra.mxu0 0.0
        %6215 = vmatprep.subr.mxu0 0.0
        %6216 = vmatpush2.msra.mxu0 0.0
        %6217 = vmatprep.subr.mxu0 0.0
        %6218 = vmatpush2.msra.mxu0 0.0
        %6219 = vmatprep.subr.mxu0 0.0
        %6220 = vmatpush2.msra.mxu0 0.0
        %6221 = vmatprep.subr.mxu0 0.0
        %6222 = vmatpush2.msra.mxu0 0.0
        %6223 = vmatprep.subr.mxu0 0.0
        %6224 = vmatpush2.msra.mxu0 0.0
        %6225 = vmatprep.subr.mxu0 0.0
        %6226 = vmatpush2.msra.mxu0 0.0
        %6227 = vmatprep.subr.mxu0 0.0
        %6228 = vmatpush2.msra.mxu0 0.0
        %6229 = vmatprep.subr.mxu0 0.0
        %6230 = vmatpush2.msra.mxu0 0.0
        %6231 = vmatprep.subr.mxu0 0.0
        %6232 = vmatpush2.msra.mxu0 0.0
        %6233 = vmatprep.subr.mxu0 0.0
        %6234 = vmatpush2.msra.mxu0 0.0
        %6235 = vmatprep.subr.mxu0 0.0
        %6236 = vmatpush2.msra.mxu0 0.0
        %6237 = vmatprep.mubr.f32.mxu0 0.0
        %6238 = vmatmul.mubr.f32.gmra.mxu0 %v6045
        %v6239 = vpop.f32.mrf.mxu0
        %v6240 = vadd.f32 0.0, %v6239
        %v6241 = vpop.f32.mrf.mxu0
        %6242 = vmatprep.mubr.f32.mxu0 0.0
        %6243 = vmatmul.mubr.f32.gmra.mxu0 %v6047
        %v6244 = vpop.f32.mrf.mxu0
        %v6245 = vadd.f32 0.0, %v6244
        %v6246 = vpop.f32.mrf.mxu0
        %6247 = vmatprep.mubr.f32.mxu0 0.0
        %6248 = vmatmul.mubr.f32.gmra.mxu0 %v6049
        %v6249 = vpop.f32.mrf.mxu0
        %v6250 = vadd.f32 0.0, %v6249
        %v6251 = vpop.f32.mrf.mxu0
        %6252 = vmatprep.mubr.f32.mxu0 0.0
        %6253 = vmatmul.mubr.f32.gmra.mxu0 %v6051
        %v6254 = vpop.f32.mrf.mxu0
        %v6255 = vadd.f32 0.0, %v6254
        %v6256 = vpop.f32.mrf.mxu0
        %6257 = vmatprep.mubr.f32.mxu0 0.0
        %6258 = vmatmul.mubr.f32.gmra.mxu0 %v6053
        %v6259 = vpop.f32.mrf.mxu0
        %v6260 = vadd.f32 0.0, %v6259
        %v6261 = vpop.f32.mrf.mxu0
        %6262 = vmatprep.mubr.f32.mxu0 0.0
        %6263 = vmatmul.mubr.f32.gmra.mxu0 %v6055
        %v6264 = vpop.f32.mrf.mxu0
        %v6265 = vadd.f32 0.0, %v6264
        %v6266 = vpop.f32.mrf.mxu0
        %6267 = vmatprep.mubr.f32.mxu0 0.0
        %6268 = vmatmul.mubr.f32.gmra.mxu0 %v6057
        %v6269 = vpop.f32.mrf.mxu0
        %v6270 = vadd.f32 0.0, %v6269
        %v6271 = vpop.f32.mrf.mxu0
        %6272 = vmatprep.mubr.f32.mxu0 0.0
        %6273 = vmatmul.mubr.f32.gmra.mxu0 %v6059
        %v6274 = vpop.f32.mrf.mxu0
        %v6275 = vadd.f32 0.0, %v6274
        %v6276 = vpop.f32.mrf.mxu0
        %6277 = vmatprep.mubr.f32.mxu0 0.0
        %6278 = vmatmul.mubr.f32.gmra.mxu0 %v6061
        %v6279 = vpop.f32.mrf.mxu0
        %v6280 = vadd.f32 0.0, %v6279
        %v6281 = vpop.f32.mrf.mxu0
        %6282 = vmatprep.mubr.f32.mxu0 0.0
        %6283 = vmatmul.mubr.f32.gmra.mxu0 %v6063
        %v6284 = vpop.f32.mrf.mxu0
        %v6285 = vadd.f32 0.0, %v6284
        %v6286 = vpop.f32.mrf.mxu0
        %6287 = vmatprep.mubr.f32.mxu0 0.0
        %6288 = vmatmul.mubr.f32.gmra.mxu0 %v6065
        %v6289 = vpop.f32.mrf.mxu0
        %v6290 = vadd.f32 0.0, %v6289
        %v6291 = vpop.f32.mrf.mxu0
        %6292 = vmatprep.mubr.f32.mxu0 0.0
        %6293 = vmatmul.mubr.f32.gmra.mxu0 %v6067
        %v6294 = vpop.f32.mrf.mxu0
        %v6295 = vadd.f32 0.0, %v6294
        %v6296 = vpop.f32.mrf.mxu0
        %6297 = vmatprep.mubr.f32.mxu0 0.0
        %6298 = vmatmul.mubr.f32.gmra.mxu0 %v6069
        %v6299 = vpop.f32.mrf.mxu0
        %v6300 = vadd.f32 0.0, %v6299
        %v6301 = vpop.f32.mrf.mxu0
        %6302 = vmatprep.mubr.f32.mxu0 0.0
        %6303 = vmatmul.mubr.f32.gmra.mxu0 %v6071
        %v6304 = vpop.f32.mrf.mxu0
        %v6305 = vadd.f32 0.0, %v6304
        %v6306 = vpop.f32.mrf.mxu0
        %6307 = vmatprep.mubr.f32.mxu0 0.0
        %6308 = vmatmul.mubr.f32.gmra.mxu0 %v6073
        %v6309 = vpop.f32.mrf.mxu0
        %v6310 = vadd.f32 0.0, %v6309
        %v6311 = vpop.f32.mrf.mxu0
        %6312 = vmatprep.mubr.f32.mxu0 0.0
        %6313 = vmatmul.mubr.f32.gmra.mxu0 %v6075
        %v6314 = vpop.f32.mrf.mxu0
        %v6315 = vadd.f32 0.0, %v6314
        %v6316 = vpop.f32.mrf.mxu0
        %6317 = vmatprep.mubr.f32.mxu0 0.0
        %6318 = vmatmul.mubr.f32.gmra.mxu0 %v6077
        %v6319 = vpop.f32.mrf.mxu0
        %v6320 = vadd.f32 0.0, %v6319
        %v6321 = vpop.f32.mrf.mxu0
        %6322 = vmatprep.mubr.f32.mxu0 0.0
        %6323 = vmatmul.mubr.f32.gmra.mxu0 %v6079
        %v6324 = vpop.f32.mrf.mxu0
        %v6325 = vadd.f32 0.0, %v6324
        %v6326 = vpop.f32.mrf.mxu0
        %6327 = vmatprep.mubr.f32.mxu0 0.0
        %6328 = vmatmul.mubr.f32.gmra.mxu0 %v6081
        %v6329 = vpop.f32.mrf.mxu0
        %v6330 = vadd.f32 0.0, %v6329
        %v6331 = vpop.f32.mrf.mxu0
        %6332 = vmatprep.mubr.f32.mxu0 0.0
        %6333 = vmatmul.mubr.f32.gmra.mxu0 %v6083
        %v6334 = vpop.f32.mrf.mxu0
        %v6335 = vadd.f32 0.0, %v6334
        %v6336 = vpop.f32.mrf.mxu0
        %6337 = vmatprep.mubr.f32.mxu0 0.0
        %6338 = vmatmul.mubr.f32.gmra.mxu0 %v6085
        %v6339 = vpop.f32.mrf.mxu0
        %v6340 = vadd.f32 0.0, %v6339
        %v6341 = vpop.f32.mrf.mxu0
        %6342 = vmatprep.mubr.f32.mxu0 0.0
        %6343 = vmatmul.mubr.f32.gmra.mxu0 %v6087
        %v6344 = vpop.f32.mrf.mxu0
        %v6345 = vadd.f32 0.0, %v6344
        %v6346 = vpop.f32.mrf.mxu0
        %6347 = vmatprep.mubr.f32.mxu0 0.0
        %6348 = vmatmul.mubr.f32.gmra.mxu0 %v6089
        %v6349 = vpop.f32.mrf.mxu0
        %v6350 = vadd.f32 0.0, %v6349
        %v6351 = vpop.f32.mrf.mxu0
        %6352 = vmatprep.mubr.f32.mxu0 0.0
        %6353 = vmatmul.mubr.f32.gmra.mxu0 %v6091
        %v6354 = vpop.f32.mrf.mxu0
        %v6355 = vadd.f32 0.0, %v6354
        %v6356 = vpop.f32.mrf.mxu0
        %6357 = vmatprep.mubr.f32.mxu0 0.0
        %6358 = vmatmul.mubr.f32.gmra.mxu0 %v6093
        %v6359 = vpop.f32.mrf.mxu0
        %v6360 = vadd.f32 0.0, %v6359
        %v6361 = vpop.f32.mrf.mxu0
        %6362 = vmatprep.mubr.f32.mxu0 0.0
        %6363 = vmatmul.mubr.f32.gmra.mxu0 %v6095
        %v6364 = vpop.f32.mrf.mxu0
        %v6365 = vadd.f32 0.0, %v6364
        %v6366 = vpop.f32.mrf.mxu0
        %6367 = vmatprep.mubr.f32.mxu0 0.0
        %6368 = vmatmul.mubr.f32.gmra.mxu0 %v6097
        %v6369 = vpop.f32.mrf.mxu0
        %v6370 = vadd.f32 0.0, %v6369
        %v6371 = vpop.f32.mrf.mxu0
        %6372 = vmatprep.mubr.f32.mxu0 0.0
        %6373 = vmatmul.mubr.f32.gmra.mxu0 %v6099
        %v6374 = vpop.f32.mrf.mxu0
        %v6375 = vadd.f32 0.0, %v6374
        %v6376 = vpop.f32.mrf.mxu0
        %6377 = vmatprep.mubr.f32.mxu0 0.0
        %6378 = vmatmul.mubr.f32.gmra.mxu0 %v6101
        %v6379 = vpop.f32.mrf.mxu0
        %v6380 = vadd.f32 0.0, %v6379
        %v6381 = vpop.f32.mrf.mxu0
        %6382 = vmatprep.mubr.f32.mxu0 0.0
        %6383 = vmatmul.mubr.f32.gmra.mxu0 %v6103
        %v6384 = vpop.f32.mrf.mxu0
        %v6385 = vadd.f32 0.0, %v6384
        %v6386 = vpop.f32.mrf.mxu0
        %6387 = vmatprep.mubr.f32.mxu0 0.0
        %6388 = vmatmul.mubr.f32.gmra.mxu0 %v6105
        %v6389 = vpop.f32.mrf.mxu0
        %v6390 = vadd.f32 0.0, %v6389
        %v6391 = vpop.f32.mrf.mxu0
        %6392 = vmatprep.mubr.f32.mxu0 0.0
        %6393 = vmatmul.mubr.f32.gmra.mxu0 %v6107
        %v6394 = vpop.f32.mrf.mxu0
        %v6395 = vadd.f32 0.0, %v6394
        %v6396 = vpop.f32.mrf.mxu0
        %6397 = vmatprep.mubr.f32.mxu0 0.0
        %6398 = vmatmul.mubr.f32.gmra.mxu0 %v6109
        %v6399 = vpop.f32.mrf.mxu0
        %v6400 = vadd.f32 0.0, %v6399
        %v6401 = vpop.f32.mrf.mxu0
        %6402 = vmatprep.mubr.f32.mxu0 0.0
        %6403 = vmatmul.mubr.f32.gmra.mxu0 %v6111
        %v6404 = vpop.f32.mrf.mxu0
        %v6405 = vadd.f32 0.0, %v6404
        %v6406 = vpop.f32.mrf.mxu0
        %6407 = vmatprep.mubr.f32.mxu0 0.0
        %6408 = vmatmul.mubr.f32.gmra.mxu0 %v6113
        %v6409 = vpop.f32.mrf.mxu0
        %v6410 = vadd.f32 0.0, %v6409
        %v6411 = vpop.f32.mrf.mxu0
        %6412 = vmatprep.mubr.f32.mxu0 0.0
        %6413 = vmatmul.mubr.f32.gmra.mxu0 %v6115
        %v6414 = vpop.f32.mrf.mxu0
        %v6415 = vadd.f32 0.0, %v6414
        %v6416 = vpop.f32.mrf.mxu0
        %6417 = vmatprep.mubr.f32.mxu0 0.0
        %6418 = vmatmul.mubr.f32.gmra.mxu0 %v6117
        %v6419 = vpop.f32.mrf.mxu0
        %v6420 = vadd.f32 0.0, %v6419
        %v6421 = vpop.f32.mrf.mxu0
        %6422 = vmatprep.mubr.f32.mxu0 0.0
        %6423 = vmatmul.mubr.f32.gmra.mxu0 %v6119
        %v6424 = vpop.f32.mrf.mxu0
        %v6425 = vadd.f32 0.0, %v6424
        %v6426 = vpop.f32.mrf.mxu0
        %6427 = vmatprep.mubr.f32.mxu0 0.0
        %6428 = vmatmul.mubr.f32.gmra.mxu0 %v6121
        %v6429 = vpop.f32.mrf.mxu0
        %v6430 = vadd.f32 0.0, %v6429
        %v6431 = vpop.f32.mrf.mxu0
        %6432 = vmatprep.mubr.f32.mxu0 0.0
        %6433 = vmatmul.mubr.f32.gmra.mxu0 %v6123
        %v6434 = vpop.f32.mrf.mxu0
        %v6435 = vadd.f32 0.0, %v6434
        %v6436 = vpop.f32.mrf.mxu0
        %6437 = vmatprep.mubr.f32.mxu0 0.0
        %6438 = vmatmul.mubr.f32.gmra.mxu0 %v6125
        %v6439 = vpop.f32.mrf.mxu0
        %v6440 = vadd.f32 0.0, %v6439
        %v6441 = vpop.f32.mrf.mxu0
        %6442 = vmatprep.mubr.f32.mxu0 0.0
        %6443 = vmatmul.mubr.f32.gmra.mxu0 %v6127
        %v6444 = vpop.f32.mrf.mxu0
        %v6445 = vadd.f32 0.0, %v6444
        %v6446 = vpop.f32.mrf.mxu0
        %6447 = vmatprep.mubr.f32.mxu0 0.0
        %6448 = vmatmul.mubr.f32.gmra.mxu0 %v6129
        %v6449 = vpop.f32.mrf.mxu0
        %v6450 = vadd.f32 0.0, %v6449
        %v6451 = vpop.f32.mrf.mxu0
        %6452 = vmatprep.mubr.f32.mxu0 0.0
        %6453 = vmatmul.mubr.f32.gmra.mxu0 %v6131
        %v6454 = vpop.f32.mrf.mxu0
        %v6455 = vadd.f32 0.0, %v6454
        %v6456 = vpop.f32.mrf.mxu0
        %6457 = vmatprep.mubr.f32.mxu0 0.0
        %6458 = vmatmul.mubr.f32.gmra.mxu0 %v6133
        %v6459 = vpop.f32.mrf.mxu0
        %v6460 = vadd.f32 0.0, %v6459
        %v6461 = vpop.f32.mrf.mxu0
        %6462 = vmatprep.mubr.f32.mxu0 0.0
        %6463 = vmatmul.mubr.f32.gmra.mxu0 %v6135
        %v6464 = vpop.f32.mrf.mxu0
        %v6465 = vadd.f32 0.0, %v6464
        %v6466 = vpop.f32.mrf.mxu0
        %6467 = vmatprep.mubr.f32.mxu0 0.0
        %6468 = vmatmul.mubr.f32.gmra.mxu0 %v6137
        %v6469 = vpop.f32.mrf.mxu0
        %v6470 = vadd.f32 0.0, %v6469
        %v6471 = vpop.f32.mrf.mxu0
        %6472 = vmatprep.mubr.f32.mxu0 0.0
        %6473 = vmatmul.mubr.f32.gmra.mxu0 %v6139
        %v6474 = vpop.f32.mrf.mxu0
        %v6475 = vadd.f32 0.0, %v6474
        %v6476 = vpop.f32.mrf.mxu0
        %6477 = vmatprep.mubr.f32.mxu0 0.0
        %6478 = vmatmul.mubr.f32.gmra.mxu0 %v6141
        %v6479 = vpop.f32.mrf.mxu0
        %v6480 = vadd.f32 0.0, %v6479
        %v6481 = vpop.f32.mrf.mxu0
        %6482 = vmatprep.mubr.f32.mxu0 0.0
        %6483 = vmatmul.mubr.f32.gmra.mxu0 %v6143
        %v6484 = vpop.f32.mrf.mxu0
        %v6485 = vadd.f32 0.0, %v6484
        %v6486 = vpop.f32.mrf.mxu0
        %6487 = vmatprep.mubr.f32.mxu0 0.0
        %6488 = vmatmul.mubr.f32.gmra.mxu0 %v6145
        %v6489 = vpop.f32.mrf.mxu0
        %v6490 = vadd.f32 0.0, %v6489
        %v6491 = vpop.f32.mrf.mxu0
        %6492 = vmatprep.mubr.f32.mxu0 0.0
        %6493 = vmatmul.mubr.f32.gmra.mxu0 %v6147
        %v6494 = vpop.f32.mrf.mxu0
        %v6495 = vadd.f32 0.0, %v6494
        %v6496 = vpop.f32.mrf.mxu0
        %6497 = vmatprep.mubr.f32.mxu0 0.0
        %6498 = vmatmul.mubr.f32.gmra.mxu0 %v6149
        %v6499 = vpop.f32.mrf.mxu0
        %v6500 = vadd.f32 0.0, %v6499
        %v6501 = vpop.f32.mrf.mxu0
        %6502 = vmatprep.mubr.f32.mxu0 0.0
        %6503 = vmatmul.mubr.f32.gmra.mxu0 %v6151
        %v6504 = vpop.f32.mrf.mxu0
        %v6505 = vadd.f32 0.0, %v6504
        %v6506 = vpop.f32.mrf.mxu0
        %6507 = vmatprep.mubr.f32.mxu0 0.0
        %6508 = vmatmul.mubr.f32.gmra.mxu0 %v6153
        %v6509 = vpop.f32.mrf.mxu0
        %v6510 = vadd.f32 0.0, %v6509
        %v6511 = vpop.f32.mrf.mxu0
        %6512 = vmatprep.mubr.f32.mxu0 0.0
        %6513 = vmatmul.mubr.f32.gmra.mxu0 %v6155
        %v6514 = vpop.f32.mrf.mxu0
        %v6515 = vadd.f32 0.0, %v6514
        %v6516 = vpop.f32.mrf.mxu0
        %6517 = vmatprep.mubr.f32.mxu0 0.0
        %6518 = vmatmul.mubr.f32.gmra.mxu0 %v6157
        %v6519 = vpop.f32.mrf.mxu0
        %v6520 = vadd.f32 0.0, %v6519
        %v6521 = vpop.f32.mrf.mxu0
        %6522 = vmatprep.mubr.f32.mxu0 0.0
        %6523 = vmatmul.mubr.f32.gmra.mxu0 %v6159
        %v6524 = vpop.f32.mrf.mxu0
        %v6525 = vadd.f32 0.0, %v6524
        %v6526 = vpop.f32.mrf.mxu0
        %6527 = vmatprep.mubr.f32.mxu0 0.0
        %6528 = vmatmul.mubr.f32.gmra.mxu0 %v6161
        %v6529 = vpop.f32.mrf.mxu0
        %v6530 = vadd.f32 0.0, %v6529
        %v6531 = vpop.f32.mrf.mxu0
        %6532 = vmatprep.mubr.f32.mxu0 0.0
        %6533 = vmatmul.mubr.f32.gmra.mxu0 %v6163
        %v6534 = vpop.f32.mrf.mxu0
        %v6535 = vadd.f32 0.0, %v6534
        %v6536 = vpop.f32.mrf.mxu0
        %6537 = vmatprep.mubr.f32.mxu0 0.0
        %6538 = vmatmul.mubr.f32.gmra.mxu0 %v6165
        %v6539 = vpop.f32.mrf.mxu0
        %v6540 = vadd.f32 0.0, %v6539
        %v6541 = vpop.f32.mrf.mxu0
        %6542 = vmatprep.mubr.f32.mxu0 0.0
        %6543 = vmatmul.mubr.f32.gmra.mxu0 %v6167
        %v6544 = vpop.f32.mrf.mxu0
        %v6545 = vadd.f32 0.0, %v6544
        %v6546 = vpop.f32.mrf.mxu0
        %6547 = vmatprep.mubr.f32.mxu0 0.0
        %6548 = vmatmul.mubr.f32.gmra.mxu0 %v6169
        %v6549 = vpop.f32.mrf.mxu0
        %v6550 = vadd.f32 0.0, %v6549
        %v6551 = vpop.f32.mrf.mxu0
        %6552 = vmatprep.mubr.f32.mxu0 0.0
        %6553 = vmatmul.mubr.f32.gmra.mxu0 %v6171
        %v6554 = vpop.f32.mrf.mxu0
        %v6555 = vadd.f32 0.0, %v6554
        %v6556 = vpop.f32.mrf.mxu0
        %6557 = vdwg.mxu0
        %v6558 = vadd.f32 %v5581, %v6240
        %v6559 = vadd.f32 %v5586, %v6245
        %v6560 = vadd.f32 %v5591, %v6250
        %v6561 = vadd.f32 %v5596, %v6255
        %v6562 = vadd.f32 %v5601, %v6260
        %v6563 = vadd.f32 %v5606, %v6265
        %v6564 = vadd.f32 %v5611, %v6270
        %v6565 = vadd.f32 %v5616, %v6275
        %v6566 = vadd.f32 %v5621, %v6280
        %v6567 = vadd.f32 %v5626, %v6285
        %v6568 = vadd.f32 %v5631, %v6290
        %v6569 = vadd.f32 %v5636, %v6295
        %v6570 = vadd.f32 %v5641, %v6300
        %v6571 = vadd.f32 %v5646, %v6305
        %v6572 = vadd.f32 %v5651, %v6310
        %v6573 = vadd.f32 %v5656, %v6315
        %v6574 = vadd.f32 %v5661, %v6320
        %v6575 = vadd.f32 %v5666, %v6325
        %v6576 = vadd.f32 %v5671, %v6330
        %v6577 = vadd.f32 %v5676, %v6335
        %v6578 = vadd.f32 %v5681, %v6340
        %v6579 = vadd.f32 %v5686, %v6345
        %v6580 = vadd.f32 %v5691, %v6350
        %v6581 = vadd.f32 %v5696, %v6355
        %v6582 = vadd.f32 %v5701, %v6360
        %v6583 = vadd.f32 %v5706, %v6365
        %v6584 = vadd.f32 %v5711, %v6370
        %v6585 = vadd.f32 %v5716, %v6375
        %v6586 = vadd.f32 %v5721, %v6380
        %v6587 = vadd.f32 %v5726, %v6385
        %v6588 = vadd.f32 %v5731, %v6390
        %v6589 = vadd.f32 %v5736, %v6395
        %v6590 = vadd.f32 %v5741, %v6400
        %v6591 = vadd.f32 %v5746, %v6405
        %v6592 = vadd.f32 %v5751, %v6410
        %v6593 = vadd.f32 %v5756, %v6415
        %v6594 = vadd.f32 %v5761, %v6420
        %v6595 = vadd.f32 %v5766, %v6425
        %v6596 = vadd.f32 %v5771, %v6430
        %v6597 = vadd.f32 %v5776, %v6435
        %v6598 = vadd.f32 %v5781, %v6440
        %v6599 = vadd.f32 %v5786, %v6445
        %v6600 = vadd.f32 %v5791, %v6450
        %v6601 = vadd.f32 %v5796, %v6455
        %v6602 = vadd.f32 %v5801, %v6460
        %v6603 = vadd.f32 %v5806, %v6465
        %v6604 = vadd.f32 %v5811, %v6470
        %v6605 = vadd.f32 %v5816, %v6475
        %v6606 = vadd.f32 %v5821, %v6480
        %v6607 = vadd.f32 %v5826, %v6485
        %v6608 = vadd.f32 %v5831, %v6490
        %v6609 = vadd.f32 %v5836, %v6495
        %v6610 = vadd.f32 %v5841, %v6500
        %v6611 = vadd.f32 %v5846, %v6505
        %v6612 = vadd.f32 %v5851, %v6510
        %v6613 = vadd.f32 %v5856, %v6515
        %v6614 = vadd.f32 %v5861, %v6520
        %v6615 = vadd.f32 %v5866, %v6525
        %v6616 = vadd.f32 %v5871, %v6530
        %v6617 = vadd.f32 %v5876, %v6535
        %v6618 = vadd.f32 %v5881, %v6540
        %v6619 = vadd.f32 %v5886, %v6545
        %v6620 = vadd.f32 %v5891, %v6550
        %v6621 = vadd.f32 %v5896, %v6555
        %v6622 = vld [vmem:[#allocation2] sm:$0xff]
        %v6623 = vld [vmem:[#allocation2 + $0x8] sm:$0xff]
        %v6624 = vld [vmem:[#allocation2 + $0x10] sm:$0xff]
        %v6625 = vld [vmem:[#allocation2 + $0x18] sm:$0xff]
        %v6626 = vld [vmem:[#allocation2 + $0x20] sm:$0xff]
        %v6627 = vld [vmem:[#allocation2 + $0x28] sm:$0xff]
        %v6628 = vld [vmem:[#allocation2 + $0x30] sm:$0xff]
        %v6629 = vld [vmem:[#allocation2 + $0x38] sm:$0xff]
        %v6630 = vld [vmem:[#allocation2 + $0x40] sm:$0xff]
        %v6631 = vld [vmem:[#allocation2 + $0x48] sm:$0xff]
        %v6632 = vld [vmem:[#allocation2 + $0x50] sm:$0xff]
        %v6633 = vld [vmem:[#allocation2 + $0x58] sm:$0xff]
        %v6634 = vld [vmem:[#allocation2 + $0x60] sm:$0xff]
        %v6635 = vld [vmem:[#allocation2 + $0x68] sm:$0xff]
        %v6636 = vld [vmem:[#allocation2 + $0x70] sm:$0xff]
        %v6637 = vld [vmem:[#allocation2 + $0x78] sm:$0xff]
        %v6638 = vld [vmem:[#allocation2 + $0x80] sm:$0xff]
        %v6639 = vld [vmem:[#allocation2 + $0x88] sm:$0xff]
        %v6640 = vld [vmem:[#allocation2 + $0x90] sm:$0xff]
        %v6641 = vld [vmem:[#allocation2 + $0x98] sm:$0xff]
        %v6642 = vld [vmem:[#allocation2 + $0xa0] sm:$0xff]
        %v6643 = vld [vmem:[#allocation2 + $0xa8] sm:$0xff]
        %v6644 = vld [vmem:[#allocation2 + $0xb0] sm:$0xff]
        %v6645 = vld [vmem:[#allocation2 + $0xb8] sm:$0xff]
        %v6646 = vld [vmem:[#allocation2 + $0xc0] sm:$0xff]
        %v6647 = vld [vmem:[#allocation2 + $0xc8] sm:$0xff]
        %v6648 = vld [vmem:[#allocation2 + $0xd0] sm:$0xff]
        %v6649 = vld [vmem:[#allocation2 + $0xd8] sm:$0xff]
        %v6650 = vld [vmem:[#allocation2 + $0xe0] sm:$0xff]
        %v6651 = vld [vmem:[#allocation2 + $0xe8] sm:$0xff]
        %v6652 = vld [vmem:[#allocation2 + $0xf0] sm:$0xff]
        %v6653 = vld [vmem:[#allocation2 + $0xf8] sm:$0xff]
        %v6654 = vld [vmem:[#allocation2 + $0x100] sm:$0xff]
        %v6655 = vld [vmem:[#allocation2 + $0x108] sm:$0xff]
        %v6656 = vld [vmem:[#allocation2 + $0x110] sm:$0xff]
        %v6657 = vld [vmem:[#allocation2 + $0x118] sm:$0xff]
        %v6658 = vld [vmem:[#allocation2 + $0x120] sm:$0xff]
        %v6659 = vld [vmem:[#allocation2 + $0x128] sm:$0xff]
        %v6660 = vld [vmem:[#allocation2 + $0x130] sm:$0xff]
        %v6661 = vld [vmem:[#allocation2 + $0x138] sm:$0xff]
        %v6662 = vld [vmem:[#allocation2 + $0x140] sm:$0xff]
        %v6663 = vld [vmem:[#allocation2 + $0x148] sm:$0xff]
        %v6664 = vld [vmem:[#allocation2 + $0x150] sm:$0xff]
        %v6665 = vld [vmem:[#allocation2 + $0x158] sm:$0xff]
        %v6666 = vld [vmem:[#allocation2 + $0x160] sm:$0xff]
        %v6667 = vld [vmem:[#allocation2 + $0x168] sm:$0xff]
        %v6668 = vld [vmem:[#allocation2 + $0x170] sm:$0xff]
        %v6669 = vld [vmem:[#allocation2 + $0x178] sm:$0xff]
        %v6670 = vld [vmem:[#allocation2 + $0x180] sm:$0xff]
        %v6671 = vld [vmem:[#allocation2 + $0x188] sm:$0xff]
        %v6672 = vld [vmem:[#allocation2 + $0x190] sm:$0xff]
        %v6673 = vld [vmem:[#allocation2 + $0x198] sm:$0xff]
        %v6674 = vld [vmem:[#allocation2 + $0x1a0] sm:$0xff]
        %v6675 = vld [vmem:[#allocation2 + $0x1a8] sm:$0xff]
        %v6676 = vld [vmem:[#allocation2 + $0x1b0] sm:$0xff]
        %v6677 = vld [vmem:[#allocation2 + $0x1b8] sm:$0xff]
        %v6678 = vld [vmem:[#allocation2 + $0x1c0] sm:$0xff]
        %v6679 = vld [vmem:[#allocation2 + $0x1c8] sm:$0xff]
        %v6680 = vld [vmem:[#allocation2 + $0x1d0] sm:$0xff]
        %v6681 = vld [vmem:[#allocation2 + $0x1d8] sm:$0xff]
        %v6682 = vld [vmem:[#allocation2 + $0x1e0] sm:$0xff]
        %v6683 = vld [vmem:[#allocation2 + $0x1e8] sm:$0xff]
        %v6684 = vld [vmem:[#allocation2 + $0x1f0] sm:$0xff]
        %v6685 = vld [vmem:[#allocation2 + $0x1f8] sm:$0xff]
        %v6686 = vadd.f32 %v6622, %v6558
        %v6687 = vadd.f32 %v6623, %v6559
        %v6688 = vadd.f32 %v6624, %v6560
        %v6689 = vadd.f32 %v6625, %v6561
        %v6690 = vadd.f32 %v6626, %v6562
        %v6691 = vadd.f32 %v6627, %v6563
        %v6692 = vadd.f32 %v6628, %v6564
        %v6693 = vadd.f32 %v6629, %v6565
        %v6694 = vadd.f32 %v6630, %v6566
        %v6695 = vadd.f32 %v6631, %v6567
        %v6696 = vadd.f32 %v6632, %v6568
        %v6697 = vadd.f32 %v6633, %v6569
        %v6698 = vadd.f32 %v6634, %v6570
        %v6699 = vadd.f32 %v6635, %v6571
        %v6700 = vadd.f32 %v6636, %v6572
        %v6701 = vadd.f32 %v6637, %v6573
        %v6702 = vadd.f32 %v6638, %v6574
        %v6703 = vadd.f32 %v6639, %v6575
        %v6704 = vadd.f32 %v6640, %v6576
        %v6705 = vadd.f32 %v6641, %v6577
        %v6706 = vadd.f32 %v6642, %v6578
        %v6707 = vadd.f32 %v6643, %v6579
        %v6708 = vadd.f32 %v6644, %v6580
        %v6709 = vadd.f32 %v6645, %v6581
        %v6710 = vadd.f32 %v6646, %v6582
        %v6711 = vadd.f32 %v6647, %v6583
        %v6712 = vadd.f32 %v6648, %v6584
        %v6713 = vadd.f32 %v6649, %v6585
        %v6714 = vadd.f32 %v6650, %v6586
        %v6715 = vadd.f32 %v6651, %v6587
        %v6716 = vadd.f32 %v6652, %v6588
        %v6717 = vadd.f32 %v6653, %v6589
        %v6718 = vadd.f32 %v6654, %v6590
        %v6719 = vadd.f32 %v6655, %v6591
        %v6720 = vadd.f32 %v6656, %v6592
        %v6721 = vadd.f32 %v6657, %v6593
        %v6722 = vadd.f32 %v6658, %v6594
        %v6723 = vadd.f32 %v6659, %v6595
        %v6724 = vadd.f32 %v6660, %v6596
        %v6725 = vadd.f32 %v6661, %v6597
        %v6726 = vadd.f32 %v6662, %v6598
        %v6727 = vadd.f32 %v6663, %v6599
        %v6728 = vadd.f32 %v6664, %v6600
        %v6729 = vadd.f32 %v6665, %v6601
        %v6730 = vadd.f32 %v6666, %v6602
        %v6731 = vadd.f32 %v6667, %v6603
        %v6732 = vadd.f32 %v6668, %v6604
        %v6733 = vadd.f32 %v6669, %v6605
        %v6734 = vadd.f32 %v6670, %v6606
        %v6735 = vadd.f32 %v6671, %v6607
        %v6736 = vadd.f32 %v6672, %v6608
        %v6737 = vadd.f32 %v6673, %v6609
        %v6738 = vadd.f32 %v6674, %v6610
        %v6739 = vadd.f32 %v6675, %v6611
        %v6740 = vadd.f32 %v6676, %v6612
        %v6741 = vadd.f32 %v6677, %v6613
        %v6742 = vadd.f32 %v6678, %v6614
        %v6743 = vadd.f32 %v6679, %v6615
        %v6744 = vadd.f32 %v6680, %v6616
        %v6745 = vadd.f32 %v6681, %v6617
        %v6746 = vadd.f32 %v6682, %v6618
        %v6747 = vadd.f32 %v6683, %v6619
        %v6748 = vadd.f32 %v6684, %v6620
        %v6749 = vadd.f32 %v6685, %v6621
        %6750 = vst [vmem:[#allocation2] sm:$0xff] %v6686
        %6751 = vst [vmem:[#allocation2 + $0x8] sm:$0xff] %v6687
        %6752 = vst [vmem:[#allocation2 + $0x10] sm:$0xff] %v6688
        %6753 = vst [vmem:[#allocation2 + $0x18] sm:$0xff] %v6689
        %6754 = vst [vmem:[#allocation2 + $0x20] sm:$0xff] %v6690
        %6755 = vst [vmem:[#allocation2 + $0x28] sm:$0xff] %v6691
        %6756 = vst [vmem:[#allocation2 + $0x30] sm:$0xff] %v6692
        %6757 = vst [vmem:[#allocation2 + $0x38] sm:$0xff] %v6693
        %6758 = vst [vmem:[#allocation2 + $0x40] sm:$0xff] %v6694
        %6759 = vst [vmem:[#allocation2 + $0x48] sm:$0xff] %v6695
        %6760 = vst [vmem:[#allocation2 + $0x50] sm:$0xff] %v6696
        %6761 = vst [vmem:[#allocation2 + $0x58] sm:$0xff] %v6697
        %6762 = vst [vmem:[#allocation2 + $0x60] sm:$0xff] %v6698
        %6763 = vst [vmem:[#allocation2 + $0x68] sm:$0xff] %v6699
        %6764 = vst [vmem:[#allocation2 + $0x70] sm:$0xff] %v6700
        %6765 = vst [vmem:[#allocation2 + $0x78] sm:$0xff] %v6701
        %6766 = vst [vmem:[#allocation2 + $0x80] sm:$0xff] %v6702
        %6767 = vst [vmem:[#allocation2 + $0x88] sm:$0xff] %v6703
        %6768 = vst [vmem:[#allocation2 + $0x90] sm:$0xff] %v6704
        %6769 = vst [vmem:[#allocation2 + $0x98] sm:$0xff] %v6705
        %6770 = vst [vmem:[#allocation2 + $0xa0] sm:$0xff] %v6706
        %6771 = vst [vmem:[#allocation2 + $0xa8] sm:$0xff] %v6707
        %6772 = vst [vmem:[#allocation2 + $0xb0] sm:$0xff] %v6708
        %6773 = vst [vmem:[#allocation2 + $0xb8] sm:$0xff] %v6709
        %6774 = vst [vmem:[#allocation2 + $0xc0] sm:$0xff] %v6710
        %6775 = vst [vmem:[#allocation2 + $0xc8] sm:$0xff] %v6711
        %6776 = vst [vmem:[#allocation2 + $0xd0] sm:$0xff] %v6712
        %6777 = vst [vmem:[#allocation2 + $0xd8] sm:$0xff] %v6713
        %6778 = vst [vmem:[#allocation2 + $0xe0] sm:$0xff] %v6714
        %6779 = vst [vmem:[#allocation2 + $0xe8] sm:$0xff] %v6715
        %6780 = vst [vmem:[#allocation2 + $0xf0] sm:$0xff] %v6716
        %6781 = vst [vmem:[#allocation2 + $0xf8] sm:$0xff] %v6717
        %6782 = vst [vmem:[#allocation2 + $0x100] sm:$0xff] %v6718
        %6783 = vst [vmem:[#allocation2 + $0x108] sm:$0xff] %v6719
        %6784 = vst [vmem:[#allocation2 + $0x110] sm:$0xff] %v6720
        %6785 = vst [vmem:[#allocation2 + $0x118] sm:$0xff] %v6721
        %6786 = vst [vmem:[#allocation2 + $0x120] sm:$0xff] %v6722
        %6787 = vst [vmem:[#allocation2 + $0x128] sm:$0xff] %v6723
        %6788 = vst [vmem:[#allocation2 + $0x130] sm:$0xff] %v6724
        %6789 = vst [vmem:[#allocation2 + $0x138] sm:$0xff] %v6725
        %6790 = vst [vmem:[#allocation2 + $0x140] sm:$0xff] %v6726
        %6791 = vst [vmem:[#allocation2 + $0x148] sm:$0xff] %v6727
        %6792 = vst [vmem:[#allocation2 + $0x150] sm:$0xff] %v6728
        %6793 = vst [vmem:[#allocation2 + $0x158] sm:$0xff] %v6729
        %6794 = vst [vmem:[#allocation2 + $0x160] sm:$0xff] %v6730
        %6795 = vst [vmem:[#allocation2 + $0x168] sm:$0xff] %v6731
        %6796 = vst [vmem:[#allocation2 + $0x170] sm:$0xff] %v6732
        %6797 = vst [vmem:[#allocation2 + $0x178] sm:$0xff] %v6733
        %6798 = vst [vmem:[#allocation2 + $0x180] sm:$0xff] %v6734
        %6799 = vst [vmem:[#allocation2 + $0x188] sm:$0xff] %v6735
        %6800 = vst [vmem:[#allocation2 + $0x190] sm:$0xff] %v6736
        %6801 = vst [vmem:[#allocation2 + $0x198] sm:$0xff] %v6737
        %6802 = vst [vmem:[#allocation2 + $0x1a0] sm:$0xff] %v6738
        %6803 = vst [vmem:[#allocation2 + $0x1a8] sm:$0xff] %v6739
        %6804 = vst [vmem:[#allocation2 + $0x1b0] sm:$0xff] %v6740
        %6805 = vst [vmem:[#allocation2 + $0x1b8] sm:$0xff] %v6741
        %6806 = vst [vmem:[#allocation2 + $0x1c0] sm:$0xff] %v6742
        %6807 = vst [vmem:[#allocation2 + $0x1c8] sm:$0xff] %v6743
        %6808 = vst [vmem:[#allocation2 + $0x1d0] sm:$0xff] %v6744
        %6809 = vst [vmem:[#allocation2 + $0x1d8] sm:$0xff] %v6745
        %6810 = vst [vmem:[#allocation2 + $0x1e0] sm:$0xff] %v6746
        %6811 = vst [vmem:[#allocation2 + $0x1e8] sm:$0xff] %v6747
        %6812 = vst [vmem:[#allocation2 + $0x1f0] sm:$0xff] %v6748
        %6813 = vst [vmem:[#allocation2 + $0x1f8] sm:$0xff] %v6749
        %v6814 = vld [vmem:[#allocation2] sm:$0xff]
        %v6815 = vld [vmem:[#allocation2 + $0x8] sm:$0xff]
        %v6816 = vld [vmem:[#allocation2 + $0x10] sm:$0xff]
        %v6817 = vld [vmem:[#allocation2 + $0x18] sm:$0xff]
        %v6818 = vld [vmem:[#allocation2 + $0x20] sm:$0xff]
        %v6819 = vld [vmem:[#allocation2 + $0x28] sm:$0xff]
        %v6820 = vld [vmem:[#allocation2 + $0x30] sm:$0xff]
        %v6821 = vld [vmem:[#allocation2 + $0x38] sm:$0xff]
        %v6822 = vld [vmem:[#allocation2 + $0x40] sm:$0xff]
        %v6823 = vld [vmem:[#allocation2 + $0x48] sm:$0xff]
        %v6824 = vld [vmem:[#allocation2 + $0x50] sm:$0xff]
        %v6825 = vld [vmem:[#allocation2 + $0x58] sm:$0xff]
        %v6826 = vld [vmem:[#allocation2 + $0x60] sm:$0xff]
        %v6827 = vld [vmem:[#allocation2 + $0x68] sm:$0xff]
        %v6828 = vld [vmem:[#allocation2 + $0x70] sm:$0xff]
        %v6829 = vld [vmem:[#allocation2 + $0x78] sm:$0xff]
        %v6830 = vld [vmem:[#allocation2 + $0x80] sm:$0xff]
        %v6831 = vld [vmem:[#allocation2 + $0x88] sm:$0xff]
        %v6832 = vld [vmem:[#allocation2 + $0x90] sm:$0xff]
        %v6833 = vld [vmem:[#allocation2 + $0x98] sm:$0xff]
        %v6834 = vld [vmem:[#allocation2 + $0xa0] sm:$0xff]
        %v6835 = vld [vmem:[#allocation2 + $0xa8] sm:$0xff]
        %v6836 = vld [vmem:[#allocation2 + $0xb0] sm:$0xff]
        %v6837 = vld [vmem:[#allocation2 + $0xb8] sm:$0xff]
        %v6838 = vld [vmem:[#allocation2 + $0xc0] sm:$0xff]
        %v6839 = vld [vmem:[#allocation2 + $0xc8] sm:$0xff]
        %v6840 = vld [vmem:[#allocation2 + $0xd0] sm:$0xff]
        %v6841 = vld [vmem:[#allocation2 + $0xd8] sm:$0xff]
        %v6842 = vld [vmem:[#allocation2 + $0xe0] sm:$0xff]
        %v6843 = vld [vmem:[#allocation2 + $0xe8] sm:$0xff]
        %v6844 = vld [vmem:[#allocation2 + $0xf0] sm:$0xff]
        %v6845 = vld [vmem:[#allocation2 + $0xf8] sm:$0xff]
        %v6846 = vld [vmem:[#allocation2 + $0x100] sm:$0xff]
        %v6847 = vld [vmem:[#allocation2 + $0x108] sm:$0xff]
        %v6848 = vld [vmem:[#allocation2 + $0x110] sm:$0xff]
        %v6849 = vld [vmem:[#allocation2 + $0x118] sm:$0xff]
        %v6850 = vld [vmem:[#allocation2 + $0x120] sm:$0xff]
        %v6851 = vld [vmem:[#allocation2 + $0x128] sm:$0xff]
        %v6852 = vld [vmem:[#allocation2 + $0x130] sm:$0xff]
        %v6853 = vld [vmem:[#allocation2 + $0x138] sm:$0xff]
        %v6854 = vld [vmem:[#allocation2 + $0x140] sm:$0xff]
        %v6855 = vld [vmem:[#allocation2 + $0x148] sm:$0xff]
        %v6856 = vld [vmem:[#allocation2 + $0x150] sm:$0xff]
        %v6857 = vld [vmem:[#allocation2 + $0x158] sm:$0xff]
        %v6858 = vld [vmem:[#allocation2 + $0x160] sm:$0xff]
        %v6859 = vld [vmem:[#allocation2 + $0x168] sm:$0xff]
        %v6860 = vld [vmem:[#allocation2 + $0x170] sm:$0xff]
        %v6861 = vld [vmem:[#allocation2 + $0x178] sm:$0xff]
        %v6862 = vld [vmem:[#allocation2 + $0x180] sm:$0xff]
        %v6863 = vld [vmem:[#allocation2 + $0x188] sm:$0xff]
        %v6864 = vld [vmem:[#allocation2 + $0x190] sm:$0xff]
        %v6865 = vld [vmem:[#allocation2 + $0x198] sm:$0xff]
        %v6866 = vld [vmem:[#allocation2 + $0x1a0] sm:$0xff]
        %v6867 = vld [vmem:[#allocation2 + $0x1a8] sm:$0xff]
        %v6868 = vld [vmem:[#allocation2 + $0x1b0] sm:$0xff]
        %v6869 = vld [vmem:[#allocation2 + $0x1b8] sm:$0xff]
        %v6870 = vld [vmem:[#allocation2 + $0x1c0] sm:$0xff]
        %v6871 = vld [vmem:[#allocation2 + $0x1c8] sm:$0xff]
        %v6872 = vld [vmem:[#allocation2 + $0x1d0] sm:$0xff]
        %v6873 = vld [vmem:[#allocation2 + $0x1d8] sm:$0xff]
        %v6874 = vld [vmem:[#allocation2 + $0x1e0] sm:$0xff]
        %v6875 = vld [vmem:[#allocation2 + $0x1e8] sm:$0xff]
        %v6876 = vld [vmem:[#allocation2 + $0x1f0] sm:$0xff]
        %v6877 = vld [vmem:[#allocation2 + $0x1f8] sm:$0xff]
        %v6878 = vld [vmem:[%s2] sm:$0x1]
        %v6880 = vlaneseq
        %v6881 = vshrl.u32 %v6880, 7
        %v6882 = vsub.s32 0, %v6881
        %v6883 = vrot.slane %v6878, %v6882
        %v6885 = vadd.f32 %v6814, %v6883
        %v6886 = vadd.f32 %v6815, %v6883
        %v6887 = vadd.f32 %v6816, %v6883
        %v6888 = vadd.f32 %v6817, %v6883
        %v6889 = vadd.f32 %v6818, %v6883
        %v6890 = vadd.f32 %v6819, %v6883
        %v6891 = vadd.f32 %v6820, %v6883
        %v6892 = vadd.f32 %v6821, %v6883
        %v6893 = vadd.f32 %v6822, %v6883
        %v6894 = vadd.f32 %v6823, %v6883
        %v6895 = vadd.f32 %v6824, %v6883
        %v6896 = vadd.f32 %v6825, %v6883
        %v6897 = vadd.f32 %v6826, %v6883
        %v6898 = vadd.f32 %v6827, %v6883
        %v6899 = vadd.f32 %v6828, %v6883
        %v6900 = vadd.f32 %v6829, %v6883
        %v6901 = vadd.f32 %v6830, %v6883
        %v6902 = vadd.f32 %v6831, %v6883
        %v6903 = vadd.f32 %v6832, %v6883
        %v6904 = vadd.f32 %v6833, %v6883
        %v6905 = vadd.f32 %v6834, %v6883
        %v6906 = vadd.f32 %v6835, %v6883
        %v6907 = vadd.f32 %v6836, %v6883
        %v6908 = vadd.f32 %v6837, %v6883
        %v6909 = vadd.f32 %v6838, %v6883
        %v6910 = vadd.f32 %v6839, %v6883
        %v6911 = vadd.f32 %v6840, %v6883
        %v6912 = vadd.f32 %v6841, %v6883
        %v6913 = vadd.f32 %v6842, %v6883
        %v6914 = vadd.f32 %v6843, %v6883
        %v6915 = vadd.f32 %v6844, %v6883
        %v6916 = vadd.f32 %v6845, %v6883
        %v6917 = vadd.f32 %v6846, %v6883
        %v6918 = vadd.f32 %v6847, %v6883
        %v6919 = vadd.f32 %v6848, %v6883
        %v6920 = vadd.f32 %v6849, %v6883
        %v6921 = vadd.f32 %v6850, %v6883
        %v6922 = vadd.f32 %v6851, %v6883
        %v6923 = vadd.f32 %v6852, %v6883
        %v6924 = vadd.f32 %v6853, %v6883
        %v6925 = vadd.f32 %v6854, %v6883
        %v6926 = vadd.f32 %v6855, %v6883
        %v6927 = vadd.f32 %v6856, %v6883
        %v6928 = vadd.f32 %v6857, %v6883
        %v6929 = vadd.f32 %v6858, %v6883
        %v6930 = vadd.f32 %v6859, %v6883
        %v6931 = vadd.f32 %v6860, %v6883
        %v6932 = vadd.f32 %v6861, %v6883
        %v6933 = vadd.f32 %v6862, %v6883
        %v6934 = vadd.f32 %v6863, %v6883
        %v6935 = vadd.f32 %v6864, %v6883
        %v6936 = vadd.f32 %v6865, %v6883
        %v6937 = vadd.f32 %v6866, %v6883
        %v6938 = vadd.f32 %v6867, %v6883
        %v6939 = vadd.f32 %v6868, %v6883
        %v6940 = vadd.f32 %v6869, %v6883
        %v6941 = vadd.f32 %v6870, %v6883
        %v6942 = vadd.f32 %v6871, %v6883
        %v6943 = vadd.f32 %v6872, %v6883
        %v6944 = vadd.f32 %v6873, %v6883
        %v6945 = vadd.f32 %v6874, %v6883
        %v6946 = vadd.f32 %v6875, %v6883
        %v6947 = vadd.f32 %v6876, %v6883
        %v6948 = vadd.f32 %v6877, %v6883
        %v6949 = vmax.f32 %v6885, 0.0
        %v6950 = vmax.f32 %v6886, 0.0
        %v6951 = vmax.f32 %v6887, 0.0
        %v6952 = vmax.f32 %v6888, 0.0
        %v6953 = vmax.f32 %v6889, 0.0
        %v6954 = vmax.f32 %v6890, 0.0
        %v6955 = vmax.f32 %v6891, 0.0
        %v6956 = vmax.f32 %v6892, 0.0
        %v6957 = vmax.f32 %v6893, 0.0
        %v6958 = vmax.f32 %v6894, 0.0
        %v6959 = vmax.f32 %v6895, 0.0
        %v6960 = vmax.f32 %v6896, 0.0
        %v6961 = vmax.f32 %v6897, 0.0
        %v6962 = vmax.f32 %v6898, 0.0
        %v6963 = vmax.f32 %v6899, 0.0
        %v6964 = vmax.f32 %v6900, 0.0
        %v6965 = vmax.f32 %v6901, 0.0
        %v6966 = vmax.f32 %v6902, 0.0
        %v6967 = vmax.f32 %v6903, 0.0
        %v6968 = vmax.f32 %v6904, 0.0
        %v6969 = vmax.f32 %v6905, 0.0
        %v6970 = vmax.f32 %v6906, 0.0
        %v6971 = vmax.f32 %v6907, 0.0
        %v6972 = vmax.f32 %v6908, 0.0
        %v6973 = vmax.f32 %v6909, 0.0
        %v6974 = vmax.f32 %v6910, 0.0
        %v6975 = vmax.f32 %v6911, 0.0
        %v6976 = vmax.f32 %v6912, 0.0
        %v6977 = vmax.f32 %v6913, 0.0
        %v6978 = vmax.f32 %v6914, 0.0
        %v6979 = vmax.f32 %v6915, 0.0
        %v6980 = vmax.f32 %v6916, 0.0
        %v6981 = vmax.f32 %v6917, 0.0
        %v6982 = vmax.f32 %v6918, 0.0
        %v6983 = vmax.f32 %v6919, 0.0
        %v6984 = vmax.f32 %v6920, 0.0
        %v6985 = vmax.f32 %v6921, 0.0
        %v6986 = vmax.f32 %v6922, 0.0
        %v6987 = vmax.f32 %v6923, 0.0
        %v6988 = vmax.f32 %v6924, 0.0
        %v6989 = vmax.f32 %v6925, 0.0
        %v6990 = vmax.f32 %v6926, 0.0
        %v6991 = vmax.f32 %v6927, 0.0
        %v6992 = vmax.f32 %v6928, 0.0
        %v6993 = vmax.f32 %v6929, 0.0
        %v6994 = vmax.f32 %v6930, 0.0
        %v6995 = vmax.f32 %v6931, 0.0
        %v6996 = vmax.f32 %v6932, 0.0
        %v6997 = vmax.f32 %v6933, 0.0
        %v6998 = vmax.f32 %v6934, 0.0
        %v6999 = vmax.f32 %v6935, 0.0
        %v7000 = vmax.f32 %v6936, 0.0
        %v7001 = vmax.f32 %v6937, 0.0
        %v7002 = vmax.f32 %v6938, 0.0
        %v7003 = vmax.f32 %v6939, 0.0
        %v7004 = vmax.f32 %v6940, 0.0
        %v7005 = vmax.f32 %v6941, 0.0
        %v7006 = vmax.f32 %v6942, 0.0
        %v7007 = vmax.f32 %v6943, 0.0
        %v7008 = vmax.f32 %v6944, 0.0
        %v7009 = vmax.f32 %v6945, 0.0
        %v7010 = vmax.f32 %v6946, 0.0
        %v7011 = vmax.f32 %v6947, 0.0
        %v7012 = vmax.f32 %v6948, 0.0
        %7013 = vst [vmem:[%s177] sm:$0xff] %v6949
        %7014 = vst [vmem:[%s177 + $0x8] sm:$0xff] %v6950
        %7015 = vst [vmem:[%s177 + $0x10] sm:$0xff] %v6951
        %7016 = vst [vmem:[%s177 + $0x18] sm:$0xff] %v6952
        %7017 = vst [vmem:[%s177 + $0x20] sm:$0xff] %v6953
        %7018 = vst [vmem:[%s177 + $0x28] sm:$0xff] %v6954
        %7019 = vst [vmem:[%s177 + $0x30] sm:$0xff] %v6955
        %7020 = vst [vmem:[%s177 + $0x38] sm:$0xff] %v6956
        %7021 = vst [vmem:[%s177 + $0x40] sm:$0xff] %v6957
        %7022 = vst [vmem:[%s177 + $0x48] sm:$0xff] %v6958
        %7023 = vst [vmem:[%s177 + $0x50] sm:$0xff] %v6959
        %7024 = vst [vmem:[%s177 + $0x58] sm:$0xff] %v6960
        %7025 = vst [vmem:[%s177 + $0x60] sm:$0xff] %v6961
        %7026 = vst [vmem:[%s177 + $0x68] sm:$0xff] %v6962
        %7027 = vst [vmem:[%s177 + $0x70] sm:$0xff] %v6963
        %7028 = vst [vmem:[%s177 + $0x78] sm:$0xff] %v6964
        %7029 = vst [vmem:[%s177 + $0x80] sm:$0xff] %v6965
        %7030 = vst [vmem:[%s177 + $0x88] sm:$0xff] %v6966
        %7031 = vst [vmem:[%s177 + $0x90] sm:$0xff] %v6967
        %7032 = vst [vmem:[%s177 + $0x98] sm:$0xff] %v6968
        %7033 = vst [vmem:[%s177 + $0xa0] sm:$0xff] %v6969
        %7034 = vst [vmem:[%s177 + $0xa8] sm:$0xff] %v6970
        %7035 = vst [vmem:[%s177 + $0xb0] sm:$0xff] %v6971
        %7036 = vst [vmem:[%s177 + $0xb8] sm:$0xff] %v6972
        %7037 = vst [vmem:[%s177 + $0xc0] sm:$0xff] %v6973
        %7038 = vst [vmem:[%s177 + $0xc8] sm:$0xff] %v6974
        %7039 = vst [vmem:[%s177 + $0xd0] sm:$0xff] %v6975
        %7040 = vst [vmem:[%s177 + $0xd8] sm:$0xff] %v6976
        %7041 = vst [vmem:[%s177 + $0xe0] sm:$0xff] %v6977
        %7042 = vst [vmem:[%s177 + $0xe8] sm:$0xff] %v6978
        %7043 = vst [vmem:[%s177 + $0xf0] sm:$0xff] %v6979
        %7044 = vst [vmem:[%s177 + $0xf8] sm:$0xff] %v6980
        %7045 = vst [vmem:[%s177 + $0x100] sm:$0xff] %v6981
        %7046 = vst [vmem:[%s177 + $0x108] sm:$0xff] %v6982
        %7047 = vst [vmem:[%s177 + $0x110] sm:$0xff] %v6983
        %7048 = vst [vmem:[%s177 + $0x118] sm:$0xff] %v6984
        %7049 = vst [vmem:[%s177 + $0x120] sm:$0xff] %v6985
        %7050 = vst [vmem:[%s177 + $0x128] sm:$0xff] %v6986
        %7051 = vst [vmem:[%s177 + $0x130] sm:$0xff] %v6987
        %7052 = vst [vmem:[%s177 + $0x138] sm:$0xff] %v6988
        %7053 = vst [vmem:[%s177 + $0x140] sm:$0xff] %v6989
        %7054 = vst [vmem:[%s177 + $0x148] sm:$0xff] %v6990
        %7055 = vst [vmem:[%s177 + $0x150] sm:$0xff] %v6991
        %7056 = vst [vmem:[%s177 + $0x158] sm:$0xff] %v6992
        %7057 = vst [vmem:[%s177 + $0x160] sm:$0xff] %v6993
        %7058 = vst [vmem:[%s177 + $0x168] sm:$0xff] %v6994
        %7059 = vst [vmem:[%s177 + $0x170] sm:$0xff] %v6995
        %7060 = vst [vmem:[%s177 + $0x178] sm:$0xff] %v6996
        %7061 = vst [vmem:[%s177 + $0x180] sm:$0xff] %v6997
        %7062 = vst [vmem:[%s177 + $0x188] sm:$0xff] %v6998
        %7063 = vst [vmem:[%s177 + $0x190] sm:$0xff] %v6999
        %7064 = vst [vmem:[%s177 + $0x198] sm:$0xff] %v7000
        %7065 = vst [vmem:[%s177 + $0x1a0] sm:$0xff] %v7001
        %7066 = vst [vmem:[%s177 + $0x1a8] sm:$0xff] %v7002
        %7067 = vst [vmem:[%s177 + $0x1b0] sm:$0xff] %v7003
        %7068 = vst [vmem:[%s177 + $0x1b8] sm:$0xff] %v7004
        %7069 = vst [vmem:[%s177 + $0x1c0] sm:$0xff] %v7005
        %7070 = vst [vmem:[%s177 + $0x1c8] sm:$0xff] %v7006
        %7071 = vst [vmem:[%s177 + $0x1d0] sm:$0xff] %v7007
        %7072 = vst [vmem:[%s177 + $0x1d8] sm:$0xff] %v7008
        %7073 = vst [vmem:[%s177 + $0x1e0] sm:$0xff] %v7009
        %7074 = vst [vmem:[%s177 + $0x1e8] sm:$0xff] %v7010
        %7075 = vst [vmem:[%s177 + $0x1f0] sm:$0xff] %v7011
        %7076 = vst [vmem:[%s177 + $0x1f8] sm:$0xff] %v7012
        %s7077 = sand.u32 %s107, 1
        %s7078 = scalar_lea.sflag [#allocation4], %s7077
        %s7079 = sand.u32 %s107, 1
        %s7080 = smul.addr %s7079, 512
        %s7081 = scalar_lea.vmem [#allocation3], %s7080
        // Predicated region
        $region33: #{tpu_custom_call.1} parent=31 // pred_check
          %p7082 = pneg %p117
        $region34: #{tpu_custom_call.1} parent=31 // pred_check_branch
          %7084 = sbr.rel (%p7082) target = $region36
        $region35: #{tpu_custom_call.1} parent=31 // pred_region
          %s7085 = smul.u32 16, %s22
          %s7087 = ssub.s32 8192, 8192
          %7088 = vsyncadd %s7078, %s7087
          %s7089 = smul.addr %s7085, 4
          %s7090 = smul.addr %s21, 128
          %s7091 = sadd.s32 %s7089, %s7090
          %s7092 = smul.addr %s7091, 128
          %s7093 = scalar_lea.hbm %s3, %s7092
          %s7094 = sshll.u32 %s7081, 4
          %s7095 = int_to_ptr.vmem [resolvable:$true] %s7094
          %7100 = dma.vmem_to_hbm [thread:$0]  %s7095, 8192, %s7093, %s7078, 128, 128, 8
        $region36: #{tpu_custom_call.1} parent=31 // pred_fallthru
          _
      $region32: #{tpu_custom_call.1} parent=5 // pred_fallthru
        _
      %p7101 = scmp.le.s32.totalorder 2, %s12
      // Predicated region
      $region37: #{tpu_custom_call.1} parent=5 // pred_check
        %p7102 = pneg %p7101
      $region38: #{tpu_custom_call.1} parent=5 // pred_check_branch
        %7104 = sbr.rel (%p7102) target = $region40
      $region39: #{tpu_custom_call.1} parent=5 // pred_region
        %s7105 = ssub.s32 %s12, 2
        // Predicated region
        $region41: #{tpu_custom_call.1} parent=39 // pred_check
          %p7106 = pneg %p123
        $region42: #{tpu_custom_call.1} parent=39 // pred_check_branch
          %7108 = sbr.rel (%p7106) target = $region44
        $region43: #{tpu_custom_call.1} parent=39 // pred_region
          %s7109 = sand.u32 %s108, 1
          %s7110 = scalar_lea.sflag [#allocation4], %s7109
          %s7111 = sand.u32 %s108, 1
          %s7112 = smul.addr %s7111, 512
          %s7113 = scalar_lea.vmem [#allocation3], %s7112
          %7114 = dma.done %s7110, 8192
        $region44: #{tpu_custom_call.1} parent=39 // pred_fallthru
          _
      $region40: #{tpu_custom_call.1} parent=5 // pred_fallthru
        _
    $region6: #{tpu_custom_call.1} parent=1 // loop_footer
      %s16 = sadd.s32 1, %s12
    $region7: #{tpu_custom_call.1} parent=1 // loop_footer_branch
      %11 = sbr.rel target = $region3
    $region8: #{tpu_custom_call.1} parent=1 // loop_exit
      _
    %7115 = vsyncpa [#allocation4], 1
    %s7116 = scalar_lea.sflag [#allocation4], 1
    %7117 = vsyncpa %s7116, 1

</llo_original>
